<compile_context>
chip_gen: v5e
topology: v5e:2x2
jax: 0.10.0
libtpu: 0.0.40
codegen_flags: <defaults>
</compile_context>

<pallas_src>
import functools
import math

import jax
import jax.numpy as jnp
from jax.experimental import pallas as pl
from jax.experimental.pallas import tpu as pltpu

EPS = 1e-5  # torch.nn.BatchNorm2d default


def _partial_stats(x, valid):
    """Per-image partial BN stats [sum; sum_of_squares] over valid rows."""
    xm = x * valid
    return jnp.concatenate([jnp.sum(xm, axis=0, keepdims=True),
                            jnp.sum(xm * x, axis=0, keepdims=True)], axis=0)


# --------------------------- stage A: conv1 (+ 1x1 shortcut) -----------------
def _stage_a_kernel(H, W, Cin, Cout, has_extra, *refs):
    if has_extra:
        (xp_ref, valid_ref, w1_ref, ws_ref,
         y1_ref, st1_ref, ysc_ref, stsc_ref) = refs
    else:
        xp_ref, valid_ref, w1_ref, y1_ref, st1_ref = refs

    WP = W + 2
    PG = (H + 2) * WP          # padded-grid rows per image
    LOUT = H * WP - 2          # compact conv-output rows per image
    OFF = WP + 1               # padded-grid row of output pixel (0, 0)

    x = xp_ref[0]              # (PG, Cin) bf16, zero-padded image (flattened)
    valid = valid_ref[...]     # (LOUT, 1) f32, 0 on wrapped (w >= W) rows

    # conv1: nine contiguous row-offset taps, accumulated on the MXU in f32.
    acc = jnp.zeros((LOUT, Cout), jnp.float32)
    for kh in range(3):
        for kw in range(3):
            d = kh * WP + kw
            acc = acc + jnp.dot(x[d:d + LOUT, :], w1_ref[kh, kw],
                                preferred_element_type=jnp.float32)

    st1_ref[0] = _partial_stats(acc, valid)

    # Store conv1's raw output on the padded grid (zero border): after BN1 +
    # ReLU + interior masking in stage B this is exactly conv2's padded input.
    y1_ref[0, :OFF, :] = jnp.zeros((OFF, Cout), jnp.float32)
    y1_ref[0, OFF:OFF + LOUT, :] = acc
    y1_ref[0, PG - OFF:, :] = jnp.zeros((OFF, Cout), jnp.float32)

    if has_extra:
        # 1x1 shortcut conv on the interior pixels (no separate x input).
        sc = jnp.dot(x[OFF:OFF + LOUT, :], ws_ref[...],
                     preferred_element_type=jnp.float32)
        stsc_ref[0] = _partial_stats(sc, valid)
        ysc_ref[0] = sc


# --------------------------- stage B: BN1 + ReLU + conv2 ---------------------
def _stage_b_kernel(H, W, Cout, *refs):
    (y1_ref, interior_ref, valid_ref, s1_ref, b1_ref, w2_ref,
     y2_ref, st2_ref) = refs

    WP = W + 2
    LOUT = H * WP - 2

    # Fused BN1 (precomputed scale/shift) + ReLU; the interior mask recreates
    # the zero padding conv2 needs (and zeroes the wrapped rows).
    a = jnp.maximum(y1_ref[0] * s1_ref[...] + b1_ref[...], 0.0)
    a = (a * interior_ref[...]).astype(jnp.bfloat16)

    acc = jnp.zeros((LOUT, Cout), jnp.float32)
    for kh in range(3):
        for kw in range(3):
            d = kh * WP + kw
            acc = acc + jnp.dot(a[d:d + LOUT, :], w2_ref[kh, kw],
                                preferred_element_type=jnp.float32)

    st2_ref[0] = _partial_stats(acc, valid_ref[...])
    y2_ref[0] = acc


# ------------------ stage C: BN2 + shortcut + add + ReLU ---------------------
def _stage_c_kernel(H, W, has_extra, *refs):
    if has_extra:
        y2_ref, s2_ref, b2_ref, ysc_ref, ss_ref, bs_ref, o_ref = refs
    else:
        y2_ref, s2_ref, b2_ref, xf_ref, o_ref = refs

    WP = W + 2
    LOUT = H * WP - 2
    OFF = WP + 1

    out = y2_ref[0] * s2_ref[...] + b2_ref[...]
    if has_extra:
        out = out + (ysc_ref[0] * ss_ref[...] + bs_ref[...])
    else:
        out = out + xf_ref[0, OFF:OFF + LOUT, :]      # identity shortcut (f32)
    o_ref[0] = jnp.maximum(out, 0.0)


# ------------------------------- wrapper -------------------------------------
def _vmem_limit(blocks):
    """Per-call scoped-VMEM budget from (lane/sublane-padded) block bytes,
    x2 for double buffering, plus compiler headroom."""
    total = 0
    for shape, dtype in blocks:
        s = list(shape)
        s[-1] = -(-s[-1] // 128) * 128
        if len(s) >= 2:
            s[-2] = -(-s[-2] // 8) * 8
        itemsize = 2 if dtype == jnp.bfloat16 else 4
        total += math.prod(s) * itemsize
    return int(min(max(2 * total + (8 << 20), 16 << 20), 96 << 20))


def _finalize_bn(st, gamma, beta, count):
    """Reduce per-image partial stats to fused BN scale/shift (x*s + b)."""
    mean = jnp.sum(st[:, 0, :], axis=0) / count
    var = jnp.maximum(jnp.sum(st[:, 1, :], axis=0) / count - mean * mean, 0.0)
    scale = gamma.reshape(-1) * jax.lax.rsqrt(var + EPS)
    shift = beta.reshape(-1) - mean * scale
    return scale.reshape(1, -1), shift.reshape(1, -1)


@functools.partial(jax.jit, static_argnames=("stride",))
def resblk_forward(x_nchw, params, stride=1):
    assert stride == 1, "stride > 1 not implemented"   # TODO(synk): see header
    N, Cin, H, W = x_nchw.shape
    Cout = params["w1"].shape[-1]
    has_extra = Cin != Cout

    WP, HP = W + 2, H + 2
    PG, LOUT = HP * WP, H * WP - 2
    count = float(N * H * W)

    def _cp(blocks):
        return pltpu.CompilerParams(dimension_semantics=("parallel",),
                                    vmem_limit_bytes=_vmem_limit(blocks))

    # NHWC, spatial zero-pad, flatten the padded grid per image.
    x_nhwc = jnp.transpose(x_nchw, (0, 2, 3, 1)).astype(jnp.float32)
    xflat32 = jnp.pad(x_nhwc, ((0, 0), (1, 1), (1, 1), (0, 0))).reshape(N, PG, Cin)
    xflat = xflat32.astype(jnp.bfloat16)              # bf16 copy for the MXU

    w1 = params["w1"].astype(jnp.bfloat16)
    w2 = params["w2"].astype(jnp.bfloat16)
    # conv biases cb1/cb2/cbs are canceled by training-mode BN -> not applied.

    # Row-validity masks on the flattened grids (tiny, shared by all images).
    valid = (jnp.arange(LOUT) % WP < W).astype(jnp.float32).reshape(LOUT, 1)
    rr = jnp.arange(PG)
    hh, ww = rr // WP, rr % WP
    interior = ((hh >= 1) & (hh <= H) & (ww >= 1) & (ww <= W)
                ).astype(jnp.float32).reshape(PG, 1)

    img3 = lambda i: (i, 0, 0)
    fix2 = lambda i: (0, 0)
    fix4 = lambda i: (0, 0, 0, 0)

    # ---------------- stage A: conv1 (+ 1x1 shortcut) + partial stats --------
    a_inputs = [xflat, valid, w1]
    a_in_specs = [pl.BlockSpec((1, PG, Cin), img3),
                  pl.BlockSpec((LOUT, 1), fix2),
                  pl.BlockSpec((3, 3, Cin, Cout), fix4)]
    a_out_shape = [jax.ShapeDtypeStruct((N, PG, Cout), jnp.float32),
                   jax.ShapeDtypeStruct((N, 2, Cout), jnp.float32)]
    a_out_specs = [pl.BlockSpec((1, PG, Cout), img3),
                   pl.BlockSpec((1, 2, Cout), img3)]
    a_blocks = [((1, PG, Cin), jnp.bfloat16), ((LOUT, 1), jnp.float32),
                ((3, 3, Cin, Cout), jnp.bfloat16),
                ((1, PG, Cout), jnp.float32), ((1, 2, Cout), jnp.float32)]
    if has_extra:
        a_inputs.append(params["ws"].astype(jnp.bfloat16))
        a_in_specs.append(pl.BlockSpec((Cin, Cout), fix2))
        a_out_shape += [jax.ShapeDtypeStruct((N, LOUT, Cout), jnp.float32),
                        jax.ShapeDtypeStruct((N, 2, Cout), jnp.float32)]
        a_out_specs += [pl.BlockSpec((1, LOUT, Cout), img3),
                        pl.BlockSpec((1, 2, Cout), img3)]
        a_blocks += [((Cin, Cout), jnp.bfloat16),
                     ((1, LOUT, Cout), jnp.float32), ((1, 2, Cout), jnp.float32)]

    a_out = pl.pallas_call(
        functools.partial(_stage_a_kernel, H, W, Cin, Cout, has_extra),
        grid=(N,), in_specs=a_in_specs, out_specs=a_out_specs,
        out_shape=a_out_shape, compiler_params=_cp(a_blocks),
    )(*a_inputs)
    if has_extra:
        y1, st1, ysc, stsc = a_out
    else:
        y1, st1 = a_out

    scale1, shift1 = _finalize_bn(st1, params["g1"], params["be1"], count)

    # ---------------- stage B: BN1 + ReLU + conv2 + partial stats ------------
    b_blocks = [((1, PG, Cout), jnp.float32), ((PG, 1), jnp.float32),
                ((LOUT, 1), jnp.float32), ((1, Cout), jnp.float32),
                ((1, Cout), jnp.float32), ((3, 3, Cout, Cout), jnp.bfloat16),
                ((1, LOUT, Cout), jnp.float32), ((1, 2, Cout), jnp.float32)]
    y2, st2 = pl.pallas_call(
        functools.partial(_stage_b_kernel, H, W, Cout),
        grid=(N,),
        in_specs=[pl.BlockSpec((1, PG, Cout), img3),
                  pl.BlockSpec((PG, 1), fix2),
                  pl.BlockSpec((LOUT, 1), fix2),
                  pl.BlockSpec((1, Cout), fix2),
                  pl.BlockSpec((1, Cout), fix2),
                  pl.BlockSpec((3, 3, Cout, Cout), fix4)],
        out_specs=[pl.BlockSpec((1, LOUT, Cout), img3),
                   pl.BlockSpec((1, 2, Cout), img3)],
        out_shape=[jax.ShapeDtypeStruct((N, LOUT, Cout), jnp.float32),
                   jax.ShapeDtypeStruct((N, 2, Cout), jnp.float32)],
        compiler_params=_cp(b_blocks),
    )(y1, interior, valid, scale1, shift1, w2)

    scale2, shift2 = _finalize_bn(st2, params["g2"], params["be2"], count)

    # ---------------- stage C: BN2 + shortcut + add + ReLU -------------------
    c_inputs = [y2, scale2, shift2]
    c_in_specs = [pl.BlockSpec((1, LOUT, Cout), img3),
                  pl.BlockSpec((1, Cout), fix2),
                  pl.BlockSpec((1, Cout), fix2)]
    c_blocks = [((1, LOUT, Cout), jnp.float32), ((1, Cout), jnp.float32),
                ((1, Cout), jnp.float32), ((1, LOUT, Cout), jnp.float32)]
    if has_extra:
        scale_s, shift_s = _finalize_bn(stsc, params["gs"], params["bes"], count)
        c_inputs += [ysc, scale_s, shift_s]
        c_in_specs += [pl.BlockSpec((1, LOUT, Cout), img3),
                       pl.BlockSpec((1, Cout), fix2),
                       pl.BlockSpec((1, Cout), fix2)]
        c_blocks += [((1, LOUT, Cout), jnp.float32), ((1, Cout), jnp.float32),
                     ((1, Cout), jnp.float32)]
    else:
        c_inputs.append(xflat32)
        c_in_specs.append(pl.BlockSpec((1, PG, Cin), img3))
        c_blocks.append(((1, PG, Cin), jnp.float32))

    out_c = pl.pallas_call(
        functools.partial(_stage_c_kernel, H, W, has_extra),
        grid=(N,), in_specs=c_in_specs,
        out_specs=pl.BlockSpec((1, LOUT, Cout), img3),
        out_shape=jax.ShapeDtypeStruct((N, LOUT, Cout), jnp.float32),
        compiler_params=_cp(c_blocks),
    )(*c_inputs)

    # Drop the two wrapped rows per image row and return to NCHW.
    out_full = jnp.concatenate(
        [out_c, jnp.zeros((N, 2, Cout), out_c.dtype)], axis=1)
    out_nhwc = out_full.reshape(N, H, WP, Cout)[:, :, :W, :]
    return jnp.transpose(out_nhwc, (0, 3, 1, 2))


# ------------------------------ reference ------------------------------------
def _reference(x_nchw, params):
    """Pure-JAX reference mirroring the PyTorch forward (training-mode BN),
    using the same precision policy as the kernels (bf16 conv inputs, f32
    accumulation, f32 BN/ReLU)."""
    Cin = x_nchw.shape[1]
    Cout = params["w1"].shape[-1]
    has_extra = Cin != Cout
    x = jnp.transpose(x_nchw, (0, 2, 3, 1)).astype(jnp.float32)

    def conv(inp, w, b, pad):
        y = jax.lax.conv_general_dilated(
            inp.astype(jnp.bfloat16), w.astype(jnp.bfloat16),
            window_strides=(1, 1), padding=[(pad, pad), (pad, pad)],
            dimension_numbers=("NHWC", "HWIO", "NHWC"),
            preferred_element_type=jnp.float32)
        return y + b.reshape(1, 1, 1, -1)

    def bn(y, g, be):
        mean = jnp.mean(y, axis=(0, 1, 2), keepdims=True)
        var = jnp.mean((y - mean) ** 2, axis=(0, 1, 2), keepdims=True)
        return (y - mean) * jax.lax.rsqrt(var + EPS) * g.reshape(1, 1, 1, -1) \
            + be.reshape(1, 1, 1, -1)

    out = jax.nn.relu(bn(conv(x, params["w1"], params["cb1"], 1),
                         params["g1"], params["be1"]))
    out = bn(conv(out, params["w2"], params["cb2"], 1),
             params["g2"], params["be2"])
    if has_extra:
        ws4 = params["ws"].reshape(1, 1, Cin, Cout)
        sc = bn(conv(x, ws4, params["cbs"], 0), params["gs"], params["bes"])
    else:
        sc = x
    return jnp.transpose(jax.nn.relu(out + sc), (0, 3, 1, 2))


def init_params(key, ch_in, ch_out):
    ks = jax.random.split(key, 8)
    p = {
        "w1":  0.1 * jax.random.normal(ks[0], (3, 3, ch_in, ch_out), jnp.float32),
        "cb1": 0.1 * jax.random.normal(ks[1], (1, ch_out), jnp.float32),
        "g1":  1.0 + 0.1 * jax.random.normal(ks[2], (1, ch_out), jnp.float32),
        "be1": 0.1 * jax.random.normal(ks[3], (1, ch_out), jnp.float32),
        "w2":  0.1 * jax.random.normal(ks[4], (3, 3, ch_out, ch_out), jnp.float32),
        "cb2": 0.1 * jax.random.normal(ks[5], (1, ch_out), jnp.float32),
        "g2":  1.0 + 0.1 * jax.random.normal(ks[6], (1, ch_out), jnp.float32),
        "be2": 0.1 * jax.random.normal(ks[7], (1, ch_out), jnp.float32),
    }
    ks2 = jax.random.split(jax.random.fold_in(key, 7), 4)
    p.update({
        "ws":  0.1 * jax.random.normal(ks2[0], (ch_in, ch_out), jnp.float32),
        "cbs": 0.1 * jax.random.normal(ks2[1], (1, ch_out), jnp.float32),
        "gs":  1.0 + 0.1 * jax.random.normal(ks2[2], (1, ch_out), jnp.float32),
        "bes": 0.1 * jax.random.normal(ks2[3], (1, ch_out), jnp.float32),
    })
    return p


if __name__ == "__main__":
    key = jax.random.PRNGKey(0)
    kx1, kp1, kx2, kp2 = jax.random.split(key, 4)

    # Case 1: ch_in != ch_out -> 1x1-conv + BN shortcut branch.
    N, CH_IN, CH_OUT, H, W = 2, 4, 8, 16, 16
    x1 = jax.random.normal(kx1, (N, CH_IN, H, W), jnp.float32)   # NCHW
    p1 = init_params(kp1, CH_IN, CH_OUT)
    out1 = jax.block_until_ready(resblk_forward(x1, p1))
    assert out1.shape == (N, CH_OUT, H, W), out1.shape
    ref1 = jax.block_until_ready(_reference(x1, p1))
    err1 = float(jnp.max(jnp.abs(out1 - ref1)))
    assert err1 < 2e-2, f"extra-branch mismatch, max abs err = {err1}"

    # Case 2: ch_in == ch_out -> identity shortcut.
    x2 = jax.random.normal(kx2, (N, CH_OUT, H, W), jnp.float32)
    p2 = init_params(kp2, CH_OUT, CH_OUT)
    out2 = jax.block_until_ready(resblk_forward(x2, p2))
    ref2 = jax.block_until_ready(_reference(x2, p2))
    err2 = float(jnp.max(jnp.abs(out2 - ref2)))
    assert err2 < 2e-2, f"identity-shortcut mismatch, max abs err = {err2}"

    print("KERNEL_OK")
</pallas_src>

<mosaic_0001>
module attributes {stable_mosaic.version = 11 : i64} {
  func.func @_stage_a_kernel(%arg0: i32, %arg1: memref<1x324x4xbf16, #tpu.memory_space<vmem>>, %arg2: memref<286x1xf32, #tpu.memory_space<vmem>>, %arg3: memref<3x3x4x8xbf16, #tpu.memory_space<vmem>>, %arg4: memref<4x8xbf16, #tpu.memory_space<vmem>>, %arg5: memref<1x324x8xf32, #tpu.memory_space<vmem>>, %arg6: memref<1x2x8xf32, #tpu.memory_space<vmem>>, %arg7: memref<1x286x8xf32, #tpu.memory_space<vmem>>, %arg8: memref<1x2x8xf32, #tpu.memory_space<vmem>>) attributes {dimension_semantics = [#tpu.dimension_semantics<parallel>], iteration_bounds = array<i64: 2>, scalar_prefetch = 0 : i64, scratch_operands = 0 : i64, tpu.core_type = #tpu.core_type<tc>, window_params = [{transform_indices = @transform_0, window_bounds = array<i64: 1, 324, 4>}, {pipeline_mode = #tpu.pipeline_mode<synchronous>, transform_indices = @transform_1, window_bounds = array<i64: 286, 1>}, {pipeline_mode = #tpu.pipeline_mode<synchronous>, transform_indices = @transform_2, window_bounds = array<i64: 3, 3, 4, 8>}, {pipeline_mode = #tpu.pipeline_mode<synchronous>, transform_indices = @transform_3, window_bounds = array<i64: 4, 8>}, {transform_indices = @transform_4, window_bounds = array<i64: 1, 324, 8>}, {transform_indices = @transform_5, window_bounds = array<i64: 1, 2, 8>}, {transform_indices = @transform_6, window_bounds = array<i64: 1, 286, 8>}, {transform_indices = @transform_7, window_bounds = array<i64: 1, 2, 8>}]} {
    %c0 = arith.constant 0 : index
    %c0_0 = arith.constant 0 : index
    %c0_1 = arith.constant 0 : index
    %0 = vector.load %arg1[%c0, %c0_0, %c0_1] : memref<1x324x4xbf16, #tpu.memory_space<vmem>>, vector<1x324x4xbf16>
    %1 = vector.shape_cast %0 : vector<1x324x4xbf16> to vector<324x4xbf16>
    %c0_2 = arith.constant 0 : index
    %c0_3 = arith.constant 0 : index
    %2 = vector.load %arg2[%c0_2, %c0_3] : memref<286x1xf32, #tpu.memory_space<vmem>>, vector<286x1xf32>
    %cst = arith.constant 0.000000e+00 : f32
    %3 = vector.broadcast %cst : f32 to vector<286x8xf32>
    %4 = vector.extract_strided_slice %1 {offsets = [0, 0], sizes = [286, 4], strides = [1, 1]} : vector<324x4xbf16> to vector<286x4xbf16>
    %c0_4 = arith.constant 0 : index
    %c0_5 = arith.constant 0 : index
    %c0_6 = arith.constant 0 : index
    %c0_7 = arith.constant 0 : index
    %5 = vector.load %arg3[%c0_4, %c0_5, %c0_6, %c0_7] : memref<3x3x4x8xbf16, #tpu.memory_space<vmem>>, vector<1x1x4x8xbf16>
    %6 = vector.shape_cast %5 : vector<1x1x4x8xbf16> to vector<4x8xbf16>
    %cst_8 = arith.constant dense<0.000000e+00> : vector<286x8xf32>
    %7 = tpu.matmul %4, %6, %cst_8 {dimension_numbers = #tpu.dot_dimension_numbers<[1], [0], [0], [1], [0, 0, 1, 1], [], []>} : vector<286x4xbf16>, vector<4x8xbf16>, vector<286x8xf32> -> vector<286x8xf32>
    %8 = arith.addf %3, %7 : vector<286x8xf32>
    %9 = vector.extract_strided_slice %1 {offsets = [1, 0], sizes = [286, 4], strides = [1, 1]} : vector<324x4xbf16> to vector<286x4xbf16>
    %c0_9 = arith.constant 0 : index
    %c1 = arith.constant 1 : index
    %c0_10 = arith.constant 0 : index
    %c0_11 = arith.constant 0 : index
    %10 = vector.load %arg3[%c0_9, %c1, %c0_10, %c0_11] : memref<3x3x4x8xbf16, #tpu.memory_space<vmem>>, vector<1x1x4x8xbf16>
    %11 = vector.shape_cast %10 : vector<1x1x4x8xbf16> to vector<4x8xbf16>
    %cst_12 = arith.constant dense<0.000000e+00> : vector<286x8xf32>
    %12 = tpu.matmul %9, %11, %cst_12 {dimension_numbers = #tpu.dot_dimension_numbers<[1], [0], [0], [1], [0, 0, 1, 1], [], []>} : vector<286x4xbf16>, vector<4x8xbf16>, vector<286x8xf32> -> vector<286x8xf32>
    %13 = arith.addf %8, %12 : vector<286x8xf32>
    %14 = vector.extract_strided_slice %1 {offsets = [2, 0], sizes = [286, 4], strides = [1, 1]} : vector<324x4xbf16> to vector<286x4xbf16>
    %c0_13 = arith.constant 0 : index
    %c2 = arith.constant 2 : index
    %c0_14 = arith.constant 0 : index
    %c0_15 = arith.constant 0 : index
    %15 = vector.load %arg3[%c0_13, %c2, %c0_14, %c0_15] : memref<3x3x4x8xbf16, #tpu.memory_space<vmem>>, vector<1x1x4x8xbf16>
    %16 = vector.shape_cast %15 : vector<1x1x4x8xbf16> to vector<4x8xbf16>
    %cst_16 = arith.constant dense<0.000000e+00> : vector<286x8xf32>
    %17 = tpu.matmul %14, %16, %cst_16 {dimension_numbers = #tpu.dot_dimension_numbers<[1], [0], [0], [1], [0, 0, 1, 1], [], []>} : vector<286x4xbf16>, vector<4x8xbf16>, vector<286x8xf32> -> vector<286x8xf32>
    %18 = arith.addf %13, %17 : vector<286x8xf32>
    %19 = vector.extract_strided_slice %1 {offsets = [18, 0], sizes = [286, 4], strides = [1, 1]} : vector<324x4xbf16> to vector<286x4xbf16>
    %c1_17 = arith.constant 1 : index
    %c0_18 = arith.constant 0 : index
    %c0_19 = arith.constant 0 : index
    %c0_20 = arith.constant 0 : index
    %20 = vector.load %arg3[%c1_17, %c0_18, %c0_19, %c0_20] : memref<3x3x4x8xbf16, #tpu.memory_space<vmem>>, vector<1x1x4x8xbf16>
    %21 = vector.shape_cast %20 : vector<1x1x4x8xbf16> to vector<4x8xbf16>
    %cst_21 = arith.constant dense<0.000000e+00> : vector<286x8xf32>
    %22 = tpu.matmul %19, %21, %cst_21 {dimension_numbers = #tpu.dot_dimension_numbers<[1], [0], [0], [1], [0, 0, 1, 1], [], []>} : vector<286x4xbf16>, vector<4x8xbf16>, vector<286x8xf32> -> vector<286x8xf32>
    %23 = arith.addf %18, %22 : vector<286x8xf32>
    %24 = vector.extract_strided_slice %1 {offsets = [19, 0], sizes = [286, 4], strides = [1, 1]} : vector<324x4xbf16> to vector<286x4xbf16>
    %c1_22 = arith.constant 1 : index
    %c1_23 = arith.constant 1 : index
    %c0_24 = arith.constant 0 : index
    %c0_25 = arith.constant 0 : index
    %25 = vector.load %arg3[%c1_22, %c1_23, %c0_24, %c0_25] : memref<3x3x4x8xbf16, #tpu.memory_space<vmem>>, vector<1x1x4x8xbf16>
    %26 = vector.shape_cast %25 : vector<1x1x4x8xbf16> to vector<4x8xbf16>
    %cst_26 = arith.constant dense<0.000000e+00> : vector<286x8xf32>
    %27 = tpu.matmul %24, %26, %cst_26 {dimension_numbers = #tpu.dot_dimension_numbers<[1], [0], [0], [1], [0, 0, 1, 1], [], []>} : vector<286x4xbf16>, vector<4x8xbf16>, vector<286x8xf32> -> vector<286x8xf32>
    %28 = arith.addf %23, %27 : vector<286x8xf32>
    %29 = vector.extract_strided_slice %1 {offsets = [20, 0], sizes = [286, 4], strides = [1, 1]} : vector<324x4xbf16> to vector<286x4xbf16>
    %c1_27 = arith.constant 1 : index
    %c2_28 = arith.constant 2 : index
    %c0_29 = arith.constant 0 : index
    %c0_30 = arith.constant 0 : index
    %30 = vector.load %arg3[%c1_27, %c2_28, %c0_29, %c0_30] : memref<3x3x4x8xbf16, #tpu.memory_space<vmem>>, vector<1x1x4x8xbf16>
    %31 = vector.shape_cast %30 : vector<1x1x4x8xbf16> to vector<4x8xbf16>
    %cst_31 = arith.constant dense<0.000000e+00> : vector<286x8xf32>
    %32 = tpu.matmul %29, %31, %cst_31 {dimension_numbers = #tpu.dot_dimension_numbers<[1], [0], [0], [1], [0, 0, 1, 1], [], []>} : vector<286x4xbf16>, vector<4x8xbf16>, vector<286x8xf32> -> vector<286x8xf32>
    %33 = arith.addf %28, %32 : vector<286x8xf32>
    %34 = vector.extract_strided_slice %1 {offsets = [36, 0], sizes = [286, 4], strides = [1, 1]} : vector<324x4xbf16> to vector<286x4xbf16>
    %c2_32 = arith.constant 2 : index
    %c0_33 = arith.constant 0 : index
    %c0_34 = arith.constant 0 : index
    %c0_35 = arith.constant 0 : index
    %35 = vector.load %arg3[%c2_32, %c0_33, %c0_34, %c0_35] : memref<3x3x4x8xbf16, #tpu.memory_space<vmem>>, vector<1x1x4x8xbf16>
    %36 = vector.shape_cast %35 : vector<1x1x4x8xbf16> to vector<4x8xbf16>
    %cst_36 = arith.constant dense<0.000000e+00> : vector<286x8xf32>
    %37 = tpu.matmul %34, %36, %cst_36 {dimension_numbers = #tpu.dot_dimension_numbers<[1], [0], [0], [1], [0, 0, 1, 1], [], []>} : vector<286x4xbf16>, vector<4x8xbf16>, vector<286x8xf32> -> vector<286x8xf32>
    %38 = arith.addf %33, %37 : vector<286x8xf32>
    %39 = vector.extract_strided_slice %1 {offsets = [37, 0], sizes = [286, 4], strides = [1, 1]} : vector<324x4xbf16> to vector<286x4xbf16>
    %c2_37 = arith.constant 2 : index
    %c1_38 = arith.constant 1 : index
    %c0_39 = arith.constant 0 : index
    %c0_40 = arith.constant 0 : index
    %40 = vector.load %arg3[%c2_37, %c1_38, %c0_39, %c0_40] : memref<3x3x4x8xbf16, #tpu.memory_space<vmem>>, vector<1x1x4x8xbf16>
    %41 = vector.shape_cast %40 : vector<1x1x4x8xbf16> to vector<4x8xbf16>
    %cst_41 = arith.constant dense<0.000000e+00> : vector<286x8xf32>
    %42 = tpu.matmul %39, %41, %cst_41 {dimension_numbers = #tpu.dot_dimension_numbers<[1], [0], [0], [1], [0, 0, 1, 1], [], []>} : vector<286x4xbf16>, vector<4x8xbf16>, vector<286x8xf32> -> vector<286x8xf32>
    %43 = arith.addf %38, %42 : vector<286x8xf32>
    %44 = vector.extract_strided_slice %1 {offsets = [38, 0], sizes = [286, 4], strides = [1, 1]} : vector<324x4xbf16> to vector<286x4xbf16>
    %c2_42 = arith.constant 2 : index
    %c2_43 = arith.constant 2 : index
    %c0_44 = arith.constant 0 : index
    %c0_45 = arith.constant 0 : index
    %45 = vector.load %arg3[%c2_42, %c2_43, %c0_44, %c0_45] : memref<3x3x4x8xbf16, #tpu.memory_space<vmem>>, vector<1x1x4x8xbf16>
    %46 = vector.shape_cast %45 : vector<1x1x4x8xbf16> to vector<4x8xbf16>
    %cst_46 = arith.constant dense<0.000000e+00> : vector<286x8xf32>
    %47 = tpu.matmul %44, %46, %cst_46 {dimension_numbers = #tpu.dot_dimension_numbers<[1], [0], [0], [1], [0, 0, 1, 1], [], []>} : vector<286x4xbf16>, vector<4x8xbf16>, vector<286x8xf32> -> vector<286x8xf32>
    %48 = arith.addf %43, %47 : vector<286x8xf32>
    %49 = vector.broadcast %2 : vector<286x1xf32> to vector<286x8xf32>
    %50 = arith.mulf %48, %49 : vector<286x8xf32>
    %cst_47 = arith.constant dense<0.000000e+00> : vector<8xf32>
    %51 = vector.multi_reduction <add>, %50, %cst_47 [0] : vector<286x8xf32> to vector<8xf32>
    %52 = vector.shape_cast %51 : vector<8xf32> to vector<1x8xf32>
    %53 = arith.mulf %50, %48 : vector<286x8xf32>
    %cst_48 = arith.constant dense<0.000000e+00> : vector<8xf32>
    %54 = vector.multi_reduction <add>, %53, %cst_48 [0] : vector<286x8xf32> to vector<8xf32>
    %55 = vector.shape_cast %54 : vector<8xf32> to vector<1x8xf32>
    %56 = tpu.concatenate %52, %55 in 0 : vector<1x8xf32>, vector<1x8xf32> -> vector<2x8xf32>
    %c0_49 = arith.constant 0 : index
    %c0_50 = arith.constant 0 : index
    %c0_51 = arith.constant 0 : index
    %57 = vector.load %arg6[%c0_49, %c0_50, %c0_51] : memref<1x2x8xf32, #tpu.memory_space<vmem>>, vector<1x2x8xf32>
    %58 = vector.shape_cast %57 : vector<1x2x8xf32> to vector<2x8xf32>
    %59 = vector.shape_cast %56 : vector<2x8xf32> to vector<1x2x8xf32>
    tpu.vector_store %arg6[%c0_49, %c0_50, %c0_51], %59 {strides = array<i32>} : memref<1x2x8xf32, #tpu.memory_space<vmem>>, vector<1x2x8xf32>,
    %cst_52 = arith.constant 0.000000e+00 : f32
    %60 = vector.broadcast %cst_52 : f32 to vector<19x8xf32>
    %c0_53 = arith.constant 0 : index
    %c0_54 = arith.constant 0 : index
    %c0_55 = arith.constant 0 : index
    %61 = vector.load %arg5[%c0_53, %c0_54, %c0_55] : memref<1x324x8xf32, #tpu.memory_space<vmem>>, vector<1x19x8xf32>
    %62 = vector.shape_cast %61 : vector<1x19x8xf32> to vector<19x8xf32>
    %63 = vector.shape_cast %60 : vector<19x8xf32> to vector<1x19x8xf32>
    tpu.vector_store %arg5[%c0_53, %c0_54, %c0_55], %63 {strides = array<i32>} : memref<1x324x8xf32, #tpu.memory_space<vmem>>, vector<1x19x8xf32>,
    %c0_56 = arith.constant 0 : index
    %c19 = arith.constant 19 : index
    %c0_57 = arith.constant 0 : index
    %64 = vector.load %arg5[%c0_56, %c19, %c0_57] : memref<1x324x8xf32, #tpu.memory_space<vmem>>, vector<1x286x8xf32>
    %65 = vector.shape_cast %64 : vector<1x286x8xf32> to vector<286x8xf32>
    %66 = vector.shape_cast %48 : vector<286x8xf32> to vector<1x286x8xf32>
    tpu.vector_store %arg5[%c0_56, %c19, %c0_57], %66 {strides = array<i32>} : memref<1x324x8xf32, #tpu.memory_space<vmem>>, vector<1x286x8xf32>,
    %cst_58 = arith.constant 0.000000e+00 : f32
    %67 = vector.broadcast %cst_58 : f32 to vector<19x8xf32>
    %c0_59 = arith.constant 0 : index
    %c305 = arith.constant 305 : index
    %c0_60 = arith.constant 0 : index
    %68 = vector.load %arg5[%c0_59, %c305, %c0_60] : memref<1x324x8xf32, #tpu.memory_space<vmem>>, vector<1x19x8xf32>
    %69 = vector.shape_cast %68 : vector<1x19x8xf32> to vector<19x8xf32>
    %70 = vector.shape_cast %67 : vector<19x8xf32> to vector<1x19x8xf32>
    tpu.vector_store %arg5[%c0_59, %c305, %c0_60], %70 {strides = array<i32>} : memref<1x324x8xf32, #tpu.memory_space<vmem>>, vector<1x19x8xf32>,
    %71 = vector.extract_strided_slice %1 {offsets = [19, 0], sizes = [286, 4], strides = [1, 1]} : vector<324x4xbf16> to vector<286x4xbf16>
    %c0_61 = arith.constant 0 : index
    %c0_62 = arith.constant 0 : index
    %72 = vector.load %arg4[%c0_61, %c0_62] : memref<4x8xbf16, #tpu.memory_space<vmem>>, vector<4x8xbf16>
    %cst_63 = arith.constant dense<0.000000e+00> : vector<286x8xf32>
    %73 = tpu.matmul %71, %72, %cst_63 {dimension_numbers = #tpu.dot_dimension_numbers<[1], [0], [0], [1], [0, 0, 1, 1], [], []>} : vector<286x4xbf16>, vector<4x8xbf16>, vector<286x8xf32> -> vector<286x8xf32>
    %74 = vector.broadcast %2 : vector<286x1xf32> to vector<286x8xf32>
    %75 = arith.mulf %73, %74 : vector<286x8xf32>
    %cst_64 = arith.constant dense<0.000000e+00> : vector<8xf32>
    %76 = vector.multi_reduction <add>, %75, %cst_64 [0] : vector<286x8xf32> to vector<8xf32>
    %77 = vector.shape_cast %76 : vector<8xf32> to vector<1x8xf32>
    %78 = arith.mulf %75, %73 : vector<286x8xf32>
    %cst_65 = arith.constant dense<0.000000e+00> : vector<8xf32>
    %79 = vector.multi_reduction <add>, %78, %cst_65 [0] : vector<286x8xf32> to vector<8xf32>
    %80 = vector.shape_cast %79 : vector<8xf32> to vector<1x8xf32>
    %81 = tpu.concatenate %77, %80 in 0 : vector<1x8xf32>, vector<1x8xf32> -> vector<2x8xf32>
    %c0_66 = arith.constant 0 : index
    %c0_67 = arith.constant 0 : index
    %c0_68 = arith.constant 0 : index
    %82 = vector.load %arg8[%c0_66, %c0_67, %c0_68] : memref<1x2x8xf32, #tpu.memory_space<vmem>>, vector<1x2x8xf32>
    %83 = vector.shape_cast %82 : vector<1x2x8xf32> to vector<2x8xf32>
    %84 = vector.shape_cast %81 : vector<2x8xf32> to vector<1x2x8xf32>
    tpu.vector_store %arg8[%c0_66, %c0_67, %c0_68], %84 {strides = array<i32>} : memref<1x2x8xf32, #tpu.memory_space<vmem>>, vector<1x2x8xf32>,
    %c0_69 = arith.constant 0 : index
    %c0_70 = arith.constant 0 : index
    %c0_71 = arith.constant 0 : index
    %85 = vector.load %arg7[%c0_69, %c0_70, %c0_71] : memref<1x286x8xf32, #tpu.memory_space<vmem>>, vector<1x286x8xf32>
    %86 = vector.shape_cast %85 : vector<1x286x8xf32> to vector<286x8xf32>
    %87 = vector.shape_cast %73 : vector<286x8xf32> to vector<1x286x8xf32>
    tpu.vector_store %arg7[%c0_69, %c0_70, %c0_71], %87 {strides = array<i32>} : memref<1x286x8xf32, #tpu.memory_space<vmem>>, vector<1x286x8xf32>,
    return
  }
  func.func @transform_0(%arg0: i32) -> (i32, i32, i32) {
    %c0_i32 = arith.constant 0 : i32
    %c0_i32_0 = arith.constant 0 : i32
    %c0_i32_1 = arith.constant 0 : i32
    return %arg0, %c0_i32, %c0_i32_0 : i32, i32, i32
  }
  func.func @transform_1(%arg0: i32) -> (i32, i32) {
    %c0_i32 = arith.constant 0 : i32
    %c0_i32_0 = arith.constant 0 : i32
    %c0_i32_1 = arith.constant 0 : i32
    return %c0_i32, %c0_i32_0 : i32, i32
  }
  func.func @transform_2(%arg0: i32) -> (i32, i32, i32, i32) {
    %c0_i32 = arith.constant 0 : i32
    %c0_i32_0 = arith.constant 0 : i32
    %c0_i32_1 = arith.constant 0 : i32
    %c0_i32_2 = arith.constant 0 : i32
    %c0_i32_3 = arith.constant 0 : i32
    return %c0_i32, %c0_i32_0, %c0_i32_1, %c0_i32_2 : i32, i32, i32, i32
  }
  func.func @transform_3(%arg0: i32) -> (i32, i32) {
    %c0_i32 = arith.constant 0 : i32
    %c0_i32_0 = arith.constant 0 : i32
    %c0_i32_1 = arith.constant 0 : i32
    return %c0_i32, %c0_i32_0 : i32, i32
  }
  func.func @transform_4(%arg0: i32) -> (i32, i32, i32) {
    %c0_i32 = arith.constant 0 : i32
    %c0_i32_0 = arith.constant 0 : i32
    %c0_i32_1 = arith.constant 0 : i32
    return %arg0, %c0_i32, %c0_i32_0 : i32, i32, i32
  }
  func.func @transform_5(%arg0: i32) -> (i32, i32, i32) {
    %c0_i32 = arith.constant 0 : i32
    %c0_i32_0 = arith.constant 0 : i32
    %c0_i32_1 = arith.constant 0 : i32
    return %arg0, %c0_i32, %c0_i32_0 : i32, i32, i32
  }
  func.func @transform_6(%arg0: i32) -> (i32, i32, i32) {
    %c0_i32 = arith.constant 0 : i32
    %c0_i32_0 = arith.constant 0 : i32
    %c0_i32_1 = arith.constant 0 : i32
    return %arg0, %c0_i32, %c0_i32_0 : i32, i32, i32
  }
  func.func @transform_7(%arg0: i32) -> (i32, i32, i32) {
    %c0_i32 = arith.constant 0 : i32
    %c0_i32_0 = arith.constant 0 : i32
    %c0_i32_1 = arith.constant 0 : i32
    return %arg0, %c0_i32, %c0_i32_0 : i32, i32, i32
  }
}

module attributes {stable_mosaic.version = 11 : i64} {
  func.func @_stage_b_kernel(%arg0: i32, %arg1: memref<1x324x8xf32, #tpu.memory_space<vmem>>, %arg2: memref<324x1xf32, #tpu.memory_space<vmem>>, %arg3: memref<286x1xf32, #tpu.memory_space<vmem>>, %arg4: memref<1x8xf32, #tpu.memory_space<vmem>>, %arg5: memref<1x8xf32, #tpu.memory_space<vmem>>, %arg6: memref<3x3x8x8xbf16, #tpu.memory_space<vmem>>, %arg7: memref<1x286x8xf32, #tpu.memory_space<vmem>>, %arg8: memref<1x2x8xf32, #tpu.memory_space<vmem>>) attributes {dimension_semantics = [#tpu.dimension_semantics<parallel>], iteration_bounds = array<i64: 2>, scalar_prefetch = 0 : i64, scratch_operands = 0 : i64, tpu.core_type = #tpu.core_type<tc>, window_params = [{transform_indices = @transform_0, window_bounds = array<i64: 1, 324, 8>}, {pipeline_mode = #tpu.pipeline_mode<synchronous>, transform_indices = @transform_1, window_bounds = array<i64: 324, 1>}, {pipeline_mode = #tpu.pipeline_mode<synchronous>, transform_indices = @transform_2, window_bounds = array<i64: 286, 1>}, {pipeline_mode = #tpu.pipeline_mode<synchronous>, transform_indices = @transform_3, window_bounds = array<i64: 1, 8>}, {pipeline_mode = #tpu.pipeline_mode<synchronous>, transform_indices = @transform_4, window_bounds = array<i64: 1, 8>}, {pipeline_mode = #tpu.pipeline_mode<synchronous>, transform_indices = @transform_5, window_bounds = array<i64: 3, 3, 8, 8>}, {transform_indices = @transform_6, window_bounds = array<i64: 1, 286, 8>}, {transform_indices = @transform_7, window_bounds = array<i64: 1, 2, 8>}]} {
    %c0 = arith.constant 0 : index
    %c0_0 = arith.constant 0 : index
    %c0_1 = arith.constant 0 : index
    %0 = vector.load %arg1[%c0, %c0_0, %c0_1] : memref<1x324x8xf32, #tpu.memory_space<vmem>>, vector<1x324x8xf32>
    %1 = vector.shape_cast %0 : vector<1x324x8xf32> to vector<324x8xf32>
    %c0_2 = arith.constant 0 : index
    %c0_3 = arith.constant 0 : index
    %2 = vector.load %arg4[%c0_2, %c0_3] : memref<1x8xf32, #tpu.memory_space<vmem>>, vector<1x8xf32>
    %3 = vector.broadcast %2 : vector<1x8xf32> to vector<324x8xf32>
    %4 = arith.mulf %1, %3 : vector<324x8xf32>
    %c0_4 = arith.constant 0 : index
    %c0_5 = arith.constant 0 : index
    %5 = vector.load %arg5[%c0_4, %c0_5] : memref<1x8xf32, #tpu.memory_space<vmem>>, vector<1x8xf32>
    %6 = vector.broadcast %5 : vector<1x8xf32> to vector<324x8xf32>
    %7 = arith.addf %4, %6 : vector<324x8xf32>
    %cst = arith.constant 0.000000e+00 : f32
    %8 = vector.broadcast %cst : f32 to vector<324x8xf32>
    %9 = arith.maximumf %7, %8 : vector<324x8xf32>
    %c0_6 = arith.constant 0 : index
    %c0_7 = arith.constant 0 : index
    %10 = vector.load %arg2[%c0_6, %c0_7] : memref<324x1xf32, #tpu.memory_space<vmem>>, vector<324x1xf32>
    %11 = vector.broadcast %10 : vector<324x1xf32> to vector<324x8xf32>
    %12 = arith.mulf %9, %11 : vector<324x8xf32>
    %13 = arith.truncf %12 : vector<324x8xf32> to vector<324x8xbf16>
    %cst_8 = arith.constant 0.000000e+00 : f32
    %14 = vector.broadcast %cst_8 : f32 to vector<286x8xf32>
    %15 = vector.extract_strided_slice %13 {offsets = [0, 0], sizes = [286, 8], strides = [1, 1]} : vector<324x8xbf16> to vector<286x8xbf16>
    %c0_9 = arith.constant 0 : index
    %c0_10 = arith.constant 0 : index
    %c0_11 = arith.constant 0 : index
    %c0_12 = arith.constant 0 : index
    %16 = vector.load %arg6[%c0_9, %c0_10, %c0_11, %c0_12] : memref<3x3x8x8xbf16, #tpu.memory_space<vmem>>, vector<1x1x8x8xbf16>
    %17 = vector.shape_cast %16 : vector<1x1x8x8xbf16> to vector<8x8xbf16>
    %cst_13 = arith.constant dense<0.000000e+00> : vector<286x8xf32>
    %18 = tpu.matmul %15, %17, %cst_13 {dimension_numbers = #tpu.dot_dimension_numbers<[1], [0], [0], [1], [0, 0, 1, 1], [], []>} : vector<286x8xbf16>, vector<8x8xbf16>, vector<286x8xf32> -> vector<286x8xf32>
    %19 = arith.addf %14, %18 : vector<286x8xf32>
    %20 = vector.extract_strided_slice %13 {offsets = [1, 0], sizes = [286, 8], strides = [1, 1]} : vector<324x8xbf16> to vector<286x8xbf16>
    %c0_14 = arith.constant 0 : index
    %c1 = arith.constant 1 : index
    %c0_15 = arith.constant 0 : index
    %c0_16 = arith.constant 0 : index
    %21 = vector.load %arg6[%c0_14, %c1, %c0_15, %c0_16] : memref<3x3x8x8xbf16, #tpu.memory_space<vmem>>, vector<1x1x8x8xbf16>
    %22 = vector.shape_cast %21 : vector<1x1x8x8xbf16> to vector<8x8xbf16>
    %cst_17 = arith.constant dense<0.000000e+00> : vector<286x8xf32>
    %23 = tpu.matmul %20, %22, %cst_17 {dimension_numbers = #tpu.dot_dimension_numbers<[1], [0], [0], [1], [0, 0, 1, 1], [], []>} : vector<286x8xbf16>, vector<8x8xbf16>, vector<286x8xf32> -> vector<286x8xf32>
    %24 = arith.addf %19, %23 : vector<286x8xf32>
    %25 = vector.extract_strided_slice %13 {offsets = [2, 0], sizes = [286, 8], strides = [1, 1]} : vector<324x8xbf16> to vector<286x8xbf16>
    %c0_18 = arith.constant 0 : index
    %c2 = arith.constant 2 : index
    %c0_19 = arith.constant 0 : index
    %c0_20 = arith.constant 0 : index
    %26 = vector.load %arg6[%c0_18, %c2, %c0_19, %c0_20] : memref<3x3x8x8xbf16, #tpu.memory_space<vmem>>, vector<1x1x8x8xbf16>
    %27 = vector.shape_cast %26 : vector<1x1x8x8xbf16> to vector<8x8xbf16>
    %cst_21 = arith.constant dense<0.000000e+00> : vector<286x8xf32>
    %28 = tpu.matmul %25, %27, %cst_21 {dimension_numbers = #tpu.dot_dimension_numbers<[1], [0], [0], [1], [0, 0, 1, 1], [], []>} : vector<286x8xbf16>, vector<8x8xbf16>, vector<286x8xf32> -> vector<286x8xf32>
    %29 = arith.addf %24, %28 : vector<286x8xf32>
    %30 = vector.extract_strided_slice %13 {offsets = [18, 0], sizes = [286, 8], strides = [1, 1]} : vector<324x8xbf16> to vector<286x8xbf16>
    %c1_22 = arith.constant 1 : index
    %c0_23 = arith.constant 0 : index
    %c0_24 = arith.constant 0 : index
    %c0_25 = arith.constant 0 : index
    %31 = vector.load %arg6[%c1_22, %c0_23, %c0_24, %c0_25] : memref<3x3x8x8xbf16, #tpu.memory_space<vmem>>, vector<1x1x8x8xbf16>
    %32 = vector.shape_cast %31 : vector<1x1x8x8xbf16> to vector<8x8xbf16>
    %cst_26 = arith.constant dense<0.000000e+00> : vector<286x8xf32>
    %33 = tpu.matmul %30, %32, %cst_26 {dimension_numbers = #tpu.dot_dimension_numbers<[1], [0], [0], [1], [0, 0, 1, 1], [], []>} : vector<286x8xbf16>, vector<8x8xbf16>, vector<286x8xf32> -> vector<286x8xf32>
    %34 = arith.addf %29, %33 : vector<286x8xf32>
    %35 = vector.extract_strided_slice %13 {offsets = [19, 0], sizes = [286, 8], strides = [1, 1]} : vector<324x8xbf16> to vector<286x8xbf16>
    %c1_27 = arith.constant 1 : index
    %c1_28 = arith.constant 1 : index
    %c0_29 = arith.constant 0 : index
    %c0_30 = arith.constant 0 : index
    %36 = vector.load %arg6[%c1_27, %c1_28, %c0_29, %c0_30] : memref<3x3x8x8xbf16, #tpu.memory_space<vmem>>, vector<1x1x8x8xbf16>
    %37 = vector.shape_cast %36 : vector<1x1x8x8xbf16> to vector<8x8xbf16>
    %cst_31 = arith.constant dense<0.000000e+00> : vector<286x8xf32>
    %38 = tpu.matmul %35, %37, %cst_31 {dimension_numbers = #tpu.dot_dimension_numbers<[1], [0], [0], [1], [0, 0, 1, 1], [], []>} : vector<286x8xbf16>, vector<8x8xbf16>, vector<286x8xf32> -> vector<286x8xf32>
    %39 = arith.addf %34, %38 : vector<286x8xf32>
    %40 = vector.extract_strided_slice %13 {offsets = [20, 0], sizes = [286, 8], strides = [1, 1]} : vector<324x8xbf16> to vector<286x8xbf16>
    %c1_32 = arith.constant 1 : index
    %c2_33 = arith.constant 2 : index
    %c0_34 = arith.constant 0 : index
    %c0_35 = arith.constant 0 : index
    %41 = vector.load %arg6[%c1_32, %c2_33, %c0_34, %c0_35] : memref<3x3x8x8xbf16, #tpu.memory_space<vmem>>, vector<1x1x8x8xbf16>
    %42 = vector.shape_cast %41 : vector<1x1x8x8xbf16> to vector<8x8xbf16>
    %cst_36 = arith.constant dense<0.000000e+00> : vector<286x8xf32>
    %43 = tpu.matmul %40, %42, %cst_36 {dimension_numbers = #tpu.dot_dimension_numbers<[1], [0], [0], [1], [0, 0, 1, 1], [], []>} : vector<286x8xbf16>, vector<8x8xbf16>, vector<286x8xf32> -> vector<286x8xf32>
    %44 = arith.addf %39, %43 : vector<286x8xf32>
    %45 = vector.extract_strided_slice %13 {offsets = [36, 0], sizes = [286, 8], strides = [1, 1]} : vector<324x8xbf16> to vector<286x8xbf16>
    %c2_37 = arith.constant 2 : index
    %c0_38 = arith.constant 0 : index
    %c0_39 = arith.constant 0 : index
    %c0_40 = arith.constant 0 : index
    %46 = vector.load %arg6[%c2_37, %c0_38, %c0_39, %c0_40] : memref<3x3x8x8xbf16, #tpu.memory_space<vmem>>, vector<1x1x8x8xbf16>
    %47 = vector.shape_cast %46 : vector<1x1x8x8xbf16> to vector<8x8xbf16>
    %cst_41 = arith.constant dense<0.000000e+00> : vector<286x8xf32>
    %48 = tpu.matmul %45, %47, %cst_41 {dimension_numbers = #tpu.dot_dimension_numbers<[1], [0], [0], [1], [0, 0, 1, 1], [], []>} : vector<286x8xbf16>, vector<8x8xbf16>, vector<286x8xf32> -> vector<286x8xf32>
    %49 = arith.addf %44, %48 : vector<286x8xf32>
    %50 = vector.extract_strided_slice %13 {offsets = [37, 0], sizes = [286, 8], strides = [1, 1]} : vector<324x8xbf16> to vector<286x8xbf16>
    %c2_42 = arith.constant 2 : index
    %c1_43 = arith.constant 1 : index
    %c0_44 = arith.constant 0 : index
    %c0_45 = arith.constant 0 : index
    %51 = vector.load %arg6[%c2_42, %c1_43, %c0_44, %c0_45] : memref<3x3x8x8xbf16, #tpu.memory_space<vmem>>, vector<1x1x8x8xbf16>
    %52 = vector.shape_cast %51 : vector<1x1x8x8xbf16> to vector<8x8xbf16>
    %cst_46 = arith.constant dense<0.000000e+00> : vector<286x8xf32>
    %53 = tpu.matmul %50, %52, %cst_46 {dimension_numbers = #tpu.dot_dimension_numbers<[1], [0], [0], [1], [0, 0, 1, 1], [], []>} : vector<286x8xbf16>, vector<8x8xbf16>, vector<286x8xf32> -> vector<286x8xf32>
    %54 = arith.addf %49, %53 : vector<286x8xf32>
    %55 = vector.extract_strided_slice %13 {offsets = [38, 0], sizes = [286, 8], strides = [1, 1]} : vector<324x8xbf16> to vector<286x8xbf16>
    %c2_47 = arith.constant 2 : index
    %c2_48 = arith.constant 2 : index
    %c0_49 = arith.constant 0 : index
    %c0_50 = arith.constant 0 : index
    %56 = vector.load %arg6[%c2_47, %c2_48, %c0_49, %c0_50] : memref<3x3x8x8xbf16, #tpu.memory_space<vmem>>, vector<1x1x8x8xbf16>
    %57 = vector.shape_cast %56 : vector<1x1x8x8xbf16> to vector<8x8xbf16>
    %cst_51 = arith.constant dense<0.000000e+00> : vector<286x8xf32>
    %58 = tpu.matmul %55, %57, %cst_51 {dimension_numbers = #tpu.dot_dimension_numbers<[1], [0], [0], [1], [0, 0, 1, 1], [], []>} : vector<286x8xbf16>, vector<8x8xbf16>, vector<286x8xf32> -> vector<286x8xf32>
    %59 = arith.addf %54, %58 : vector<286x8xf32>
    %c0_52 = arith.constant 0 : index
    %c0_53 = arith.constant 0 : index
    %60 = vector.load %arg3[%c0_52, %c0_53] : memref<286x1xf32, #tpu.memory_space<vmem>>, vector<286x1xf32>
    %61 = vector.broadcast %60 : vector<286x1xf32> to vector<286x8xf32>
    %62 = arith.mulf %59, %61 : vector<286x8xf32>
    %cst_54 = arith.constant dense<0.000000e+00> : vector<8xf32>
    %63 = vector.multi_reduction <add>, %62, %cst_54 [0] : vector<286x8xf32> to vector<8xf32>
    %64 = vector.shape_cast %63 : vector<8xf32> to vector<1x8xf32>
    %65 = arith.mulf %62, %59 : vector<286x8xf32>
    %cst_55 = arith.constant dense<0.000000e+00> : vector<8xf32>
    %66 = vector.multi_reduction <add>, %65, %cst_55 [0] : vector<286x8xf32> to vector<8xf32>
    %67 = vector.shape_cast %66 : vector<8xf32> to vector<1x8xf32>
    %68 = tpu.concatenate %64, %67 in 0 : vector<1x8xf32>, vector<1x8xf32> -> vector<2x8xf32>
    %c0_56 = arith.constant 0 : index
    %c0_57 = arith.constant 0 : index
    %c0_58 = arith.constant 0 : index
    %69 = vector.load %arg8[%c0_56, %c0_57, %c0_58] : memref<1x2x8xf32, #tpu.memory_space<vmem>>, vector<1x2x8xf32>
    %70 = vector.shape_cast %69 : vector<1x2x8xf32> to vector<2x8xf32>
    %71 = vector.shape_cast %68 : vector<2x8xf32> to vector<1x2x8xf32>
    tpu.vector_store %arg8[%c0_56, %c0_57, %c0_58], %71 {strides = array<i32>} : memref<1x2x8xf32, #tpu.memory_space<vmem>>, vector<1x2x8xf32>,
    %c0_59 = arith.constant 0 : index
    %c0_60 = arith.constant 0 : index
    %c0_61 = arith.constant 0 : index
    %72 = vector.load %arg7[%c0_59, %c0_60, %c0_61] : memref<1x286x8xf32, #tpu.memory_space<vmem>>, vector<1x286x8xf32>
    %73 = vector.shape_cast %72 : vector<1x286x8xf32> to vector<286x8xf32>
    %74 = vector.shape_cast %59 : vector<286x8xf32> to vector<1x286x8xf32>
    tpu.vector_store %arg7[%c0_59, %c0_60, %c0_61], %74 {strides = array<i32>} : memref<1x286x8xf32, #tpu.memory_space<vmem>>, vector<1x286x8xf32>,
    return
  }
  func.func @transform_0(%arg0: i32) -> (i32, i32, i32) {
    %c0_i32 = arith.constant 0 : i32
    %c0_i32_0 = arith.constant 0 : i32
    %c0_i32_1 = arith.constant 0 : i32
    return %arg0, %c0_i32, %c0_i32_0 : i32, i32, i32
  }
  func.func @transform_1(%arg0: i32) -> (i32, i32) {
    %c0_i32 = arith.constant 0 : i32
    %c0_i32_0 = arith.constant 0 : i32
    %c0_i32_1 = arith.constant 0 : i32
    return %c0_i32, %c0_i32_0 : i32, i32
  }
  func.func @transform_2(%arg0: i32) -> (i32, i32) {
    %c0_i32 = arith.constant 0 : i32
    %c0_i32_0 = arith.constant 0 : i32
    %c0_i32_1 = arith.constant 0 : i32
    return %c0_i32, %c0_i32_0 : i32, i32
  }
  func.func @transform_3(%arg0: i32) -> (i32, i32) {
    %c0_i32 = arith.constant 0 : i32
    %c0_i32_0 = arith.constant 0 : i32
    %c0_i32_1 = arith.constant 0 : i32
    return %c0_i32, %c0_i32_0 : i32, i32
  }
  func.func @transform_4(%arg0: i32) -> (i32, i32) {
    %c0_i32 = arith.constant 0 : i32
    %c0_i32_0 = arith.constant 0 : i32
    %c0_i32_1 = arith.constant 0 : i32
    return %c0_i32, %c0_i32_0 : i32, i32
  }
  func.func @transform_5(%arg0: i32) -> (i32, i32, i32, i32) {
    %c0_i32 = arith.constant 0 : i32
    %c0_i32_0 = arith.constant 0 : i32
    %c0_i32_1 = arith.constant 0 : i32
    %c0_i32_2 = arith.constant 0 : i32
    %c0_i32_3 = arith.constant 0 : i32
    return %c0_i32, %c0_i32_0, %c0_i32_1, %c0_i32_2 : i32, i32, i32, i32
  }
  func.func @transform_6(%arg0: i32) -> (i32, i32, i32) {
    %c0_i32 = arith.constant 0 : i32
    %c0_i32_0 = arith.constant 0 : i32
    %c0_i32_1 = arith.constant 0 : i32
    return %arg0, %c0_i32, %c0_i32_0 : i32, i32, i32
  }
  func.func @transform_7(%arg0: i32) -> (i32, i32, i32) {
    %c0_i32 = arith.constant 0 : i32
    %c0_i32_0 = arith.constant 0 : i32
    %c0_i32_1 = arith.constant 0 : i32
    return %arg0, %c0_i32, %c0_i32_0 : i32, i32, i32
  }
}

module attributes {stable_mosaic.version = 11 : i64} {
  func.func @_stage_c_kernel(%arg0: i32, %arg1: memref<1x286x8xf32, #tpu.memory_space<vmem>>, %arg2: memref<1x8xf32, #tpu.memory_space<vmem>>, %arg3: memref<1x8xf32, #tpu.memory_space<vmem>>, %arg4: memref<1x286x8xf32, #tpu.memory_space<vmem>>, %arg5: memref<1x8xf32, #tpu.memory_space<vmem>>, %arg6: memref<1x8xf32, #tpu.memory_space<vmem>>, %arg7: memref<1x286x8xf32, #tpu.memory_space<vmem>>) attributes {dimension_semantics = [#tpu.dimension_semantics<parallel>], iteration_bounds = array<i64: 2>, scalar_prefetch = 0 : i64, scratch_operands = 0 : i64, tpu.core_type = #tpu.core_type<tc>, window_params = [{transform_indices = @transform_0, window_bounds = array<i64: 1, 286, 8>}, {pipeline_mode = #tpu.pipeline_mode<synchronous>, transform_indices = @transform_1, window_bounds = array<i64: 1, 8>}, {pipeline_mode = #tpu.pipeline_mode<synchronous>, transform_indices = @transform_2, window_bounds = array<i64: 1, 8>}, {transform_indices = @transform_3, window_bounds = array<i64: 1, 286, 8>}, {pipeline_mode = #tpu.pipeline_mode<synchronous>, transform_indices = @transform_4, window_bounds = array<i64: 1, 8>}, {pipeline_mode = #tpu.pipeline_mode<synchronous>, transform_indices = @transform_5, window_bounds = array<i64: 1, 8>}, {transform_indices = @transform_6, window_bounds = array<i64: 1, 286, 8>}]} {
    %c0 = arith.constant 0 : index
    %c0_0 = arith.constant 0 : index
    %c0_1 = arith.constant 0 : index
    %0 = vector.load %arg1[%c0, %c0_0, %c0_1] : memref<1x286x8xf32, #tpu.memory_space<vmem>>, vector<1x286x8xf32>
    %1 = vector.shape_cast %0 : vector<1x286x8xf32> to vector<286x8xf32>
    %c0_2 = arith.constant 0 : index
    %c0_3 = arith.constant 0 : index
    %2 = vector.load %arg2[%c0_2, %c0_3] : memref<1x8xf32, #tpu.memory_space<vmem>>, vector<1x8xf32>
    %3 = vector.broadcast %2 : vector<1x8xf32> to vector<286x8xf32>
    %4 = arith.mulf %1, %3 : vector<286x8xf32>
    %c0_4 = arith.constant 0 : index
    %c0_5 = arith.constant 0 : index
    %5 = vector.load %arg3[%c0_4, %c0_5] : memref<1x8xf32, #tpu.memory_space<vmem>>, vector<1x8xf32>
    %6 = vector.broadcast %5 : vector<1x8xf32> to vector<286x8xf32>
    %7 = arith.addf %4, %6 : vector<286x8xf32>
    %c0_6 = arith.constant 0 : index
    %c0_7 = arith.constant 0 : index
    %c0_8 = arith.constant 0 : index
    %8 = vector.load %arg4[%c0_6, %c0_7, %c0_8] : memref<1x286x8xf32, #tpu.memory_space<vmem>>, vector<1x286x8xf32>
    %9 = vector.shape_cast %8 : vector<1x286x8xf32> to vector<286x8xf32>
    %c0_9 = arith.constant 0 : index
    %c0_10 = arith.constant 0 : index
    %10 = vector.load %arg5[%c0_9, %c0_10] : memref<1x8xf32, #tpu.memory_space<vmem>>, vector<1x8xf32>
    %11 = vector.broadcast %10 : vector<1x8xf32> to vector<286x8xf32>
    %12 = arith.mulf %9, %11 : vector<286x8xf32>
    %c0_11 = arith.constant 0 : index
    %c0_12 = arith.constant 0 : index
    %13 = vector.load %arg6[%c0_11, %c0_12] : memref<1x8xf32, #tpu.memory_space<vmem>>, vector<1x8xf32>
    %14 = vector.broadcast %13 : vector<1x8xf32> to vector<286x8xf32>
    %15 = arith.addf %12, %14 : vector<286x8xf32>
    %16 = arith.addf %7, %15 : vector<286x8xf32>
    %cst = arith.constant 0.000000e+00 : f32
    %17 = vector.broadcast %cst : f32 to vector<286x8xf32>
    %18 = arith.maximumf %16, %17 : vector<286x8xf32>
    %c0_13 = arith.constant 0 : index
    %c0_14 = arith.constant 0 : index
    %c0_15 = arith.constant 0 : index
    %19 = vector.load %arg7[%c0_13, %c0_14, %c0_15] : memref<1x286x8xf32, #tpu.memory_space<vmem>>, vector<1x286x8xf32>
    %20 = vector.shape_cast %19 : vector<1x286x8xf32> to vector<286x8xf32>
    %21 = vector.shape_cast %18 : vector<286x8xf32> to vector<1x286x8xf32>
    tpu.vector_store %arg7[%c0_13, %c0_14, %c0_15], %21 {strides = array<i32>} : memref<1x286x8xf32, #tpu.memory_space<vmem>>, vector<1x286x8xf32>,
    return
  }
  func.func @transform_0(%arg0: i32) -> (i32, i32, i32) {
    %c0_i32 = arith.constant 0 : i32
    %c0_i32_0 = arith.constant 0 : i32
    %c0_i32_1 = arith.constant 0 : i32
    return %arg0, %c0_i32, %c0_i32_0 : i32, i32, i32
  }
  func.func @transform_1(%arg0: i32) -> (i32, i32) {
    %c0_i32 = arith.constant 0 : i32
    %c0_i32_0 = arith.constant 0 : i32
    %c0_i32_1 = arith.constant 0 : i32
    return %c0_i32, %c0_i32_0 : i32, i32
  }
  func.func @transform_2(%arg0: i32) -> (i32, i32) {
    %c0_i32 = arith.constant 0 : i32
    %c0_i32_0 = arith.constant 0 : i32
    %c0_i32_1 = arith.constant 0 : i32
    return %c0_i32, %c0_i32_0 : i32, i32
  }
  func.func @transform_3(%arg0: i32) -> (i32, i32, i32) {
    %c0_i32 = arith.constant 0 : i32
    %c0_i32_0 = arith.constant 0 : i32
    %c0_i32_1 = arith.constant 0 : i32
    return %arg0, %c0_i32, %c0_i32_0 : i32, i32, i32
  }
  func.func @transform_4(%arg0: i32) -> (i32, i32) {
    %c0_i32 = arith.constant 0 : i32
    %c0_i32_0 = arith.constant 0 : i32
    %c0_i32_1 = arith.constant 0 : i32
    return %c0_i32, %c0_i32_0 : i32, i32
  }
  func.func @transform_5(%arg0: i32) -> (i32, i32) {
    %c0_i32 = arith.constant 0 : i32
    %c0_i32_0 = arith.constant 0 : i32
    %c0_i32_1 = arith.constant 0 : i32
    return %c0_i32, %c0_i32_0 : i32, i32
  }
  func.func @transform_6(%arg0: i32) -> (i32, i32, i32) {
    %c0_i32 = arith.constant 0 : i32
    %c0_i32_0 = arith.constant 0 : i32
    %c0_i32_1 = arith.constant 0 : i32
    return %arg0, %c0_i32, %c0_i32_0 : i32, i32, i32
  }
}

</mosaic_0001>

<llo_original>
// kernel: resblk_forward.5
$region0: #{resblk_forward.5}
  #allocation0 [shape = 'u32[]', space=smem, size = 0x4, offset = 0x4, fixed_abs, tag = 'smem constant byte address 0x4 - core index']
  #allocation1 [shape = 'u32[72,128]{1,0:T(1,128)}', space=vmem, size = 0x9000, scoped, tag = 'internal scratch']
  %s0 = inlined_call_operand.vmem [shape: f32[2,286,8], index: 0, kind: input, shape index: {}]
  %s1 = inlined_call_operand.vmem [shape: f32[1,8], index: 1, kind: input, shape index: {}]
  %s2 = inlined_call_operand.vmem [shape: f32[1,8], index: 2, kind: input, shape index: {}]
  %s3 = inlined_call_operand.vmem [shape: f32[2,286,8], index: 3, kind: input, shape index: {}]
  %s4 = inlined_call_operand.vmem [shape: f32[1,8], index: 4, kind: input, shape index: {}]
  %s5 = inlined_call_operand.vmem [shape: f32[1,8], index: 5, kind: input, shape index: {}]
  %s6 = inlined_call_operand.vmem [shape: f32[2,286,8], index: 6, kind: output, shape index: {}]
  %s7 = sld [smem:[#allocation0]]
  $region57: #{resblk_forward.5} parent=0
    _
  %s9 = ssub.s32 1, %s7
  %s10 = scalar_select 0, %s9, %s7
  loop: start=0, step=1, limit=4
  $region2: #{resblk_forward.5} parent=0 // loop_pre_header
    _
  $region3: #{resblk_forward.5} parent=0 // loop_header
    %s12 = sphi 0, %s16
    %p13 = scmp.ge.s32.totalorder %s12, 4
    %s22 = sphi 0, %s24
    %s25 = sphi 0, %s22
    %s26 = sphi 0, %s25
    %s42 = sphi 0, %s26
    %s46 = sphi 0, %s46
    %s48 = sphi 0, %s46
    %s49 = sphi 0, %s48
    %s63 = sphi 0, %s49
    %s67 = sphi 0, %s67
    %s69 = sphi 0, %s67
    %s70 = sphi 0, %s69
    %s84 = sphi 0, %s70
    %s90 = sphi 0, %s92
    %s93 = sphi 0, %s90
    %s94 = sphi 0, %s93
    %s110 = sphi 0, %s94
    %s114 = sphi 0, %s114
    %s116 = sphi 0, %s114
    %s117 = sphi 0, %s116
    %s131 = sphi 0, %s117
    %s135 = sphi 0, %s135
    %s137 = sphi 0, %s135
    %s138 = sphi 0, %s137
    %s152 = sphi 0, %s138
    %s158 = sphi 0, %s160
    %s161 = sphi 0, %s158
    %s162 = sphi 0, %s161
    %s178 = sphi 0, %s162
  $region4: #{resblk_forward.5} parent=0 // loop_header_branch
    %15 = sbr.rel (%p13) target = $region8
  $region5: #{resblk_forward.5} parent=0 // loop_body
    %s17 = ssub.s32 %s12, 1
    %s18 = ssub.s32 %s12, 2
    %s19 = sadd.s32 %s12, 1
    %s20 = ssub.s32 %s12, %s19
    %p21 = scmp.eq.s32.totalorder %s20, 0
    %s23 = sadd.s32 %s22, 1
    %s24 = scalar_select %p21, %s22, %s23
    %p27 = pneg %p21
    %p28 = scmp.eq.s32.totalorder %s12, 1
    %p29 = por %p27, %p28
    %p30 = scmp.ne.s32.totalorder %s22, %s25
    %p31 = scmp.eq.s32.totalorder %s12, 0
    %p32 = por %p30, %p31
    %p33 = scmp.ne.s32.totalorder %s22, %s25
    %p34 = scmp.eq.s32.totalorder %s17, 1
    %p35 = por %p33, %p34
    %p36 = scmp.ne.s32.totalorder %s25, %s26
    %p37 = scmp.eq.s32.totalorder %s17, 0
    %p38 = por %p36, %p37
    %p39 = scmp.ne.s32.totalorder %s25, %s26
    %p40 = scmp.eq.s32.totalorder %s18, 1
    %p41 = por %p39, %p40
    %p43 = scmp.ne.s32.totalorder %s26, %s42
    %p44 = scmp.eq.s32.totalorder %s18, 0
    %p45 = por %p43, %p44
    %s47 = sadd.s32 %s46, 1
    %p50 = scmp.eq.s32.totalorder %s12, 1
    %p51 = scmp.ne.s32.totalorder %s46, %s48
    %p52 = scmp.eq.s32.totalorder %s12, 0
    %p53 = por %p51, %p52
    %p54 = scmp.ne.s32.totalorder %s46, %s48
    %p55 = scmp.eq.s32.totalorder %s17, 1
    %p56 = por %p54, %p55
    %p57 = scmp.ne.s32.totalorder %s48, %s49
    %p58 = scmp.eq.s32.totalorder %s17, 0
    %p59 = por %p57, %p58
    %p60 = scmp.ne.s32.totalorder %s48, %s49
    %p61 = scmp.eq.s32.totalorder %s18, 1
    %p62 = por %p60, %p61
    %p64 = scmp.ne.s32.totalorder %s49, %s63
    %p65 = scmp.eq.s32.totalorder %s18, 0
    %p66 = por %p64, %p65
    %s68 = sadd.s32 %s67, 1
    %p71 = scmp.eq.s32.totalorder %s12, 1
    %p72 = scmp.ne.s32.totalorder %s67, %s69
    %p73 = scmp.eq.s32.totalorder %s12, 0
    %p74 = por %p72, %p73
    %p75 = scmp.ne.s32.totalorder %s67, %s69
    %p76 = scmp.eq.s32.totalorder %s17, 1
    %p77 = por %p75, %p76
    %p78 = scmp.ne.s32.totalorder %s69, %s70
    %p79 = scmp.eq.s32.totalorder %s17, 0
    %p80 = por %p78, %p79
    %p81 = scmp.ne.s32.totalorder %s69, %s70
    %p82 = scmp.eq.s32.totalorder %s18, 1
    %p83 = por %p81, %p82
    %p85 = scmp.ne.s32.totalorder %s70, %s84
    %p86 = scmp.eq.s32.totalorder %s18, 0
    %p87 = por %p85, %p86
    %s88 = ssub.s32 %s12, %s19
    %p89 = scmp.eq.s32.totalorder %s88, 0
    %s91 = sadd.s32 %s90, 1
    %s92 = scalar_select %p89, %s90, %s91
    %p95 = pneg %p89
    %p96 = scmp.eq.s32.totalorder %s12, 1
    %p97 = por %p95, %p96
    %p98 = scmp.ne.s32.totalorder %s90, %s93
    %p99 = scmp.eq.s32.totalorder %s12, 0
    %p100 = por %p98, %p99
    %p101 = scmp.ne.s32.totalorder %s90, %s93
    %p102 = scmp.eq.s32.totalorder %s17, 1
    %p103 = por %p101, %p102
    %p104 = scmp.ne.s32.totalorder %s93, %s94
    %p105 = scmp.eq.s32.totalorder %s17, 0
    %p106 = por %p104, %p105
    %p107 = scmp.ne.s32.totalorder %s93, %s94
    %p108 = scmp.eq.s32.totalorder %s18, 1
    %p109 = por %p107, %p108
    %p111 = scmp.ne.s32.totalorder %s94, %s110
    %p112 = scmp.eq.s32.totalorder %s18, 0
    %p113 = por %p111, %p112
    %s115 = sadd.s32 %s114, 1
    %p118 = scmp.eq.s32.totalorder %s12, 1
    %p119 = scmp.ne.s32.totalorder %s114, %s116
    %p120 = scmp.eq.s32.totalorder %s12, 0
    %p121 = por %p119, %p120
    %p122 = scmp.ne.s32.totalorder %s114, %s116
    %p123 = scmp.eq.s32.totalorder %s17, 1
    %p124 = por %p122, %p123
    %p125 = scmp.ne.s32.totalorder %s116, %s117
    %p126 = scmp.eq.s32.totalorder %s17, 0
    %p127 = por %p125, %p126
    %p128 = scmp.ne.s32.totalorder %s116, %s117
    %p129 = scmp.eq.s32.totalorder %s18, 1
    %p130 = por %p128, %p129
    %p132 = scmp.ne.s32.totalorder %s117, %s131
    %p133 = scmp.eq.s32.totalorder %s18, 0
    %p134 = por %p132, %p133
    %s136 = sadd.s32 %s135, 1
    %p139 = scmp.eq.s32.totalorder %s12, 1
    %p140 = scmp.ne.s32.totalorder %s135, %s137
    %p141 = scmp.eq.s32.totalorder %s12, 0
    %p142 = por %p140, %p141
    %p143 = scmp.ne.s32.totalorder %s135, %s137
    %p144 = scmp.eq.s32.totalorder %s17, 1
    %p145 = por %p143, %p144
    %p146 = scmp.ne.s32.totalorder %s137, %s138
    %p147 = scmp.eq.s32.totalorder %s17, 0
    %p148 = por %p146, %p147
    %p149 = scmp.ne.s32.totalorder %s137, %s138
    %p150 = scmp.eq.s32.totalorder %s18, 1
    %p151 = por %p149, %p150
    %p153 = scmp.ne.s32.totalorder %s138, %s152
    %p154 = scmp.eq.s32.totalorder %s18, 0
    %p155 = por %p153, %p154
    %s156 = ssub.s32 %s12, %s19
    %p157 = scmp.eq.s32.totalorder %s156, 0
    %s159 = sadd.s32 %s158, 1
    %s160 = scalar_select %p157, %s158, %s159
    %p163 = pneg %p157
    %p164 = scmp.eq.s32.totalorder %s12, 1
    %p165 = por %p163, %p164
    %p166 = scmp.ne.s32.totalorder %s158, %s161
    %p167 = scmp.eq.s32.totalorder %s12, 0
    %p168 = por %p166, %p167
    %p169 = scmp.ne.s32.totalorder %s158, %s161
    %p170 = scmp.eq.s32.totalorder %s17, 1
    %p171 = por %p169, %p170
    %p172 = scmp.ne.s32.totalorder %s161, %s162
    %p173 = scmp.eq.s32.totalorder %s17, 0
    %p174 = por %p172, %p173
    %p175 = scmp.ne.s32.totalorder %s161, %s162
    %p176 = scmp.eq.s32.totalorder %s18, 1
    %p177 = por %p175, %p176
    %p179 = scmp.ne.s32.totalorder %s162, %s178
    %p180 = scmp.eq.s32.totalorder %s18, 0
    %p181 = por %p179, %p180
    %p182 = scmp.le.s32.totalorder 1, %s12
    %p183 = scmp.lt.s32.totalorder %s12, 3
    %p184 = pnand %p182, %p183
    %p185 = pneg %p184
    // Predicated region
    $region9: #{resblk_forward.5} parent=5 // pred_check
      _
    $region10: #{resblk_forward.5} parent=5 // pred_check_branch
      %187 = sbr.rel (%p184) target = $region12
    $region11: #{resblk_forward.5} parent=5 // pred_region
      %s188 = ssub.s32 %s12, 1
      // Predicated region
      $region13: #{resblk_forward.5} parent=11 // pred_check
        %p189 = pneg %p59
      $region14: #{resblk_forward.5} parent=11 // pred_check_branch
        %191 = sbr.rel (%p189) target = $region16
      $region15: #{resblk_forward.5} parent=11 // pred_region
        _
      $region16: #{resblk_forward.5} parent=11 // pred_fallthru
        _
      // Predicated region
      $region17: #{resblk_forward.5} parent=11 // pred_check
        %p192 = pneg %p80
      $region18: #{resblk_forward.5} parent=11 // pred_check_branch
        %194 = sbr.rel (%p192) target = $region20
      $region19: #{resblk_forward.5} parent=11 // pred_region
        _
      $region20: #{resblk_forward.5} parent=11 // pred_fallthru
        _
      // Predicated region
      $region21: #{resblk_forward.5} parent=11 // pred_check
        %p195 = pneg %p127
      $region22: #{resblk_forward.5} parent=11 // pred_check_branch
        %197 = sbr.rel (%p195) target = $region24
      $region23: #{resblk_forward.5} parent=11 // pred_region
        _
      $region24: #{resblk_forward.5} parent=11 // pred_fallthru
        _
      // Predicated region
      $region25: #{resblk_forward.5} parent=11 // pred_check
        %p198 = pneg %p148
      $region26: #{resblk_forward.5} parent=11 // pred_check_branch
        %200 = sbr.rel (%p198) target = $region28
      $region27: #{resblk_forward.5} parent=11 // pred_region
        _
      $region28: #{resblk_forward.5} parent=11 // pred_fallthru
        _
    $region12: #{resblk_forward.5} parent=5 // pred_fallthru
      _
    %p201 = scmp.lt.s32.totalorder %s12, 2
    // Predicated region
    $region29: #{resblk_forward.5} parent=5 // pred_check
      %p202 = pneg %p201
    $region30: #{resblk_forward.5} parent=5 // pred_check_branch
      %204 = sbr.rel (%p202) target = $region32
    $region31: #{resblk_forward.5} parent=5 // pred_region
      // Predicated region
      $region33: #{resblk_forward.5} parent=31 // pred_check
        %p205 = pneg %p32
      $region34: #{resblk_forward.5} parent=31 // pred_check_branch
        %207 = sbr.rel (%p205) target = $region36
      $region35: #{resblk_forward.5} parent=31 // pred_region
        %p208 = scmp.lt.s32.totalorder %s12, 1
        %s209 = scalar_select %p208, %s12, 1
        %s210 = smul.addr %s209, 36
        %s211 = smul.addr %s210, 8
        %s212 = scalar_lea.vmem %s0, %s211
      $region36: #{resblk_forward.5} parent=31 // pred_fallthru
        _
      // Predicated region
      $region37: #{resblk_forward.5} parent=31 // pred_check
        %p213 = pneg %p100
      $region38: #{resblk_forward.5} parent=31 // pred_check_branch
        %215 = sbr.rel (%p213) target = $region40
      $region39: #{resblk_forward.5} parent=31 // pred_region
        %p216 = scmp.lt.s32.totalorder %s12, 1
        %s217 = scalar_select %p216, %s12, 1
        %s218 = smul.addr %s217, 36
        %s219 = smul.addr %s218, 8
        %s220 = scalar_lea.vmem %s3, %s219
      $region40: #{resblk_forward.5} parent=31 // pred_fallthru
        _
    $region32: #{resblk_forward.5} parent=5 // pred_fallthru
      _
    %p221 = scmp.le.s32.totalorder 1, %s12
    %p222 = scmp.lt.s32.totalorder %s12, 3
    %p223 = pnand %p221, %p222
    %p224 = pneg %p223
    // Predicated region
    $region41: #{resblk_forward.5} parent=5 // pred_check
      _
    $region42: #{resblk_forward.5} parent=5 // pred_check_branch
      %226 = sbr.rel (%p223) target = $region44
    $region43: #{resblk_forward.5} parent=5 // pred_region
      %s227 = ssub.s32 %s12, 1
      %p228 = scmp.lt.s32.totalorder %s17, 1
      %s229 = scalar_select %p228, %s17, 1
      %s230 = smul.addr %s229, 36
      %s231 = smul.addr %s230, 8
      %s232 = scalar_lea.vmem %s0, %s231
      %p233 = pneg %p38
      %p234 = pneg %p35
      %p235 = pneg %p59
      %p236 = pneg %p56
      %p237 = pneg %p80
      %p238 = pneg %p77
      %p239 = scmp.lt.s32.totalorder %s17, 1
      %s240 = scalar_select %p239, %s17, 1
      %s241 = smul.addr %s240, 36
      %s242 = smul.addr %s241, 8
      %s243 = scalar_lea.vmem %s3, %s242
      %p244 = pneg %p106
      %p245 = pneg %p103
      %p246 = pneg %p127
      %p247 = pneg %p124
      %p248 = pneg %p148
      %p249 = pneg %p145
      %p250 = pneg %p174
      %p251 = pneg %p171
      %p252 = scmp.lt.s32.totalorder %s17, 1
      %s253 = scalar_select %p252, %s17, 1
      %s254 = smul.addr %s253, 36
      %s255 = smul.addr %s254, 8
      %s256 = scalar_lea.vmem %s6, %s255
      %p257 = scmp.lt.s32.totalorder %s17, 1
      %s258 = scalar_select %p257, %s17, 1
      %s259 = smul.addr %s258, 36
      %s260 = smul.addr %s259, 8
      %s261 = scalar_lea.vmem %s0, %s260
      %p262 = scmp.lt.s32.totalorder %s17, 1
      %s263 = scalar_select %p262, %s17, 1
      %s264 = smul.addr %s263, 36
      %s265 = smul.addr %s264, 8
      %s266 = scalar_lea.vmem %s3, %s265
      %p267 = scmp.lt.s32.totalorder %s17, 1
      %s268 = scalar_select %p267, %s17, 1
      %s269 = smul.addr %s268, 36
      %s270 = smul.addr %s269, 8
      %s271 = scalar_lea.vmem %s6, %s270
      %v272 = vld [vmem:[%s261] sm:$0xff]
      %v273 = vld [vmem:[%s261 + $0x8] sm:$0xff]
      %v274 = vld [vmem:[%s261 + $0x10] sm:$0xff]
      %v275 = vld [vmem:[%s261 + $0x18] sm:$0xff]
      %v276 = vld [vmem:[%s261 + $0x20] sm:$0xff]
      %v277 = vld [vmem:[%s261 + $0x28] sm:$0xff]
      %v278 = vld [vmem:[%s261 + $0x30] sm:$0xff]
      %v279 = vld [vmem:[%s261 + $0x38] sm:$0xff]
      %v280 = vld [vmem:[%s261 + $0x40] sm:$0xff]
      %v281 = vld [vmem:[%s261 + $0x48] sm:$0xff]
      %v282 = vld [vmem:[%s261 + $0x50] sm:$0xff]
      %v283 = vld [vmem:[%s261 + $0x58] sm:$0xff]
      %v284 = vld [vmem:[%s261 + $0x60] sm:$0xff]
      %v285 = vld [vmem:[%s261 + $0x68] sm:$0xff]
      %v286 = vld [vmem:[%s261 + $0x70] sm:$0xff]
      %v287 = vld [vmem:[%s261 + $0x78] sm:$0xff]
      %v288 = vld [vmem:[%s261 + $0x80] sm:$0xff]
      %v289 = vld [vmem:[%s261 + $0x88] sm:$0xff]
      %v290 = vld [vmem:[%s261 + $0x90] sm:$0xff]
      %v291 = vld [vmem:[%s261 + $0x98] sm:$0xff]
      %v292 = vld [vmem:[%s261 + $0xa0] sm:$0xff]
      %v293 = vld [vmem:[%s261 + $0xa8] sm:$0xff]
      %v294 = vld [vmem:[%s261 + $0xb0] sm:$0xff]
      %v295 = vld [vmem:[%s261 + $0xb8] sm:$0xff]
      %v296 = vld [vmem:[%s261 + $0xc0] sm:$0xff]
      %v297 = vld [vmem:[%s261 + $0xc8] sm:$0xff]
      %v298 = vld [vmem:[%s261 + $0xd0] sm:$0xff]
      %v299 = vld [vmem:[%s261 + $0xd8] sm:$0xff]
      %v300 = vld [vmem:[%s261 + $0xe0] sm:$0xff]
      %v301 = vld [vmem:[%s261 + $0xe8] sm:$0xff]
      %v302 = vld [vmem:[%s261 + $0xf0] sm:$0xff]
      %v303 = vld [vmem:[%s261 + $0xf8] sm:$0xff]
      %v304 = vld [vmem:[%s261 + $0x100] sm:$0xff]
      %v305 = vld [vmem:[%s261 + $0x108] sm:$0xff]
      %v306 = vld [vmem:[%s261 + $0x110] sm:$0xff]
      %v307 = vld [vmem:[%s261 + $0x118] sm:$0x3f]
      %v308 = vld [vmem:[%s1] sm:$0x1]
      %v310 = vperm.slane %v308, 0
      %v312 = vmul.f32 %v272, %v310
      %v313 = vmul.f32 %v273, %v310
      %v314 = vmul.f32 %v274, %v310
      %v315 = vmul.f32 %v275, %v310
      %v316 = vmul.f32 %v276, %v310
      %v317 = vmul.f32 %v277, %v310
      %v318 = vmul.f32 %v278, %v310
      %v319 = vmul.f32 %v279, %v310
      %v320 = vmul.f32 %v280, %v310
      %v321 = vmul.f32 %v281, %v310
      %v322 = vmul.f32 %v282, %v310
      %v323 = vmul.f32 %v283, %v310
      %v324 = vmul.f32 %v284, %v310
      %v325 = vmul.f32 %v285, %v310
      %v326 = vmul.f32 %v286, %v310
      %v327 = vmul.f32 %v287, %v310
      %v328 = vmul.f32 %v288, %v310
      %v329 = vmul.f32 %v289, %v310
      %v330 = vmul.f32 %v290, %v310
      %v331 = vmul.f32 %v291, %v310
      %v332 = vmul.f32 %v292, %v310
      %v333 = vmul.f32 %v293, %v310
      %v334 = vmul.f32 %v294, %v310
      %v335 = vmul.f32 %v295, %v310
      %v336 = vmul.f32 %v296, %v310
      %v337 = vmul.f32 %v297, %v310
      %v338 = vmul.f32 %v298, %v310
      %v339 = vmul.f32 %v299, %v310
      %v340 = vmul.f32 %v300, %v310
      %v341 = vmul.f32 %v301, %v310
      %v342 = vmul.f32 %v302, %v310
      %v343 = vmul.f32 %v303, %v310
      %v344 = vmul.f32 %v304, %v310
      %v345 = vmul.f32 %v305, %v310
      %v346 = vmul.f32 %v306, %v310
      %v347 = vmul.f32 %v307, %v310
      %v348 = vld [vmem:[%s2] sm:$0x1]
      %v350 = vperm.slane %v348, 0
      %v352 = vadd.f32 %v312, %v350
      %v353 = vadd.f32 %v313, %v350
      %v354 = vadd.f32 %v314, %v350
      %v355 = vadd.f32 %v315, %v350
      %v356 = vadd.f32 %v316, %v350
      %v357 = vadd.f32 %v317, %v350
      %v358 = vadd.f32 %v318, %v350
      %v359 = vadd.f32 %v319, %v350
      %v360 = vadd.f32 %v320, %v350
      %v361 = vadd.f32 %v321, %v350
      %v362 = vadd.f32 %v322, %v350
      %v363 = vadd.f32 %v323, %v350
      %v364 = vadd.f32 %v324, %v350
      %v365 = vadd.f32 %v325, %v350
      %v366 = vadd.f32 %v326, %v350
      %v367 = vadd.f32 %v327, %v350
      %v368 = vadd.f32 %v328, %v350
      %v369 = vadd.f32 %v329, %v350
      %v370 = vadd.f32 %v330, %v350
      %v371 = vadd.f32 %v331, %v350
      %v372 = vadd.f32 %v332, %v350
      %v373 = vadd.f32 %v333, %v350
      %v374 = vadd.f32 %v334, %v350
      %v375 = vadd.f32 %v335, %v350
      %v376 = vadd.f32 %v336, %v350
      %v377 = vadd.f32 %v337, %v350
      %v378 = vadd.f32 %v338, %v350
      %v379 = vadd.f32 %v339, %v350
      %v380 = vadd.f32 %v340, %v350
      %v381 = vadd.f32 %v341, %v350
      %v382 = vadd.f32 %v342, %v350
      %v383 = vadd.f32 %v343, %v350
      %v384 = vadd.f32 %v344, %v350
      %v385 = vadd.f32 %v345, %v350
      %v386 = vadd.f32 %v346, %v350
      %v387 = vadd.f32 %v347, %v350
      %v388 = vld [vmem:[%s266] sm:$0xff]
      %v389 = vld [vmem:[%s266 + $0x8] sm:$0xff]
      %v390 = vld [vmem:[%s266 + $0x10] sm:$0xff]
      %v391 = vld [vmem:[%s266 + $0x18] sm:$0xff]
      %v392 = vld [vmem:[%s266 + $0x20] sm:$0xff]
      %v393 = vld [vmem:[%s266 + $0x28] sm:$0xff]
      %v394 = vld [vmem:[%s266 + $0x30] sm:$0xff]
      %v395 = vld [vmem:[%s266 + $0x38] sm:$0xff]
      %v396 = vld [vmem:[%s266 + $0x40] sm:$0xff]
      %v397 = vld [vmem:[%s266 + $0x48] sm:$0xff]
      %v398 = vld [vmem:[%s266 + $0x50] sm:$0xff]
      %v399 = vld [vmem:[%s266 + $0x58] sm:$0xff]
      %v400 = vld [vmem:[%s266 + $0x60] sm:$0xff]
      %v401 = vld [vmem:[%s266 + $0x68] sm:$0xff]
      %v402 = vld [vmem:[%s266 + $0x70] sm:$0xff]
      %v403 = vld [vmem:[%s266 + $0x78] sm:$0xff]
      %v404 = vld [vmem:[%s266 + $0x80] sm:$0xff]
      %v405 = vld [vmem:[%s266 + $0x88] sm:$0xff]
      %v406 = vld [vmem:[%s266 + $0x90] sm:$0xff]
      %v407 = vld [vmem:[%s266 + $0x98] sm:$0xff]
      %v408 = vld [vmem:[%s266 + $0xa0] sm:$0xff]
      %v409 = vld [vmem:[%s266 + $0xa8] sm:$0xff]
      %v410 = vld [vmem:[%s266 + $0xb0] sm:$0xff]
      %v411 = vld [vmem:[%s266 + $0xb8] sm:$0xff]
      %v412 = vld [vmem:[%s266 + $0xc0] sm:$0xff]
      %v413 = vld [vmem:[%s266 + $0xc8] sm:$0xff]
      %v414 = vld [vmem:[%s266 + $0xd0] sm:$0xff]
      %v415 = vld [vmem:[%s266 + $0xd8] sm:$0xff]
      %v416 = vld [vmem:[%s266 + $0xe0] sm:$0xff]
      %v417 = vld [vmem:[%s266 + $0xe8] sm:$0xff]
      %v418 = vld [vmem:[%s266 + $0xf0] sm:$0xff]
      %v419 = vld [vmem:[%s266 + $0xf8] sm:$0xff]
      %v420 = vld [vmem:[%s266 + $0x100] sm:$0xff]
      %v421 = vld [vmem:[%s266 + $0x108] sm:$0xff]
      %v422 = vld [vmem:[%s266 + $0x110] sm:$0xff]
      %v423 = vld [vmem:[%s266 + $0x118] sm:$0x3f]
      %v424 = vld [vmem:[%s4] sm:$0x1]
      %v426 = vperm.slane %v424, 0
      %v428 = vmul.f32 %v388, %v426
      %v429 = vmul.f32 %v389, %v426
      %v430 = vmul.f32 %v390, %v426
      %v431 = vmul.f32 %v391, %v426
      %v432 = vmul.f32 %v392, %v426
      %v433 = vmul.f32 %v393, %v426
      %v434 = vmul.f32 %v394, %v426
      %v435 = vmul.f32 %v395, %v426
      %v436 = vmul.f32 %v396, %v426
      %v437 = vmul.f32 %v397, %v426
      %v438 = vmul.f32 %v398, %v426
      %v439 = vmul.f32 %v399, %v426
      %v440 = vmul.f32 %v400, %v426
      %v441 = vmul.f32 %v401, %v426
      %v442 = vmul.f32 %v402, %v426
      %v443 = vmul.f32 %v403, %v426
      %v444 = vmul.f32 %v404, %v426
      %v445 = vmul.f32 %v405, %v426
      %v446 = vmul.f32 %v406, %v426
      %v447 = vmul.f32 %v407, %v426
      %v448 = vmul.f32 %v408, %v426
      %v449 = vmul.f32 %v409, %v426
      %v450 = vmul.f32 %v410, %v426
      %v451 = vmul.f32 %v411, %v426
      %v452 = vmul.f32 %v412, %v426
      %v453 = vmul.f32 %v413, %v426
      %v454 = vmul.f32 %v414, %v426
      %v455 = vmul.f32 %v415, %v426
      %v456 = vmul.f32 %v416, %v426
      %v457 = vmul.f32 %v417, %v426
      %v458 = vmul.f32 %v418, %v426
      %v459 = vmul.f32 %v419, %v426
      %v460 = vmul.f32 %v420, %v426
      %v461 = vmul.f32 %v421, %v426
      %v462 = vmul.f32 %v422, %v426
      %v463 = vmul.f32 %v423, %v426
      %v464 = vld [vmem:[%s5] sm:$0x1]
      %v466 = vperm.slane %v464, 0
      %v468 = vadd.f32 %v428, %v466
      %v469 = vadd.f32 %v429, %v466
      %v470 = vadd.f32 %v430, %v466
      %v471 = vadd.f32 %v431, %v466
      %v472 = vadd.f32 %v432, %v466
      %v473 = vadd.f32 %v433, %v466
      %v474 = vadd.f32 %v434, %v466
      %v475 = vadd.f32 %v435, %v466
      %v476 = vadd.f32 %v436, %v466
      %v477 = vadd.f32 %v437, %v466
      %v478 = vadd.f32 %v438, %v466
      %v479 = vadd.f32 %v439, %v466
      %v480 = vadd.f32 %v440, %v466
      %v481 = vadd.f32 %v441, %v466
      %v482 = vadd.f32 %v442, %v466
      %v483 = vadd.f32 %v443, %v466
      %v484 = vadd.f32 %v444, %v466
      %v485 = vadd.f32 %v445, %v466
      %v486 = vadd.f32 %v446, %v466
      %v487 = vadd.f32 %v447, %v466
      %v488 = vadd.f32 %v448, %v466
      %v489 = vadd.f32 %v449, %v466
      %v490 = vadd.f32 %v450, %v466
      %v491 = vadd.f32 %v451, %v466
      %v492 = vadd.f32 %v452, %v466
      %v493 = vadd.f32 %v453, %v466
      %v494 = vadd.f32 %v454, %v466
      %v495 = vadd.f32 %v455, %v466
      %v496 = vadd.f32 %v456, %v466
      %v497 = vadd.f32 %v457, %v466
      %v498 = vadd.f32 %v458, %v466
      %v499 = vadd.f32 %v459, %v466
      %v500 = vadd.f32 %v460, %v466
      %v501 = vadd.f32 %v461, %v466
      %v502 = vadd.f32 %v462, %v466
      %v503 = vadd.f32 %v463, %v466
      %v504 = vadd.f32 %v352, %v468
      %v505 = vadd.f32 %v353, %v469
      %v506 = vadd.f32 %v354, %v470
      %v507 = vadd.f32 %v355, %v471
      %v508 = vadd.f32 %v356, %v472
      %v509 = vadd.f32 %v357, %v473
      %v510 = vadd.f32 %v358, %v474
      %v511 = vadd.f32 %v359, %v475
      %v512 = vadd.f32 %v360, %v476
      %v513 = vadd.f32 %v361, %v477
      %v514 = vadd.f32 %v362, %v478
      %v515 = vadd.f32 %v363, %v479
      %v516 = vadd.f32 %v364, %v480
      %v517 = vadd.f32 %v365, %v481
      %v518 = vadd.f32 %v366, %v482
      %v519 = vadd.f32 %v367, %v483
      %v520 = vadd.f32 %v368, %v484
      %v521 = vadd.f32 %v369, %v485
      %v522 = vadd.f32 %v370, %v486
      %v523 = vadd.f32 %v371, %v487
      %v524 = vadd.f32 %v372, %v488
      %v525 = vadd.f32 %v373, %v489
      %v526 = vadd.f32 %v374, %v490
      %v527 = vadd.f32 %v375, %v491
      %v528 = vadd.f32 %v376, %v492
      %v529 = vadd.f32 %v377, %v493
      %v530 = vadd.f32 %v378, %v494
      %v531 = vadd.f32 %v379, %v495
      %v532 = vadd.f32 %v380, %v496
      %v533 = vadd.f32 %v381, %v497
      %v534 = vadd.f32 %v382, %v498
      %v535 = vadd.f32 %v383, %v499
      %v536 = vadd.f32 %v384, %v500
      %v537 = vadd.f32 %v385, %v501
      %v538 = vadd.f32 %v386, %v502
      %v539 = vadd.f32 %v387, %v503
      %v540 = vmax.f32 %v504, 0.0
      %v541 = vmax.f32 %v505, 0.0
      %v542 = vmax.f32 %v506, 0.0
      %v543 = vmax.f32 %v507, 0.0
      %v544 = vmax.f32 %v508, 0.0
      %v545 = vmax.f32 %v509, 0.0
      %v546 = vmax.f32 %v510, 0.0
      %v547 = vmax.f32 %v511, 0.0
      %v548 = vmax.f32 %v512, 0.0
      %v549 = vmax.f32 %v513, 0.0
      %v550 = vmax.f32 %v514, 0.0
      %v551 = vmax.f32 %v515, 0.0
      %v552 = vmax.f32 %v516, 0.0
      %v553 = vmax.f32 %v517, 0.0
      %v554 = vmax.f32 %v518, 0.0
      %v555 = vmax.f32 %v519, 0.0
      %v556 = vmax.f32 %v520, 0.0
      %v557 = vmax.f32 %v521, 0.0
      %v558 = vmax.f32 %v522, 0.0
      %v559 = vmax.f32 %v523, 0.0
      %v560 = vmax.f32 %v524, 0.0
      %v561 = vmax.f32 %v525, 0.0
      %v562 = vmax.f32 %v526, 0.0
      %v563 = vmax.f32 %v527, 0.0
      %v564 = vmax.f32 %v528, 0.0
      %v565 = vmax.f32 %v529, 0.0
      %v566 = vmax.f32 %v530, 0.0
      %v567 = vmax.f32 %v531, 0.0
      %v568 = vmax.f32 %v532, 0.0
      %v569 = vmax.f32 %v533, 0.0
      %v570 = vmax.f32 %v534, 0.0
      %v571 = vmax.f32 %v535, 0.0
      %v572 = vmax.f32 %v536, 0.0
      %v573 = vmax.f32 %v537, 0.0
      %v574 = vmax.f32 %v538, 0.0
      %v575 = vmax.f32 %v539, 0.0
      %vm576 = vcmask 64512
      %577 = vst.msk [vmem:[%s271] sm:$0xff] %vm576, %v540
      %578 = vst.msk [vmem:[%s271 + $0x8] sm:$0xff] %vm576, %v541
      %579 = vst.msk [vmem:[%s271 + $0x10] sm:$0xff] %vm576, %v542
      %580 = vst.msk [vmem:[%s271 + $0x18] sm:$0xff] %vm576, %v543
      %581 = vst.msk [vmem:[%s271 + $0x20] sm:$0xff] %vm576, %v544
      %582 = vst.msk [vmem:[%s271 + $0x28] sm:$0xff] %vm576, %v545
      %583 = vst.msk [vmem:[%s271 + $0x30] sm:$0xff] %vm576, %v546
      %584 = vst.msk [vmem:[%s271 + $0x38] sm:$0xff] %vm576, %v547
      %585 = vst.msk [vmem:[%s271 + $0x40] sm:$0xff] %vm576, %v548
      %586 = vst.msk [vmem:[%s271 + $0x48] sm:$0xff] %vm576, %v549
      %587 = vst.msk [vmem:[%s271 + $0x50] sm:$0xff] %vm576, %v550
      %588 = vst.msk [vmem:[%s271 + $0x58] sm:$0xff] %vm576, %v551
      %589 = vst.msk [vmem:[%s271 + $0x60] sm:$0xff] %vm576, %v552
      %590 = vst.msk [vmem:[%s271 + $0x68] sm:$0xff] %vm576, %v553
      %591 = vst.msk [vmem:[%s271 + $0x70] sm:$0xff] %vm576, %v554
      %592 = vst.msk [vmem:[%s271 + $0x78] sm:$0xff] %vm576, %v555
      %593 = vst.msk [vmem:[%s271 + $0x80] sm:$0xff] %vm576, %v556
      %594 = vst.msk [vmem:[%s271 + $0x88] sm:$0xff] %vm576, %v557
      %595 = vst.msk [vmem:[%s271 + $0x90] sm:$0xff] %vm576, %v558
      %596 = vst.msk [vmem:[%s271 + $0x98] sm:$0xff] %vm576, %v559
      %597 = vst.msk [vmem:[%s271 + $0xa0] sm:$0xff] %vm576, %v560
      %598 = vst.msk [vmem:[%s271 + $0xa8] sm:$0xff] %vm576, %v561
      %599 = vst.msk [vmem:[%s271 + $0xb0] sm:$0xff] %vm576, %v562
      %600 = vst.msk [vmem:[%s271 + $0xb8] sm:$0xff] %vm576, %v563
      %601 = vst.msk [vmem:[%s271 + $0xc0] sm:$0xff] %vm576, %v564
      %602 = vst.msk [vmem:[%s271 + $0xc8] sm:$0xff] %vm576, %v565
      %603 = vst.msk [vmem:[%s271 + $0xd0] sm:$0xff] %vm576, %v566
      %604 = vst.msk [vmem:[%s271 + $0xd8] sm:$0xff] %vm576, %v567
      %605 = vst.msk [vmem:[%s271 + $0xe0] sm:$0xff] %vm576, %v568
      %606 = vst.msk [vmem:[%s271 + $0xe8] sm:$0xff] %vm576, %v569
      %607 = vst.msk [vmem:[%s271 + $0xf0] sm:$0xff] %vm576, %v570
      %608 = vst.msk [vmem:[%s271 + $0xf8] sm:$0xff] %vm576, %v571
      %609 = vst.msk [vmem:[%s271 + $0x100] sm:$0xff] %vm576, %v572
      %610 = vst.msk [vmem:[%s271 + $0x108] sm:$0xff] %vm576, %v573
      %611 = vst.msk [vmem:[%s271 + $0x110] sm:$0xff] %vm576, %v574
      %vm612 = vcmask 62464
      %613 = vst.msk [vmem:[%s271 + $0x118] sm:$0x3f] %vm612, %v575
      %p614 = scmp.lt.s32.totalorder %s17, 1
      %s615 = scalar_select %p614, %s17, 1
      %s616 = smul.addr %s615, 36
      %s617 = smul.addr %s616, 8
      %s618 = scalar_lea.vmem %s6, %s617
      // Predicated region
      $region45: #{resblk_forward.5} parent=43 // pred_check
        %p619 = pneg %p171
      $region46: #{resblk_forward.5} parent=43 // pred_check_branch
        %621 = sbr.rel (%p619) target = $region48
      $region47: #{resblk_forward.5} parent=43 // pred_region
        _
      $region48: #{resblk_forward.5} parent=43 // pred_fallthru
        _
    $region44: #{resblk_forward.5} parent=5 // pred_fallthru
      _
    %p622 = scmp.le.s32.totalorder 2, %s12
    // Predicated region
    $region49: #{resblk_forward.5} parent=5 // pred_check
      %p623 = pneg %p622
    $region50: #{resblk_forward.5} parent=5 // pred_check_branch
      %625 = sbr.rel (%p623) target = $region52
    $region51: #{resblk_forward.5} parent=5 // pred_region
      %s626 = ssub.s32 %s12, 2
      // Predicated region
      $region53: #{resblk_forward.5} parent=51 // pred_check
        %p627 = pneg %p177
      $region54: #{resblk_forward.5} parent=51 // pred_check_branch
        %629 = sbr.rel (%p627) target = $region56
      $region55: #{resblk_forward.5} parent=51 // pred_region
        %p630 = scmp.lt.s32.totalorder %s18, 1
        %s631 = scalar_select %p630, %s18, 1
        %s632 = smul.addr %s631, 36
        %s633 = smul.addr %s632, 8
        %s634 = scalar_lea.vmem %s6, %s633
      $region56: #{resblk_forward.5} parent=51 // pred_fallthru
        _
    $region52: #{resblk_forward.5} parent=5 // pred_fallthru
      _
  $region6: #{resblk_forward.5} parent=0 // loop_footer
    %s16 = sadd.s32 1, %s12
  $region7: #{resblk_forward.5} parent=0 // loop_footer_branch
    %11 = sbr.rel target = $region3
  $region8: #{resblk_forward.5} parent=0 // loop_exit
    _

// kernel: resblk_forward.3
$region0: #{resblk_forward.3}
  #allocation0 [shape = 'u32[]', space=smem, size = 0x4, offset = 0x4, fixed_abs, tag = 'smem constant byte address 0x4 - core index']
  #allocation1 [shape = 'u32[72,128]{1,0:T(1,128)}', space=vmem, size = 0x9000, scoped, tag = 'internal scratch']
  %s0 = inlined_call_operand.vmem [shape: bf16[2,324,4], index: 0, kind: input, shape index: {}]
  %s1 = inlined_call_operand.vmem [shape: f32[286,1], index: 1, kind: input, shape index: {}]
  %s2 = inlined_call_operand.vmem [shape: bf16[3,3,4,8], index: 2, kind: input, shape index: {}]
  %s3 = inlined_call_operand.vmem [shape: bf16[4,8], index: 3, kind: input, shape index: {}]
  %s4 = inlined_call_operand.vmem [shape: f32[2,324,8], index: 4, kind: output, shape index: {0}]
  %s5 = inlined_call_operand.vmem [shape: f32[2,2,8], index: 5, kind: output, shape index: {1}]
  %s6 = inlined_call_operand.vmem [shape: f32[2,286,8], index: 6, kind: output, shape index: {2}]
  %s7 = inlined_call_operand.vmem [shape: f32[2,2,8], index: 7, kind: output, shape index: {3}]
  %8 = xla_tuple %s4, %s5, %s6, %s7
  %s9 = sld [smem:[#allocation0]]
  $region73: #{resblk_forward.3} parent=0
    _
  %s11 = ssub.s32 1, %s9
  %s12 = scalar_select 0, %s11, %s9
  loop: start=0, step=1, limit=4
  $region2: #{resblk_forward.3} parent=0 // loop_pre_header
    _
  $region3: #{resblk_forward.3} parent=0 // loop_header
    %s14 = sphi 0, %s18
    %p15 = scmp.ge.s32.totalorder %s14, 4
    %s24 = sphi 0, %s26
    %s27 = sphi 0, %s24
    %s28 = sphi 0, %s27
    %s44 = sphi 0, %s28
    %s48 = sphi 0, %s48
    %s50 = sphi 0, %s48
    %s51 = sphi 0, %s50
    %s65 = sphi 0, %s51
    %s69 = sphi 0, %s69
    %s71 = sphi 0, %s69
    %s72 = sphi 0, %s71
    %s86 = sphi 0, %s72
    %s90 = sphi 0, %s90
    %s92 = sphi 0, %s90
    %s93 = sphi 0, %s92
    %s107 = sphi 0, %s93
    %s113 = sphi 0, %s115
    %s116 = sphi 0, %s113
    %s117 = sphi 0, %s116
    %s133 = sphi 0, %s117
    %s139 = sphi 0, %s141
    %s142 = sphi 0, %s139
    %s143 = sphi 0, %s142
    %s159 = sphi 0, %s143
    %s165 = sphi 0, %s167
    %s168 = sphi 0, %s165
    %s169 = sphi 0, %s168
    %s185 = sphi 0, %s169
    %s191 = sphi 0, %s193
    %s194 = sphi 0, %s191
    %s195 = sphi 0, %s194
    %s211 = sphi 0, %s195
  $region4: #{resblk_forward.3} parent=0 // loop_header_branch
    %17 = sbr.rel (%p15) target = $region8
  $region5: #{resblk_forward.3} parent=0 // loop_body
    %s19 = ssub.s32 %s14, 1
    %s20 = ssub.s32 %s14, 2
    %s21 = sadd.s32 %s14, 1
    %s22 = ssub.s32 %s14, %s21
    %p23 = scmp.eq.s32.totalorder %s22, 0
    %s25 = sadd.s32 %s24, 1
    %s26 = scalar_select %p23, %s24, %s25
    %p29 = pneg %p23
    %p30 = scmp.eq.s32.totalorder %s14, 1
    %p31 = por %p29, %p30
    %p32 = scmp.ne.s32.totalorder %s24, %s27
    %p33 = scmp.eq.s32.totalorder %s14, 0
    %p34 = por %p32, %p33
    %p35 = scmp.ne.s32.totalorder %s24, %s27
    %p36 = scmp.eq.s32.totalorder %s19, 1
    %p37 = por %p35, %p36
    %p38 = scmp.ne.s32.totalorder %s27, %s28
    %p39 = scmp.eq.s32.totalorder %s19, 0
    %p40 = por %p38, %p39
    %p41 = scmp.ne.s32.totalorder %s27, %s28
    %p42 = scmp.eq.s32.totalorder %s20, 1
    %p43 = por %p41, %p42
    %p45 = scmp.ne.s32.totalorder %s28, %s44
    %p46 = scmp.eq.s32.totalorder %s20, 0
    %p47 = por %p45, %p46
    %s49 = sadd.s32 %s48, 1
    %p52 = scmp.eq.s32.totalorder %s14, 1
    %p53 = scmp.ne.s32.totalorder %s48, %s50
    %p54 = scmp.eq.s32.totalorder %s14, 0
    %p55 = por %p53, %p54
    %p56 = scmp.ne.s32.totalorder %s48, %s50
    %p57 = scmp.eq.s32.totalorder %s19, 1
    %p58 = por %p56, %p57
    %p59 = scmp.ne.s32.totalorder %s50, %s51
    %p60 = scmp.eq.s32.totalorder %s19, 0
    %p61 = por %p59, %p60
    %p62 = scmp.ne.s32.totalorder %s50, %s51
    %p63 = scmp.eq.s32.totalorder %s20, 1
    %p64 = por %p62, %p63
    %p66 = scmp.ne.s32.totalorder %s51, %s65
    %p67 = scmp.eq.s32.totalorder %s20, 0
    %p68 = por %p66, %p67
    %s70 = sadd.s32 %s69, 1
    %p73 = scmp.eq.s32.totalorder %s14, 1
    %p74 = scmp.ne.s32.totalorder %s69, %s71
    %p75 = scmp.eq.s32.totalorder %s14, 0
    %p76 = por %p74, %p75
    %p77 = scmp.ne.s32.totalorder %s69, %s71
    %p78 = scmp.eq.s32.totalorder %s19, 1
    %p79 = por %p77, %p78
    %p80 = scmp.ne.s32.totalorder %s71, %s72
    %p81 = scmp.eq.s32.totalorder %s19, 0
    %p82 = por %p80, %p81
    %p83 = scmp.ne.s32.totalorder %s71, %s72
    %p84 = scmp.eq.s32.totalorder %s20, 1
    %p85 = por %p83, %p84
    %p87 = scmp.ne.s32.totalorder %s72, %s86
    %p88 = scmp.eq.s32.totalorder %s20, 0
    %p89 = por %p87, %p88
    %s91 = sadd.s32 %s90, 1
    %p94 = scmp.eq.s32.totalorder %s14, 1
    %p95 = scmp.ne.s32.totalorder %s90, %s92
    %p96 = scmp.eq.s32.totalorder %s14, 0
    %p97 = por %p95, %p96
    %p98 = scmp.ne.s32.totalorder %s90, %s92
    %p99 = scmp.eq.s32.totalorder %s19, 1
    %p100 = por %p98, %p99
    %p101 = scmp.ne.s32.totalorder %s92, %s93
    %p102 = scmp.eq.s32.totalorder %s19, 0
    %p103 = por %p101, %p102
    %p104 = scmp.ne.s32.totalorder %s92, %s93
    %p105 = scmp.eq.s32.totalorder %s20, 1
    %p106 = por %p104, %p105
    %p108 = scmp.ne.s32.totalorder %s93, %s107
    %p109 = scmp.eq.s32.totalorder %s20, 0
    %p110 = por %p108, %p109
    %s111 = ssub.s32 %s14, %s21
    %p112 = scmp.eq.s32.totalorder %s111, 0
    %s114 = sadd.s32 %s113, 1
    %s115 = scalar_select %p112, %s113, %s114
    %p118 = pneg %p112
    %p119 = scmp.eq.s32.totalorder %s14, 1
    %p120 = por %p118, %p119
    %p121 = scmp.ne.s32.totalorder %s113, %s116
    %p122 = scmp.eq.s32.totalorder %s14, 0
    %p123 = por %p121, %p122
    %p124 = scmp.ne.s32.totalorder %s113, %s116
    %p125 = scmp.eq.s32.totalorder %s19, 1
    %p126 = por %p124, %p125
    %p127 = scmp.ne.s32.totalorder %s116, %s117
    %p128 = scmp.eq.s32.totalorder %s19, 0
    %p129 = por %p127, %p128
    %p130 = scmp.ne.s32.totalorder %s116, %s117
    %p131 = scmp.eq.s32.totalorder %s20, 1
    %p132 = por %p130, %p131
    %p134 = scmp.ne.s32.totalorder %s117, %s133
    %p135 = scmp.eq.s32.totalorder %s20, 0
    %p136 = por %p134, %p135
    %s137 = ssub.s32 %s14, %s21
    %p138 = scmp.eq.s32.totalorder %s137, 0
    %s140 = sadd.s32 %s139, 1
    %s141 = scalar_select %p138, %s139, %s140
    %p144 = pneg %p138
    %p145 = scmp.eq.s32.totalorder %s14, 1
    %p146 = por %p144, %p145
    %p147 = scmp.ne.s32.totalorder %s139, %s142
    %p148 = scmp.eq.s32.totalorder %s14, 0
    %p149 = por %p147, %p148
    %p150 = scmp.ne.s32.totalorder %s139, %s142
    %p151 = scmp.eq.s32.totalorder %s19, 1
    %p152 = por %p150, %p151
    %p153 = scmp.ne.s32.totalorder %s142, %s143
    %p154 = scmp.eq.s32.totalorder %s19, 0
    %p155 = por %p153, %p154
    %p156 = scmp.ne.s32.totalorder %s142, %s143
    %p157 = scmp.eq.s32.totalorder %s20, 1
    %p158 = por %p156, %p157
    %p160 = scmp.ne.s32.totalorder %s143, %s159
    %p161 = scmp.eq.s32.totalorder %s20, 0
    %p162 = por %p160, %p161
    %s163 = ssub.s32 %s14, %s21
    %p164 = scmp.eq.s32.totalorder %s163, 0
    %s166 = sadd.s32 %s165, 1
    %s167 = scalar_select %p164, %s165, %s166
    %p170 = pneg %p164
    %p171 = scmp.eq.s32.totalorder %s14, 1
    %p172 = por %p170, %p171
    %p173 = scmp.ne.s32.totalorder %s165, %s168
    %p174 = scmp.eq.s32.totalorder %s14, 0
    %p175 = por %p173, %p174
    %p176 = scmp.ne.s32.totalorder %s165, %s168
    %p177 = scmp.eq.s32.totalorder %s19, 1
    %p178 = por %p176, %p177
    %p179 = scmp.ne.s32.totalorder %s168, %s169
    %p180 = scmp.eq.s32.totalorder %s19, 0
    %p181 = por %p179, %p180
    %p182 = scmp.ne.s32.totalorder %s168, %s169
    %p183 = scmp.eq.s32.totalorder %s20, 1
    %p184 = por %p182, %p183
    %p186 = scmp.ne.s32.totalorder %s169, %s185
    %p187 = scmp.eq.s32.totalorder %s20, 0
    %p188 = por %p186, %p187
    %s189 = ssub.s32 %s14, %s21
    %p190 = scmp.eq.s32.totalorder %s189, 0
    %s192 = sadd.s32 %s191, 1
    %s193 = scalar_select %p190, %s191, %s192
    %p196 = pneg %p190
    %p197 = scmp.eq.s32.totalorder %s14, 1
    %p198 = por %p196, %p197
    %p199 = scmp.ne.s32.totalorder %s191, %s194
    %p200 = scmp.eq.s32.totalorder %s14, 0
    %p201 = por %p199, %p200
    %p202 = scmp.ne.s32.totalorder %s191, %s194
    %p203 = scmp.eq.s32.totalorder %s19, 1
    %p204 = por %p202, %p203
    %p205 = scmp.ne.s32.totalorder %s194, %s195
    %p206 = scmp.eq.s32.totalorder %s19, 0
    %p207 = por %p205, %p206
    %p208 = scmp.ne.s32.totalorder %s194, %s195
    %p209 = scmp.eq.s32.totalorder %s20, 1
    %p210 = por %p208, %p209
    %p212 = scmp.ne.s32.totalorder %s195, %s211
    %p213 = scmp.eq.s32.totalorder %s20, 0
    %p214 = por %p212, %p213
    %p215 = scmp.le.s32.totalorder 1, %s14
    %p216 = scmp.lt.s32.totalorder %s14, 3
    %p217 = pnand %p215, %p216
    %p218 = pneg %p217
    // Predicated region
    $region9: #{resblk_forward.3} parent=5 // pred_check
      _
    $region10: #{resblk_forward.3} parent=5 // pred_check_branch
      %220 = sbr.rel (%p217) target = $region12
    $region11: #{resblk_forward.3} parent=5 // pred_region
      %s221 = ssub.s32 %s14, 1
      // Predicated region
      $region13: #{resblk_forward.3} parent=11 // pred_check
        %p222 = pneg %p61
      $region14: #{resblk_forward.3} parent=11 // pred_check_branch
        %224 = sbr.rel (%p222) target = $region16
      $region15: #{resblk_forward.3} parent=11 // pred_region
        _
      $region16: #{resblk_forward.3} parent=11 // pred_fallthru
        _
      // Predicated region
      $region17: #{resblk_forward.3} parent=11 // pred_check
        %p225 = pneg %p82
      $region18: #{resblk_forward.3} parent=11 // pred_check_branch
        %227 = sbr.rel (%p225) target = $region20
      $region19: #{resblk_forward.3} parent=11 // pred_region
        _
      $region20: #{resblk_forward.3} parent=11 // pred_fallthru
        _
      // Predicated region
      $region21: #{resblk_forward.3} parent=11 // pred_check
        %p228 = pneg %p103
      $region22: #{resblk_forward.3} parent=11 // pred_check_branch
        %230 = sbr.rel (%p228) target = $region24
      $region23: #{resblk_forward.3} parent=11 // pred_region
        _
      $region24: #{resblk_forward.3} parent=11 // pred_fallthru
        _
    $region12: #{resblk_forward.3} parent=5 // pred_fallthru
      _
    %p231 = scmp.lt.s32.totalorder %s14, 2
    // Predicated region
    $region25: #{resblk_forward.3} parent=5 // pred_check
      %p232 = pneg %p231
    $region26: #{resblk_forward.3} parent=5 // pred_check_branch
      %234 = sbr.rel (%p232) target = $region28
    $region27: #{resblk_forward.3} parent=5 // pred_region
      // Predicated region
      $region29: #{resblk_forward.3} parent=27 // pred_check
        %p235 = pneg %p34
      $region30: #{resblk_forward.3} parent=27 // pred_check_branch
        %237 = sbr.rel (%p235) target = $region32
      $region31: #{resblk_forward.3} parent=27 // pred_region
        %p238 = scmp.lt.s32.totalorder %s14, 1
        %s239 = scalar_select %p238, %s14, 1
        %s240 = smul.addr %s239, 41
        %s241 = smul.addr %s240, 4
        %s242 = scalar_lea.vmem %s0, %s241
      $region32: #{resblk_forward.3} parent=27 // pred_fallthru
        _
    $region28: #{resblk_forward.3} parent=5 // pred_fallthru
      _
    %p243 = scmp.le.s32.totalorder 1, %s14
    %p244 = scmp.lt.s32.totalorder %s14, 3
    %p245 = pnand %p243, %p244
    %p246 = pneg %p245
    // Predicated region
    $region33: #{resblk_forward.3} parent=5 // pred_check
      _
    $region34: #{resblk_forward.3} parent=5 // pred_check_branch
      %248 = sbr.rel (%p245) target = $region36
    $region35: #{resblk_forward.3} parent=5 // pred_region
      %s249 = ssub.s32 %s14, 1
      %p250 = scmp.lt.s32.totalorder %s19, 1
      %s251 = scalar_select %p250, %s19, 1
      %s252 = smul.addr %s251, 41
      %s253 = smul.addr %s252, 4
      %s254 = scalar_lea.vmem %s0, %s253
      %p255 = pneg %p40
      %p256 = pneg %p37
      %p257 = pneg %p61
      %p258 = pneg %p58
      %p259 = pneg %p82
      %p260 = pneg %p79
      %p261 = pneg %p103
      %p262 = pneg %p100
      %p263 = pneg %p129
      %p264 = pneg %p126
      %p265 = scmp.lt.s32.totalorder %s19, 1
      %s266 = scalar_select %p265, %s19, 1
      %s267 = smul.addr %s266, 41
      %s268 = smul.addr %s267, 8
      %s269 = scalar_lea.vmem %s4, %s268
      %p270 = pneg %p155
      %p271 = pneg %p152
      %p272 = scmp.lt.s32.totalorder %s19, 1
      %s273 = scalar_select %p272, %s19, 1
      %s274 = smul.addr %s273, 2
      %s275 = scalar_lea.vmem %s5, %s274
      %p276 = pneg %p181
      %p277 = pneg %p178
      %p278 = scmp.lt.s32.totalorder %s19, 1
      %s279 = scalar_select %p278, %s19, 1
      %s280 = smul.addr %s279, 36
      %s281 = smul.addr %s280, 8
      %s282 = scalar_lea.vmem %s6, %s281
      %p283 = pneg %p207
      %p284 = pneg %p204
      %p285 = scmp.lt.s32.totalorder %s19, 1
      %s286 = scalar_select %p285, %s19, 1
      %s287 = smul.addr %s286, 2
      %s288 = scalar_lea.vmem %s7, %s287
      %p289 = scmp.lt.s32.totalorder %s19, 1
      %s290 = scalar_select %p289, %s19, 1
      %s291 = smul.addr %s290, 41
      %s292 = smul.addr %s291, 4
      %s293 = scalar_lea.vmem %s0, %s292
      %p294 = scmp.lt.s32.totalorder %s19, 1
      %s295 = scalar_select %p294, %s19, 1
      %s296 = smul.addr %s295, 41
      %s297 = smul.addr %s296, 8
      %s298 = scalar_lea.vmem %s4, %s297
      %p299 = scmp.lt.s32.totalorder %s19, 1
      %s300 = scalar_select %p299, %s19, 1
      %s301 = smul.addr %s300, 2
      %s302 = scalar_lea.vmem %s5, %s301
      %p303 = scmp.lt.s32.totalorder %s19, 1
      %s304 = scalar_select %p303, %s19, 1
      %s305 = smul.addr %s304, 36
      %s306 = smul.addr %s305, 8
      %s307 = scalar_lea.vmem %s6, %s306
      %p308 = scmp.lt.s32.totalorder %s19, 1
      %s309 = scalar_select %p308, %s19, 1
      %s310 = smul.addr %s309, 2
      %s311 = scalar_lea.vmem %s7, %s310
      %v313 = vld [vmem:[%s293] sm:$0xf]
      %v314 = vld [vmem:[%s293 + $0x4] sm:$0xf]
      %v315 = vld [vmem:[%s293 + $0x8] sm:$0xf]
      %v316 = vld [vmem:[%s293 + $0xc] sm:$0xf]
      %v317 = vld [vmem:[%s293 + $0x10] sm:$0xf]
      %v318 = vld [vmem:[%s293 + $0x14] sm:$0xf]
      %v319 = vld [vmem:[%s293 + $0x18] sm:$0xf]
      %v320 = vld [vmem:[%s293 + $0x1c] sm:$0xf]
      %v321 = vld [vmem:[%s293 + $0x20] sm:$0xf]
      %v322 = vld [vmem:[%s293 + $0x24] sm:$0xf]
      %v323 = vld [vmem:[%s293 + $0x28] sm:$0xf]
      %v324 = vld [vmem:[%s293 + $0x2c] sm:$0xf]
      %v325 = vld [vmem:[%s293 + $0x30] sm:$0xf]
      %v326 = vld [vmem:[%s293 + $0x34] sm:$0xf]
      %v327 = vld [vmem:[%s293 + $0x38] sm:$0xf]
      %v328 = vld [vmem:[%s293 + $0x3c] sm:$0xf]
      %v329 = vld [vmem:[%s293 + $0x40] sm:$0xf]
      %v330 = vld [vmem:[%s293 + $0x44] sm:$0xf]
      %v331 = vld [vmem:[%s293 + $0x48] sm:$0xf]
      %v332 = vld [vmem:[%s293 + $0x4c] sm:$0xf]
      %v333 = vld [vmem:[%s293 + $0x50] sm:$0xf]
      %v334 = vld [vmem:[%s293 + $0x54] sm:$0xf]
      %v335 = vld [vmem:[%s293 + $0x58] sm:$0xf]
      %v336 = vld [vmem:[%s293 + $0x5c] sm:$0xf]
      %v337 = vld [vmem:[%s293 + $0x60] sm:$0xf]
      %v338 = vld [vmem:[%s293 + $0x64] sm:$0xf]
      %v339 = vld [vmem:[%s293 + $0x68] sm:$0xf]
      %v340 = vld [vmem:[%s293 + $0x6c] sm:$0xf]
      %v341 = vld [vmem:[%s293 + $0x70] sm:$0xf]
      %v342 = vld [vmem:[%s293 + $0x74] sm:$0xf]
      %v343 = vld [vmem:[%s293 + $0x78] sm:$0xf]
      %v344 = vld [vmem:[%s293 + $0x7c] sm:$0xf]
      %v345 = vld [vmem:[%s293 + $0x80] sm:$0xf]
      %v346 = vld [vmem:[%s293 + $0x84] sm:$0xf]
      %v347 = vld [vmem:[%s293 + $0x88] sm:$0xf]
      %v348 = vld [vmem:[%s293 + $0x8c] sm:$0xf]
      %v349 = vld [vmem:[%s293 + $0x90] sm:$0xf]
      %v350 = vld [vmem:[%s293 + $0x94] sm:$0xf]
      %v351 = vld [vmem:[%s293 + $0x98] sm:$0xf]
      %v352 = vld [vmem:[%s293 + $0x9c] sm:$0xf]
      %v353 = vld [vmem:[%s293 + $0xa0] sm:$0x3]
      %v354 = vld [vmem:[%s1] sm:$0xff]
      %v355 = vld [vmem:[%s1 + $0x8] sm:$0xff]
      %v356 = vld [vmem:[%s1 + $0x10] sm:$0xff]
      %v357 = vld [vmem:[%s1 + $0x18] sm:$0xff]
      %v358 = vld [vmem:[%s1 + $0x20] sm:$0xff]
      %v359 = vld [vmem:[%s1 + $0x28] sm:$0xff]
      %v360 = vld [vmem:[%s1 + $0x30] sm:$0xff]
      %v361 = vld [vmem:[%s1 + $0x38] sm:$0xff]
      %v362 = vld [vmem:[%s1 + $0x40] sm:$0xff]
      %v363 = vld [vmem:[%s1 + $0x48] sm:$0xff]
      %v364 = vld [vmem:[%s1 + $0x50] sm:$0xff]
      %v365 = vld [vmem:[%s1 + $0x58] sm:$0xff]
      %v366 = vld [vmem:[%s1 + $0x60] sm:$0xff]
      %v367 = vld [vmem:[%s1 + $0x68] sm:$0xff]
      %v368 = vld [vmem:[%s1 + $0x70] sm:$0xff]
      %v369 = vld [vmem:[%s1 + $0x78] sm:$0xff]
      %v370 = vld [vmem:[%s1 + $0x80] sm:$0xff]
      %v371 = vld [vmem:[%s1 + $0x88] sm:$0xff]
      %v372 = vld [vmem:[%s1 + $0x90] sm:$0xff]
      %v373 = vld [vmem:[%s1 + $0x98] sm:$0xff]
      %v374 = vld [vmem:[%s1 + $0xa0] sm:$0xff]
      %v375 = vld [vmem:[%s1 + $0xa8] sm:$0xff]
      %v376 = vld [vmem:[%s1 + $0xb0] sm:$0xff]
      %v377 = vld [vmem:[%s1 + $0xb8] sm:$0xff]
      %v378 = vld [vmem:[%s1 + $0xc0] sm:$0xff]
      %v379 = vld [vmem:[%s1 + $0xc8] sm:$0xff]
      %v380 = vld [vmem:[%s1 + $0xd0] sm:$0xff]
      %v381 = vld [vmem:[%s1 + $0xd8] sm:$0xff]
      %v382 = vld [vmem:[%s1 + $0xe0] sm:$0xff]
      %v383 = vld [vmem:[%s1 + $0xe8] sm:$0xff]
      %v384 = vld [vmem:[%s1 + $0xf0] sm:$0xff]
      %v385 = vld [vmem:[%s1 + $0xf8] sm:$0xff]
      %v386 = vld [vmem:[%s1 + $0x100] sm:$0xff]
      %v387 = vld [vmem:[%s1 + $0x108] sm:$0xff]
      %v388 = vld [vmem:[%s1 + $0x110] sm:$0xff]
      %v389 = vld [vmem:[%s1 + $0x118] sm:$0x3f]
      %v390 = vld [vmem:[%s2] sm:$0x3]
      %s391 = scalar_lea.vmem %s2, 2
      %v392 = vld [vmem:[%s391] sm:$0x3]
      %v429 = vunpack.c.l.b16 %v313
      %v430 = vunpack.c.l.b16 %v314
      %v431 = vunpack.c.l.b16 %v315
      %v432 = vunpack.c.l.b16 %v316
      %v433 = vunpack.c.l.b16 %v317
      %v434 = vunpack.c.l.b16 %v318
      %v435 = vunpack.c.l.b16 %v319
      %v436 = vunpack.c.l.b16 %v320
      %v437 = vunpack.c.l.b16 %v321
      %v438 = vunpack.c.l.b16 %v322
      %v439 = vunpack.c.l.b16 %v323
      %v440 = vunpack.c.l.b16 %v324
      %v441 = vunpack.c.l.b16 %v325
      %v442 = vunpack.c.l.b16 %v326
      %v443 = vunpack.c.l.b16 %v327
      %v444 = vunpack.c.l.b16 %v328
      %v445 = vunpack.c.l.b16 %v329
      %v446 = vunpack.c.l.b16 %v330
      %v447 = vunpack.c.l.b16 %v331
      %v448 = vunpack.c.l.b16 %v332
      %v449 = vunpack.c.l.b16 %v333
      %v450 = vunpack.c.l.b16 %v334
      %v451 = vunpack.c.l.b16 %v335
      %v452 = vunpack.c.l.b16 %v336
      %v453 = vunpack.c.l.b16 %v337
      %v454 = vunpack.c.l.b16 %v338
      %v455 = vunpack.c.l.b16 %v339
      %v456 = vunpack.c.l.b16 %v340
      %v457 = vunpack.c.l.b16 %v341
      %v458 = vunpack.c.l.b16 %v342
      %v459 = vunpack.c.l.b16 %v343
      %v460 = vunpack.c.l.b16 %v344
      %v461 = vunpack.c.l.b16 %v345
      %v462 = vunpack.c.l.b16 %v346
      %v463 = vunpack.c.l.b16 %v347
      %v464 = vunpack.c.l.b16 %v348
      %v465 = vpack.c.b16 %v430, %v429
      %v466 = vpack.c.b16 %v432, %v431
      %v467 = vpack.c.b16 %v434, %v433
      %v468 = vpack.c.b16 %v436, %v435
      %v469 = vpack.c.b16 %v438, %v437
      %v470 = vpack.c.b16 %v440, %v439
      %v471 = vpack.c.b16 %v442, %v441
      %v472 = vpack.c.b16 %v444, %v443
      %v473 = vpack.c.b16 %v446, %v445
      %v474 = vpack.c.b16 %v448, %v447
      %v475 = vpack.c.b16 %v450, %v449
      %v476 = vpack.c.b16 %v452, %v451
      %v477 = vpack.c.b16 %v454, %v453
      %v478 = vpack.c.b16 %v456, %v455
      %v479 = vpack.c.b16 %v458, %v457
      %v480 = vpack.c.b16 %v460, %v459
      %v481 = vpack.c.b16 %v462, %v461
      %v482 = vpack.c.b16 %v464, %v463
      %vm483 = vsmask.f32 7424
      %v485 = vshrl.u32 %v465, 16
      %v487 = vshll.u32 %v465, 16
      %v489 = vrot.slane %v487, 1
      %v490 = vor.u32 %v485, %v489
      %v492 = vshll.u32 %v466, 16
      %v494 = vrot.slane %v492, 1
      %v495 = vsel %vm483, %v490, %v494
      %v496 = vshrl.u32 %v466, 16
      %v498 = vor.u32 %v496, %v494
      %v500 = vshll.u32 %v467, 16
      %v502 = vrot.slane %v500, 1
      %v503 = vsel %vm483, %v498, %v502
      %v504 = vshrl.u32 %v467, 16
      %v506 = vor.u32 %v504, %v502
      %v508 = vshll.u32 %v468, 16
      %v510 = vrot.slane %v508, 1
      %v511 = vsel %vm483, %v506, %v510
      %v512 = vshrl.u32 %v468, 16
      %v514 = vor.u32 %v512, %v510
      %v516 = vshll.u32 %v469, 16
      %v518 = vrot.slane %v516, 1
      %v519 = vsel %vm483, %v514, %v518
      %v520 = vshrl.u32 %v469, 16
      %v522 = vor.u32 %v520, %v518
      %v524 = vshll.u32 %v470, 16
      %v526 = vrot.slane %v524, 1
      %v527 = vsel %vm483, %v522, %v526
      %v528 = vshrl.u32 %v470, 16
      %v530 = vor.u32 %v528, %v526
      %v532 = vshll.u32 %v471, 16
      %v534 = vrot.slane %v532, 1
      %v535 = vsel %vm483, %v530, %v534
      %v536 = vshrl.u32 %v471, 16
      %v538 = vor.u32 %v536, %v534
      %v540 = vshll.u32 %v472, 16
      %v542 = vrot.slane %v540, 1
      %v543 = vsel %vm483, %v538, %v542
      %v544 = vshrl.u32 %v472, 16
      %v546 = vor.u32 %v544, %v542
      %v548 = vshll.u32 %v473, 16
      %v550 = vrot.slane %v548, 1
      %v551 = vsel %vm483, %v546, %v550
      %v552 = vshrl.u32 %v473, 16
      %v554 = vor.u32 %v552, %v550
      %v556 = vshll.u32 %v474, 16
      %v558 = vrot.slane %v556, 1
      %v559 = vsel %vm483, %v554, %v558
      %v560 = vshrl.u32 %v474, 16
      %v562 = vor.u32 %v560, %v558
      %v564 = vshll.u32 %v475, 16
      %v566 = vrot.slane %v564, 1
      %v567 = vsel %vm483, %v562, %v566
      %v568 = vshrl.u32 %v475, 16
      %v570 = vor.u32 %v568, %v566
      %v572 = vshll.u32 %v476, 16
      %v574 = vrot.slane %v572, 1
      %v575 = vsel %vm483, %v570, %v574
      %v576 = vshrl.u32 %v476, 16
      %v578 = vor.u32 %v576, %v574
      %v580 = vshll.u32 %v477, 16
      %v582 = vrot.slane %v580, 1
      %v583 = vsel %vm483, %v578, %v582
      %v584 = vshrl.u32 %v477, 16
      %v586 = vor.u32 %v584, %v582
      %v588 = vshll.u32 %v478, 16
      %v590 = vrot.slane %v588, 1
      %v591 = vsel %vm483, %v586, %v590
      %v592 = vshrl.u32 %v478, 16
      %v594 = vor.u32 %v592, %v590
      %v596 = vshll.u32 %v479, 16
      %v598 = vrot.slane %v596, 1
      %v599 = vsel %vm483, %v594, %v598
      %v600 = vshrl.u32 %v479, 16
      %v602 = vor.u32 %v600, %v598
      %v604 = vshll.u32 %v480, 16
      %v606 = vrot.slane %v604, 1
      %v607 = vsel %vm483, %v602, %v606
      %v608 = vshrl.u32 %v480, 16
      %v610 = vor.u32 %v608, %v606
      %v612 = vshll.u32 %v481, 16
      %v614 = vrot.slane %v612, 1
      %v615 = vsel %vm483, %v610, %v614
      %v616 = vshrl.u32 %v481, 16
      %v618 = vor.u32 %v616, %v614
      %v620 = vshll.u32 %v482, 16
      %v622 = vrot.slane %v620, 1
      %v623 = vsel %vm483, %v618, %v622
      %v624 = vshrl.u32 %v482, 16
      %v626 = vor.u32 %v624, %v622
      %vm627 = vcmask 31744
      %v629 = vsel %vm627, %v495, 0
      %v632 = vsel %vm627, %v503, 0
      %v635 = vsel %vm627, %v511, 0
      %v638 = vsel %vm627, %v519, 0
      %v641 = vsel %vm627, %v527, 0
      %v644 = vsel %vm627, %v535, 0
      %v647 = vsel %vm627, %v543, 0
      %v650 = vsel %vm627, %v551, 0
      %v653 = vsel %vm627, %v559, 0
      %v656 = vsel %vm627, %v567, 0
      %v659 = vsel %vm627, %v575, 0
      %v662 = vsel %vm627, %v583, 0
      %v665 = vsel %vm627, %v591, 0
      %v668 = vsel %vm627, %v599, 0
      %v671 = vsel %vm627, %v607, 0
      %v674 = vsel %vm627, %v615, 0
      %v677 = vsel %vm627, %v623, 0
      %v680 = vsel %vm627, %v626, 0
      %vm682 = vcmask 1041408
      %v684 = vsel %vm682, %v392, 0
      %686 = vmatpush.bf16.msra.mxu0 0
      %687 = vmatpush.bf16.msra.mxu0 0
      %688 = vmatpush.bf16.msra.mxu0 0
      %689 = vmatpush.bf16.msra.mxu0 0
      %690 = vmatpush.bf16.msra.mxu0 0
      %691 = vmatpush.bf16.msra.mxu0 0
      %692 = vmatpush.bf16.msra.mxu0 0
      %693 = vmatpush.bf16.msra.mxu0 %v684
      %694 = vmatmul.bf16.gmra.mxu0 %v629
      %v695 = vpop.f32.mrf.mxu0
      %v696 = vadd.f32 0.0, %v695
      %v697 = vpop.f32.mrf.mxu0
      %v698 = vadd.f32 0.0, %v697
      %699 = vmatmul.bf16.gmra.mxu0 %v632
      %v700 = vpop.f32.mrf.mxu0
      %v701 = vadd.f32 0.0, %v700
      %v702 = vpop.f32.mrf.mxu0
      %v703 = vadd.f32 0.0, %v702
      %704 = vmatmul.bf16.gmra.mxu0 %v635
      %v705 = vpop.f32.mrf.mxu0
      %v706 = vadd.f32 0.0, %v705
      %v707 = vpop.f32.mrf.mxu0
      %v708 = vadd.f32 0.0, %v707
      %709 = vmatmul.bf16.gmra.mxu0 %v638
      %v710 = vpop.f32.mrf.mxu0
      %v711 = vadd.f32 0.0, %v710
      %v712 = vpop.f32.mrf.mxu0
      %v713 = vadd.f32 0.0, %v712
      %714 = vmatmul.bf16.gmra.mxu0 %v641
      %v715 = vpop.f32.mrf.mxu0
      %v716 = vadd.f32 0.0, %v715
      %v717 = vpop.f32.mrf.mxu0
      %v718 = vadd.f32 0.0, %v717
      %719 = vmatmul.bf16.gmra.mxu0 %v644
      %v720 = vpop.f32.mrf.mxu0
      %v721 = vadd.f32 0.0, %v720
      %v722 = vpop.f32.mrf.mxu0
      %v723 = vadd.f32 0.0, %v722
      %724 = vmatmul.bf16.gmra.mxu0 %v647
      %v725 = vpop.f32.mrf.mxu0
      %v726 = vadd.f32 0.0, %v725
      %v727 = vpop.f32.mrf.mxu0
      %v728 = vadd.f32 0.0, %v727
      %729 = vmatmul.bf16.gmra.mxu0 %v650
      %v730 = vpop.f32.mrf.mxu0
      %v731 = vadd.f32 0.0, %v730
      %v732 = vpop.f32.mrf.mxu0
      %v733 = vadd.f32 0.0, %v732
      %734 = vmatmul.bf16.gmra.mxu0 %v653
      %v735 = vpop.f32.mrf.mxu0
      %v736 = vadd.f32 0.0, %v735
      %v737 = vpop.f32.mrf.mxu0
      %v738 = vadd.f32 0.0, %v737
      %739 = vmatmul.bf16.gmra.mxu0 %v656
      %v740 = vpop.f32.mrf.mxu0
      %v741 = vadd.f32 0.0, %v740
      %v742 = vpop.f32.mrf.mxu0
      %v743 = vadd.f32 0.0, %v742
      %744 = vmatmul.bf16.gmra.mxu0 %v659
      %v745 = vpop.f32.mrf.mxu0
      %v746 = vadd.f32 0.0, %v745
      %v747 = vpop.f32.mrf.mxu0
      %v748 = vadd.f32 0.0, %v747
      %749 = vmatmul.bf16.gmra.mxu0 %v662
      %v750 = vpop.f32.mrf.mxu0
      %v751 = vadd.f32 0.0, %v750
      %v752 = vpop.f32.mrf.mxu0
      %v753 = vadd.f32 0.0, %v752
      %754 = vmatmul.bf16.gmra.mxu0 %v665
      %v755 = vpop.f32.mrf.mxu0
      %v756 = vadd.f32 0.0, %v755
      %v757 = vpop.f32.mrf.mxu0
      %v758 = vadd.f32 0.0, %v757
      %759 = vmatmul.bf16.gmra.mxu0 %v668
      %v760 = vpop.f32.mrf.mxu0
      %v761 = vadd.f32 0.0, %v760
      %v762 = vpop.f32.mrf.mxu0
      %v763 = vadd.f32 0.0, %v762
      %764 = vmatmul.bf16.gmra.mxu0 %v671
      %v765 = vpop.f32.mrf.mxu0
      %v766 = vadd.f32 0.0, %v765
      %v767 = vpop.f32.mrf.mxu0
      %v768 = vadd.f32 0.0, %v767
      %769 = vmatmul.bf16.gmra.mxu0 %v674
      %v770 = vpop.f32.mrf.mxu0
      %v771 = vadd.f32 0.0, %v770
      %v772 = vpop.f32.mrf.mxu0
      %v773 = vadd.f32 0.0, %v772
      %774 = vmatmul.bf16.gmra.mxu0 %v677
      %v775 = vpop.f32.mrf.mxu0
      %v776 = vadd.f32 0.0, %v775
      %v777 = vpop.f32.mrf.mxu0
      %v778 = vadd.f32 0.0, %v777
      %779 = vmatmul.bf16.gmra.mxu0 %v680
      %v780 = vpop.f32.mrf.mxu0
      %v781 = vadd.f32 0.0, %v780
      %v782 = vpop.f32.mrf.mxu0
      %v783 = vadd.f32 0.0, %v782
      %784 = vdwg.mxu0
      %v785 = vsel %vm627, %v465, 0
      %v787 = vsel %vm627, %v466, 0
      %v789 = vsel %vm627, %v467, 0
      %v791 = vsel %vm627, %v468, 0
      %v793 = vsel %vm627, %v469, 0
      %v795 = vsel %vm627, %v470, 0
      %v797 = vsel %vm627, %v471, 0
      %v799 = vsel %vm627, %v472, 0
      %v801 = vsel %vm627, %v473, 0
      %v803 = vsel %vm627, %v474, 0
      %v805 = vsel %vm627, %v475, 0
      %v807 = vsel %vm627, %v476, 0
      %v809 = vsel %vm627, %v477, 0
      %v811 = vsel %vm627, %v478, 0
      %v813 = vsel %vm627, %v479, 0
      %v815 = vsel %vm627, %v480, 0
      %v817 = vsel %vm627, %v481, 0
      %v819 = vsel %vm627, %v482, 0
      %v822 = vsel %vm682, %v390, 0
      %824 = vmatpush.bf16.msra.mxu0 0
      %825 = vmatpush.bf16.msra.mxu0 0
      %826 = vmatpush.bf16.msra.mxu0 0
      %827 = vmatpush.bf16.msra.mxu0 0
      %828 = vmatpush.bf16.msra.mxu0 0
      %829 = vmatpush.bf16.msra.mxu0 0
      %830 = vmatpush.bf16.msra.mxu0 0
      %831 = vmatpush.bf16.msra.mxu0 %v822
      %832 = vmatmul.bf16.gmra.mxu0 %v785
      %v833 = vpop.f32.mrf.mxu0
      %v834 = vadd.f32 %v696, %v833
      %v835 = vpop.f32.mrf.mxu0
      %v836 = vadd.f32 %v698, %v835
      %837 = vmatmul.bf16.gmra.mxu0 %v787
      %v838 = vpop.f32.mrf.mxu0
      %v839 = vadd.f32 %v701, %v838
      %v840 = vpop.f32.mrf.mxu0
      %v841 = vadd.f32 %v703, %v840
      %842 = vmatmul.bf16.gmra.mxu0 %v789
      %v843 = vpop.f32.mrf.mxu0
      %v844 = vadd.f32 %v706, %v843
      %v845 = vpop.f32.mrf.mxu0
      %v846 = vadd.f32 %v708, %v845
      %847 = vmatmul.bf16.gmra.mxu0 %v791
      %v848 = vpop.f32.mrf.mxu0
      %v849 = vadd.f32 %v711, %v848
      %v850 = vpop.f32.mrf.mxu0
      %v851 = vadd.f32 %v713, %v850
      %852 = vmatmul.bf16.gmra.mxu0 %v793
      %v853 = vpop.f32.mrf.mxu0
      %v854 = vadd.f32 %v716, %v853
      %v855 = vpop.f32.mrf.mxu0
      %v856 = vadd.f32 %v718, %v855
      %857 = vmatmul.bf16.gmra.mxu0 %v795
      %v858 = vpop.f32.mrf.mxu0
      %v859 = vadd.f32 %v721, %v858
      %v860 = vpop.f32.mrf.mxu0
      %v861 = vadd.f32 %v723, %v860
      %862 = vmatmul.bf16.gmra.mxu0 %v797
      %v863 = vpop.f32.mrf.mxu0
      %v864 = vadd.f32 %v726, %v863
      %v865 = vpop.f32.mrf.mxu0
      %v866 = vadd.f32 %v728, %v865
      %867 = vmatmul.bf16.gmra.mxu0 %v799
      %v868 = vpop.f32.mrf.mxu0
      %v869 = vadd.f32 %v731, %v868
      %v870 = vpop.f32.mrf.mxu0
      %v871 = vadd.f32 %v733, %v870
      %872 = vmatmul.bf16.gmra.mxu0 %v801
      %v873 = vpop.f32.mrf.mxu0
      %v874 = vadd.f32 %v736, %v873
      %v875 = vpop.f32.mrf.mxu0
      %v876 = vadd.f32 %v738, %v875
      %877 = vmatmul.bf16.gmra.mxu0 %v803
      %v878 = vpop.f32.mrf.mxu0
      %v879 = vadd.f32 %v741, %v878
      %v880 = vpop.f32.mrf.mxu0
      %v881 = vadd.f32 %v743, %v880
      %882 = vmatmul.bf16.gmra.mxu0 %v805
      %v883 = vpop.f32.mrf.mxu0
      %v884 = vadd.f32 %v746, %v883
      %v885 = vpop.f32.mrf.mxu0
      %v886 = vadd.f32 %v748, %v885
      %887 = vmatmul.bf16.gmra.mxu0 %v807
      %v888 = vpop.f32.mrf.mxu0
      %v889 = vadd.f32 %v751, %v888
      %v890 = vpop.f32.mrf.mxu0
      %v891 = vadd.f32 %v753, %v890
      %892 = vmatmul.bf16.gmra.mxu0 %v809
      %v893 = vpop.f32.mrf.mxu0
      %v894 = vadd.f32 %v756, %v893
      %v895 = vpop.f32.mrf.mxu0
      %v896 = vadd.f32 %v758, %v895
      %897 = vmatmul.bf16.gmra.mxu0 %v811
      %v898 = vpop.f32.mrf.mxu0
      %v899 = vadd.f32 %v761, %v898
      %v900 = vpop.f32.mrf.mxu0
      %v901 = vadd.f32 %v763, %v900
      %902 = vmatmul.bf16.gmra.mxu0 %v813
      %v903 = vpop.f32.mrf.mxu0
      %v904 = vadd.f32 %v766, %v903
      %v905 = vpop.f32.mrf.mxu0
      %v906 = vadd.f32 %v768, %v905
      %907 = vmatmul.bf16.gmra.mxu0 %v815
      %v908 = vpop.f32.mrf.mxu0
      %v909 = vadd.f32 %v771, %v908
      %v910 = vpop.f32.mrf.mxu0
      %v911 = vadd.f32 %v773, %v910
      %912 = vmatmul.bf16.gmra.mxu0 %v817
      %v913 = vpop.f32.mrf.mxu0
      %v914 = vadd.f32 %v776, %v913
      %v915 = vpop.f32.mrf.mxu0
      %v916 = vadd.f32 %v778, %v915
      %917 = vmatmul.bf16.gmra.mxu0 %v819
      %v918 = vpop.f32.mrf.mxu0
      %v919 = vadd.f32 %v781, %v918
      %v920 = vpop.f32.mrf.mxu0
      %v921 = vadd.f32 %v783, %v920
      %922 = vdwg.mxu0
      %s923 = scalar_lea.vmem %s2, 4
      %v924 = vld [vmem:[%s923] sm:$0x3]
      %vm925 = vcmask 1046528
      %v926 = vrot.slane %v465, 1
      %v927 = vrot.slane %v466, 1
      %v928 = vsel %vm925, %v926, %v927
      %v929 = vrot.slane %v467, 1
      %v930 = vsel %vm925, %v927, %v929
      %v931 = vrot.slane %v468, 1
      %v932 = vsel %vm925, %v929, %v931
      %v933 = vrot.slane %v469, 1
      %v934 = vsel %vm925, %v931, %v933
      %v935 = vrot.slane %v470, 1
      %v936 = vsel %vm925, %v933, %v935
      %v937 = vrot.slane %v471, 1
      %v938 = vsel %vm925, %v935, %v937
      %v939 = vrot.slane %v472, 1
      %v940 = vsel %vm925, %v937, %v939
      %v941 = vrot.slane %v473, 1
      %v942 = vsel %vm925, %v939, %v941
      %v943 = vrot.slane %v474, 1
      %v944 = vsel %vm925, %v941, %v943
      %v945 = vrot.slane %v475, 1
      %v946 = vsel %vm925, %v943, %v945
      %v947 = vrot.slane %v476, 1
      %v948 = vsel %vm925, %v945, %v947
      %v949 = vrot.slane %v477, 1
      %v950 = vsel %vm925, %v947, %v949
      %v951 = vrot.slane %v478, 1
      %v952 = vsel %vm925, %v949, %v951
      %v953 = vrot.slane %v479, 1
      %v954 = vsel %vm925, %v951, %v953
      %v955 = vrot.slane %v480, 1
      %v956 = vsel %vm925, %v953, %v955
      %v957 = vrot.slane %v481, 1
      %v958 = vsel %vm925, %v955, %v957
      %v959 = vrot.slane %v482, 1
      %v960 = vsel %vm925, %v957, %v959
      %v962 = vsel %vm627, %v928, 0
      %v965 = vsel %vm627, %v930, 0
      %v968 = vsel %vm627, %v932, 0
      %v971 = vsel %vm627, %v934, 0
      %v974 = vsel %vm627, %v936, 0
      %v977 = vsel %vm627, %v938, 0
      %v980 = vsel %vm627, %v940, 0
      %v983 = vsel %vm627, %v942, 0
      %v986 = vsel %vm627, %v944, 0
      %v989 = vsel %vm627, %v946, 0
      %v992 = vsel %vm627, %v948, 0
      %v995 = vsel %vm627, %v950, 0
      %v998 = vsel %vm627, %v952, 0
      %v1001 = vsel %vm627, %v954, 0
      %v1004 = vsel %vm627, %v956, 0
      %v1007 = vsel %vm627, %v958, 0
      %v1010 = vsel %vm627, %v960, 0
      %v1013 = vsel %vm627, %v959, 0
      %v1016 = vsel %vm682, %v924, 0
      %1018 = vmatpush.bf16.msra.mxu0 0
      %1019 = vmatpush.bf16.msra.mxu0 0
      %1020 = vmatpush.bf16.msra.mxu0 0
      %1021 = vmatpush.bf16.msra.mxu0 0
      %1022 = vmatpush.bf16.msra.mxu0 0
      %1023 = vmatpush.bf16.msra.mxu0 0
      %1024 = vmatpush.bf16.msra.mxu0 0
      %1025 = vmatpush.bf16.msra.mxu0 %v1016
      %1026 = vmatmul.bf16.gmra.mxu0 %v962
      %v1027 = vpop.f32.mrf.mxu0
      %v1028 = vadd.f32 0.0, %v1027
      %v1029 = vpop.f32.mrf.mxu0
      %v1030 = vadd.f32 0.0, %v1029
      %1031 = vmatmul.bf16.gmra.mxu0 %v965
      %v1032 = vpop.f32.mrf.mxu0
      %v1033 = vadd.f32 0.0, %v1032
      %v1034 = vpop.f32.mrf.mxu0
      %v1035 = vadd.f32 0.0, %v1034
      %1036 = vmatmul.bf16.gmra.mxu0 %v968
      %v1037 = vpop.f32.mrf.mxu0
      %v1038 = vadd.f32 0.0, %v1037
      %v1039 = vpop.f32.mrf.mxu0
      %v1040 = vadd.f32 0.0, %v1039
      %1041 = vmatmul.bf16.gmra.mxu0 %v971
      %v1042 = vpop.f32.mrf.mxu0
      %v1043 = vadd.f32 0.0, %v1042
      %v1044 = vpop.f32.mrf.mxu0
      %v1045 = vadd.f32 0.0, %v1044
      %1046 = vmatmul.bf16.gmra.mxu0 %v974
      %v1047 = vpop.f32.mrf.mxu0
      %v1048 = vadd.f32 0.0, %v1047
      %v1049 = vpop.f32.mrf.mxu0
      %v1050 = vadd.f32 0.0, %v1049
      %1051 = vmatmul.bf16.gmra.mxu0 %v977
      %v1052 = vpop.f32.mrf.mxu0
      %v1053 = vadd.f32 0.0, %v1052
      %v1054 = vpop.f32.mrf.mxu0
      %v1055 = vadd.f32 0.0, %v1054
      %1056 = vmatmul.bf16.gmra.mxu0 %v980
      %v1057 = vpop.f32.mrf.mxu0
      %v1058 = vadd.f32 0.0, %v1057
      %v1059 = vpop.f32.mrf.mxu0
      %v1060 = vadd.f32 0.0, %v1059
      %1061 = vmatmul.bf16.gmra.mxu0 %v983
      %v1062 = vpop.f32.mrf.mxu0
      %v1063 = vadd.f32 0.0, %v1062
      %v1064 = vpop.f32.mrf.mxu0
      %v1065 = vadd.f32 0.0, %v1064
      %1066 = vmatmul.bf16.gmra.mxu0 %v986
      %v1067 = vpop.f32.mrf.mxu0
      %v1068 = vadd.f32 0.0, %v1067
      %v1069 = vpop.f32.mrf.mxu0
      %v1070 = vadd.f32 0.0, %v1069
      %1071 = vmatmul.bf16.gmra.mxu0 %v989
      %v1072 = vpop.f32.mrf.mxu0
      %v1073 = vadd.f32 0.0, %v1072
      %v1074 = vpop.f32.mrf.mxu0
      %v1075 = vadd.f32 0.0, %v1074
      %1076 = vmatmul.bf16.gmra.mxu0 %v992
      %v1077 = vpop.f32.mrf.mxu0
      %v1078 = vadd.f32 0.0, %v1077
      %v1079 = vpop.f32.mrf.mxu0
      %v1080 = vadd.f32 0.0, %v1079
      %1081 = vmatmul.bf16.gmra.mxu0 %v995
      %v1082 = vpop.f32.mrf.mxu0
      %v1083 = vadd.f32 0.0, %v1082
      %v1084 = vpop.f32.mrf.mxu0
      %v1085 = vadd.f32 0.0, %v1084
      %1086 = vmatmul.bf16.gmra.mxu0 %v998
      %v1087 = vpop.f32.mrf.mxu0
      %v1088 = vadd.f32 0.0, %v1087
      %v1089 = vpop.f32.mrf.mxu0
      %v1090 = vadd.f32 0.0, %v1089
      %1091 = vmatmul.bf16.gmra.mxu0 %v1001
      %v1092 = vpop.f32.mrf.mxu0
      %v1093 = vadd.f32 0.0, %v1092
      %v1094 = vpop.f32.mrf.mxu0
      %v1095 = vadd.f32 0.0, %v1094
      %1096 = vmatmul.bf16.gmra.mxu0 %v1004
      %v1097 = vpop.f32.mrf.mxu0
      %v1098 = vadd.f32 0.0, %v1097
      %v1099 = vpop.f32.mrf.mxu0
      %v1100 = vadd.f32 0.0, %v1099
      %1101 = vmatmul.bf16.gmra.mxu0 %v1007
      %v1102 = vpop.f32.mrf.mxu0
      %v1103 = vadd.f32 0.0, %v1102
      %v1104 = vpop.f32.mrf.mxu0
      %v1105 = vadd.f32 0.0, %v1104
      %1106 = vmatmul.bf16.gmra.mxu0 %v1010
      %v1107 = vpop.f32.mrf.mxu0
      %v1108 = vadd.f32 0.0, %v1107
      %v1109 = vpop.f32.mrf.mxu0
      %v1110 = vadd.f32 0.0, %v1109
      %1111 = vmatmul.bf16.gmra.mxu0 %v1013
      %v1112 = vpop.f32.mrf.mxu0
      %v1113 = vadd.f32 0.0, %v1112
      %v1114 = vpop.f32.mrf.mxu0
      %v1115 = vadd.f32 0.0, %v1114
      %1116 = vdwg.mxu0
      %v1117 = vadd.f32 %v834, %v1028
      %v1118 = vadd.f32 %v836, %v1030
      %v1119 = vadd.f32 %v839, %v1033
      %v1120 = vadd.f32 %v841, %v1035
      %v1121 = vadd.f32 %v844, %v1038
      %v1122 = vadd.f32 %v846, %v1040
      %v1123 = vadd.f32 %v849, %v1043
      %v1124 = vadd.f32 %v851, %v1045
      %v1125 = vadd.f32 %v854, %v1048
      %v1126 = vadd.f32 %v856, %v1050
      %v1127 = vadd.f32 %v859, %v1053
      %v1128 = vadd.f32 %v861, %v1055
      %v1129 = vadd.f32 %v864, %v1058
      %v1130 = vadd.f32 %v866, %v1060
      %v1131 = vadd.f32 %v869, %v1063
      %v1132 = vadd.f32 %v871, %v1065
      %v1133 = vadd.f32 %v874, %v1068
      %v1134 = vadd.f32 %v876, %v1070
      %v1135 = vadd.f32 %v879, %v1073
      %v1136 = vadd.f32 %v881, %v1075
      %v1137 = vadd.f32 %v884, %v1078
      %v1138 = vadd.f32 %v886, %v1080
      %v1139 = vadd.f32 %v889, %v1083
      %v1140 = vadd.f32 %v891, %v1085
      %v1141 = vadd.f32 %v894, %v1088
      %v1142 = vadd.f32 %v896, %v1090
      %v1143 = vadd.f32 %v899, %v1093
      %v1144 = vadd.f32 %v901, %v1095
      %v1145 = vadd.f32 %v904, %v1098
      %v1146 = vadd.f32 %v906, %v1100
      %v1147 = vadd.f32 %v909, %v1103
      %v1148 = vadd.f32 %v911, %v1105
      %v1149 = vadd.f32 %v914, %v1108
      %v1150 = vadd.f32 %v916, %v1110
      %v1151 = vadd.f32 %v919, %v1113
      %v1152 = vadd.f32 %v921, %v1115
      %s1153 = scalar_lea.vmem %s2, 6
      %v1154 = vld [vmem:[%s1153] sm:$0x3]
      %v1157 = vunpack.c.l.b16 %v349
      %v1158 = vunpack.c.l.b16 %v350
      %v1159 = vpack.c.b16 %v1158, %v1157
      %v1160 = vrot.slane %v1159, 1
      %v1161 = vsel %vm925, %v959, %v1160
      %v1163 = vsel %vm627, %v1161, 0
      %v1166 = vsel %vm627, %v1160, 0
      %v1169 = vsel %vm682, %v1154, 0
      %1171 = vmatpush.bf16.msra.mxu0 0
      %1172 = vmatpush.bf16.msra.mxu0 0
      %1173 = vmatpush.bf16.msra.mxu0 0
      %1174 = vmatpush.bf16.msra.mxu0 0
      %1175 = vmatpush.bf16.msra.mxu0 0
      %1176 = vmatpush.bf16.msra.mxu0 0
      %1177 = vmatpush.bf16.msra.mxu0 0
      %1178 = vmatpush.bf16.msra.mxu0 %v1169
      %1179 = vmatmul.bf16.gmra.mxu0 %v965
      %v1180 = vpop.f32.mrf.mxu0
      %v1181 = vadd.f32 0.0, %v1180
      %v1182 = vpop.f32.mrf.mxu0
      %v1183 = vadd.f32 0.0, %v1182
      %1184 = vmatmul.bf16.gmra.mxu0 %v968
      %v1185 = vpop.f32.mrf.mxu0
      %v1186 = vadd.f32 0.0, %v1185
      %v1187 = vpop.f32.mrf.mxu0
      %v1188 = vadd.f32 0.0, %v1187
      %1189 = vmatmul.bf16.gmra.mxu0 %v971
      %v1190 = vpop.f32.mrf.mxu0
      %v1191 = vadd.f32 0.0, %v1190
      %v1192 = vpop.f32.mrf.mxu0
      %v1193 = vadd.f32 0.0, %v1192
      %1194 = vmatmul.bf16.gmra.mxu0 %v974
      %v1195 = vpop.f32.mrf.mxu0
      %v1196 = vadd.f32 0.0, %v1195
      %v1197 = vpop.f32.mrf.mxu0
      %v1198 = vadd.f32 0.0, %v1197
      %1199 = vmatmul.bf16.gmra.mxu0 %v977
      %v1200 = vpop.f32.mrf.mxu0
      %v1201 = vadd.f32 0.0, %v1200
      %v1202 = vpop.f32.mrf.mxu0
      %v1203 = vadd.f32 0.0, %v1202
      %1204 = vmatmul.bf16.gmra.mxu0 %v980
      %v1205 = vpop.f32.mrf.mxu0
      %v1206 = vadd.f32 0.0, %v1205
      %v1207 = vpop.f32.mrf.mxu0
      %v1208 = vadd.f32 0.0, %v1207
      %1209 = vmatmul.bf16.gmra.mxu0 %v983
      %v1210 = vpop.f32.mrf.mxu0
      %v1211 = vadd.f32 0.0, %v1210
      %v1212 = vpop.f32.mrf.mxu0
      %v1213 = vadd.f32 0.0, %v1212
      %1214 = vmatmul.bf16.gmra.mxu0 %v986
      %v1215 = vpop.f32.mrf.mxu0
      %v1216 = vadd.f32 0.0, %v1215
      %v1217 = vpop.f32.mrf.mxu0
      %v1218 = vadd.f32 0.0, %v1217
      %1219 = vmatmul.bf16.gmra.mxu0 %v989
      %v1220 = vpop.f32.mrf.mxu0
      %v1221 = vadd.f32 0.0, %v1220
      %v1222 = vpop.f32.mrf.mxu0
      %v1223 = vadd.f32 0.0, %v1222
      %1224 = vmatmul.bf16.gmra.mxu0 %v992
      %v1225 = vpop.f32.mrf.mxu0
      %v1226 = vadd.f32 0.0, %v1225
      %v1227 = vpop.f32.mrf.mxu0
      %v1228 = vadd.f32 0.0, %v1227
      %1229 = vmatmul.bf16.gmra.mxu0 %v995
      %v1230 = vpop.f32.mrf.mxu0
      %v1231 = vadd.f32 0.0, %v1230
      %v1232 = vpop.f32.mrf.mxu0
      %v1233 = vadd.f32 0.0, %v1232
      %1234 = vmatmul.bf16.gmra.mxu0 %v998
      %v1235 = vpop.f32.mrf.mxu0
      %v1236 = vadd.f32 0.0, %v1235
      %v1237 = vpop.f32.mrf.mxu0
      %v1238 = vadd.f32 0.0, %v1237
      %1239 = vmatmul.bf16.gmra.mxu0 %v1001
      %v1240 = vpop.f32.mrf.mxu0
      %v1241 = vadd.f32 0.0, %v1240
      %v1242 = vpop.f32.mrf.mxu0
      %v1243 = vadd.f32 0.0, %v1242
      %1244 = vmatmul.bf16.gmra.mxu0 %v1004
      %v1245 = vpop.f32.mrf.mxu0
      %v1246 = vadd.f32 0.0, %v1245
      %v1247 = vpop.f32.mrf.mxu0
      %v1248 = vadd.f32 0.0, %v1247
      %1249 = vmatmul.bf16.gmra.mxu0 %v1007
      %v1250 = vpop.f32.mrf.mxu0
      %v1251 = vadd.f32 0.0, %v1250
      %v1252 = vpop.f32.mrf.mxu0
      %v1253 = vadd.f32 0.0, %v1252
      %1254 = vmatmul.bf16.gmra.mxu0 %v1010
      %v1255 = vpop.f32.mrf.mxu0
      %v1256 = vadd.f32 0.0, %v1255
      %v1257 = vpop.f32.mrf.mxu0
      %v1258 = vadd.f32 0.0, %v1257
      %1259 = vmatmul.bf16.gmra.mxu0 %v1163
      %v1260 = vpop.f32.mrf.mxu0
      %v1261 = vadd.f32 0.0, %v1260
      %v1262 = vpop.f32.mrf.mxu0
      %v1263 = vadd.f32 0.0, %v1262
      %1264 = vmatmul.bf16.gmra.mxu0 %v1166
      %v1265 = vpop.f32.mrf.mxu0
      %v1266 = vadd.f32 0.0, %v1265
      %v1267 = vpop.f32.mrf.mxu0
      %v1268 = vadd.f32 0.0, %v1267
      %1269 = vdwg.mxu0
      %v1270 = vadd.f32 %v1117, %v1181
      %v1271 = vadd.f32 %v1118, %v1183
      %v1272 = vadd.f32 %v1119, %v1186
      %v1273 = vadd.f32 %v1120, %v1188
      %v1274 = vadd.f32 %v1121, %v1191
      %v1275 = vadd.f32 %v1122, %v1193
      %v1276 = vadd.f32 %v1123, %v1196
      %v1277 = vadd.f32 %v1124, %v1198
      %v1278 = vadd.f32 %v1125, %v1201
      %v1279 = vadd.f32 %v1126, %v1203
      %v1280 = vadd.f32 %v1127, %v1206
      %v1281 = vadd.f32 %v1128, %v1208
      %v1282 = vadd.f32 %v1129, %v1211
      %v1283 = vadd.f32 %v1130, %v1213
      %v1284 = vadd.f32 %v1131, %v1216
      %v1285 = vadd.f32 %v1132, %v1218
      %v1286 = vadd.f32 %v1133, %v1221
      %v1287 = vadd.f32 %v1134, %v1223
      %v1288 = vadd.f32 %v1135, %v1226
      %v1289 = vadd.f32 %v1136, %v1228
      %v1290 = vadd.f32 %v1137, %v1231
      %v1291 = vadd.f32 %v1138, %v1233
      %v1292 = vadd.f32 %v1139, %v1236
      %v1293 = vadd.f32 %v1140, %v1238
      %v1294 = vadd.f32 %v1141, %v1241
      %v1295 = vadd.f32 %v1142, %v1243
      %v1296 = vadd.f32 %v1143, %v1246
      %v1297 = vadd.f32 %v1144, %v1248
      %v1298 = vadd.f32 %v1145, %v1251
      %v1299 = vadd.f32 %v1146, %v1253
      %v1300 = vadd.f32 %v1147, %v1256
      %v1301 = vadd.f32 %v1148, %v1258
      %v1302 = vadd.f32 %v1149, %v1261
      %v1303 = vadd.f32 %v1150, %v1263
      %v1304 = vadd.f32 %v1151, %v1266
      %v1305 = vadd.f32 %v1152, %v1268
      %s1306 = scalar_lea.vmem %s2, 8
      %v1307 = vld [vmem:[%s1306] sm:$0x3]
      %v1309 = vunpack.c.l.b16 %v351
      %v1310 = vpack.c.b16 %v1309, %v1309
      %vm1311 = vsmask.f32 6400
      %v1312 = vrot.slane %v496, 1
      %v1313 = vrot.slane %v492, 2
      %v1314 = vor.u32 %v1312, %v1313
      %v1315 = vrot.slane %v504, 1
      %v1316 = vrot.slane %v500, 2
      %v1317 = vor.u32 %v1315, %v1316
      %v1318 = vsel %vm1311, %v1314, %v1317
      %v1319 = vrot.slane %v512, 1
      %v1320 = vrot.slane %v508, 2
      %v1321 = vor.u32 %v1319, %v1320
      %v1322 = vsel %vm1311, %v1317, %v1321
      %v1323 = vrot.slane %v520, 1
      %v1324 = vrot.slane %v516, 2
      %v1325 = vor.u32 %v1323, %v1324
      %v1326 = vsel %vm1311, %v1321, %v1325
      %v1327 = vrot.slane %v528, 1
      %v1328 = vrot.slane %v524, 2
      %v1329 = vor.u32 %v1327, %v1328
      %v1330 = vsel %vm1311, %v1325, %v1329
      %v1331 = vrot.slane %v536, 1
      %v1332 = vrot.slane %v532, 2
      %v1333 = vor.u32 %v1331, %v1332
      %v1334 = vsel %vm1311, %v1329, %v1333
      %v1335 = vrot.slane %v544, 1
      %v1336 = vrot.slane %v540, 2
      %v1337 = vor.u32 %v1335, %v1336
      %v1338 = vsel %vm1311, %v1333, %v1337
      %v1339 = vrot.slane %v552, 1
      %v1340 = vrot.slane %v548, 2
      %v1341 = vor.u32 %v1339, %v1340
      %v1342 = vsel %vm1311, %v1337, %v1341
      %v1343 = vrot.slane %v560, 1
      %v1344 = vrot.slane %v556, 2
      %v1345 = vor.u32 %v1343, %v1344
      %v1346 = vsel %vm1311, %v1341, %v1345
      %v1347 = vrot.slane %v568, 1
      %v1348 = vrot.slane %v564, 2
      %v1349 = vor.u32 %v1347, %v1348
      %v1350 = vsel %vm1311, %v1345, %v1349
      %v1351 = vrot.slane %v576, 1
      %v1352 = vrot.slane %v572, 2
      %v1353 = vor.u32 %v1351, %v1352
      %v1354 = vsel %vm1311, %v1349, %v1353
      %v1355 = vrot.slane %v584, 1
      %v1356 = vrot.slane %v580, 2
      %v1357 = vor.u32 %v1355, %v1356
      %v1358 = vsel %vm1311, %v1353, %v1357
      %v1359 = vrot.slane %v592, 1
      %v1360 = vrot.slane %v588, 2
      %v1361 = vor.u32 %v1359, %v1360
      %v1362 = vsel %vm1311, %v1357, %v1361
      %v1363 = vrot.slane %v600, 1
      %v1364 = vrot.slane %v596, 2
      %v1365 = vor.u32 %v1363, %v1364
      %v1366 = vsel %vm1311, %v1361, %v1365
      %v1367 = vrot.slane %v608, 1
      %v1368 = vrot.slane %v604, 2
      %v1369 = vor.u32 %v1367, %v1368
      %v1370 = vsel %vm1311, %v1365, %v1369
      %v1371 = vrot.slane %v616, 1
      %v1372 = vrot.slane %v612, 2
      %v1373 = vor.u32 %v1371, %v1372
      %v1374 = vsel %vm1311, %v1369, %v1373
      %v1375 = vrot.slane %v624, 1
      %v1376 = vrot.slane %v620, 2
      %v1377 = vor.u32 %v1375, %v1376
      %v1378 = vsel %vm1311, %v1373, %v1377
      %v1380 = vshrl.u32 %v1159, 16
      %v1382 = vrot.slane %v1380, 1
      %v1383 = vshll.u32 %v1159, 16
      %v1385 = vrot.slane %v1383, 2
      %v1386 = vor.u32 %v1382, %v1385
      %v1387 = vsel %vm1311, %v1377, %v1386
      %v1389 = vshll.u32 %v1310, 16
      %v1391 = vrot.slane %v1389, 2
      %v1392 = vsel %vm1311, %v1386, %v1391
      %v1394 = vsel %vm627, %v1318, 0
      %v1397 = vsel %vm627, %v1322, 0
      %v1400 = vsel %vm627, %v1326, 0
      %v1403 = vsel %vm627, %v1330, 0
      %v1406 = vsel %vm627, %v1334, 0
      %v1409 = vsel %vm627, %v1338, 0
      %v1412 = vsel %vm627, %v1342, 0
      %v1415 = vsel %vm627, %v1346, 0
      %v1418 = vsel %vm627, %v1350, 0
      %v1421 = vsel %vm627, %v1354, 0
      %v1424 = vsel %vm627, %v1358, 0
      %v1427 = vsel %vm627, %v1362, 0
      %v1430 = vsel %vm627, %v1366, 0
      %v1433 = vsel %vm627, %v1370, 0
      %v1436 = vsel %vm627, %v1374, 0
      %v1439 = vsel %vm627, %v1378, 0
      %v1442 = vsel %vm627, %v1387, 0
      %v1445 = vsel %vm627, %v1392, 0
      %v1448 = vsel %vm682, %v1307, 0
      %1450 = vmatpush.bf16.msra.mxu0 0
      %1451 = vmatpush.bf16.msra.mxu0 0
      %1452 = vmatpush.bf16.msra.mxu0 0
      %1453 = vmatpush.bf16.msra.mxu0 0
      %1454 = vmatpush.bf16.msra.mxu0 0
      %1455 = vmatpush.bf16.msra.mxu0 0
      %1456 = vmatpush.bf16.msra.mxu0 0
      %1457 = vmatpush.bf16.msra.mxu0 %v1448
      %1458 = vmatmul.bf16.gmra.mxu0 %v1394
      %v1459 = vpop.f32.mrf.mxu0
      %v1460 = vadd.f32 0.0, %v1459
      %v1461 = vpop.f32.mrf.mxu0
      %v1462 = vadd.f32 0.0, %v1461
      %1463 = vmatmul.bf16.gmra.mxu0 %v1397
      %v1464 = vpop.f32.mrf.mxu0
      %v1465 = vadd.f32 0.0, %v1464
      %v1466 = vpop.f32.mrf.mxu0
      %v1467 = vadd.f32 0.0, %v1466
      %1468 = vmatmul.bf16.gmra.mxu0 %v1400
      %v1469 = vpop.f32.mrf.mxu0
      %v1470 = vadd.f32 0.0, %v1469
      %v1471 = vpop.f32.mrf.mxu0
      %v1472 = vadd.f32 0.0, %v1471
      %1473 = vmatmul.bf16.gmra.mxu0 %v1403
      %v1474 = vpop.f32.mrf.mxu0
      %v1475 = vadd.f32 0.0, %v1474
      %v1476 = vpop.f32.mrf.mxu0
      %v1477 = vadd.f32 0.0, %v1476
      %1478 = vmatmul.bf16.gmra.mxu0 %v1406
      %v1479 = vpop.f32.mrf.mxu0
      %v1480 = vadd.f32 0.0, %v1479
      %v1481 = vpop.f32.mrf.mxu0
      %v1482 = vadd.f32 0.0, %v1481
      %1483 = vmatmul.bf16.gmra.mxu0 %v1409
      %v1484 = vpop.f32.mrf.mxu0
      %v1485 = vadd.f32 0.0, %v1484
      %v1486 = vpop.f32.mrf.mxu0
      %v1487 = vadd.f32 0.0, %v1486
      %1488 = vmatmul.bf16.gmra.mxu0 %v1412
      %v1489 = vpop.f32.mrf.mxu0
      %v1490 = vadd.f32 0.0, %v1489
      %v1491 = vpop.f32.mrf.mxu0
      %v1492 = vadd.f32 0.0, %v1491
      %1493 = vmatmul.bf16.gmra.mxu0 %v1415
      %v1494 = vpop.f32.mrf.mxu0
      %v1495 = vadd.f32 0.0, %v1494
      %v1496 = vpop.f32.mrf.mxu0
      %v1497 = vadd.f32 0.0, %v1496
      %1498 = vmatmul.bf16.gmra.mxu0 %v1418
      %v1499 = vpop.f32.mrf.mxu0
      %v1500 = vadd.f32 0.0, %v1499
      %v1501 = vpop.f32.mrf.mxu0
      %v1502 = vadd.f32 0.0, %v1501
      %1503 = vmatmul.bf16.gmra.mxu0 %v1421
      %v1504 = vpop.f32.mrf.mxu0
      %v1505 = vadd.f32 0.0, %v1504
      %v1506 = vpop.f32.mrf.mxu0
      %v1507 = vadd.f32 0.0, %v1506
      %1508 = vmatmul.bf16.gmra.mxu0 %v1424
      %v1509 = vpop.f32.mrf.mxu0
      %v1510 = vadd.f32 0.0, %v1509
      %v1511 = vpop.f32.mrf.mxu0
      %v1512 = vadd.f32 0.0, %v1511
      %1513 = vmatmul.bf16.gmra.mxu0 %v1427
      %v1514 = vpop.f32.mrf.mxu0
      %v1515 = vadd.f32 0.0, %v1514
      %v1516 = vpop.f32.mrf.mxu0
      %v1517 = vadd.f32 0.0, %v1516
      %1518 = vmatmul.bf16.gmra.mxu0 %v1430
      %v1519 = vpop.f32.mrf.mxu0
      %v1520 = vadd.f32 0.0, %v1519
      %v1521 = vpop.f32.mrf.mxu0
      %v1522 = vadd.f32 0.0, %v1521
      %1523 = vmatmul.bf16.gmra.mxu0 %v1433
      %v1524 = vpop.f32.mrf.mxu0
      %v1525 = vadd.f32 0.0, %v1524
      %v1526 = vpop.f32.mrf.mxu0
      %v1527 = vadd.f32 0.0, %v1526
      %1528 = vmatmul.bf16.gmra.mxu0 %v1436
      %v1529 = vpop.f32.mrf.mxu0
      %v1530 = vadd.f32 0.0, %v1529
      %v1531 = vpop.f32.mrf.mxu0
      %v1532 = vadd.f32 0.0, %v1531
      %1533 = vmatmul.bf16.gmra.mxu0 %v1439
      %v1534 = vpop.f32.mrf.mxu0
      %v1535 = vadd.f32 0.0, %v1534
      %v1536 = vpop.f32.mrf.mxu0
      %v1537 = vadd.f32 0.0, %v1536
      %1538 = vmatmul.bf16.gmra.mxu0 %v1442
      %v1539 = vpop.f32.mrf.mxu0
      %v1540 = vadd.f32 0.0, %v1539
      %v1541 = vpop.f32.mrf.mxu0
      %v1542 = vadd.f32 0.0, %v1541
      %1543 = vmatmul.bf16.gmra.mxu0 %v1445
      %v1544 = vpop.f32.mrf.mxu0
      %v1545 = vadd.f32 0.0, %v1544
      %v1546 = vpop.f32.mrf.mxu0
      %v1547 = vadd.f32 0.0, %v1546
      %1548 = vdwg.mxu0
      %v1549 = vadd.f32 %v1270, %v1460
      %v1550 = vadd.f32 %v1271, %v1462
      %v1551 = vadd.f32 %v1272, %v1465
      %v1552 = vadd.f32 %v1273, %v1467
      %v1553 = vadd.f32 %v1274, %v1470
      %v1554 = vadd.f32 %v1275, %v1472
      %v1555 = vadd.f32 %v1276, %v1475
      %v1556 = vadd.f32 %v1277, %v1477
      %v1557 = vadd.f32 %v1278, %v1480
      %v1558 = vadd.f32 %v1279, %v1482
      %v1559 = vadd.f32 %v1280, %v1485
      %v1560 = vadd.f32 %v1281, %v1487
      %v1561 = vadd.f32 %v1282, %v1490
      %v1562 = vadd.f32 %v1283, %v1492
      %v1563 = vadd.f32 %v1284, %v1495
      %v1564 = vadd.f32 %v1285, %v1497
      %v1565 = vadd.f32 %v1286, %v1500
      %v1566 = vadd.f32 %v1287, %v1502
      %v1567 = vadd.f32 %v1288, %v1505
      %v1568 = vadd.f32 %v1289, %v1507
      %v1569 = vadd.f32 %v1290, %v1510
      %v1570 = vadd.f32 %v1291, %v1512
      %v1571 = vadd.f32 %v1292, %v1515
      %v1572 = vadd.f32 %v1293, %v1517
      %v1573 = vadd.f32 %v1294, %v1520
      %v1574 = vadd.f32 %v1295, %v1522
      %v1575 = vadd.f32 %v1296, %v1525
      %v1576 = vadd.f32 %v1297, %v1527
      %v1577 = vadd.f32 %v1298, %v1530
      %v1578 = vadd.f32 %v1299, %v1532
      %v1579 = vadd.f32 %v1300, %v1535
      %v1580 = vadd.f32 %v1301, %v1537
      %v1581 = vadd.f32 %v1302, %v1540
      %v1582 = vadd.f32 %v1303, %v1542
      %v1583 = vadd.f32 %v1304, %v1545
      %v1584 = vadd.f32 %v1305, %v1547
      %s1585 = scalar_lea.vmem %s2, 10
      %v1586 = vld [vmem:[%s1585] sm:$0x3]
      %vm1587 = vcmask 1045504
      %v1588 = vrot.slane %v466, 2
      %v1589 = vrot.slane %v467, 2
      %v1590 = vsel %vm1587, %v1588, %v1589
      %v1591 = vrot.slane %v468, 2
      %v1592 = vsel %vm1587, %v1589, %v1591
      %v1593 = vrot.slane %v469, 2
      %v1594 = vsel %vm1587, %v1591, %v1593
      %v1595 = vrot.slane %v470, 2
      %v1596 = vsel %vm1587, %v1593, %v1595
      %v1597 = vrot.slane %v471, 2
      %v1598 = vsel %vm1587, %v1595, %v1597
      %v1599 = vrot.slane %v472, 2
      %v1600 = vsel %vm1587, %v1597, %v1599
      %v1601 = vrot.slane %v473, 2
      %v1602 = vsel %vm1587, %v1599, %v1601
      %v1603 = vrot.slane %v474, 2
      %v1604 = vsel %vm1587, %v1601, %v1603
      %v1605 = vrot.slane %v475, 2
      %v1606 = vsel %vm1587, %v1603, %v1605
      %v1607 = vrot.slane %v476, 2
      %v1608 = vsel %vm1587, %v1605, %v1607
      %v1609 = vrot.slane %v477, 2
      %v1610 = vsel %vm1587, %v1607, %v1609
      %v1611 = vrot.slane %v478, 2
      %v1612 = vsel %vm1587, %v1609, %v1611
      %v1613 = vrot.slane %v479, 2
      %v1614 = vsel %vm1587, %v1611, %v1613
      %v1615 = vrot.slane %v480, 2
      %v1616 = vsel %vm1587, %v1613, %v1615
      %v1617 = vrot.slane %v481, 2
      %v1618 = vsel %vm1587, %v1615, %v1617
      %v1619 = vrot.slane %v482, 2
      %v1620 = vsel %vm1587, %v1617, %v1619
      %v1621 = vrot.slane %v1159, 2
      %v1622 = vsel %vm1587, %v1619, %v1621
      %v1623 = vrot.slane %v1310, 2
      %v1624 = vsel %vm1587, %v1621, %v1623
      %v1626 = vsel %vm627, %v1590, 0
      %v1629 = vsel %vm627, %v1592, 0
      %v1632 = vsel %vm627, %v1594, 0
      %v1635 = vsel %vm627, %v1596, 0
      %v1638 = vsel %vm627, %v1598, 0
      %v1641 = vsel %vm627, %v1600, 0
      %v1644 = vsel %vm627, %v1602, 0
      %v1647 = vsel %vm627, %v1604, 0
      %v1650 = vsel %vm627, %v1606, 0
      %v1653 = vsel %vm627, %v1608, 0
      %v1656 = vsel %vm627, %v1610, 0
      %v1659 = vsel %vm627, %v1612, 0
      %v1662 = vsel %vm627, %v1614, 0
      %v1665 = vsel %vm627, %v1616, 0
      %v1668 = vsel %vm627, %v1618, 0
      %v1671 = vsel %vm627, %v1620, 0
      %v1674 = vsel %vm627, %v1622, 0
      %v1677 = vsel %vm627, %v1624, 0
      %v1680 = vsel %vm682, %v1586, 0
      %1682 = vmatpush.bf16.msra.mxu0 0
      %1683 = vmatpush.bf16.msra.mxu0 0
      %1684 = vmatpush.bf16.msra.mxu0 0
      %1685 = vmatpush.bf16.msra.mxu0 0
      %1686 = vmatpush.bf16.msra.mxu0 0
      %1687 = vmatpush.bf16.msra.mxu0 0
      %1688 = vmatpush.bf16.msra.mxu0 0
      %1689 = vmatpush.bf16.msra.mxu0 %v1680
      %1690 = vmatmul.bf16.gmra.mxu0 %v1626
      %v1691 = vpop.f32.mrf.mxu0
      %v1692 = vadd.f32 0.0, %v1691
      %v1693 = vpop.f32.mrf.mxu0
      %v1694 = vadd.f32 0.0, %v1693
      %1695 = vmatmul.bf16.gmra.mxu0 %v1629
      %v1696 = vpop.f32.mrf.mxu0
      %v1697 = vadd.f32 0.0, %v1696
      %v1698 = vpop.f32.mrf.mxu0
      %v1699 = vadd.f32 0.0, %v1698
      %1700 = vmatmul.bf16.gmra.mxu0 %v1632
      %v1701 = vpop.f32.mrf.mxu0
      %v1702 = vadd.f32 0.0, %v1701
      %v1703 = vpop.f32.mrf.mxu0
      %v1704 = vadd.f32 0.0, %v1703
      %1705 = vmatmul.bf16.gmra.mxu0 %v1635
      %v1706 = vpop.f32.mrf.mxu0
      %v1707 = vadd.f32 0.0, %v1706
      %v1708 = vpop.f32.mrf.mxu0
      %v1709 = vadd.f32 0.0, %v1708
      %1710 = vmatmul.bf16.gmra.mxu0 %v1638
      %v1711 = vpop.f32.mrf.mxu0
      %v1712 = vadd.f32 0.0, %v1711
      %v1713 = vpop.f32.mrf.mxu0
      %v1714 = vadd.f32 0.0, %v1713
      %1715 = vmatmul.bf16.gmra.mxu0 %v1641
      %v1716 = vpop.f32.mrf.mxu0
      %v1717 = vadd.f32 0.0, %v1716
      %v1718 = vpop.f32.mrf.mxu0
      %v1719 = vadd.f32 0.0, %v1718
      %1720 = vmatmul.bf16.gmra.mxu0 %v1644
      %v1721 = vpop.f32.mrf.mxu0
      %v1722 = vadd.f32 0.0, %v1721
      %v1723 = vpop.f32.mrf.mxu0
      %v1724 = vadd.f32 0.0, %v1723
      %1725 = vmatmul.bf16.gmra.mxu0 %v1647
      %v1726 = vpop.f32.mrf.mxu0
      %v1727 = vadd.f32 0.0, %v1726
      %v1728 = vpop.f32.mrf.mxu0
      %v1729 = vadd.f32 0.0, %v1728
      %1730 = vmatmul.bf16.gmra.mxu0 %v1650
      %v1731 = vpop.f32.mrf.mxu0
      %v1732 = vadd.f32 0.0, %v1731
      %v1733 = vpop.f32.mrf.mxu0
      %v1734 = vadd.f32 0.0, %v1733
      %1735 = vmatmul.bf16.gmra.mxu0 %v1653
      %v1736 = vpop.f32.mrf.mxu0
      %v1737 = vadd.f32 0.0, %v1736
      %v1738 = vpop.f32.mrf.mxu0
      %v1739 = vadd.f32 0.0, %v1738
      %1740 = vmatmul.bf16.gmra.mxu0 %v1656
      %v1741 = vpop.f32.mrf.mxu0
      %v1742 = vadd.f32 0.0, %v1741
      %v1743 = vpop.f32.mrf.mxu0
      %v1744 = vadd.f32 0.0, %v1743
      %1745 = vmatmul.bf16.gmra.mxu0 %v1659
      %v1746 = vpop.f32.mrf.mxu0
      %v1747 = vadd.f32 0.0, %v1746
      %v1748 = vpop.f32.mrf.mxu0
      %v1749 = vadd.f32 0.0, %v1748
      %1750 = vmatmul.bf16.gmra.mxu0 %v1662
      %v1751 = vpop.f32.mrf.mxu0
      %v1752 = vadd.f32 0.0, %v1751
      %v1753 = vpop.f32.mrf.mxu0
      %v1754 = vadd.f32 0.0, %v1753
      %1755 = vmatmul.bf16.gmra.mxu0 %v1665
      %v1756 = vpop.f32.mrf.mxu0
      %v1757 = vadd.f32 0.0, %v1756
      %v1758 = vpop.f32.mrf.mxu0
      %v1759 = vadd.f32 0.0, %v1758
      %1760 = vmatmul.bf16.gmra.mxu0 %v1668
      %v1761 = vpop.f32.mrf.mxu0
      %v1762 = vadd.f32 0.0, %v1761
      %v1763 = vpop.f32.mrf.mxu0
      %v1764 = vadd.f32 0.0, %v1763
      %1765 = vmatmul.bf16.gmra.mxu0 %v1671
      %v1766 = vpop.f32.mrf.mxu0
      %v1767 = vadd.f32 0.0, %v1766
      %v1768 = vpop.f32.mrf.mxu0
      %v1769 = vadd.f32 0.0, %v1768
      %1770 = vmatmul.bf16.gmra.mxu0 %v1674
      %v1771 = vpop.f32.mrf.mxu0
      %v1772 = vadd.f32 0.0, %v1771
      %v1773 = vpop.f32.mrf.mxu0
      %v1774 = vadd.f32 0.0, %v1773
      %1775 = vmatmul.bf16.gmra.mxu0 %v1677
      %v1776 = vpop.f32.mrf.mxu0
      %v1777 = vadd.f32 0.0, %v1776
      %v1778 = vpop.f32.mrf.mxu0
      %v1779 = vadd.f32 0.0, %v1778
      %1780 = vdwg.mxu0
      %v1781 = vadd.f32 %v1549, %v1692
      %v1782 = vadd.f32 %v1550, %v1694
      %v1783 = vadd.f32 %v1551, %v1697
      %v1784 = vadd.f32 %v1552, %v1699
      %v1785 = vadd.f32 %v1553, %v1702
      %v1786 = vadd.f32 %v1554, %v1704
      %v1787 = vadd.f32 %v1555, %v1707
      %v1788 = vadd.f32 %v1556, %v1709
      %v1789 = vadd.f32 %v1557, %v1712
      %v1790 = vadd.f32 %v1558, %v1714
      %v1791 = vadd.f32 %v1559, %v1717
      %v1792 = vadd.f32 %v1560, %v1719
      %v1793 = vadd.f32 %v1561, %v1722
      %v1794 = vadd.f32 %v1562, %v1724
      %v1795 = vadd.f32 %v1563, %v1727
      %v1796 = vadd.f32 %v1564, %v1729
      %v1797 = vadd.f32 %v1565, %v1732
      %v1798 = vadd.f32 %v1566, %v1734
      %v1799 = vadd.f32 %v1567, %v1737
      %v1800 = vadd.f32 %v1568, %v1739
      %v1801 = vadd.f32 %v1569, %v1742
      %v1802 = vadd.f32 %v1570, %v1744
      %v1803 = vadd.f32 %v1571, %v1747
      %v1804 = vadd.f32 %v1572, %v1749
      %v1805 = vadd.f32 %v1573, %v1752
      %v1806 = vadd.f32 %v1574, %v1754
      %v1807 = vadd.f32 %v1575, %v1757
      %v1808 = vadd.f32 %v1576, %v1759
      %v1809 = vadd.f32 %v1577, %v1762
      %v1810 = vadd.f32 %v1578, %v1764
      %v1811 = vadd.f32 %v1579, %v1767
      %v1812 = vadd.f32 %v1580, %v1769
      %v1813 = vadd.f32 %v1581, %v1772
      %v1814 = vadd.f32 %v1582, %v1774
      %v1815 = vadd.f32 %v1583, %v1777
      %v1816 = vadd.f32 %v1584, %v1779
      %s1817 = scalar_lea.vmem %s2, 12
      %v1818 = vld [vmem:[%s1817] sm:$0x3]
      %v1821 = vunpack.c.l.b16 %v352
      %v1822 = vunpack.c.l.b16 %v353
      %v1823 = vpack.c.b16 %v1821, %v1309
      %v1824 = vpack.c.b16 %v1822, %v1822
      %v1825 = vrot.slane %v1823, 2
      %v1826 = vsel %vm1587, %v1621, %v1825
      %v1827 = vrot.slane %v1824, 2
      %v1828 = vsel %vm1587, %v1825, %v1827
      %v1830 = vsel %vm627, %v1826, 0
      %v1833 = vsel %vm627, %v1828, 0
      %v1836 = vsel %vm682, %v1818, 0
      %1838 = vmatpush.bf16.msra.mxu0 0
      %1839 = vmatpush.bf16.msra.mxu0 0
      %1840 = vmatpush.bf16.msra.mxu0 0
      %1841 = vmatpush.bf16.msra.mxu0 0
      %1842 = vmatpush.bf16.msra.mxu0 0
      %1843 = vmatpush.bf16.msra.mxu0 0
      %1844 = vmatpush.bf16.msra.mxu0 0
      %1845 = vmatpush.bf16.msra.mxu0 %v1836
      %1846 = vmatmul.bf16.gmra.mxu0 %v1629
      %v1847 = vpop.f32.mrf.mxu0
      %v1848 = vadd.f32 0.0, %v1847
      %v1849 = vpop.f32.mrf.mxu0
      %v1850 = vadd.f32 0.0, %v1849
      %1851 = vmatmul.bf16.gmra.mxu0 %v1632
      %v1852 = vpop.f32.mrf.mxu0
      %v1853 = vadd.f32 0.0, %v1852
      %v1854 = vpop.f32.mrf.mxu0
      %v1855 = vadd.f32 0.0, %v1854
      %1856 = vmatmul.bf16.gmra.mxu0 %v1635
      %v1857 = vpop.f32.mrf.mxu0
      %v1858 = vadd.f32 0.0, %v1857
      %v1859 = vpop.f32.mrf.mxu0
      %v1860 = vadd.f32 0.0, %v1859
      %1861 = vmatmul.bf16.gmra.mxu0 %v1638
      %v1862 = vpop.f32.mrf.mxu0
      %v1863 = vadd.f32 0.0, %v1862
      %v1864 = vpop.f32.mrf.mxu0
      %v1865 = vadd.f32 0.0, %v1864
      %1866 = vmatmul.bf16.gmra.mxu0 %v1641
      %v1867 = vpop.f32.mrf.mxu0
      %v1868 = vadd.f32 0.0, %v1867
      %v1869 = vpop.f32.mrf.mxu0
      %v1870 = vadd.f32 0.0, %v1869
      %1871 = vmatmul.bf16.gmra.mxu0 %v1644
      %v1872 = vpop.f32.mrf.mxu0
      %v1873 = vadd.f32 0.0, %v1872
      %v1874 = vpop.f32.mrf.mxu0
      %v1875 = vadd.f32 0.0, %v1874
      %1876 = vmatmul.bf16.gmra.mxu0 %v1647
      %v1877 = vpop.f32.mrf.mxu0
      %v1878 = vadd.f32 0.0, %v1877
      %v1879 = vpop.f32.mrf.mxu0
      %v1880 = vadd.f32 0.0, %v1879
      %1881 = vmatmul.bf16.gmra.mxu0 %v1650
      %v1882 = vpop.f32.mrf.mxu0
      %v1883 = vadd.f32 0.0, %v1882
      %v1884 = vpop.f32.mrf.mxu0
      %v1885 = vadd.f32 0.0, %v1884
      %1886 = vmatmul.bf16.gmra.mxu0 %v1653
      %v1887 = vpop.f32.mrf.mxu0
      %v1888 = vadd.f32 0.0, %v1887
      %v1889 = vpop.f32.mrf.mxu0
      %v1890 = vadd.f32 0.0, %v1889
      %1891 = vmatmul.bf16.gmra.mxu0 %v1656
      %v1892 = vpop.f32.mrf.mxu0
      %v1893 = vadd.f32 0.0, %v1892
      %v1894 = vpop.f32.mrf.mxu0
      %v1895 = vadd.f32 0.0, %v1894
      %1896 = vmatmul.bf16.gmra.mxu0 %v1659
      %v1897 = vpop.f32.mrf.mxu0
      %v1898 = vadd.f32 0.0, %v1897
      %v1899 = vpop.f32.mrf.mxu0
      %v1900 = vadd.f32 0.0, %v1899
      %1901 = vmatmul.bf16.gmra.mxu0 %v1662
      %v1902 = vpop.f32.mrf.mxu0
      %v1903 = vadd.f32 0.0, %v1902
      %v1904 = vpop.f32.mrf.mxu0
      %v1905 = vadd.f32 0.0, %v1904
      %1906 = vmatmul.bf16.gmra.mxu0 %v1665
      %v1907 = vpop.f32.mrf.mxu0
      %v1908 = vadd.f32 0.0, %v1907
      %v1909 = vpop.f32.mrf.mxu0
      %v1910 = vadd.f32 0.0, %v1909
      %1911 = vmatmul.bf16.gmra.mxu0 %v1668
      %v1912 = vpop.f32.mrf.mxu0
      %v1913 = vadd.f32 0.0, %v1912
      %v1914 = vpop.f32.mrf.mxu0
      %v1915 = vadd.f32 0.0, %v1914
      %1916 = vmatmul.bf16.gmra.mxu0 %v1671
      %v1917 = vpop.f32.mrf.mxu0
      %v1918 = vadd.f32 0.0, %v1917
      %v1919 = vpop.f32.mrf.mxu0
      %v1920 = vadd.f32 0.0, %v1919
      %1921 = vmatmul.bf16.gmra.mxu0 %v1674
      %v1922 = vpop.f32.mrf.mxu0
      %v1923 = vadd.f32 0.0, %v1922
      %v1924 = vpop.f32.mrf.mxu0
      %v1925 = vadd.f32 0.0, %v1924
      %1926 = vmatmul.bf16.gmra.mxu0 %v1830
      %v1927 = vpop.f32.mrf.mxu0
      %v1928 = vadd.f32 0.0, %v1927
      %v1929 = vpop.f32.mrf.mxu0
      %v1930 = vadd.f32 0.0, %v1929
      %1931 = vmatmul.bf16.gmra.mxu0 %v1833
      %v1932 = vpop.f32.mrf.mxu0
      %v1933 = vadd.f32 0.0, %v1932
      %v1934 = vpop.f32.mrf.mxu0
      %v1935 = vadd.f32 0.0, %v1934
      %1936 = vdwg.mxu0
      %v1937 = vadd.f32 %v1781, %v1848
      %v1938 = vadd.f32 %v1782, %v1850
      %v1939 = vadd.f32 %v1783, %v1853
      %v1940 = vadd.f32 %v1784, %v1855
      %v1941 = vadd.f32 %v1785, %v1858
      %v1942 = vadd.f32 %v1786, %v1860
      %v1943 = vadd.f32 %v1787, %v1863
      %v1944 = vadd.f32 %v1788, %v1865
      %v1945 = vadd.f32 %v1789, %v1868
      %v1946 = vadd.f32 %v1790, %v1870
      %v1947 = vadd.f32 %v1791, %v1873
      %v1948 = vadd.f32 %v1792, %v1875
      %v1949 = vadd.f32 %v1793, %v1878
      %v1950 = vadd.f32 %v1794, %v1880
      %v1951 = vadd.f32 %v1795, %v1883
      %v1952 = vadd.f32 %v1796, %v1885
      %v1953 = vadd.f32 %v1797, %v1888
      %v1954 = vadd.f32 %v1798, %v1890
      %v1955 = vadd.f32 %v1799, %v1893
      %v1956 = vadd.f32 %v1800, %v1895
      %v1957 = vadd.f32 %v1801, %v1898
      %v1958 = vadd.f32 %v1802, %v1900
      %v1959 = vadd.f32 %v1803, %v1903
      %v1960 = vadd.f32 %v1804, %v1905
      %v1961 = vadd.f32 %v1805, %v1908
      %v1962 = vadd.f32 %v1806, %v1910
      %v1963 = vadd.f32 %v1807, %v1913
      %v1964 = vadd.f32 %v1808, %v1915
      %v1965 = vadd.f32 %v1809, %v1918
      %v1966 = vadd.f32 %v1810, %v1920
      %v1967 = vadd.f32 %v1811, %v1923
      %v1968 = vadd.f32 %v1812, %v1925
      %v1969 = vadd.f32 %v1813, %v1928
      %v1970 = vadd.f32 %v1814, %v1930
      %v1971 = vadd.f32 %v1815, %v1933
      %v1972 = vadd.f32 %v1816, %v1935
      %s1973 = scalar_lea.vmem %s2, 14
      %v1974 = vld [vmem:[%s1973] sm:$0x3]
      %vm1975 = vsmask.f32 5376
      %v1976 = vrot.slane %v504, 2
      %v1977 = vrot.slane %v500, 3
      %v1978 = vor.u32 %v1976, %v1977
      %v1979 = vrot.slane %v512, 2
      %v1980 = vrot.slane %v508, 3
      %v1981 = vor.u32 %v1979, %v1980
      %v1982 = vsel %vm1975, %v1978, %v1981
      %v1983 = vrot.slane %v520, 2
      %v1984 = vrot.slane %v516, 3
      %v1985 = vor.u32 %v1983, %v1984
      %v1986 = vsel %vm1975, %v1981, %v1985
      %v1987 = vrot.slane %v528, 2
      %v1988 = vrot.slane %v524, 3
      %v1989 = vor.u32 %v1987, %v1988
      %v1990 = vsel %vm1975, %v1985, %v1989
      %v1991 = vrot.slane %v536, 2
      %v1992 = vrot.slane %v532, 3
      %v1993 = vor.u32 %v1991, %v1992
      %v1994 = vsel %vm1975, %v1989, %v1993
      %v1995 = vrot.slane %v544, 2
      %v1996 = vrot.slane %v540, 3
      %v1997 = vor.u32 %v1995, %v1996
      %v1998 = vsel %vm1975, %v1993, %v1997
      %v1999 = vrot.slane %v552, 2
      %v2000 = vrot.slane %v548, 3
      %v2001 = vor.u32 %v1999, %v2000
      %v2002 = vsel %vm1975, %v1997, %v2001
      %v2003 = vrot.slane %v560, 2
      %v2004 = vrot.slane %v556, 3
      %v2005 = vor.u32 %v2003, %v2004
      %v2006 = vsel %vm1975, %v2001, %v2005
      %v2007 = vrot.slane %v568, 2
      %v2008 = vrot.slane %v564, 3
      %v2009 = vor.u32 %v2007, %v2008
      %v2010 = vsel %vm1975, %v2005, %v2009
      %v2011 = vrot.slane %v576, 2
      %v2012 = vrot.slane %v572, 3
      %v2013 = vor.u32 %v2011, %v2012
      %v2014 = vsel %vm1975, %v2009, %v2013
      %v2015 = vrot.slane %v584, 2
      %v2016 = vrot.slane %v580, 3
      %v2017 = vor.u32 %v2015, %v2016
      %v2018 = vsel %vm1975, %v2013, %v2017
      %v2019 = vrot.slane %v592, 2
      %v2020 = vrot.slane %v588, 3
      %v2021 = vor.u32 %v2019, %v2020
      %v2022 = vsel %vm1975, %v2017, %v2021
      %v2023 = vrot.slane %v600, 2
      %v2024 = vrot.slane %v596, 3
      %v2025 = vor.u32 %v2023, %v2024
      %v2026 = vsel %vm1975, %v2021, %v2025
      %v2027 = vrot.slane %v608, 2
      %v2028 = vrot.slane %v604, 3
      %v2029 = vor.u32 %v2027, %v2028
      %v2030 = vsel %vm1975, %v2025, %v2029
      %v2031 = vrot.slane %v616, 2
      %v2032 = vrot.slane %v612, 3
      %v2033 = vor.u32 %v2031, %v2032
      %v2034 = vsel %vm1975, %v2029, %v2033
      %v2035 = vrot.slane %v624, 2
      %v2036 = vrot.slane %v620, 3
      %v2037 = vor.u32 %v2035, %v2036
      %v2038 = vsel %vm1975, %v2033, %v2037
      %v2039 = vrot.slane %v1380, 2
      %v2040 = vrot.slane %v1383, 3
      %v2041 = vor.u32 %v2039, %v2040
      %v2042 = vsel %vm1975, %v2037, %v2041
      %v2044 = vshrl.u32 %v1823, 16
      %v2046 = vrot.slane %v2044, 2
      %v2047 = vshll.u32 %v1823, 16
      %v2049 = vrot.slane %v2047, 3
      %v2050 = vor.u32 %v2046, %v2049
      %v2051 = vsel %vm1975, %v2041, %v2050
      %v2053 = vshrl.u32 %v1824, 16
      %v2055 = vrot.slane %v2053, 2
      %v2056 = vshll.u32 %v1824, 16
      %v2058 = vrot.slane %v2056, 3
      %v2059 = vor.u32 %v2055, %v2058
      %v2060 = vsel %vm1975, %v2050, %v2059
      %v2062 = vsel %vm627, %v1982, 0
      %v2065 = vsel %vm627, %v1986, 0
      %v2068 = vsel %vm627, %v1990, 0
      %v2071 = vsel %vm627, %v1994, 0
      %v2074 = vsel %vm627, %v1998, 0
      %v2077 = vsel %vm627, %v2002, 0
      %v2080 = vsel %vm627, %v2006, 0
      %v2083 = vsel %vm627, %v2010, 0
      %v2086 = vsel %vm627, %v2014, 0
      %v2089 = vsel %vm627, %v2018, 0
      %v2092 = vsel %vm627, %v2022, 0
      %v2095 = vsel %vm627, %v2026, 0
      %v2098 = vsel %vm627, %v2030, 0
      %v2101 = vsel %vm627, %v2034, 0
      %v2104 = vsel %vm627, %v2038, 0
      %v2107 = vsel %vm627, %v2042, 0
      %v2110 = vsel %vm627, %v2051, 0
      %v2113 = vsel %vm627, %v2060, 0
      %v2116 = vsel %vm682, %v1974, 0
      %2118 = vmatpush.bf16.msra.mxu0 0
      %2119 = vmatpush.bf16.msra.mxu0 0
      %2120 = vmatpush.bf16.msra.mxu0 0
      %2121 = vmatpush.bf16.msra.mxu0 0
      %2122 = vmatpush.bf16.msra.mxu0 0
      %2123 = vmatpush.bf16.msra.mxu0 0
      %2124 = vmatpush.bf16.msra.mxu0 0
      %2125 = vmatpush.bf16.msra.mxu0 %v2116
      %2126 = vmatmul.bf16.gmra.mxu0 %v2062
      %v2127 = vpop.f32.mrf.mxu0
      %v2128 = vadd.f32 0.0, %v2127
      %v2129 = vpop.f32.mrf.mxu0
      %v2130 = vadd.f32 0.0, %v2129
      %2131 = vmatmul.bf16.gmra.mxu0 %v2065
      %v2132 = vpop.f32.mrf.mxu0
      %v2133 = vadd.f32 0.0, %v2132
      %v2134 = vpop.f32.mrf.mxu0
      %v2135 = vadd.f32 0.0, %v2134
      %2136 = vmatmul.bf16.gmra.mxu0 %v2068
      %v2137 = vpop.f32.mrf.mxu0
      %v2138 = vadd.f32 0.0, %v2137
      %v2139 = vpop.f32.mrf.mxu0
      %v2140 = vadd.f32 0.0, %v2139
      %2141 = vmatmul.bf16.gmra.mxu0 %v2071
      %v2142 = vpop.f32.mrf.mxu0
      %v2143 = vadd.f32 0.0, %v2142
      %v2144 = vpop.f32.mrf.mxu0
      %v2145 = vadd.f32 0.0, %v2144
      %2146 = vmatmul.bf16.gmra.mxu0 %v2074
      %v2147 = vpop.f32.mrf.mxu0
      %v2148 = vadd.f32 0.0, %v2147
      %v2149 = vpop.f32.mrf.mxu0
      %v2150 = vadd.f32 0.0, %v2149
      %2151 = vmatmul.bf16.gmra.mxu0 %v2077
      %v2152 = vpop.f32.mrf.mxu0
      %v2153 = vadd.f32 0.0, %v2152
      %v2154 = vpop.f32.mrf.mxu0
      %v2155 = vadd.f32 0.0, %v2154
      %2156 = vmatmul.bf16.gmra.mxu0 %v2080
      %v2157 = vpop.f32.mrf.mxu0
      %v2158 = vadd.f32 0.0, %v2157
      %v2159 = vpop.f32.mrf.mxu0
      %v2160 = vadd.f32 0.0, %v2159
      %2161 = vmatmul.bf16.gmra.mxu0 %v2083
      %v2162 = vpop.f32.mrf.mxu0
      %v2163 = vadd.f32 0.0, %v2162
      %v2164 = vpop.f32.mrf.mxu0
      %v2165 = vadd.f32 0.0, %v2164
      %2166 = vmatmul.bf16.gmra.mxu0 %v2086
      %v2167 = vpop.f32.mrf.mxu0
      %v2168 = vadd.f32 0.0, %v2167
      %v2169 = vpop.f32.mrf.mxu0
      %v2170 = vadd.f32 0.0, %v2169
      %2171 = vmatmul.bf16.gmra.mxu0 %v2089
      %v2172 = vpop.f32.mrf.mxu0
      %v2173 = vadd.f32 0.0, %v2172
      %v2174 = vpop.f32.mrf.mxu0
      %v2175 = vadd.f32 0.0, %v2174
      %2176 = vmatmul.bf16.gmra.mxu0 %v2092
      %v2177 = vpop.f32.mrf.mxu0
      %v2178 = vadd.f32 0.0, %v2177
      %v2179 = vpop.f32.mrf.mxu0
      %v2180 = vadd.f32 0.0, %v2179
      %2181 = vmatmul.bf16.gmra.mxu0 %v2095
      %v2182 = vpop.f32.mrf.mxu0
      %v2183 = vadd.f32 0.0, %v2182
      %v2184 = vpop.f32.mrf.mxu0
      %v2185 = vadd.f32 0.0, %v2184
      %2186 = vmatmul.bf16.gmra.mxu0 %v2098
      %v2187 = vpop.f32.mrf.mxu0
      %v2188 = vadd.f32 0.0, %v2187
      %v2189 = vpop.f32.mrf.mxu0
      %v2190 = vadd.f32 0.0, %v2189
      %2191 = vmatmul.bf16.gmra.mxu0 %v2101
      %v2192 = vpop.f32.mrf.mxu0
      %v2193 = vadd.f32 0.0, %v2192
      %v2194 = vpop.f32.mrf.mxu0
      %v2195 = vadd.f32 0.0, %v2194
      %2196 = vmatmul.bf16.gmra.mxu0 %v2104
      %v2197 = vpop.f32.mrf.mxu0
      %v2198 = vadd.f32 0.0, %v2197
      %v2199 = vpop.f32.mrf.mxu0
      %v2200 = vadd.f32 0.0, %v2199
      %2201 = vmatmul.bf16.gmra.mxu0 %v2107
      %v2202 = vpop.f32.mrf.mxu0
      %v2203 = vadd.f32 0.0, %v2202
      %v2204 = vpop.f32.mrf.mxu0
      %v2205 = vadd.f32 0.0, %v2204
      %2206 = vmatmul.bf16.gmra.mxu0 %v2110
      %v2207 = vpop.f32.mrf.mxu0
      %v2208 = vadd.f32 0.0, %v2207
      %v2209 = vpop.f32.mrf.mxu0
      %v2210 = vadd.f32 0.0, %v2209
      %2211 = vmatmul.bf16.gmra.mxu0 %v2113
      %v2212 = vpop.f32.mrf.mxu0
      %v2213 = vadd.f32 0.0, %v2212
      %v2214 = vpop.f32.mrf.mxu0
      %v2215 = vadd.f32 0.0, %v2214
      %2216 = vdwg.mxu0
      %v2217 = vadd.f32 %v1937, %v2128
      %v2218 = vadd.f32 %v1938, %v2130
      %v2219 = vadd.f32 %v1939, %v2133
      %v2220 = vadd.f32 %v1940, %v2135
      %v2221 = vadd.f32 %v1941, %v2138
      %v2222 = vadd.f32 %v1942, %v2140
      %v2223 = vadd.f32 %v1943, %v2143
      %v2224 = vadd.f32 %v1944, %v2145
      %v2225 = vadd.f32 %v1945, %v2148
      %v2226 = vadd.f32 %v1946, %v2150
      %v2227 = vadd.f32 %v1947, %v2153
      %v2228 = vadd.f32 %v1948, %v2155
      %v2229 = vadd.f32 %v1949, %v2158
      %v2230 = vadd.f32 %v1950, %v2160
      %v2231 = vadd.f32 %v1951, %v2163
      %v2232 = vadd.f32 %v1952, %v2165
      %v2233 = vadd.f32 %v1953, %v2168
      %v2234 = vadd.f32 %v1954, %v2170
      %v2235 = vadd.f32 %v1955, %v2173
      %v2236 = vadd.f32 %v1956, %v2175
      %v2237 = vadd.f32 %v1957, %v2178
      %v2238 = vadd.f32 %v1958, %v2180
      %v2239 = vadd.f32 %v1959, %v2183
      %v2240 = vadd.f32 %v1960, %v2185
      %v2241 = vadd.f32 %v1961, %v2188
      %v2242 = vadd.f32 %v1962, %v2190
      %v2243 = vadd.f32 %v1963, %v2193
      %v2244 = vadd.f32 %v1964, %v2195
      %v2245 = vadd.f32 %v1965, %v2198
      %v2246 = vadd.f32 %v1966, %v2200
      %v2247 = vadd.f32 %v1967, %v2203
      %v2248 = vadd.f32 %v1968, %v2205
      %v2249 = vadd.f32 %v1969, %v2208
      %v2250 = vadd.f32 %v1970, %v2210
      %v2251 = vadd.f32 %v1971, %v2213
      %v2252 = vadd.f32 %v1972, %v2215
      %s2253 = scalar_lea.vmem %s2, 16
      %v2254 = vld [vmem:[%s2253] sm:$0x3]
      %vm2255 = vcmask 1044480
      %v2256 = vrot.slane %v467, 3
      %v2257 = vrot.slane %v468, 3
      %v2258 = vsel %vm2255, %v2256, %v2257
      %v2259 = vrot.slane %v469, 3
      %v2260 = vsel %vm2255, %v2257, %v2259
      %v2261 = vrot.slane %v470, 3
      %v2262 = vsel %vm2255, %v2259, %v2261
      %v2263 = vrot.slane %v471, 3
      %v2264 = vsel %vm2255, %v2261, %v2263
      %v2265 = vrot.slane %v472, 3
      %v2266 = vsel %vm2255, %v2263, %v2265
      %v2267 = vrot.slane %v473, 3
      %v2268 = vsel %vm2255, %v2265, %v2267
      %v2269 = vrot.slane %v474, 3
      %v2270 = vsel %vm2255, %v2267, %v2269
      %v2271 = vrot.slane %v475, 3
      %v2272 = vsel %vm2255, %v2269, %v2271
      %v2273 = vrot.slane %v476, 3
      %v2274 = vsel %vm2255, %v2271, %v2273
      %v2275 = vrot.slane %v477, 3
      %v2276 = vsel %vm2255, %v2273, %v2275
      %v2277 = vrot.slane %v478, 3
      %v2278 = vsel %vm2255, %v2275, %v2277
      %v2279 = vrot.slane %v479, 3
      %v2280 = vsel %vm2255, %v2277, %v2279
      %v2281 = vrot.slane %v480, 3
      %v2282 = vsel %vm2255, %v2279, %v2281
      %v2283 = vrot.slane %v481, 3
      %v2284 = vsel %vm2255, %v2281, %v2283
      %v2285 = vrot.slane %v482, 3
      %v2286 = vsel %vm2255, %v2283, %v2285
      %v2287 = vrot.slane %v1159, 3
      %v2288 = vsel %vm2255, %v2285, %v2287
      %v2289 = vrot.slane %v1823, 3
      %v2290 = vsel %vm2255, %v2287, %v2289
      %v2291 = vrot.slane %v1824, 3
      %v2292 = vsel %vm2255, %v2289, %v2291
      %v2294 = vsel %vm627, %v2258, 0
      %v2297 = vsel %vm627, %v2260, 0
      %v2300 = vsel %vm627, %v2262, 0
      %v2303 = vsel %vm627, %v2264, 0
      %v2306 = vsel %vm627, %v2266, 0
      %v2309 = vsel %vm627, %v2268, 0
      %v2312 = vsel %vm627, %v2270, 0
      %v2315 = vsel %vm627, %v2272, 0
      %v2318 = vsel %vm627, %v2274, 0
      %v2321 = vsel %vm627, %v2276, 0
      %v2324 = vsel %vm627, %v2278, 0
      %v2327 = vsel %vm627, %v2280, 0
      %v2330 = vsel %vm627, %v2282, 0
      %v2333 = vsel %vm627, %v2284, 0
      %v2336 = vsel %vm627, %v2286, 0
      %v2339 = vsel %vm627, %v2288, 0
      %v2342 = vsel %vm627, %v2290, 0
      %v2345 = vsel %vm627, %v2292, 0
      %v2348 = vsel %vm682, %v2254, 0
      %2350 = vmatpush.bf16.msra.mxu0 0
      %2351 = vmatpush.bf16.msra.mxu0 0
      %2352 = vmatpush.bf16.msra.mxu0 0
      %2353 = vmatpush.bf16.msra.mxu0 0
      %2354 = vmatpush.bf16.msra.mxu0 0
      %2355 = vmatpush.bf16.msra.mxu0 0
      %2356 = vmatpush.bf16.msra.mxu0 0
      %2357 = vmatpush.bf16.msra.mxu0 %v2348
      %2358 = vmatmul.bf16.gmra.mxu0 %v2294
      %v2359 = vpop.f32.mrf.mxu0
      %v2360 = vadd.f32 0.0, %v2359
      %v2361 = vpop.f32.mrf.mxu0
      %v2362 = vadd.f32 0.0, %v2361
      %2363 = vmatmul.bf16.gmra.mxu0 %v2297
      %v2364 = vpop.f32.mrf.mxu0
      %v2365 = vadd.f32 0.0, %v2364
      %v2366 = vpop.f32.mrf.mxu0
      %v2367 = vadd.f32 0.0, %v2366
      %2368 = vmatmul.bf16.gmra.mxu0 %v2300
      %v2369 = vpop.f32.mrf.mxu0
      %v2370 = vadd.f32 0.0, %v2369
      %v2371 = vpop.f32.mrf.mxu0
      %v2372 = vadd.f32 0.0, %v2371
      %2373 = vmatmul.bf16.gmra.mxu0 %v2303
      %v2374 = vpop.f32.mrf.mxu0
      %v2375 = vadd.f32 0.0, %v2374
      %v2376 = vpop.f32.mrf.mxu0
      %v2377 = vadd.f32 0.0, %v2376
      %2378 = vmatmul.bf16.gmra.mxu0 %v2306
      %v2379 = vpop.f32.mrf.mxu0
      %v2380 = vadd.f32 0.0, %v2379
      %v2381 = vpop.f32.mrf.mxu0
      %v2382 = vadd.f32 0.0, %v2381
      %2383 = vmatmul.bf16.gmra.mxu0 %v2309
      %v2384 = vpop.f32.mrf.mxu0
      %v2385 = vadd.f32 0.0, %v2384
      %v2386 = vpop.f32.mrf.mxu0
      %v2387 = vadd.f32 0.0, %v2386
      %2388 = vmatmul.bf16.gmra.mxu0 %v2312
      %v2389 = vpop.f32.mrf.mxu0
      %v2390 = vadd.f32 0.0, %v2389
      %v2391 = vpop.f32.mrf.mxu0
      %v2392 = vadd.f32 0.0, %v2391
      %2393 = vmatmul.bf16.gmra.mxu0 %v2315
      %v2394 = vpop.f32.mrf.mxu0
      %v2395 = vadd.f32 0.0, %v2394
      %v2396 = vpop.f32.mrf.mxu0
      %v2397 = vadd.f32 0.0, %v2396
      %2398 = vmatmul.bf16.gmra.mxu0 %v2318
      %v2399 = vpop.f32.mrf.mxu0
      %v2400 = vadd.f32 0.0, %v2399
      %v2401 = vpop.f32.mrf.mxu0
      %v2402 = vadd.f32 0.0, %v2401
      %2403 = vmatmul.bf16.gmra.mxu0 %v2321
      %v2404 = vpop.f32.mrf.mxu0
      %v2405 = vadd.f32 0.0, %v2404
      %v2406 = vpop.f32.mrf.mxu0
      %v2407 = vadd.f32 0.0, %v2406
      %2408 = vmatmul.bf16.gmra.mxu0 %v2324
      %v2409 = vpop.f32.mrf.mxu0
      %v2410 = vadd.f32 0.0, %v2409
      %v2411 = vpop.f32.mrf.mxu0
      %v2412 = vadd.f32 0.0, %v2411
      %2413 = vmatmul.bf16.gmra.mxu0 %v2327
      %v2414 = vpop.f32.mrf.mxu0
      %v2415 = vadd.f32 0.0, %v2414
      %v2416 = vpop.f32.mrf.mxu0
      %v2417 = vadd.f32 0.0, %v2416
      %2418 = vmatmul.bf16.gmra.mxu0 %v2330
      %v2419 = vpop.f32.mrf.mxu0
      %v2420 = vadd.f32 0.0, %v2419
      %v2421 = vpop.f32.mrf.mxu0
      %v2422 = vadd.f32 0.0, %v2421
      %2423 = vmatmul.bf16.gmra.mxu0 %v2333
      %v2424 = vpop.f32.mrf.mxu0
      %v2425 = vadd.f32 0.0, %v2424
      %v2426 = vpop.f32.mrf.mxu0
      %v2427 = vadd.f32 0.0, %v2426
      %2428 = vmatmul.bf16.gmra.mxu0 %v2336
      %v2429 = vpop.f32.mrf.mxu0
      %v2430 = vadd.f32 0.0, %v2429
      %v2431 = vpop.f32.mrf.mxu0
      %v2432 = vadd.f32 0.0, %v2431
      %2433 = vmatmul.bf16.gmra.mxu0 %v2339
      %v2434 = vpop.f32.mrf.mxu0
      %v2435 = vadd.f32 0.0, %v2434
      %v2436 = vpop.f32.mrf.mxu0
      %v2437 = vadd.f32 0.0, %v2436
      %2438 = vmatmul.bf16.gmra.mxu0 %v2342
      %v2439 = vpop.f32.mrf.mxu0
      %v2440 = vadd.f32 0.0, %v2439
      %v2441 = vpop.f32.mrf.mxu0
      %v2442 = vadd.f32 0.0, %v2441
      %2443 = vmatmul.bf16.gmra.mxu0 %v2345
      %v2444 = vpop.f32.mrf.mxu0
      %v2445 = vadd.f32 0.0, %v2444
      %v2446 = vpop.f32.mrf.mxu0
      %v2447 = vadd.f32 0.0, %v2446
      %2448 = vdwg.mxu0
      %v2449 = vadd.f32 %v2217, %v2360
      %v2450 = vadd.f32 %v2218, %v2362
      %v2451 = vadd.f32 %v2219, %v2365
      %v2452 = vadd.f32 %v2220, %v2367
      %v2453 = vadd.f32 %v2221, %v2370
      %v2454 = vadd.f32 %v2222, %v2372
      %v2455 = vadd.f32 %v2223, %v2375
      %v2456 = vadd.f32 %v2224, %v2377
      %v2457 = vadd.f32 %v2225, %v2380
      %v2458 = vadd.f32 %v2226, %v2382
      %v2459 = vadd.f32 %v2227, %v2385
      %v2460 = vadd.f32 %v2228, %v2387
      %v2461 = vadd.f32 %v2229, %v2390
      %v2462 = vadd.f32 %v2230, %v2392
      %v2463 = vadd.f32 %v2231, %v2395
      %v2464 = vadd.f32 %v2232, %v2397
      %v2465 = vadd.f32 %v2233, %v2400
      %v2466 = vadd.f32 %v2234, %v2402
      %v2467 = vadd.f32 %v2235, %v2405
      %v2468 = vadd.f32 %v2236, %v2407
      %v2469 = vadd.f32 %v2237, %v2410
      %v2470 = vadd.f32 %v2238, %v2412
      %v2471 = vadd.f32 %v2239, %v2415
      %v2472 = vadd.f32 %v2240, %v2417
      %v2473 = vadd.f32 %v2241, %v2420
      %v2474 = vadd.f32 %v2242, %v2422
      %v2475 = vadd.f32 %v2243, %v2425
      %v2476 = vadd.f32 %v2244, %v2427
      %v2477 = vadd.f32 %v2245, %v2430
      %v2478 = vadd.f32 %v2246, %v2432
      %v2479 = vadd.f32 %v2247, %v2435
      %v2480 = vadd.f32 %v2248, %v2437
      %v2481 = vadd.f32 %v2249, %v2440
      %v2482 = vadd.f32 %v2250, %v2442
      %v2483 = vadd.f32 %v2251, %v2445
      %v2484 = vadd.f32 %v2252, %v2447
      %2486 = vset.pattern.permute.xlu0 0
      %2487 = vperm.xlu0 %2486, %v354
      %v2488 = vpop.permute.xlu0 %2487
      %2491 = vset.pattern.permute.xlu0 0
      %2492 = vperm.xlu0 %2491, %v355
      %v2493 = vpop.permute.xlu0 %2492
      %2496 = vset.pattern.permute.xlu0 0
      %2497 = vperm.xlu0 %2496, %v356
      %v2498 = vpop.permute.xlu0 %2497
      %2501 = vset.pattern.permute.xlu0 0
      %2502 = vperm.xlu0 %2501, %v357
      %v2503 = vpop.permute.xlu0 %2502
      %2506 = vset.pattern.permute.xlu0 0
      %2507 = vperm.xlu0 %2506, %v358
      %v2508 = vpop.permute.xlu0 %2507
      %2511 = vset.pattern.permute.xlu0 0
      %2512 = vperm.xlu0 %2511, %v359
      %v2513 = vpop.permute.xlu0 %2512
      %2516 = vset.pattern.permute.xlu0 0
      %2517 = vperm.xlu0 %2516, %v360
      %v2518 = vpop.permute.xlu0 %2517
      %2521 = vset.pattern.permute.xlu0 0
      %2522 = vperm.xlu0 %2521, %v361
      %v2523 = vpop.permute.xlu0 %2522
      %2526 = vset.pattern.permute.xlu0 0
      %2527 = vperm.xlu0 %2526, %v362
      %v2528 = vpop.permute.xlu0 %2527
      %2531 = vset.pattern.permute.xlu0 0
      %2532 = vperm.xlu0 %2531, %v363
      %v2533 = vpop.permute.xlu0 %2532
      %2536 = vset.pattern.permute.xlu0 0
      %2537 = vperm.xlu0 %2536, %v364
      %v2538 = vpop.permute.xlu0 %2537
      %2541 = vset.pattern.permute.xlu0 0
      %2542 = vperm.xlu0 %2541, %v365
      %v2543 = vpop.permute.xlu0 %2542
      %2546 = vset.pattern.permute.xlu0 0
      %2547 = vperm.xlu0 %2546, %v366
      %v2548 = vpop.permute.xlu0 %2547
      %2551 = vset.pattern.permute.xlu0 0
      %2552 = vperm.xlu0 %2551, %v367
      %v2553 = vpop.permute.xlu0 %2552
      %2556 = vset.pattern.permute.xlu0 0
      %2557 = vperm.xlu0 %2556, %v368
      %v2558 = vpop.permute.xlu0 %2557
      %2561 = vset.pattern.permute.xlu0 0
      %2562 = vperm.xlu0 %2561, %v369
      %v2563 = vpop.permute.xlu0 %2562
      %2566 = vset.pattern.permute.xlu0 0
      %2567 = vperm.xlu0 %2566, %v370
      %v2568 = vpop.permute.xlu0 %2567
      %2571 = vset.pattern.permute.xlu0 0
      %2572 = vperm.xlu0 %2571, %v371
      %v2573 = vpop.permute.xlu0 %2572
      %2576 = vset.pattern.permute.xlu0 0
      %2577 = vperm.xlu0 %2576, %v372
      %v2578 = vpop.permute.xlu0 %2577
      %2581 = vset.pattern.permute.xlu0 0
      %2582 = vperm.xlu0 %2581, %v373
      %v2583 = vpop.permute.xlu0 %2582
      %2586 = vset.pattern.permute.xlu0 0
      %2587 = vperm.xlu0 %2586, %v374
      %v2588 = vpop.permute.xlu0 %2587
      %2591 = vset.pattern.permute.xlu0 0
      %2592 = vperm.xlu0 %2591, %v375
      %v2593 = vpop.permute.xlu0 %2592
      %2596 = vset.pattern.permute.xlu0 0
      %2597 = vperm.xlu0 %2596, %v376
      %v2598 = vpop.permute.xlu0 %2597
      %2601 = vset.pattern.permute.xlu0 0
      %2602 = vperm.xlu0 %2601, %v377
      %v2603 = vpop.permute.xlu0 %2602
      %2606 = vset.pattern.permute.xlu0 0
      %2607 = vperm.xlu0 %2606, %v378
      %v2608 = vpop.permute.xlu0 %2607
      %2611 = vset.pattern.permute.xlu0 0
      %2612 = vperm.xlu0 %2611, %v379
      %v2613 = vpop.permute.xlu0 %2612
      %2616 = vset.pattern.permute.xlu0 0
      %2617 = vperm.xlu0 %2616, %v380
      %v2618 = vpop.permute.xlu0 %2617
      %2621 = vset.pattern.permute.xlu0 0
      %2622 = vperm.xlu0 %2621, %v381
      %v2623 = vpop.permute.xlu0 %2622
      %2626 = vset.pattern.permute.xlu0 0
      %2627 = vperm.xlu0 %2626, %v382
      %v2628 = vpop.permute.xlu0 %2627
      %2631 = vset.pattern.permute.xlu0 0
      %2632 = vperm.xlu0 %2631, %v383
      %v2633 = vpop.permute.xlu0 %2632
      %2636 = vset.pattern.permute.xlu0 0
      %2637 = vperm.xlu0 %2636, %v384
      %v2638 = vpop.permute.xlu0 %2637
      %2641 = vset.pattern.permute.xlu0 0
      %2642 = vperm.xlu0 %2641, %v385
      %v2643 = vpop.permute.xlu0 %2642
      %2646 = vset.pattern.permute.xlu0 0
      %2647 = vperm.xlu0 %2646, %v386
      %v2648 = vpop.permute.xlu0 %2647
      %2651 = vset.pattern.permute.xlu0 0
      %2652 = vperm.xlu0 %2651, %v387
      %v2653 = vpop.permute.xlu0 %2652
      %2656 = vset.pattern.permute.xlu0 0
      %2657 = vperm.xlu0 %2656, %v388
      %v2658 = vpop.permute.xlu0 %2657
      %2661 = vset.pattern.permute.xlu0 0
      %2662 = vperm.xlu0 %2661, %v389
      %v2663 = vpop.permute.xlu0 %2662
      %v2665 = vmul.f32 %v2449, %v2488
      %v2666 = vmul.f32 %v2450, %v2493
      %v2667 = vmul.f32 %v2451, %v2498
      %v2668 = vmul.f32 %v2452, %v2503
      %v2669 = vmul.f32 %v2453, %v2508
      %v2670 = vmul.f32 %v2454, %v2513
      %v2671 = vmul.f32 %v2455, %v2518
      %v2672 = vmul.f32 %v2456, %v2523
      %v2673 = vmul.f32 %v2457, %v2528
      %v2674 = vmul.f32 %v2458, %v2533
      %v2675 = vmul.f32 %v2459, %v2538
      %v2676 = vmul.f32 %v2460, %v2543
      %v2677 = vmul.f32 %v2461, %v2548
      %v2678 = vmul.f32 %v2462, %v2553
      %v2679 = vmul.f32 %v2463, %v2558
      %v2680 = vmul.f32 %v2464, %v2563
      %v2681 = vmul.f32 %v2465, %v2568
      %v2682 = vmul.f32 %v2466, %v2573
      %v2683 = vmul.f32 %v2467, %v2578
      %v2684 = vmul.f32 %v2468, %v2583
      %v2685 = vmul.f32 %v2469, %v2588
      %v2686 = vmul.f32 %v2470, %v2593
      %v2687 = vmul.f32 %v2471, %v2598
      %v2688 = vmul.f32 %v2472, %v2603
      %v2689 = vmul.f32 %v2473, %v2608
      %v2690 = vmul.f32 %v2474, %v2613
      %v2691 = vmul.f32 %v2475, %v2618
      %v2692 = vmul.f32 %v2476, %v2623
      %v2693 = vmul.f32 %v2477, %v2628
      %v2694 = vmul.f32 %v2478, %v2633
      %v2695 = vmul.f32 %v2479, %v2638
      %v2696 = vmul.f32 %v2480, %v2643
      %v2697 = vmul.f32 %v2481, %v2648
      %v2698 = vmul.f32 %v2482, %v2653
      %v2699 = vmul.f32 %v2483, %v2658
      %v2700 = vmul.f32 %v2484, %v2663
      %vm2701 = vcmask 64512
      %v2702 = vsel %vm2701, %v2665, 0.0
      %v2703 = vsel %vm2701, %v2666, 0.0
      %v2704 = vadd.f32 %v2702, %v2703
      %v2705 = vsel %vm2701, %v2667, 0.0
      %v2706 = vadd.f32 %v2704, %v2705
      %v2707 = vsel %vm2701, %v2668, 0.0
      %v2708 = vadd.f32 %v2706, %v2707
      %v2709 = vsel %vm2701, %v2669, 0.0
      %v2710 = vadd.f32 %v2708, %v2709
      %v2711 = vsel %vm2701, %v2670, 0.0
      %v2712 = vadd.f32 %v2710, %v2711
      %v2713 = vsel %vm2701, %v2671, 0.0
      %v2714 = vadd.f32 %v2712, %v2713
      %v2715 = vsel %vm2701, %v2672, 0.0
      %v2716 = vadd.f32 %v2714, %v2715
      %v2717 = vsel %vm2701, %v2673, 0.0
      %v2718 = vadd.f32 %v2716, %v2717
      %v2719 = vsel %vm2701, %v2674, 0.0
      %v2720 = vadd.f32 %v2718, %v2719
      %v2721 = vsel %vm2701, %v2675, 0.0
      %v2722 = vadd.f32 %v2720, %v2721
      %v2723 = vsel %vm2701, %v2676, 0.0
      %v2724 = vadd.f32 %v2722, %v2723
      %v2725 = vsel %vm2701, %v2677, 0.0
      %v2726 = vadd.f32 %v2724, %v2725
      %v2727 = vsel %vm2701, %v2678, 0.0
      %v2728 = vadd.f32 %v2726, %v2727
      %v2729 = vsel %vm2701, %v2679, 0.0
      %v2730 = vadd.f32 %v2728, %v2729
      %v2731 = vsel %vm2701, %v2680, 0.0
      %v2732 = vadd.f32 %v2730, %v2731
      %v2733 = vsel %vm2701, %v2681, 0.0
      %v2734 = vadd.f32 %v2732, %v2733
      %v2735 = vsel %vm2701, %v2682, 0.0
      %v2736 = vadd.f32 %v2734, %v2735
      %v2737 = vsel %vm2701, %v2683, 0.0
      %v2738 = vadd.f32 %v2736, %v2737
      %v2739 = vsel %vm2701, %v2684, 0.0
      %v2740 = vadd.f32 %v2738, %v2739
      %v2741 = vsel %vm2701, %v2685, 0.0
      %v2742 = vadd.f32 %v2740, %v2741
      %v2743 = vsel %vm2701, %v2686, 0.0
      %v2744 = vadd.f32 %v2742, %v2743
      %v2745 = vsel %vm2701, %v2687, 0.0
      %v2746 = vadd.f32 %v2744, %v2745
      %v2747 = vsel %vm2701, %v2688, 0.0
      %v2748 = vadd.f32 %v2746, %v2747
      %v2749 = vsel %vm2701, %v2689, 0.0
      %v2750 = vadd.f32 %v2748, %v2749
      %v2751 = vsel %vm2701, %v2690, 0.0
      %v2752 = vadd.f32 %v2750, %v2751
      %v2753 = vsel %vm2701, %v2691, 0.0
      %v2754 = vadd.f32 %v2752, %v2753
      %v2755 = vsel %vm2701, %v2692, 0.0
      %v2756 = vadd.f32 %v2754, %v2755
      %v2757 = vsel %vm2701, %v2693, 0.0
      %v2758 = vadd.f32 %v2756, %v2757
      %v2759 = vsel %vm2701, %v2694, 0.0
      %v2760 = vadd.f32 %v2758, %v2759
      %v2761 = vsel %vm2701, %v2695, 0.0
      %v2762 = vadd.f32 %v2760, %v2761
      %v2763 = vsel %vm2701, %v2696, 0.0
      %v2764 = vadd.f32 %v2762, %v2763
      %v2765 = vsel %vm2701, %v2697, 0.0
      %v2766 = vadd.f32 %v2764, %v2765
      %v2767 = vsel %vm2701, %v2698, 0.0
      %v2768 = vadd.f32 %v2766, %v2767
      %v2769 = vsel %vm2701, %v2699, 0.0
      %v2770 = vadd.f32 %v2768, %v2769
      %vm2771 = vcmask 62464
      %v2772 = vsel %vm2771, %v2700, 0.0
      %v2773 = vadd.f32 %v2770, %v2772
      %v2774 = vrot.slane %v2773, 4
      %v2775 = vadd.f32 %v2773, %v2774
      %v2776 = vrot.slane %v2775, 2
      %v2777 = vadd.f32 %v2775, %v2776
      %v2778 = vrot.slane %v2777, 1
      %v2779 = vadd.f32 %v2777, %v2778
      %v2780 = vmul.f32 %v2665, %v2449
      %v2781 = vmul.f32 %v2666, %v2450
      %v2782 = vmul.f32 %v2667, %v2451
      %v2783 = vmul.f32 %v2668, %v2452
      %v2784 = vmul.f32 %v2669, %v2453
      %v2785 = vmul.f32 %v2670, %v2454
      %v2786 = vmul.f32 %v2671, %v2455
      %v2787 = vmul.f32 %v2672, %v2456
      %v2788 = vmul.f32 %v2673, %v2457
      %v2789 = vmul.f32 %v2674, %v2458
      %v2790 = vmul.f32 %v2675, %v2459
      %v2791 = vmul.f32 %v2676, %v2460
      %v2792 = vmul.f32 %v2677, %v2461
      %v2793 = vmul.f32 %v2678, %v2462
      %v2794 = vmul.f32 %v2679, %v2463
      %v2795 = vmul.f32 %v2680, %v2464
      %v2796 = vmul.f32 %v2681, %v2465
      %v2797 = vmul.f32 %v2682, %v2466
      %v2798 = vmul.f32 %v2683, %v2467
      %v2799 = vmul.f32 %v2684, %v2468
      %v2800 = vmul.f32 %v2685, %v2469
      %v2801 = vmul.f32 %v2686, %v2470
      %v2802 = vmul.f32 %v2687, %v2471
      %v2803 = vmul.f32 %v2688, %v2472
      %v2804 = vmul.f32 %v2689, %v2473
      %v2805 = vmul.f32 %v2690, %v2474
      %v2806 = vmul.f32 %v2691, %v2475
      %v2807 = vmul.f32 %v2692, %v2476
      %v2808 = vmul.f32 %v2693, %v2477
      %v2809 = vmul.f32 %v2694, %v2478
      %v2810 = vmul.f32 %v2695, %v2479
      %v2811 = vmul.f32 %v2696, %v2480
      %v2812 = vmul.f32 %v2697, %v2481
      %v2813 = vmul.f32 %v2698, %v2482
      %v2814 = vmul.f32 %v2699, %v2483
      %v2815 = vmul.f32 %v2700, %v2484
      %v2816 = vsel %vm2701, %v2780, 0.0
      %v2817 = vsel %vm2701, %v2781, 0.0
      %v2818 = vadd.f32 %v2816, %v2817
      %v2819 = vsel %vm2701, %v2782, 0.0
      %v2820 = vadd.f32 %v2818, %v2819
      %v2821 = vsel %vm2701, %v2783, 0.0
      %v2822 = vadd.f32 %v2820, %v2821
      %v2823 = vsel %vm2701, %v2784, 0.0
      %v2824 = vadd.f32 %v2822, %v2823
      %v2825 = vsel %vm2701, %v2785, 0.0
      %v2826 = vadd.f32 %v2824, %v2825
      %v2827 = vsel %vm2701, %v2786, 0.0
      %v2828 = vadd.f32 %v2826, %v2827
      %v2829 = vsel %vm2701, %v2787, 0.0
      %v2830 = vadd.f32 %v2828, %v2829
      %v2831 = vsel %vm2701, %v2788, 0.0
      %v2832 = vadd.f32 %v2830, %v2831
      %v2833 = vsel %vm2701, %v2789, 0.0
      %v2834 = vadd.f32 %v2832, %v2833
      %v2835 = vsel %vm2701, %v2790, 0.0
      %v2836 = vadd.f32 %v2834, %v2835
      %v2837 = vsel %vm2701, %v2791, 0.0
      %v2838 = vadd.f32 %v2836, %v2837
      %v2839 = vsel %vm2701, %v2792, 0.0
      %v2840 = vadd.f32 %v2838, %v2839
      %v2841 = vsel %vm2701, %v2793, 0.0
      %v2842 = vadd.f32 %v2840, %v2841
      %v2843 = vsel %vm2701, %v2794, 0.0
      %v2844 = vadd.f32 %v2842, %v2843
      %v2845 = vsel %vm2701, %v2795, 0.0
      %v2846 = vadd.f32 %v2844, %v2845
      %v2847 = vsel %vm2701, %v2796, 0.0
      %v2848 = vadd.f32 %v2846, %v2847
      %v2849 = vsel %vm2701, %v2797, 0.0
      %v2850 = vadd.f32 %v2848, %v2849
      %v2851 = vsel %vm2701, %v2798, 0.0
      %v2852 = vadd.f32 %v2850, %v2851
      %v2853 = vsel %vm2701, %v2799, 0.0
      %v2854 = vadd.f32 %v2852, %v2853
      %v2855 = vsel %vm2701, %v2800, 0.0
      %v2856 = vadd.f32 %v2854, %v2855
      %v2857 = vsel %vm2701, %v2801, 0.0
      %v2858 = vadd.f32 %v2856, %v2857
      %v2859 = vsel %vm2701, %v2802, 0.0
      %v2860 = vadd.f32 %v2858, %v2859
      %v2861 = vsel %vm2701, %v2803, 0.0
      %v2862 = vadd.f32 %v2860, %v2861
      %v2863 = vsel %vm2701, %v2804, 0.0
      %v2864 = vadd.f32 %v2862, %v2863
      %v2865 = vsel %vm2701, %v2805, 0.0
      %v2866 = vadd.f32 %v2864, %v2865
      %v2867 = vsel %vm2701, %v2806, 0.0
      %v2868 = vadd.f32 %v2866, %v2867
      %v2869 = vsel %vm2701, %v2807, 0.0
      %v2870 = vadd.f32 %v2868, %v2869
      %v2871 = vsel %vm2701, %v2808, 0.0
      %v2872 = vadd.f32 %v2870, %v2871
      %v2873 = vsel %vm2701, %v2809, 0.0
      %v2874 = vadd.f32 %v2872, %v2873
      %v2875 = vsel %vm2701, %v2810, 0.0
      %v2876 = vadd.f32 %v2874, %v2875
      %v2877 = vsel %vm2701, %v2811, 0.0
      %v2878 = vadd.f32 %v2876, %v2877
      %v2879 = vsel %vm2701, %v2812, 0.0
      %v2880 = vadd.f32 %v2878, %v2879
      %v2881 = vsel %vm2701, %v2813, 0.0
      %v2882 = vadd.f32 %v2880, %v2881
      %v2883 = vsel %vm2701, %v2814, 0.0
      %v2884 = vadd.f32 %v2882, %v2883
      %v2885 = vsel %vm2771, %v2815, 0.0
      %v2886 = vadd.f32 %v2884, %v2885
      %v2887 = vrot.slane %v2886, 4
      %v2888 = vadd.f32 %v2886, %v2887
      %v2889 = vrot.slane %v2888, 2
      %v2890 = vadd.f32 %v2888, %v2889
      %v2891 = vrot.slane %v2890, 1
      %v2892 = vadd.f32 %v2890, %v2891
      %vm2893 = vcmask 1040384
      %v2894 = vsel %vm2893, %v2779, %v2892
      %vm2895 = vcmask 58368
      %2896 = vst.msk [vmem:[%s302] sm:$0x3] %vm2895, %v2894
      %2897 = vst.msk [vmem:[%s298] sm:$0xff] %vm2701, 0.0
      %2898 = vst.msk [vmem:[%s298 + $0x8] sm:$0xff] %vm2701, 0.0
      %vm2899 = vcmask 59392
      %2900 = vst.msk [vmem:[%s298 + $0x10] sm:$0x7] %vm2899, 0.0
      %2901 = vst.msk [vmem:[%s298 + $0x13] sm:$0xff] %vm2701, %v2449
      %2902 = vst.msk [vmem:[%s298 + $0x1b] sm:$0xff] %vm2701, %v2450
      %2903 = vst.msk [vmem:[%s298 + $0x23] sm:$0xff] %vm2701, %v2451
      %2904 = vst.msk [vmem:[%s298 + $0x2b] sm:$0xff] %vm2701, %v2452
      %2905 = vst.msk [vmem:[%s298 + $0x33] sm:$0xff] %vm2701, %v2453
      %2906 = vst.msk [vmem:[%s298 + $0x3b] sm:$0xff] %vm2701, %v2454
      %2907 = vst.msk [vmem:[%s298 + $0x43] sm:$0xff] %vm2701, %v2455
      %2908 = vst.msk [vmem:[%s298 + $0x4b] sm:$0xff] %vm2701, %v2456
      %2909 = vst.msk [vmem:[%s298 + $0x53] sm:$0xff] %vm2701, %v2457
      %2910 = vst.msk [vmem:[%s298 + $0x5b] sm:$0xff] %vm2701, %v2458
      %2911 = vst.msk [vmem:[%s298 + $0x63] sm:$0xff] %vm2701, %v2459
      %2912 = vst.msk [vmem:[%s298 + $0x6b] sm:$0xff] %vm2701, %v2460
      %2913 = vst.msk [vmem:[%s298 + $0x73] sm:$0xff] %vm2701, %v2461
      %2914 = vst.msk [vmem:[%s298 + $0x7b] sm:$0xff] %vm2701, %v2462
      %2915 = vst.msk [vmem:[%s298 + $0x83] sm:$0xff] %vm2701, %v2463
      %2916 = vst.msk [vmem:[%s298 + $0x8b] sm:$0xff] %vm2701, %v2464
      %2917 = vst.msk [vmem:[%s298 + $0x93] sm:$0xff] %vm2701, %v2465
      %2918 = vst.msk [vmem:[%s298 + $0x9b] sm:$0xff] %vm2701, %v2466
      %2919 = vst.msk [vmem:[%s298 + $0xa3] sm:$0xff] %vm2701, %v2467
      %2920 = vst.msk [vmem:[%s298 + $0xab] sm:$0xff] %vm2701, %v2468
      %2921 = vst.msk [vmem:[%s298 + $0xb3] sm:$0xff] %vm2701, %v2469
      %2922 = vst.msk [vmem:[%s298 + $0xbb] sm:$0xff] %vm2701, %v2470
      %2923 = vst.msk [vmem:[%s298 + $0xc3] sm:$0xff] %vm2701, %v2471
      %2924 = vst.msk [vmem:[%s298 + $0xcb] sm:$0xff] %vm2701, %v2472
      %2925 = vst.msk [vmem:[%s298 + $0xd3] sm:$0xff] %vm2701, %v2473
      %2926 = vst.msk [vmem:[%s298 + $0xdb] sm:$0xff] %vm2701, %v2474
      %2927 = vst.msk [vmem:[%s298 + $0xe3] sm:$0xff] %vm2701, %v2475
      %2928 = vst.msk [vmem:[%s298 + $0xeb] sm:$0xff] %vm2701, %v2476
      %2929 = vst.msk [vmem:[%s298 + $0xf3] sm:$0xff] %vm2701, %v2477
      %2930 = vst.msk [vmem:[%s298 + $0xfb] sm:$0xff] %vm2701, %v2478
      %2931 = vst.msk [vmem:[%s298 + $0x103] sm:$0xff] %vm2701, %v2479
      %2932 = vst.msk [vmem:[%s298 + $0x10b] sm:$0xff] %vm2701, %v2480
      %2933 = vst.msk [vmem:[%s298 + $0x113] sm:$0xff] %vm2701, %v2481
      %2934 = vst.msk [vmem:[%s298 + $0x11b] sm:$0xff] %vm2701, %v2482
      %2935 = vst.msk [vmem:[%s298 + $0x123] sm:$0xff] %vm2701, %v2483
      %2936 = vst.msk [vmem:[%s298 + $0x12b] sm:$0x3f] %vm2771, %v2484
      %2937 = vst.msk [vmem:[%s298 + $0x131] sm:$0xff] %vm2701, 0.0
      %2938 = vst.msk [vmem:[%s298 + $0x139] sm:$0xff] %vm2701, 0.0
      %2939 = vst.msk [vmem:[%s298 + $0x141] sm:$0x7] %vm2899, 0.0
      %v2940 = vld [vmem:[%s3] sm:$0x3]
      %v2942 = vsel %vm682, %v2940, 0
      %2944 = vmatpush.bf16.msra.mxu0 0
      %2945 = vmatpush.bf16.msra.mxu0 0
      %2946 = vmatpush.bf16.msra.mxu0 0
      %2947 = vmatpush.bf16.msra.mxu0 0
      %2948 = vmatpush.bf16.msra.mxu0 0
      %2949 = vmatpush.bf16.msra.mxu0 0
      %2950 = vmatpush.bf16.msra.mxu0 0
      %2951 = vmatpush.bf16.msra.mxu0 %v2942
      %2952 = vmatmul.bf16.gmra.mxu0 %v1394
      %v2953 = vpop.f32.mrf.mxu0
      %v2954 = vadd.f32 0.0, %v2953
      %v2955 = vpop.f32.mrf.mxu0
      %v2956 = vadd.f32 0.0, %v2955
      %2957 = vmatmul.bf16.gmra.mxu0 %v1397
      %v2958 = vpop.f32.mrf.mxu0
      %v2959 = vadd.f32 0.0, %v2958
      %v2960 = vpop.f32.mrf.mxu0
      %v2961 = vadd.f32 0.0, %v2960
      %2962 = vmatmul.bf16.gmra.mxu0 %v1400
      %v2963 = vpop.f32.mrf.mxu0
      %v2964 = vadd.f32 0.0, %v2963
      %v2965 = vpop.f32.mrf.mxu0
      %v2966 = vadd.f32 0.0, %v2965
      %2967 = vmatmul.bf16.gmra.mxu0 %v1403
      %v2968 = vpop.f32.mrf.mxu0
      %v2969 = vadd.f32 0.0, %v2968
      %v2970 = vpop.f32.mrf.mxu0
      %v2971 = vadd.f32 0.0, %v2970
      %2972 = vmatmul.bf16.gmra.mxu0 %v1406
      %v2973 = vpop.f32.mrf.mxu0
      %v2974 = vadd.f32 0.0, %v2973
      %v2975 = vpop.f32.mrf.mxu0
      %v2976 = vadd.f32 0.0, %v2975
      %2977 = vmatmul.bf16.gmra.mxu0 %v1409
      %v2978 = vpop.f32.mrf.mxu0
      %v2979 = vadd.f32 0.0, %v2978
      %v2980 = vpop.f32.mrf.mxu0
      %v2981 = vadd.f32 0.0, %v2980
      %2982 = vmatmul.bf16.gmra.mxu0 %v1412
      %v2983 = vpop.f32.mrf.mxu0
      %v2984 = vadd.f32 0.0, %v2983
      %v2985 = vpop.f32.mrf.mxu0
      %v2986 = vadd.f32 0.0, %v2985
      %2987 = vmatmul.bf16.gmra.mxu0 %v1415
      %v2988 = vpop.f32.mrf.mxu0
      %v2989 = vadd.f32 0.0, %v2988
      %v2990 = vpop.f32.mrf.mxu0
      %v2991 = vadd.f32 0.0, %v2990
      %2992 = vmatmul.bf16.gmra.mxu0 %v1418
      %v2993 = vpop.f32.mrf.mxu0
      %v2994 = vadd.f32 0.0, %v2993
      %v2995 = vpop.f32.mrf.mxu0
      %v2996 = vadd.f32 0.0, %v2995
      %2997 = vmatmul.bf16.gmra.mxu0 %v1421
      %v2998 = vpop.f32.mrf.mxu0
      %v2999 = vadd.f32 0.0, %v2998
      %v3000 = vpop.f32.mrf.mxu0
      %v3001 = vadd.f32 0.0, %v3000
      %3002 = vmatmul.bf16.gmra.mxu0 %v1424
      %v3003 = vpop.f32.mrf.mxu0
      %v3004 = vadd.f32 0.0, %v3003
      %v3005 = vpop.f32.mrf.mxu0
      %v3006 = vadd.f32 0.0, %v3005
      %3007 = vmatmul.bf16.gmra.mxu0 %v1427
      %v3008 = vpop.f32.mrf.mxu0
      %v3009 = vadd.f32 0.0, %v3008
      %v3010 = vpop.f32.mrf.mxu0
      %v3011 = vadd.f32 0.0, %v3010
      %3012 = vmatmul.bf16.gmra.mxu0 %v1430
      %v3013 = vpop.f32.mrf.mxu0
      %v3014 = vadd.f32 0.0, %v3013
      %v3015 = vpop.f32.mrf.mxu0
      %v3016 = vadd.f32 0.0, %v3015
      %3017 = vmatmul.bf16.gmra.mxu0 %v1433
      %v3018 = vpop.f32.mrf.mxu0
      %v3019 = vadd.f32 0.0, %v3018
      %v3020 = vpop.f32.mrf.mxu0
      %v3021 = vadd.f32 0.0, %v3020
      %3022 = vmatmul.bf16.gmra.mxu0 %v1436
      %v3023 = vpop.f32.mrf.mxu0
      %v3024 = vadd.f32 0.0, %v3023
      %v3025 = vpop.f32.mrf.mxu0
      %v3026 = vadd.f32 0.0, %v3025
      %3027 = vmatmul.bf16.gmra.mxu0 %v1439
      %v3028 = vpop.f32.mrf.mxu0
      %v3029 = vadd.f32 0.0, %v3028
      %v3030 = vpop.f32.mrf.mxu0
      %v3031 = vadd.f32 0.0, %v3030
      %3032 = vmatmul.bf16.gmra.mxu0 %v1442
      %v3033 = vpop.f32.mrf.mxu0
      %v3034 = vadd.f32 0.0, %v3033
      %v3035 = vpop.f32.mrf.mxu0
      %v3036 = vadd.f32 0.0, %v3035
      %3037 = vmatmul.bf16.gmra.mxu0 %v1445
      %v3038 = vpop.f32.mrf.mxu0
      %v3039 = vadd.f32 0.0, %v3038
      %v3040 = vpop.f32.mrf.mxu0
      %v3041 = vadd.f32 0.0, %v3040
      %3042 = vdwg.mxu0
      %v3043 = vmul.f32 %v2954, %v2488
      %v3044 = vmul.f32 %v2956, %v2493
      %v3045 = vmul.f32 %v2959, %v2498
      %v3046 = vmul.f32 %v2961, %v2503
      %v3047 = vmul.f32 %v2964, %v2508
      %v3048 = vmul.f32 %v2966, %v2513
      %v3049 = vmul.f32 %v2969, %v2518
      %v3050 = vmul.f32 %v2971, %v2523
      %v3051 = vmul.f32 %v2974, %v2528
      %v3052 = vmul.f32 %v2976, %v2533
      %v3053 = vmul.f32 %v2979, %v2538
      %v3054 = vmul.f32 %v2981, %v2543
      %v3055 = vmul.f32 %v2984, %v2548
      %v3056 = vmul.f32 %v2986, %v2553
      %v3057 = vmul.f32 %v2989, %v2558
      %v3058 = vmul.f32 %v2991, %v2563
      %v3059 = vmul.f32 %v2994, %v2568
      %v3060 = vmul.f32 %v2996, %v2573
      %v3061 = vmul.f32 %v2999, %v2578
      %v3062 = vmul.f32 %v3001, %v2583
      %v3063 = vmul.f32 %v3004, %v2588
      %v3064 = vmul.f32 %v3006, %v2593
      %v3065 = vmul.f32 %v3009, %v2598
      %v3066 = vmul.f32 %v3011, %v2603
      %v3067 = vmul.f32 %v3014, %v2608
      %v3068 = vmul.f32 %v3016, %v2613
      %v3069 = vmul.f32 %v3019, %v2618
      %v3070 = vmul.f32 %v3021, %v2623
      %v3071 = vmul.f32 %v3024, %v2628
      %v3072 = vmul.f32 %v3026, %v2633
      %v3073 = vmul.f32 %v3029, %v2638
      %v3074 = vmul.f32 %v3031, %v2643
      %v3075 = vmul.f32 %v3034, %v2648
      %v3076 = vmul.f32 %v3036, %v2653
      %v3077 = vmul.f32 %v3039, %v2658
      %v3078 = vmul.f32 %v3041, %v2663
      %v3079 = vsel %vm2701, %v3043, 0.0
      %v3080 = vsel %vm2701, %v3044, 0.0
      %v3081 = vadd.f32 %v3079, %v3080
      %v3082 = vsel %vm2701, %v3045, 0.0
      %v3083 = vadd.f32 %v3081, %v3082
      %v3084 = vsel %vm2701, %v3046, 0.0
      %v3085 = vadd.f32 %v3083, %v3084
      %v3086 = vsel %vm2701, %v3047, 0.0
      %v3087 = vadd.f32 %v3085, %v3086
      %v3088 = vsel %vm2701, %v3048, 0.0
      %v3089 = vadd.f32 %v3087, %v3088
      %v3090 = vsel %vm2701, %v3049, 0.0
      %v3091 = vadd.f32 %v3089, %v3090
      %v3092 = vsel %vm2701, %v3050, 0.0
      %v3093 = vadd.f32 %v3091, %v3092
      %v3094 = vsel %vm2701, %v3051, 0.0
      %v3095 = vadd.f32 %v3093, %v3094
      %v3096 = vsel %vm2701, %v3052, 0.0
      %v3097 = vadd.f32 %v3095, %v3096
      %v3098 = vsel %vm2701, %v3053, 0.0
      %v3099 = vadd.f32 %v3097, %v3098
      %v3100 = vsel %vm2701, %v3054, 0.0
      %v3101 = vadd.f32 %v3099, %v3100
      %v3102 = vsel %vm2701, %v3055, 0.0
      %v3103 = vadd.f32 %v3101, %v3102
      %v3104 = vsel %vm2701, %v3056, 0.0
      %v3105 = vadd.f32 %v3103, %v3104
      %v3106 = vsel %vm2701, %v3057, 0.0
      %v3107 = vadd.f32 %v3105, %v3106
      %v3108 = vsel %vm2701, %v3058, 0.0
      %v3109 = vadd.f32 %v3107, %v3108
      %v3110 = vsel %vm2701, %v3059, 0.0
      %v3111 = vadd.f32 %v3109, %v3110
      %v3112 = vsel %vm2701, %v3060, 0.0
      %v3113 = vadd.f32 %v3111, %v3112
      %v3114 = vsel %vm2701, %v3061, 0.0
      %v3115 = vadd.f32 %v3113, %v3114
      %v3116 = vsel %vm2701, %v3062, 0.0
      %v3117 = vadd.f32 %v3115, %v3116
      %v3118 = vsel %vm2701, %v3063, 0.0
      %v3119 = vadd.f32 %v3117, %v3118
      %v3120 = vsel %vm2701, %v3064, 0.0
      %v3121 = vadd.f32 %v3119, %v3120
      %v3122 = vsel %vm2701, %v3065, 0.0
      %v3123 = vadd.f32 %v3121, %v3122
      %v3124 = vsel %vm2701, %v3066, 0.0
      %v3125 = vadd.f32 %v3123, %v3124
      %v3126 = vsel %vm2701, %v3067, 0.0
      %v3127 = vadd.f32 %v3125, %v3126
      %v3128 = vsel %vm2701, %v3068, 0.0
      %v3129 = vadd.f32 %v3127, %v3128
      %v3130 = vsel %vm2701, %v3069, 0.0
      %v3131 = vadd.f32 %v3129, %v3130
      %v3132 = vsel %vm2701, %v3070, 0.0
      %v3133 = vadd.f32 %v3131, %v3132
      %v3134 = vsel %vm2701, %v3071, 0.0
      %v3135 = vadd.f32 %v3133, %v3134
      %v3136 = vsel %vm2701, %v3072, 0.0
      %v3137 = vadd.f32 %v3135, %v3136
      %v3138 = vsel %vm2701, %v3073, 0.0
      %v3139 = vadd.f32 %v3137, %v3138
      %v3140 = vsel %vm2701, %v3074, 0.0
      %v3141 = vadd.f32 %v3139, %v3140
      %v3142 = vsel %vm2701, %v3075, 0.0
      %v3143 = vadd.f32 %v3141, %v3142
      %v3144 = vsel %vm2701, %v3076, 0.0
      %v3145 = vadd.f32 %v3143, %v3144
      %v3146 = vsel %vm2701, %v3077, 0.0
      %v3147 = vadd.f32 %v3145, %v3146
      %v3148 = vsel %vm2771, %v3078, 0.0
      %v3149 = vadd.f32 %v3147, %v3148
      %v3150 = vrot.slane %v3149, 4
      %v3151 = vadd.f32 %v3149, %v3150
      %v3152 = vrot.slane %v3151, 2
      %v3153 = vadd.f32 %v3151, %v3152
      %v3154 = vrot.slane %v3153, 1
      %v3155 = vadd.f32 %v3153, %v3154
      %v3156 = vmul.f32 %v3043, %v2954
      %v3157 = vmul.f32 %v3044, %v2956
      %v3158 = vmul.f32 %v3045, %v2959
      %v3159 = vmul.f32 %v3046, %v2961
      %v3160 = vmul.f32 %v3047, %v2964
      %v3161 = vmul.f32 %v3048, %v2966
      %v3162 = vmul.f32 %v3049, %v2969
      %v3163 = vmul.f32 %v3050, %v2971
      %v3164 = vmul.f32 %v3051, %v2974
      %v3165 = vmul.f32 %v3052, %v2976
      %v3166 = vmul.f32 %v3053, %v2979
      %v3167 = vmul.f32 %v3054, %v2981
      %v3168 = vmul.f32 %v3055, %v2984
      %v3169 = vmul.f32 %v3056, %v2986
      %v3170 = vmul.f32 %v3057, %v2989
      %v3171 = vmul.f32 %v3058, %v2991
      %v3172 = vmul.f32 %v3059, %v2994
      %v3173 = vmul.f32 %v3060, %v2996
      %v3174 = vmul.f32 %v3061, %v2999
      %v3175 = vmul.f32 %v3062, %v3001
      %v3176 = vmul.f32 %v3063, %v3004
      %v3177 = vmul.f32 %v3064, %v3006
      %v3178 = vmul.f32 %v3065, %v3009
      %v3179 = vmul.f32 %v3066, %v3011
      %v3180 = vmul.f32 %v3067, %v3014
      %v3181 = vmul.f32 %v3068, %v3016
      %v3182 = vmul.f32 %v3069, %v3019
      %v3183 = vmul.f32 %v3070, %v3021
      %v3184 = vmul.f32 %v3071, %v3024
      %v3185 = vmul.f32 %v3072, %v3026
      %v3186 = vmul.f32 %v3073, %v3029
      %v3187 = vmul.f32 %v3074, %v3031
      %v3188 = vmul.f32 %v3075, %v3034
      %v3189 = vmul.f32 %v3076, %v3036
      %v3190 = vmul.f32 %v3077, %v3039
      %v3191 = vmul.f32 %v3078, %v3041
      %v3192 = vsel %vm2701, %v3156, 0.0
      %v3193 = vsel %vm2701, %v3157, 0.0
      %v3194 = vadd.f32 %v3192, %v3193
      %v3195 = vsel %vm2701, %v3158, 0.0
      %v3196 = vadd.f32 %v3194, %v3195
      %v3197 = vsel %vm2701, %v3159, 0.0
      %v3198 = vadd.f32 %v3196, %v3197
      %v3199 = vsel %vm2701, %v3160, 0.0
      %v3200 = vadd.f32 %v3198, %v3199
      %v3201 = vsel %vm2701, %v3161, 0.0
      %v3202 = vadd.f32 %v3200, %v3201
      %v3203 = vsel %vm2701, %v3162, 0.0
      %v3204 = vadd.f32 %v3202, %v3203
      %v3205 = vsel %vm2701, %v3163, 0.0
      %v3206 = vadd.f32 %v3204, %v3205
      %v3207 = vsel %vm2701, %v3164, 0.0
      %v3208 = vadd.f32 %v3206, %v3207
      %v3209 = vsel %vm2701, %v3165, 0.0
      %v3210 = vadd.f32 %v3208, %v3209
      %v3211 = vsel %vm2701, %v3166, 0.0
      %v3212 = vadd.f32 %v3210, %v3211
      %v3213 = vsel %vm2701, %v3167, 0.0
      %v3214 = vadd.f32 %v3212, %v3213
      %v3215 = vsel %vm2701, %v3168, 0.0
      %v3216 = vadd.f32 %v3214, %v3215
      %v3217 = vsel %vm2701, %v3169, 0.0
      %v3218 = vadd.f32 %v3216, %v3217
      %v3219 = vsel %vm2701, %v3170, 0.0
      %v3220 = vadd.f32 %v3218, %v3219
      %v3221 = vsel %vm2701, %v3171, 0.0
      %v3222 = vadd.f32 %v3220, %v3221
      %v3223 = vsel %vm2701, %v3172, 0.0
      %v3224 = vadd.f32 %v3222, %v3223
      %v3225 = vsel %vm2701, %v3173, 0.0
      %v3226 = vadd.f32 %v3224, %v3225
      %v3227 = vsel %vm2701, %v3174, 0.0
      %v3228 = vadd.f32 %v3226, %v3227
      %v3229 = vsel %vm2701, %v3175, 0.0
      %v3230 = vadd.f32 %v3228, %v3229
      %v3231 = vsel %vm2701, %v3176, 0.0
      %v3232 = vadd.f32 %v3230, %v3231
      %v3233 = vsel %vm2701, %v3177, 0.0
      %v3234 = vadd.f32 %v3232, %v3233
      %v3235 = vsel %vm2701, %v3178, 0.0
      %v3236 = vadd.f32 %v3234, %v3235
      %v3237 = vsel %vm2701, %v3179, 0.0
      %v3238 = vadd.f32 %v3236, %v3237
      %v3239 = vsel %vm2701, %v3180, 0.0
      %v3240 = vadd.f32 %v3238, %v3239
      %v3241 = vsel %vm2701, %v3181, 0.0
      %v3242 = vadd.f32 %v3240, %v3241
      %v3243 = vsel %vm2701, %v3182, 0.0
      %v3244 = vadd.f32 %v3242, %v3243
      %v3245 = vsel %vm2701, %v3183, 0.0
      %v3246 = vadd.f32 %v3244, %v3245
      %v3247 = vsel %vm2701, %v3184, 0.0
      %v3248 = vadd.f32 %v3246, %v3247
      %v3249 = vsel %vm2701, %v3185, 0.0
      %v3250 = vadd.f32 %v3248, %v3249
      %v3251 = vsel %vm2701, %v3186, 0.0
      %v3252 = vadd.f32 %v3250, %v3251
      %v3253 = vsel %vm2701, %v3187, 0.0
      %v3254 = vadd.f32 %v3252, %v3253
      %v3255 = vsel %vm2701, %v3188, 0.0
      %v3256 = vadd.f32 %v3254, %v3255
      %v3257 = vsel %vm2701, %v3189, 0.0
      %v3258 = vadd.f32 %v3256, %v3257
      %v3259 = vsel %vm2701, %v3190, 0.0
      %v3260 = vadd.f32 %v3258, %v3259
      %v3261 = vsel %vm2771, %v3191, 0.0
      %v3262 = vadd.f32 %v3260, %v3261
      %v3263 = vrot.slane %v3262, 4
      %v3264 = vadd.f32 %v3262, %v3263
      %v3265 = vrot.slane %v3264, 2
      %v3266 = vadd.f32 %v3264, %v3265
      %v3267 = vrot.slane %v3266, 1
      %v3268 = vadd.f32 %v3266, %v3267
      %v3269 = vsel %vm2893, %v3155, %v3268
      %3270 = vst.msk [vmem:[%s311] sm:$0x3] %vm2895, %v3269
      %3271 = vst.msk [vmem:[%s307] sm:$0xff] %vm2701, %v2954
      %3272 = vst.msk [vmem:[%s307 + $0x8] sm:$0xff] %vm2701, %v2956
      %3273 = vst.msk [vmem:[%s307 + $0x10] sm:$0xff] %vm2701, %v2959
      %3274 = vst.msk [vmem:[%s307 + $0x18] sm:$0xff] %vm2701, %v2961
      %3275 = vst.msk [vmem:[%s307 + $0x20] sm:$0xff] %vm2701, %v2964
      %3276 = vst.msk [vmem:[%s307 + $0x28] sm:$0xff] %vm2701, %v2966
      %3277 = vst.msk [vmem:[%s307 + $0x30] sm:$0xff] %vm2701, %v2969
      %3278 = vst.msk [vmem:[%s307 + $0x38] sm:$0xff] %vm2701, %v2971
      %3279 = vst.msk [vmem:[%s307 + $0x40] sm:$0xff] %vm2701, %v2974
      %3280 = vst.msk [vmem:[%s307 + $0x48] sm:$0xff] %vm2701, %v2976
      %3281 = vst.msk [vmem:[%s307 + $0x50] sm:$0xff] %vm2701, %v2979
      %3282 = vst.msk [vmem:[%s307 + $0x58] sm:$0xff] %vm2701, %v2981
      %3283 = vst.msk [vmem:[%s307 + $0x60] sm:$0xff] %vm2701, %v2984
      %3284 = vst.msk [vmem:[%s307 + $0x68] sm:$0xff] %vm2701, %v2986
      %3285 = vst.msk [vmem:[%s307 + $0x70] sm:$0xff] %vm2701, %v2989
      %3286 = vst.msk [vmem:[%s307 + $0x78] sm:$0xff] %vm2701, %v2991
      %3287 = vst.msk [vmem:[%s307 + $0x80] sm:$0xff] %vm2701, %v2994
      %3288 = vst.msk [vmem:[%s307 + $0x88] sm:$0xff] %vm2701, %v2996
      %3289 = vst.msk [vmem:[%s307 + $0x90] sm:$0xff] %vm2701, %v2999
      %3290 = vst.msk [vmem:[%s307 + $0x98] sm:$0xff] %vm2701, %v3001
      %3291 = vst.msk [vmem:[%s307 + $0xa0] sm:$0xff] %vm2701, %v3004
      %3292 = vst.msk [vmem:[%s307 + $0xa8] sm:$0xff] %vm2701, %v3006
      %3293 = vst.msk [vmem:[%s307 + $0xb0] sm:$0xff] %vm2701, %v3009
      %3294 = vst.msk [vmem:[%s307 + $0xb8] sm:$0xff] %vm2701, %v3011
      %3295 = vst.msk [vmem:[%s307 + $0xc0] sm:$0xff] %vm2701, %v3014
      %3296 = vst.msk [vmem:[%s307 + $0xc8] sm:$0xff] %vm2701, %v3016
      %3297 = vst.msk [vmem:[%s307 + $0xd0] sm:$0xff] %vm2701, %v3019
      %3298 = vst.msk [vmem:[%s307 + $0xd8] sm:$0xff] %vm2701, %v3021
      %3299 = vst.msk [vmem:[%s307 + $0xe0] sm:$0xff] %vm2701, %v3024
      %3300 = vst.msk [vmem:[%s307 + $0xe8] sm:$0xff] %vm2701, %v3026
      %3301 = vst.msk [vmem:[%s307 + $0xf0] sm:$0xff] %vm2701, %v3029
      %3302 = vst.msk [vmem:[%s307 + $0xf8] sm:$0xff] %vm2701, %v3031
      %3303 = vst.msk [vmem:[%s307 + $0x100] sm:$0xff] %vm2701, %v3034
      %3304 = vst.msk [vmem:[%s307 + $0x108] sm:$0xff] %vm2701, %v3036
      %3305 = vst.msk [vmem:[%s307 + $0x110] sm:$0xff] %vm2701, %v3039
      %3306 = vst.msk [vmem:[%s307 + $0x118] sm:$0x3f] %vm2771, %v3041
      %p3307 = scmp.lt.s32.totalorder %s19, 1
      %s3308 = scalar_select %p3307, %s19, 1
      %s3309 = smul.addr %s3308, 41
      %s3310 = smul.addr %s3309, 8
      %s3311 = scalar_lea.vmem %s4, %s3310
      %p3312 = scmp.lt.s32.totalorder %s19, 1
      %s3313 = scalar_select %p3312, %s19, 1
      %s3314 = smul.addr %s3313, 2
      %s3315 = scalar_lea.vmem %s5, %s3314
      %p3316 = scmp.lt.s32.totalorder %s19, 1
      %s3317 = scalar_select %p3316, %s19, 1
      %s3318 = smul.addr %s3317, 36
      %s3319 = smul.addr %s3318, 8
      %s3320 = scalar_lea.vmem %s6, %s3319
      %p3321 = scmp.lt.s32.totalorder %s19, 1
      %s3322 = scalar_select %p3321, %s19, 1
      %s3323 = smul.addr %s3322, 2
      %s3324 = scalar_lea.vmem %s7, %s3323
      // Predicated region
      $region37: #{resblk_forward.3} parent=35 // pred_check
        %p3325 = pneg %p126
      $region38: #{resblk_forward.3} parent=35 // pred_check_branch
        %3327 = sbr.rel (%p3325) target = $region40
      $region39: #{resblk_forward.3} parent=35 // pred_region
        _
      $region40: #{resblk_forward.3} parent=35 // pred_fallthru
        _
      // Predicated region
      $region41: #{resblk_forward.3} parent=35 // pred_check
        %p3328 = pneg %p152
      $region42: #{resblk_forward.3} parent=35 // pred_check_branch
        %3330 = sbr.rel (%p3328) target = $region44
      $region43: #{resblk_forward.3} parent=35 // pred_region
        _
      $region44: #{resblk_forward.3} parent=35 // pred_fallthru
        _
      // Predicated region
      $region45: #{resblk_forward.3} parent=35 // pred_check
        %p3331 = pneg %p178
      $region46: #{resblk_forward.3} parent=35 // pred_check_branch
        %3333 = sbr.rel (%p3331) target = $region48
      $region47: #{resblk_forward.3} parent=35 // pred_region
        _
      $region48: #{resblk_forward.3} parent=35 // pred_fallthru
        _
      // Predicated region
      $region49: #{resblk_forward.3} parent=35 // pred_check
        %p3334 = pneg %p204
      $region50: #{resblk_forward.3} parent=35 // pred_check_branch
        %3336 = sbr.rel (%p3334) target = $region52
      $region51: #{resblk_forward.3} parent=35 // pred_region
        _
      $region52: #{resblk_forward.3} parent=35 // pred_fallthru
        _
    $region36: #{resblk_forward.3} parent=5 // pred_fallthru
      _
    %p3337 = scmp.le.s32.totalorder 2, %s14
    // Predicated region
    $region53: #{resblk_forward.3} parent=5 // pred_check
      %p3338 = pneg %p3337
    $region54: #{resblk_forward.3} parent=5 // pred_check_branch
      %3340 = sbr.rel (%p3338) target = $region56
    $region55: #{resblk_forward.3} parent=5 // pred_region
      %s3341 = ssub.s32 %s14, 2
      // Predicated region
      $region57: #{resblk_forward.3} parent=55 // pred_check
        %p3342 = pneg %p132
      $region58: #{resblk_forward.3} parent=55 // pred_check_branch
        %3344 = sbr.rel (%p3342) target = $region60
      $region59: #{resblk_forward.3} parent=55 // pred_region
        %p3345 = scmp.lt.s32.totalorder %s20, 1
        %s3346 = scalar_select %p3345, %s20, 1
        %s3347 = smul.addr %s3346, 41
        %s3348 = smul.addr %s3347, 8
        %s3349 = scalar_lea.vmem %s4, %s3348
      $region60: #{resblk_forward.3} parent=55 // pred_fallthru
        _
      // Predicated region
      $region61: #{resblk_forward.3} parent=55 // pred_check
        %p3350 = pneg %p158
      $region62: #{resblk_forward.3} parent=55 // pred_check_branch
        %3352 = sbr.rel (%p3350) target = $region64
      $region63: #{resblk_forward.3} parent=55 // pred_region
        %p3353 = scmp.lt.s32.totalorder %s20, 1
        %s3354 = scalar_select %p3353, %s20, 1
        %s3355 = smul.addr %s3354, 2
        %s3356 = scalar_lea.vmem %s5, %s3355
      $region64: #{resblk_forward.3} parent=55 // pred_fallthru
        _
      // Predicated region
      $region65: #{resblk_forward.3} parent=55 // pred_check
        %p3357 = pneg %p184
      $region66: #{resblk_forward.3} parent=55 // pred_check_branch
        %3359 = sbr.rel (%p3357) target = $region68
      $region67: #{resblk_forward.3} parent=55 // pred_region
        %p3360 = scmp.lt.s32.totalorder %s20, 1
        %s3361 = scalar_select %p3360, %s20, 1
        %s3362 = smul.addr %s3361, 36
        %s3363 = smul.addr %s3362, 8
        %s3364 = scalar_lea.vmem %s6, %s3363
      $region68: #{resblk_forward.3} parent=55 // pred_fallthru
        _
      // Predicated region
      $region69: #{resblk_forward.3} parent=55 // pred_check
        %p3365 = pneg %p210
      $region70: #{resblk_forward.3} parent=55 // pred_check_branch
        %3367 = sbr.rel (%p3365) target = $region72
      $region71: #{resblk_forward.3} parent=55 // pred_region
        %p3368 = scmp.lt.s32.totalorder %s20, 1
        %s3369 = scalar_select %p3368, %s20, 1
        %s3370 = smul.addr %s3369, 2
        %s3371 = scalar_lea.vmem %s7, %s3370
      $region72: #{resblk_forward.3} parent=55 // pred_fallthru
        _
    $region56: #{resblk_forward.3} parent=5 // pred_fallthru
      _
  $region6: #{resblk_forward.3} parent=0 // loop_footer
    %s18 = sadd.s32 1, %s14
  $region7: #{resblk_forward.3} parent=0 // loop_footer_branch
    %13 = sbr.rel target = $region3
  $region8: #{resblk_forward.3} parent=0 // loop_exit
    _

// kernel: resblk_forward.4
$region0: #{resblk_forward.4}
  #allocation0 [shape = 'u32[]', space=smem, size = 0x4, offset = 0x4, fixed_abs, tag = 'smem constant byte address 0x4 - core index']
  #allocation1 [shape = 'u32[72,128]{1,0:T(1,128)}', space=vmem, size = 0x9000, scoped, tag = 'internal scratch']
  %s0 = inlined_call_operand.vmem [shape: f32[2,324,8], index: 0, kind: input, shape index: {}]
  %s1 = inlined_call_operand.vmem [shape: f32[324,1], index: 1, kind: input, shape index: {}]
  %s2 = inlined_call_operand.vmem [shape: f32[286,1], index: 2, kind: input, shape index: {}]
  %s3 = inlined_call_operand.vmem [shape: f32[1,8], index: 3, kind: input, shape index: {}]
  %s4 = inlined_call_operand.vmem [shape: f32[1,8], index: 4, kind: input, shape index: {}]
  %s5 = inlined_call_operand.vmem [shape: bf16[3,3,8,8], index: 5, kind: input, shape index: {}]
  %s6 = inlined_call_operand.vmem [shape: f32[2,286,8], index: 6, kind: output, shape index: {0}]
  %s7 = inlined_call_operand.vmem [shape: f32[2,2,8], index: 7, kind: output, shape index: {1}]
  %8 = xla_tuple %s6, %s7
  %s9 = sld [smem:[#allocation0]]
  $region65: #{resblk_forward.4} parent=0
    _
  %s11 = ssub.s32 1, %s9
  %s12 = scalar_select 0, %s11, %s9
  loop: start=0, step=1, limit=4
  $region2: #{resblk_forward.4} parent=0 // loop_pre_header
    _
  $region3: #{resblk_forward.4} parent=0 // loop_header
    %s14 = sphi 0, %s18
    %p15 = scmp.ge.s32.totalorder %s14, 4
    %s24 = sphi 0, %s26
    %s27 = sphi 0, %s24
    %s28 = sphi 0, %s27
    %s44 = sphi 0, %s28
    %s48 = sphi 0, %s48
    %s50 = sphi 0, %s48
    %s51 = sphi 0, %s50
    %s65 = sphi 0, %s51
    %s69 = sphi 0, %s69
    %s71 = sphi 0, %s69
    %s72 = sphi 0, %s71
    %s86 = sphi 0, %s72
    %s90 = sphi 0, %s90
    %s92 = sphi 0, %s90
    %s93 = sphi 0, %s92
    %s107 = sphi 0, %s93
    %s111 = sphi 0, %s111
    %s113 = sphi 0, %s111
    %s114 = sphi 0, %s113
    %s128 = sphi 0, %s114
    %s132 = sphi 0, %s132
    %s134 = sphi 0, %s132
    %s135 = sphi 0, %s134
    %s149 = sphi 0, %s135
    %s155 = sphi 0, %s157
    %s158 = sphi 0, %s155
    %s159 = sphi 0, %s158
    %s175 = sphi 0, %s159
    %s181 = sphi 0, %s183
    %s184 = sphi 0, %s181
    %s185 = sphi 0, %s184
    %s201 = sphi 0, %s185
  $region4: #{resblk_forward.4} parent=0 // loop_header_branch
    %17 = sbr.rel (%p15) target = $region8
  $region5: #{resblk_forward.4} parent=0 // loop_body
    %s19 = ssub.s32 %s14, 1
    %s20 = ssub.s32 %s14, 2
    %s21 = sadd.s32 %s14, 1
    %s22 = ssub.s32 %s14, %s21
    %p23 = scmp.eq.s32.totalorder %s22, 0
    %s25 = sadd.s32 %s24, 1
    %s26 = scalar_select %p23, %s24, %s25
    %p29 = pneg %p23
    %p30 = scmp.eq.s32.totalorder %s14, 1
    %p31 = por %p29, %p30
    %p32 = scmp.ne.s32.totalorder %s24, %s27
    %p33 = scmp.eq.s32.totalorder %s14, 0
    %p34 = por %p32, %p33
    %p35 = scmp.ne.s32.totalorder %s24, %s27
    %p36 = scmp.eq.s32.totalorder %s19, 1
    %p37 = por %p35, %p36
    %p38 = scmp.ne.s32.totalorder %s27, %s28
    %p39 = scmp.eq.s32.totalorder %s19, 0
    %p40 = por %p38, %p39
    %p41 = scmp.ne.s32.totalorder %s27, %s28
    %p42 = scmp.eq.s32.totalorder %s20, 1
    %p43 = por %p41, %p42
    %p45 = scmp.ne.s32.totalorder %s28, %s44
    %p46 = scmp.eq.s32.totalorder %s20, 0
    %p47 = por %p45, %p46
    %s49 = sadd.s32 %s48, 1
    %p52 = scmp.eq.s32.totalorder %s14, 1
    %p53 = scmp.ne.s32.totalorder %s48, %s50
    %p54 = scmp.eq.s32.totalorder %s14, 0
    %p55 = por %p53, %p54
    %p56 = scmp.ne.s32.totalorder %s48, %s50
    %p57 = scmp.eq.s32.totalorder %s19, 1
    %p58 = por %p56, %p57
    %p59 = scmp.ne.s32.totalorder %s50, %s51
    %p60 = scmp.eq.s32.totalorder %s19, 0
    %p61 = por %p59, %p60
    %p62 = scmp.ne.s32.totalorder %s50, %s51
    %p63 = scmp.eq.s32.totalorder %s20, 1
    %p64 = por %p62, %p63
    %p66 = scmp.ne.s32.totalorder %s51, %s65
    %p67 = scmp.eq.s32.totalorder %s20, 0
    %p68 = por %p66, %p67
    %s70 = sadd.s32 %s69, 1
    %p73 = scmp.eq.s32.totalorder %s14, 1
    %p74 = scmp.ne.s32.totalorder %s69, %s71
    %p75 = scmp.eq.s32.totalorder %s14, 0
    %p76 = por %p74, %p75
    %p77 = scmp.ne.s32.totalorder %s69, %s71
    %p78 = scmp.eq.s32.totalorder %s19, 1
    %p79 = por %p77, %p78
    %p80 = scmp.ne.s32.totalorder %s71, %s72
    %p81 = scmp.eq.s32.totalorder %s19, 0
    %p82 = por %p80, %p81
    %p83 = scmp.ne.s32.totalorder %s71, %s72
    %p84 = scmp.eq.s32.totalorder %s20, 1
    %p85 = por %p83, %p84
    %p87 = scmp.ne.s32.totalorder %s72, %s86
    %p88 = scmp.eq.s32.totalorder %s20, 0
    %p89 = por %p87, %p88
    %s91 = sadd.s32 %s90, 1
    %p94 = scmp.eq.s32.totalorder %s14, 1
    %p95 = scmp.ne.s32.totalorder %s90, %s92
    %p96 = scmp.eq.s32.totalorder %s14, 0
    %p97 = por %p95, %p96
    %p98 = scmp.ne.s32.totalorder %s90, %s92
    %p99 = scmp.eq.s32.totalorder %s19, 1
    %p100 = por %p98, %p99
    %p101 = scmp.ne.s32.totalorder %s92, %s93
    %p102 = scmp.eq.s32.totalorder %s19, 0
    %p103 = por %p101, %p102
    %p104 = scmp.ne.s32.totalorder %s92, %s93
    %p105 = scmp.eq.s32.totalorder %s20, 1
    %p106 = por %p104, %p105
    %p108 = scmp.ne.s32.totalorder %s93, %s107
    %p109 = scmp.eq.s32.totalorder %s20, 0
    %p110 = por %p108, %p109
    %s112 = sadd.s32 %s111, 1
    %p115 = scmp.eq.s32.totalorder %s14, 1
    %p116 = scmp.ne.s32.totalorder %s111, %s113
    %p117 = scmp.eq.s32.totalorder %s14, 0
    %p118 = por %p116, %p117
    %p119 = scmp.ne.s32.totalorder %s111, %s113
    %p120 = scmp.eq.s32.totalorder %s19, 1
    %p121 = por %p119, %p120
    %p122 = scmp.ne.s32.totalorder %s113, %s114
    %p123 = scmp.eq.s32.totalorder %s19, 0
    %p124 = por %p122, %p123
    %p125 = scmp.ne.s32.totalorder %s113, %s114
    %p126 = scmp.eq.s32.totalorder %s20, 1
    %p127 = por %p125, %p126
    %p129 = scmp.ne.s32.totalorder %s114, %s128
    %p130 = scmp.eq.s32.totalorder %s20, 0
    %p131 = por %p129, %p130
    %s133 = sadd.s32 %s132, 1
    %p136 = scmp.eq.s32.totalorder %s14, 1
    %p137 = scmp.ne.s32.totalorder %s132, %s134
    %p138 = scmp.eq.s32.totalorder %s14, 0
    %p139 = por %p137, %p138
    %p140 = scmp.ne.s32.totalorder %s132, %s134
    %p141 = scmp.eq.s32.totalorder %s19, 1
    %p142 = por %p140, %p141
    %p143 = scmp.ne.s32.totalorder %s134, %s135
    %p144 = scmp.eq.s32.totalorder %s19, 0
    %p145 = por %p143, %p144
    %p146 = scmp.ne.s32.totalorder %s134, %s135
    %p147 = scmp.eq.s32.totalorder %s20, 1
    %p148 = por %p146, %p147
    %p150 = scmp.ne.s32.totalorder %s135, %s149
    %p151 = scmp.eq.s32.totalorder %s20, 0
    %p152 = por %p150, %p151
    %s153 = ssub.s32 %s14, %s21
    %p154 = scmp.eq.s32.totalorder %s153, 0
    %s156 = sadd.s32 %s155, 1
    %s157 = scalar_select %p154, %s155, %s156
    %p160 = pneg %p154
    %p161 = scmp.eq.s32.totalorder %s14, 1
    %p162 = por %p160, %p161
    %p163 = scmp.ne.s32.totalorder %s155, %s158
    %p164 = scmp.eq.s32.totalorder %s14, 0
    %p165 = por %p163, %p164
    %p166 = scmp.ne.s32.totalorder %s155, %s158
    %p167 = scmp.eq.s32.totalorder %s19, 1
    %p168 = por %p166, %p167
    %p169 = scmp.ne.s32.totalorder %s158, %s159
    %p170 = scmp.eq.s32.totalorder %s19, 0
    %p171 = por %p169, %p170
    %p172 = scmp.ne.s32.totalorder %s158, %s159
    %p173 = scmp.eq.s32.totalorder %s20, 1
    %p174 = por %p172, %p173
    %p176 = scmp.ne.s32.totalorder %s159, %s175
    %p177 = scmp.eq.s32.totalorder %s20, 0
    %p178 = por %p176, %p177
    %s179 = ssub.s32 %s14, %s21
    %p180 = scmp.eq.s32.totalorder %s179, 0
    %s182 = sadd.s32 %s181, 1
    %s183 = scalar_select %p180, %s181, %s182
    %p186 = pneg %p180
    %p187 = scmp.eq.s32.totalorder %s14, 1
    %p188 = por %p186, %p187
    %p189 = scmp.ne.s32.totalorder %s181, %s184
    %p190 = scmp.eq.s32.totalorder %s14, 0
    %p191 = por %p189, %p190
    %p192 = scmp.ne.s32.totalorder %s181, %s184
    %p193 = scmp.eq.s32.totalorder %s19, 1
    %p194 = por %p192, %p193
    %p195 = scmp.ne.s32.totalorder %s184, %s185
    %p196 = scmp.eq.s32.totalorder %s19, 0
    %p197 = por %p195, %p196
    %p198 = scmp.ne.s32.totalorder %s184, %s185
    %p199 = scmp.eq.s32.totalorder %s20, 1
    %p200 = por %p198, %p199
    %p202 = scmp.ne.s32.totalorder %s185, %s201
    %p203 = scmp.eq.s32.totalorder %s20, 0
    %p204 = por %p202, %p203
    %p205 = scmp.le.s32.totalorder 1, %s14
    %p206 = scmp.lt.s32.totalorder %s14, 3
    %p207 = pnand %p205, %p206
    %p208 = pneg %p207
    // Predicated region
    $region9: #{resblk_forward.4} parent=5 // pred_check
      _
    $region10: #{resblk_forward.4} parent=5 // pred_check_branch
      %210 = sbr.rel (%p207) target = $region12
    $region11: #{resblk_forward.4} parent=5 // pred_region
      %s211 = ssub.s32 %s14, 1
      // Predicated region
      $region13: #{resblk_forward.4} parent=11 // pred_check
        %p212 = pneg %p61
      $region14: #{resblk_forward.4} parent=11 // pred_check_branch
        %214 = sbr.rel (%p212) target = $region16
      $region15: #{resblk_forward.4} parent=11 // pred_region
        _
      $region16: #{resblk_forward.4} parent=11 // pred_fallthru
        _
      // Predicated region
      $region17: #{resblk_forward.4} parent=11 // pred_check
        %p215 = pneg %p82
      $region18: #{resblk_forward.4} parent=11 // pred_check_branch
        %217 = sbr.rel (%p215) target = $region20
      $region19: #{resblk_forward.4} parent=11 // pred_region
        _
      $region20: #{resblk_forward.4} parent=11 // pred_fallthru
        _
      // Predicated region
      $region21: #{resblk_forward.4} parent=11 // pred_check
        %p218 = pneg %p103
      $region22: #{resblk_forward.4} parent=11 // pred_check_branch
        %220 = sbr.rel (%p218) target = $region24
      $region23: #{resblk_forward.4} parent=11 // pred_region
        _
      $region24: #{resblk_forward.4} parent=11 // pred_fallthru
        _
      // Predicated region
      $region25: #{resblk_forward.4} parent=11 // pred_check
        %p221 = pneg %p124
      $region26: #{resblk_forward.4} parent=11 // pred_check_branch
        %223 = sbr.rel (%p221) target = $region28
      $region27: #{resblk_forward.4} parent=11 // pred_region
        _
      $region28: #{resblk_forward.4} parent=11 // pred_fallthru
        _
      // Predicated region
      $region29: #{resblk_forward.4} parent=11 // pred_check
        %p224 = pneg %p145
      $region30: #{resblk_forward.4} parent=11 // pred_check_branch
        %226 = sbr.rel (%p224) target = $region32
      $region31: #{resblk_forward.4} parent=11 // pred_region
        _
      $region32: #{resblk_forward.4} parent=11 // pred_fallthru
        _
    $region12: #{resblk_forward.4} parent=5 // pred_fallthru
      _
    %p227 = scmp.lt.s32.totalorder %s14, 2
    // Predicated region
    $region33: #{resblk_forward.4} parent=5 // pred_check
      %p228 = pneg %p227
    $region34: #{resblk_forward.4} parent=5 // pred_check_branch
      %230 = sbr.rel (%p228) target = $region36
    $region35: #{resblk_forward.4} parent=5 // pred_region
      // Predicated region
      $region37: #{resblk_forward.4} parent=35 // pred_check
        %p231 = pneg %p34
      $region38: #{resblk_forward.4} parent=35 // pred_check_branch
        %233 = sbr.rel (%p231) target = $region40
      $region39: #{resblk_forward.4} parent=35 // pred_region
        %p234 = scmp.lt.s32.totalorder %s14, 1
        %s235 = scalar_select %p234, %s14, 1
        %s236 = smul.addr %s235, 41
        %s237 = smul.addr %s236, 8
        %s238 = scalar_lea.vmem %s0, %s237
      $region40: #{resblk_forward.4} parent=35 // pred_fallthru
        _
    $region36: #{resblk_forward.4} parent=5 // pred_fallthru
      _
    %p239 = scmp.le.s32.totalorder 1, %s14
    %p240 = scmp.lt.s32.totalorder %s14, 3
    %p241 = pnand %p239, %p240
    %p242 = pneg %p241
    // Predicated region
    $region41: #{resblk_forward.4} parent=5 // pred_check
      _
    $region42: #{resblk_forward.4} parent=5 // pred_check_branch
      %244 = sbr.rel (%p241) target = $region44
    $region43: #{resblk_forward.4} parent=5 // pred_region
      %s245 = ssub.s32 %s14, 1
      %p246 = scmp.lt.s32.totalorder %s19, 1
      %s247 = scalar_select %p246, %s19, 1
      %s248 = smul.addr %s247, 41
      %s249 = smul.addr %s248, 8
      %s250 = scalar_lea.vmem %s0, %s249
      %p251 = pneg %p40
      %p252 = pneg %p37
      %p253 = pneg %p61
      %p254 = pneg %p58
      %p255 = pneg %p82
      %p256 = pneg %p79
      %p257 = pneg %p103
      %p258 = pneg %p100
      %p259 = pneg %p124
      %p260 = pneg %p121
      %p261 = pneg %p145
      %p262 = pneg %p142
      %p263 = pneg %p171
      %p264 = pneg %p168
      %p265 = scmp.lt.s32.totalorder %s19, 1
      %s266 = scalar_select %p265, %s19, 1
      %s267 = smul.addr %s266, 36
      %s268 = smul.addr %s267, 8
      %s269 = scalar_lea.vmem %s6, %s268
      %p270 = pneg %p197
      %p271 = pneg %p194
      %p272 = scmp.lt.s32.totalorder %s19, 1
      %s273 = scalar_select %p272, %s19, 1
      %s274 = smul.addr %s273, 2
      %s275 = scalar_lea.vmem %s7, %s274
      %p276 = scmp.lt.s32.totalorder %s19, 1
      %s277 = scalar_select %p276, %s19, 1
      %s278 = smul.addr %s277, 41
      %s279 = smul.addr %s278, 8
      %s280 = scalar_lea.vmem %s0, %s279
      %p281 = scmp.lt.s32.totalorder %s19, 1
      %s282 = scalar_select %p281, %s19, 1
      %s283 = smul.addr %s282, 36
      %s284 = smul.addr %s283, 8
      %s285 = scalar_lea.vmem %s6, %s284
      %p286 = scmp.lt.s32.totalorder %s19, 1
      %s287 = scalar_select %p286, %s19, 1
      %s288 = smul.addr %s287, 2
      %s289 = scalar_lea.vmem %s7, %s288
      %v291 = vld [vmem:[%s280] sm:$0xff]
      %v292 = vld [vmem:[%s280 + $0x8] sm:$0xff]
      %v293 = vld [vmem:[%s280 + $0x10] sm:$0xff]
      %v294 = vld [vmem:[%s280 + $0x18] sm:$0xff]
      %v295 = vld [vmem:[%s280 + $0x20] sm:$0xff]
      %v296 = vld [vmem:[%s280 + $0x28] sm:$0xff]
      %v297 = vld [vmem:[%s280 + $0x30] sm:$0xff]
      %v298 = vld [vmem:[%s280 + $0x38] sm:$0xff]
      %v299 = vld [vmem:[%s280 + $0x40] sm:$0xff]
      %v300 = vld [vmem:[%s280 + $0x48] sm:$0xff]
      %v301 = vld [vmem:[%s280 + $0x50] sm:$0xff]
      %v302 = vld [vmem:[%s280 + $0x58] sm:$0xff]
      %v303 = vld [vmem:[%s280 + $0x60] sm:$0xff]
      %v304 = vld [vmem:[%s280 + $0x68] sm:$0xff]
      %v305 = vld [vmem:[%s280 + $0x70] sm:$0xff]
      %v306 = vld [vmem:[%s280 + $0x78] sm:$0xff]
      %v307 = vld [vmem:[%s280 + $0x80] sm:$0xff]
      %v308 = vld [vmem:[%s280 + $0x88] sm:$0xff]
      %v309 = vld [vmem:[%s280 + $0x90] sm:$0xff]
      %v310 = vld [vmem:[%s280 + $0x98] sm:$0xff]
      %v311 = vld [vmem:[%s280 + $0xa0] sm:$0xff]
      %v312 = vld [vmem:[%s280 + $0xa8] sm:$0xff]
      %v313 = vld [vmem:[%s280 + $0xb0] sm:$0xff]
      %v314 = vld [vmem:[%s280 + $0xb8] sm:$0xff]
      %v315 = vld [vmem:[%s280 + $0xc0] sm:$0xff]
      %v316 = vld [vmem:[%s280 + $0xc8] sm:$0xff]
      %v317 = vld [vmem:[%s280 + $0xd0] sm:$0xff]
      %v318 = vld [vmem:[%s280 + $0xd8] sm:$0xff]
      %v319 = vld [vmem:[%s280 + $0xe0] sm:$0xff]
      %v320 = vld [vmem:[%s280 + $0xe8] sm:$0xff]
      %v321 = vld [vmem:[%s280 + $0xf0] sm:$0xff]
      %v322 = vld [vmem:[%s280 + $0xf8] sm:$0xff]
      %v323 = vld [vmem:[%s280 + $0x100] sm:$0xff]
      %v324 = vld [vmem:[%s280 + $0x108] sm:$0xff]
      %v325 = vld [vmem:[%s280 + $0x110] sm:$0xff]
      %v326 = vld [vmem:[%s280 + $0x118] sm:$0xff]
      %v327 = vld [vmem:[%s280 + $0x120] sm:$0xff]
      %v328 = vld [vmem:[%s280 + $0x128] sm:$0xff]
      %v329 = vld [vmem:[%s280 + $0x130] sm:$0xff]
      %v330 = vld [vmem:[%s280 + $0x138] sm:$0xff]
      %v331 = vld [vmem:[%s280 + $0x140] sm:$0xf]
      %v332 = vld [vmem:[%s3] sm:$0x1]
      %v334 = vperm.slane %v332, 0
      %v336 = vmul.f32 %v291, %v334
      %v337 = vmul.f32 %v292, %v334
      %v338 = vmul.f32 %v293, %v334
      %v339 = vmul.f32 %v294, %v334
      %v340 = vmul.f32 %v295, %v334
      %v341 = vmul.f32 %v296, %v334
      %v342 = vmul.f32 %v297, %v334
      %v343 = vmul.f32 %v298, %v334
      %v344 = vmul.f32 %v299, %v334
      %v345 = vmul.f32 %v300, %v334
      %v346 = vmul.f32 %v301, %v334
      %v347 = vmul.f32 %v302, %v334
      %v348 = vmul.f32 %v303, %v334
      %v349 = vmul.f32 %v304, %v334
      %v350 = vmul.f32 %v305, %v334
      %v351 = vmul.f32 %v306, %v334
      %v352 = vmul.f32 %v307, %v334
      %v353 = vmul.f32 %v308, %v334
      %v354 = vmul.f32 %v309, %v334
      %v355 = vmul.f32 %v310, %v334
      %v356 = vmul.f32 %v311, %v334
      %v357 = vmul.f32 %v312, %v334
      %v358 = vmul.f32 %v313, %v334
      %v359 = vmul.f32 %v314, %v334
      %v360 = vmul.f32 %v315, %v334
      %v361 = vmul.f32 %v316, %v334
      %v362 = vmul.f32 %v317, %v334
      %v363 = vmul.f32 %v318, %v334
      %v364 = vmul.f32 %v319, %v334
      %v365 = vmul.f32 %v320, %v334
      %v366 = vmul.f32 %v321, %v334
      %v367 = vmul.f32 %v322, %v334
      %v368 = vmul.f32 %v323, %v334
      %v369 = vmul.f32 %v324, %v334
      %v370 = vmul.f32 %v325, %v334
      %v371 = vmul.f32 %v326, %v334
      %v372 = vmul.f32 %v327, %v334
      %v373 = vmul.f32 %v328, %v334
      %v374 = vmul.f32 %v329, %v334
      %v375 = vmul.f32 %v330, %v334
      %v376 = vmul.f32 %v331, %v334
      %v377 = vld [vmem:[%s4] sm:$0x1]
      %v379 = vperm.slane %v377, 0
      %v381 = vadd.f32 %v336, %v379
      %v382 = vadd.f32 %v337, %v379
      %v383 = vadd.f32 %v338, %v379
      %v384 = vadd.f32 %v339, %v379
      %v385 = vadd.f32 %v340, %v379
      %v386 = vadd.f32 %v341, %v379
      %v387 = vadd.f32 %v342, %v379
      %v388 = vadd.f32 %v343, %v379
      %v389 = vadd.f32 %v344, %v379
      %v390 = vadd.f32 %v345, %v379
      %v391 = vadd.f32 %v346, %v379
      %v392 = vadd.f32 %v347, %v379
      %v393 = vadd.f32 %v348, %v379
      %v394 = vadd.f32 %v349, %v379
      %v395 = vadd.f32 %v350, %v379
      %v396 = vadd.f32 %v351, %v379
      %v397 = vadd.f32 %v352, %v379
      %v398 = vadd.f32 %v353, %v379
      %v399 = vadd.f32 %v354, %v379
      %v400 = vadd.f32 %v355, %v379
      %v401 = vadd.f32 %v356, %v379
      %v402 = vadd.f32 %v357, %v379
      %v403 = vadd.f32 %v358, %v379
      %v404 = vadd.f32 %v359, %v379
      %v405 = vadd.f32 %v360, %v379
      %v406 = vadd.f32 %v361, %v379
      %v407 = vadd.f32 %v362, %v379
      %v408 = vadd.f32 %v363, %v379
      %v409 = vadd.f32 %v364, %v379
      %v410 = vadd.f32 %v365, %v379
      %v411 = vadd.f32 %v366, %v379
      %v412 = vadd.f32 %v367, %v379
      %v413 = vadd.f32 %v368, %v379
      %v414 = vadd.f32 %v369, %v379
      %v415 = vadd.f32 %v370, %v379
      %v416 = vadd.f32 %v371, %v379
      %v417 = vadd.f32 %v372, %v379
      %v418 = vadd.f32 %v373, %v379
      %v419 = vadd.f32 %v374, %v379
      %v420 = vadd.f32 %v375, %v379
      %v421 = vadd.f32 %v376, %v379
      %v422 = vmax.f32 %v381, 0.0
      %v423 = vmax.f32 %v382, 0.0
      %v424 = vmax.f32 %v383, 0.0
      %v425 = vmax.f32 %v384, 0.0
      %v426 = vmax.f32 %v385, 0.0
      %v427 = vmax.f32 %v386, 0.0
      %v428 = vmax.f32 %v387, 0.0
      %v429 = vmax.f32 %v388, 0.0
      %v430 = vmax.f32 %v389, 0.0
      %v431 = vmax.f32 %v390, 0.0
      %v432 = vmax.f32 %v391, 0.0
      %v433 = vmax.f32 %v392, 0.0
      %v434 = vmax.f32 %v393, 0.0
      %v435 = vmax.f32 %v394, 0.0
      %v436 = vmax.f32 %v395, 0.0
      %v437 = vmax.f32 %v396, 0.0
      %v438 = vmax.f32 %v397, 0.0
      %v439 = vmax.f32 %v398, 0.0
      %v440 = vmax.f32 %v399, 0.0
      %v441 = vmax.f32 %v400, 0.0
      %v442 = vmax.f32 %v401, 0.0
      %v443 = vmax.f32 %v402, 0.0
      %v444 = vmax.f32 %v403, 0.0
      %v445 = vmax.f32 %v404, 0.0
      %v446 = vmax.f32 %v405, 0.0
      %v447 = vmax.f32 %v406, 0.0
      %v448 = vmax.f32 %v407, 0.0
      %v449 = vmax.f32 %v408, 0.0
      %v450 = vmax.f32 %v409, 0.0
      %v451 = vmax.f32 %v410, 0.0
      %v452 = vmax.f32 %v411, 0.0
      %v453 = vmax.f32 %v412, 0.0
      %v454 = vmax.f32 %v413, 0.0
      %v455 = vmax.f32 %v414, 0.0
      %v456 = vmax.f32 %v415, 0.0
      %v457 = vmax.f32 %v416, 0.0
      %v458 = vmax.f32 %v417, 0.0
      %v459 = vmax.f32 %v418, 0.0
      %v460 = vmax.f32 %v419, 0.0
      %v461 = vmax.f32 %v420, 0.0
      %v462 = vmax.f32 %v421, 0.0
      %v463 = vld [vmem:[%s1] sm:$0xff]
      %v464 = vld [vmem:[%s1 + $0x8] sm:$0xff]
      %v465 = vld [vmem:[%s1 + $0x10] sm:$0xff]
      %v466 = vld [vmem:[%s1 + $0x18] sm:$0xff]
      %v467 = vld [vmem:[%s1 + $0x20] sm:$0xff]
      %v468 = vld [vmem:[%s1 + $0x28] sm:$0xff]
      %v469 = vld [vmem:[%s1 + $0x30] sm:$0xff]
      %v470 = vld [vmem:[%s1 + $0x38] sm:$0xff]
      %v471 = vld [vmem:[%s1 + $0x40] sm:$0xff]
      %v472 = vld [vmem:[%s1 + $0x48] sm:$0xff]
      %v473 = vld [vmem:[%s1 + $0x50] sm:$0xff]
      %v474 = vld [vmem:[%s1 + $0x58] sm:$0xff]
      %v475 = vld [vmem:[%s1 + $0x60] sm:$0xff]
      %v476 = vld [vmem:[%s1 + $0x68] sm:$0xff]
      %v477 = vld [vmem:[%s1 + $0x70] sm:$0xff]
      %v478 = vld [vmem:[%s1 + $0x78] sm:$0xff]
      %v479 = vld [vmem:[%s1 + $0x80] sm:$0xff]
      %v480 = vld [vmem:[%s1 + $0x88] sm:$0xff]
      %v481 = vld [vmem:[%s1 + $0x90] sm:$0xff]
      %v482 = vld [vmem:[%s1 + $0x98] sm:$0xff]
      %v483 = vld [vmem:[%s1 + $0xa0] sm:$0xff]
      %v484 = vld [vmem:[%s1 + $0xa8] sm:$0xff]
      %v485 = vld [vmem:[%s1 + $0xb0] sm:$0xff]
      %v486 = vld [vmem:[%s1 + $0xb8] sm:$0xff]
      %v487 = vld [vmem:[%s1 + $0xc0] sm:$0xff]
      %v488 = vld [vmem:[%s1 + $0xc8] sm:$0xff]
      %v489 = vld [vmem:[%s1 + $0xd0] sm:$0xff]
      %v490 = vld [vmem:[%s1 + $0xd8] sm:$0xff]
      %v491 = vld [vmem:[%s1 + $0xe0] sm:$0xff]
      %v492 = vld [vmem:[%s1 + $0xe8] sm:$0xff]
      %v493 = vld [vmem:[%s1 + $0xf0] sm:$0xff]
      %v494 = vld [vmem:[%s1 + $0xf8] sm:$0xff]
      %v495 = vld [vmem:[%s1 + $0x100] sm:$0xff]
      %v496 = vld [vmem:[%s1 + $0x108] sm:$0xff]
      %v497 = vld [vmem:[%s1 + $0x110] sm:$0xff]
      %v498 = vld [vmem:[%s1 + $0x118] sm:$0xff]
      %v499 = vld [vmem:[%s1 + $0x120] sm:$0xff]
      %v500 = vld [vmem:[%s1 + $0x128] sm:$0xff]
      %v501 = vld [vmem:[%s1 + $0x130] sm:$0xff]
      %v502 = vld [vmem:[%s1 + $0x138] sm:$0xff]
      %v503 = vld [vmem:[%s1 + $0x140] sm:$0xf]
      %505 = vset.pattern.permute.xlu0 0
      %506 = vperm.xlu0 %505, %v463
      %v507 = vpop.permute.xlu0 %506
      %510 = vset.pattern.permute.xlu0 0
      %511 = vperm.xlu0 %510, %v464
      %v512 = vpop.permute.xlu0 %511
      %515 = vset.pattern.permute.xlu0 0
      %516 = vperm.xlu0 %515, %v465
      %v517 = vpop.permute.xlu0 %516
      %520 = vset.pattern.permute.xlu0 0
      %521 = vperm.xlu0 %520, %v466
      %v522 = vpop.permute.xlu0 %521
      %525 = vset.pattern.permute.xlu0 0
      %526 = vperm.xlu0 %525, %v467
      %v527 = vpop.permute.xlu0 %526
      %530 = vset.pattern.permute.xlu0 0
      %531 = vperm.xlu0 %530, %v468
      %v532 = vpop.permute.xlu0 %531
      %535 = vset.pattern.permute.xlu0 0
      %536 = vperm.xlu0 %535, %v469
      %v537 = vpop.permute.xlu0 %536
      %540 = vset.pattern.permute.xlu0 0
      %541 = vperm.xlu0 %540, %v470
      %v542 = vpop.permute.xlu0 %541
      %545 = vset.pattern.permute.xlu0 0
      %546 = vperm.xlu0 %545, %v471
      %v547 = vpop.permute.xlu0 %546
      %550 = vset.pattern.permute.xlu0 0
      %551 = vperm.xlu0 %550, %v472
      %v552 = vpop.permute.xlu0 %551
      %555 = vset.pattern.permute.xlu0 0
      %556 = vperm.xlu0 %555, %v473
      %v557 = vpop.permute.xlu0 %556
      %560 = vset.pattern.permute.xlu0 0
      %561 = vperm.xlu0 %560, %v474
      %v562 = vpop.permute.xlu0 %561
      %565 = vset.pattern.permute.xlu0 0
      %566 = vperm.xlu0 %565, %v475
      %v567 = vpop.permute.xlu0 %566
      %570 = vset.pattern.permute.xlu0 0
      %571 = vperm.xlu0 %570, %v476
      %v572 = vpop.permute.xlu0 %571
      %575 = vset.pattern.permute.xlu0 0
      %576 = vperm.xlu0 %575, %v477
      %v577 = vpop.permute.xlu0 %576
      %580 = vset.pattern.permute.xlu0 0
      %581 = vperm.xlu0 %580, %v478
      %v582 = vpop.permute.xlu0 %581
      %585 = vset.pattern.permute.xlu0 0
      %586 = vperm.xlu0 %585, %v479
      %v587 = vpop.permute.xlu0 %586
      %590 = vset.pattern.permute.xlu0 0
      %591 = vperm.xlu0 %590, %v480
      %v592 = vpop.permute.xlu0 %591
      %595 = vset.pattern.permute.xlu0 0
      %596 = vperm.xlu0 %595, %v481
      %v597 = vpop.permute.xlu0 %596
      %600 = vset.pattern.permute.xlu0 0
      %601 = vperm.xlu0 %600, %v482
      %v602 = vpop.permute.xlu0 %601
      %605 = vset.pattern.permute.xlu0 0
      %606 = vperm.xlu0 %605, %v483
      %v607 = vpop.permute.xlu0 %606
      %610 = vset.pattern.permute.xlu0 0
      %611 = vperm.xlu0 %610, %v484
      %v612 = vpop.permute.xlu0 %611
      %615 = vset.pattern.permute.xlu0 0
      %616 = vperm.xlu0 %615, %v485
      %v617 = vpop.permute.xlu0 %616
      %620 = vset.pattern.permute.xlu0 0
      %621 = vperm.xlu0 %620, %v486
      %v622 = vpop.permute.xlu0 %621
      %625 = vset.pattern.permute.xlu0 0
      %626 = vperm.xlu0 %625, %v487
      %v627 = vpop.permute.xlu0 %626
      %630 = vset.pattern.permute.xlu0 0
      %631 = vperm.xlu0 %630, %v488
      %v632 = vpop.permute.xlu0 %631
      %635 = vset.pattern.permute.xlu0 0
      %636 = vperm.xlu0 %635, %v489
      %v637 = vpop.permute.xlu0 %636
      %640 = vset.pattern.permute.xlu0 0
      %641 = vperm.xlu0 %640, %v490
      %v642 = vpop.permute.xlu0 %641
      %645 = vset.pattern.permute.xlu0 0
      %646 = vperm.xlu0 %645, %v491
      %v647 = vpop.permute.xlu0 %646
      %650 = vset.pattern.permute.xlu0 0
      %651 = vperm.xlu0 %650, %v492
      %v652 = vpop.permute.xlu0 %651
      %655 = vset.pattern.permute.xlu0 0
      %656 = vperm.xlu0 %655, %v493
      %v657 = vpop.permute.xlu0 %656
      %660 = vset.pattern.permute.xlu0 0
      %661 = vperm.xlu0 %660, %v494
      %v662 = vpop.permute.xlu0 %661
      %665 = vset.pattern.permute.xlu0 0
      %666 = vperm.xlu0 %665, %v495
      %v667 = vpop.permute.xlu0 %666
      %670 = vset.pattern.permute.xlu0 0
      %671 = vperm.xlu0 %670, %v496
      %v672 = vpop.permute.xlu0 %671
      %675 = vset.pattern.permute.xlu0 0
      %676 = vperm.xlu0 %675, %v497
      %v677 = vpop.permute.xlu0 %676
      %680 = vset.pattern.permute.xlu0 0
      %681 = vperm.xlu0 %680, %v498
      %v682 = vpop.permute.xlu0 %681
      %685 = vset.pattern.permute.xlu0 0
      %686 = vperm.xlu0 %685, %v499
      %v687 = vpop.permute.xlu0 %686
      %690 = vset.pattern.permute.xlu0 0
      %691 = vperm.xlu0 %690, %v500
      %v692 = vpop.permute.xlu0 %691
      %695 = vset.pattern.permute.xlu0 0
      %696 = vperm.xlu0 %695, %v501
      %v697 = vpop.permute.xlu0 %696
      %700 = vset.pattern.permute.xlu0 0
      %701 = vperm.xlu0 %700, %v502
      %v702 = vpop.permute.xlu0 %701
      %705 = vset.pattern.permute.xlu0 0
      %706 = vperm.xlu0 %705, %v503
      %v707 = vpop.permute.xlu0 %706
      %v709 = vmul.f32 %v422, %v507
      %v710 = vmul.f32 %v423, %v512
      %v711 = vmul.f32 %v424, %v517
      %v712 = vmul.f32 %v425, %v522
      %v713 = vmul.f32 %v426, %v527
      %v714 = vmul.f32 %v427, %v532
      %v715 = vmul.f32 %v428, %v537
      %v716 = vmul.f32 %v429, %v542
      %v717 = vmul.f32 %v430, %v547
      %v718 = vmul.f32 %v431, %v552
      %v719 = vmul.f32 %v432, %v557
      %v720 = vmul.f32 %v433, %v562
      %v721 = vmul.f32 %v434, %v567
      %v722 = vmul.f32 %v435, %v572
      %v723 = vmul.f32 %v436, %v577
      %v724 = vmul.f32 %v437, %v582
      %v725 = vmul.f32 %v438, %v587
      %v726 = vmul.f32 %v439, %v592
      %v727 = vmul.f32 %v440, %v597
      %v728 = vmul.f32 %v441, %v602
      %v729 = vmul.f32 %v442, %v607
      %v730 = vmul.f32 %v443, %v612
      %v731 = vmul.f32 %v444, %v617
      %v732 = vmul.f32 %v445, %v622
      %v733 = vmul.f32 %v446, %v627
      %v734 = vmul.f32 %v447, %v632
      %v735 = vmul.f32 %v448, %v637
      %v736 = vmul.f32 %v449, %v642
      %v737 = vmul.f32 %v450, %v647
      %v738 = vmul.f32 %v451, %v652
      %v739 = vmul.f32 %v452, %v657
      %v740 = vmul.f32 %v453, %v662
      %v741 = vmul.f32 %v454, %v667
      %v742 = vmul.f32 %v455, %v672
      %v743 = vmul.f32 %v456, %v677
      %v744 = vmul.f32 %v457, %v682
      %v745 = vmul.f32 %v458, %v687
      %v746 = vmul.f32 %v459, %v692
      %v747 = vmul.f32 %v460, %v697
      %v748 = vmul.f32 %v461, %v702
      %v749 = vmul.f32 %v462, %v707
      %v750 = vpack.c.bf16 %v709, %v709
      %v751 = vpack.c.bf16 %v710, %v710
      %v752 = vpack.c.bf16 %v711, %v711
      %v753 = vpack.c.bf16 %v712, %v712
      %v754 = vpack.c.bf16 %v713, %v713
      %v755 = vpack.c.bf16 %v714, %v714
      %v756 = vpack.c.bf16 %v715, %v715
      %v757 = vpack.c.bf16 %v716, %v716
      %v758 = vpack.c.bf16 %v717, %v717
      %v759 = vpack.c.bf16 %v718, %v718
      %v760 = vpack.c.bf16 %v719, %v719
      %v761 = vpack.c.bf16 %v720, %v720
      %v762 = vpack.c.bf16 %v721, %v721
      %v763 = vpack.c.bf16 %v722, %v722
      %v764 = vpack.c.bf16 %v723, %v723
      %v765 = vpack.c.bf16 %v724, %v724
      %v766 = vpack.c.bf16 %v725, %v725
      %v767 = vpack.c.bf16 %v726, %v726
      %v768 = vpack.c.bf16 %v727, %v727
      %v769 = vpack.c.bf16 %v728, %v728
      %v770 = vpack.c.bf16 %v729, %v729
      %v771 = vpack.c.bf16 %v730, %v730
      %v772 = vpack.c.bf16 %v731, %v731
      %v773 = vpack.c.bf16 %v732, %v732
      %v774 = vpack.c.bf16 %v733, %v733
      %v775 = vpack.c.bf16 %v734, %v734
      %v776 = vpack.c.bf16 %v735, %v735
      %v777 = vpack.c.bf16 %v736, %v736
      %v778 = vpack.c.bf16 %v737, %v737
      %v779 = vpack.c.bf16 %v738, %v738
      %v780 = vpack.c.bf16 %v739, %v739
      %v781 = vpack.c.bf16 %v740, %v740
      %v782 = vpack.c.bf16 %v741, %v741
      %v783 = vpack.c.bf16 %v742, %v742
      %v784 = vpack.c.bf16 %v743, %v743
      %v785 = vpack.c.bf16 %v744, %v744
      %v786 = vpack.c.bf16 %v745, %v745
      %v787 = vpack.c.bf16 %v746, %v746
      %v788 = vpack.c.bf16 %v747, %v747
      %v789 = vpack.c.bf16 %v748, %v748
      %v790 = vpack.c.bf16 %v749, %v749
      %v791 = vld [vmem:[%s5] sm:$0xf]
      %s792 = scalar_lea.vmem %s5, 4
      %v793 = vld [vmem:[%s792] sm:$0xf]
      %v830 = vunpack.c.l.b16 %v750
      %v831 = vunpack.c.l.b16 %v751
      %v832 = vunpack.c.l.b16 %v752
      %v833 = vunpack.c.l.b16 %v753
      %v834 = vunpack.c.l.b16 %v754
      %v835 = vunpack.c.l.b16 %v755
      %v836 = vunpack.c.l.b16 %v756
      %v837 = vunpack.c.l.b16 %v757
      %v838 = vunpack.c.l.b16 %v758
      %v839 = vunpack.c.l.b16 %v759
      %v840 = vunpack.c.l.b16 %v760
      %v841 = vunpack.c.l.b16 %v761
      %v842 = vunpack.c.l.b16 %v762
      %v843 = vunpack.c.l.b16 %v763
      %v844 = vunpack.c.l.b16 %v764
      %v845 = vunpack.c.l.b16 %v765
      %v846 = vunpack.c.l.b16 %v766
      %v847 = vunpack.c.l.b16 %v767
      %v848 = vunpack.c.l.b16 %v768
      %v849 = vunpack.c.l.b16 %v769
      %v850 = vunpack.c.l.b16 %v770
      %v851 = vunpack.c.l.b16 %v771
      %v852 = vunpack.c.l.b16 %v772
      %v853 = vunpack.c.l.b16 %v773
      %v854 = vunpack.c.l.b16 %v774
      %v855 = vunpack.c.l.b16 %v775
      %v856 = vunpack.c.l.b16 %v776
      %v857 = vunpack.c.l.b16 %v777
      %v858 = vunpack.c.l.b16 %v778
      %v859 = vunpack.c.l.b16 %v779
      %v860 = vunpack.c.l.b16 %v780
      %v861 = vunpack.c.l.b16 %v781
      %v862 = vunpack.c.l.b16 %v782
      %v863 = vunpack.c.l.b16 %v783
      %v864 = vunpack.c.l.b16 %v784
      %v865 = vunpack.c.l.b16 %v785
      %v866 = vpack.c.b16 %v831, %v830
      %v867 = vpack.c.b16 %v833, %v832
      %v868 = vpack.c.b16 %v835, %v834
      %v869 = vpack.c.b16 %v837, %v836
      %v870 = vpack.c.b16 %v839, %v838
      %v871 = vpack.c.b16 %v841, %v840
      %v872 = vpack.c.b16 %v843, %v842
      %v873 = vpack.c.b16 %v845, %v844
      %v874 = vpack.c.b16 %v847, %v846
      %v875 = vpack.c.b16 %v849, %v848
      %v876 = vpack.c.b16 %v851, %v850
      %v877 = vpack.c.b16 %v853, %v852
      %v878 = vpack.c.b16 %v855, %v854
      %v879 = vpack.c.b16 %v857, %v856
      %v880 = vpack.c.b16 %v859, %v858
      %v881 = vpack.c.b16 %v861, %v860
      %v882 = vpack.c.b16 %v863, %v862
      %v883 = vpack.c.b16 %v865, %v864
      %vm884 = vsmask.f32 7424
      %v886 = vshrl.u32 %v866, 16
      %v888 = vshll.u32 %v866, 16
      %v890 = vrot.slane %v888, 1
      %v891 = vor.u32 %v886, %v890
      %v893 = vshll.u32 %v867, 16
      %v895 = vrot.slane %v893, 1
      %v896 = vsel %vm884, %v891, %v895
      %v897 = vshrl.u32 %v867, 16
      %v899 = vor.u32 %v897, %v895
      %v901 = vshll.u32 %v868, 16
      %v903 = vrot.slane %v901, 1
      %v904 = vsel %vm884, %v899, %v903
      %v905 = vshrl.u32 %v868, 16
      %v907 = vor.u32 %v905, %v903
      %v909 = vshll.u32 %v869, 16
      %v911 = vrot.slane %v909, 1
      %v912 = vsel %vm884, %v907, %v911
      %v913 = vshrl.u32 %v869, 16
      %v915 = vor.u32 %v913, %v911
      %v917 = vshll.u32 %v870, 16
      %v919 = vrot.slane %v917, 1
      %v920 = vsel %vm884, %v915, %v919
      %v921 = vshrl.u32 %v870, 16
      %v923 = vor.u32 %v921, %v919
      %v925 = vshll.u32 %v871, 16
      %v927 = vrot.slane %v925, 1
      %v928 = vsel %vm884, %v923, %v927
      %v929 = vshrl.u32 %v871, 16
      %v931 = vor.u32 %v929, %v927
      %v933 = vshll.u32 %v872, 16
      %v935 = vrot.slane %v933, 1
      %v936 = vsel %vm884, %v931, %v935
      %v937 = vshrl.u32 %v872, 16
      %v939 = vor.u32 %v937, %v935
      %v941 = vshll.u32 %v873, 16
      %v943 = vrot.slane %v941, 1
      %v944 = vsel %vm884, %v939, %v943
      %v945 = vshrl.u32 %v873, 16
      %v947 = vor.u32 %v945, %v943
      %v949 = vshll.u32 %v874, 16
      %v951 = vrot.slane %v949, 1
      %v952 = vsel %vm884, %v947, %v951
      %v953 = vshrl.u32 %v874, 16
      %v955 = vor.u32 %v953, %v951
      %v957 = vshll.u32 %v875, 16
      %v959 = vrot.slane %v957, 1
      %v960 = vsel %vm884, %v955, %v959
      %v961 = vshrl.u32 %v875, 16
      %v963 = vor.u32 %v961, %v959
      %v965 = vshll.u32 %v876, 16
      %v967 = vrot.slane %v965, 1
      %v968 = vsel %vm884, %v963, %v967
      %v969 = vshrl.u32 %v876, 16
      %v971 = vor.u32 %v969, %v967
      %v973 = vshll.u32 %v877, 16
      %v975 = vrot.slane %v973, 1
      %v976 = vsel %vm884, %v971, %v975
      %v977 = vshrl.u32 %v877, 16
      %v979 = vor.u32 %v977, %v975
      %v981 = vshll.u32 %v878, 16
      %v983 = vrot.slane %v981, 1
      %v984 = vsel %vm884, %v979, %v983
      %v985 = vshrl.u32 %v878, 16
      %v987 = vor.u32 %v985, %v983
      %v989 = vshll.u32 %v879, 16
      %v991 = vrot.slane %v989, 1
      %v992 = vsel %vm884, %v987, %v991
      %v993 = vshrl.u32 %v879, 16
      %v995 = vor.u32 %v993, %v991
      %v997 = vshll.u32 %v880, 16
      %v999 = vrot.slane %v997, 1
      %v1000 = vsel %vm884, %v995, %v999
      %v1001 = vshrl.u32 %v880, 16
      %v1003 = vor.u32 %v1001, %v999
      %v1005 = vshll.u32 %v881, 16
      %v1007 = vrot.slane %v1005, 1
      %v1008 = vsel %vm884, %v1003, %v1007
      %v1009 = vshrl.u32 %v881, 16
      %v1011 = vor.u32 %v1009, %v1007
      %v1013 = vshll.u32 %v882, 16
      %v1015 = vrot.slane %v1013, 1
      %v1016 = vsel %vm884, %v1011, %v1015
      %v1017 = vshrl.u32 %v882, 16
      %v1019 = vor.u32 %v1017, %v1015
      %v1021 = vshll.u32 %v883, 16
      %v1023 = vrot.slane %v1021, 1
      %v1024 = vsel %vm884, %v1019, %v1023
      %v1025 = vshrl.u32 %v883, 16
      %v1027 = vor.u32 %v1025, %v1023
      %vm1028 = vcmask 64512
      %v1030 = vsel %vm1028, %v896, 0
      %v1033 = vsel %vm1028, %v904, 0
      %v1036 = vsel %vm1028, %v912, 0
      %v1039 = vsel %vm1028, %v920, 0
      %v1042 = vsel %vm1028, %v928, 0
      %v1045 = vsel %vm1028, %v936, 0
      %v1048 = vsel %vm1028, %v944, 0
      %v1051 = vsel %vm1028, %v952, 0
      %v1054 = vsel %vm1028, %v960, 0
      %v1057 = vsel %vm1028, %v968, 0
      %v1060 = vsel %vm1028, %v976, 0
      %v1063 = vsel %vm1028, %v984, 0
      %v1066 = vsel %vm1028, %v992, 0
      %v1069 = vsel %vm1028, %v1000, 0
      %v1072 = vsel %vm1028, %v1008, 0
      %v1075 = vsel %vm1028, %v1016, 0
      %v1078 = vsel %vm1028, %v1024, 0
      %v1081 = vsel %vm1028, %v1027, 0
      %vm1083 = vcmask 1043456
      %v1085 = vsel %vm1083, %v793, 0
      %1087 = vmatpush.bf16.msra.mxu0 0
      %1088 = vmatpush.bf16.msra.mxu0 0
      %1089 = vmatpush.bf16.msra.mxu0 0
      %1090 = vmatpush.bf16.msra.mxu0 0
      %1091 = vmatpush.bf16.msra.mxu0 0
      %1092 = vmatpush.bf16.msra.mxu0 0
      %1093 = vmatpush.bf16.msra.mxu0 0
      %1094 = vmatpush.bf16.msra.mxu0 %v1085
      %1095 = vmatmul.bf16.gmra.mxu0 %v1030
      %v1096 = vpop.f32.mrf.mxu0
      %v1097 = vadd.f32 0.0, %v1096
      %v1098 = vpop.f32.mrf.mxu0
      %v1099 = vadd.f32 0.0, %v1098
      %1100 = vmatmul.bf16.gmra.mxu0 %v1033
      %v1101 = vpop.f32.mrf.mxu0
      %v1102 = vadd.f32 0.0, %v1101
      %v1103 = vpop.f32.mrf.mxu0
      %v1104 = vadd.f32 0.0, %v1103
      %1105 = vmatmul.bf16.gmra.mxu0 %v1036
      %v1106 = vpop.f32.mrf.mxu0
      %v1107 = vadd.f32 0.0, %v1106
      %v1108 = vpop.f32.mrf.mxu0
      %v1109 = vadd.f32 0.0, %v1108
      %1110 = vmatmul.bf16.gmra.mxu0 %v1039
      %v1111 = vpop.f32.mrf.mxu0
      %v1112 = vadd.f32 0.0, %v1111
      %v1113 = vpop.f32.mrf.mxu0
      %v1114 = vadd.f32 0.0, %v1113
      %1115 = vmatmul.bf16.gmra.mxu0 %v1042
      %v1116 = vpop.f32.mrf.mxu0
      %v1117 = vadd.f32 0.0, %v1116
      %v1118 = vpop.f32.mrf.mxu0
      %v1119 = vadd.f32 0.0, %v1118
      %1120 = vmatmul.bf16.gmra.mxu0 %v1045
      %v1121 = vpop.f32.mrf.mxu0
      %v1122 = vadd.f32 0.0, %v1121
      %v1123 = vpop.f32.mrf.mxu0
      %v1124 = vadd.f32 0.0, %v1123
      %1125 = vmatmul.bf16.gmra.mxu0 %v1048
      %v1126 = vpop.f32.mrf.mxu0
      %v1127 = vadd.f32 0.0, %v1126
      %v1128 = vpop.f32.mrf.mxu0
      %v1129 = vadd.f32 0.0, %v1128
      %1130 = vmatmul.bf16.gmra.mxu0 %v1051
      %v1131 = vpop.f32.mrf.mxu0
      %v1132 = vadd.f32 0.0, %v1131
      %v1133 = vpop.f32.mrf.mxu0
      %v1134 = vadd.f32 0.0, %v1133
      %1135 = vmatmul.bf16.gmra.mxu0 %v1054
      %v1136 = vpop.f32.mrf.mxu0
      %v1137 = vadd.f32 0.0, %v1136
      %v1138 = vpop.f32.mrf.mxu0
      %v1139 = vadd.f32 0.0, %v1138
      %1140 = vmatmul.bf16.gmra.mxu0 %v1057
      %v1141 = vpop.f32.mrf.mxu0
      %v1142 = vadd.f32 0.0, %v1141
      %v1143 = vpop.f32.mrf.mxu0
      %v1144 = vadd.f32 0.0, %v1143
      %1145 = vmatmul.bf16.gmra.mxu0 %v1060
      %v1146 = vpop.f32.mrf.mxu0
      %v1147 = vadd.f32 0.0, %v1146
      %v1148 = vpop.f32.mrf.mxu0
      %v1149 = vadd.f32 0.0, %v1148
      %1150 = vmatmul.bf16.gmra.mxu0 %v1063
      %v1151 = vpop.f32.mrf.mxu0
      %v1152 = vadd.f32 0.0, %v1151
      %v1153 = vpop.f32.mrf.mxu0
      %v1154 = vadd.f32 0.0, %v1153
      %1155 = vmatmul.bf16.gmra.mxu0 %v1066
      %v1156 = vpop.f32.mrf.mxu0
      %v1157 = vadd.f32 0.0, %v1156
      %v1158 = vpop.f32.mrf.mxu0
      %v1159 = vadd.f32 0.0, %v1158
      %1160 = vmatmul.bf16.gmra.mxu0 %v1069
      %v1161 = vpop.f32.mrf.mxu0
      %v1162 = vadd.f32 0.0, %v1161
      %v1163 = vpop.f32.mrf.mxu0
      %v1164 = vadd.f32 0.0, %v1163
      %1165 = vmatmul.bf16.gmra.mxu0 %v1072
      %v1166 = vpop.f32.mrf.mxu0
      %v1167 = vadd.f32 0.0, %v1166
      %v1168 = vpop.f32.mrf.mxu0
      %v1169 = vadd.f32 0.0, %v1168
      %1170 = vmatmul.bf16.gmra.mxu0 %v1075
      %v1171 = vpop.f32.mrf.mxu0
      %v1172 = vadd.f32 0.0, %v1171
      %v1173 = vpop.f32.mrf.mxu0
      %v1174 = vadd.f32 0.0, %v1173
      %1175 = vmatmul.bf16.gmra.mxu0 %v1078
      %v1176 = vpop.f32.mrf.mxu0
      %v1177 = vadd.f32 0.0, %v1176
      %v1178 = vpop.f32.mrf.mxu0
      %v1179 = vadd.f32 0.0, %v1178
      %1180 = vmatmul.bf16.gmra.mxu0 %v1081
      %v1181 = vpop.f32.mrf.mxu0
      %v1182 = vadd.f32 0.0, %v1181
      %v1183 = vpop.f32.mrf.mxu0
      %v1184 = vadd.f32 0.0, %v1183
      %1185 = vdwg.mxu0
      %v1186 = vsel %vm1028, %v866, 0
      %v1188 = vsel %vm1028, %v867, 0
      %v1190 = vsel %vm1028, %v868, 0
      %v1192 = vsel %vm1028, %v869, 0
      %v1194 = vsel %vm1028, %v870, 0
      %v1196 = vsel %vm1028, %v871, 0
      %v1198 = vsel %vm1028, %v872, 0
      %v1200 = vsel %vm1028, %v873, 0
      %v1202 = vsel %vm1028, %v874, 0
      %v1204 = vsel %vm1028, %v875, 0
      %v1206 = vsel %vm1028, %v876, 0
      %v1208 = vsel %vm1028, %v877, 0
      %v1210 = vsel %vm1028, %v878, 0
      %v1212 = vsel %vm1028, %v879, 0
      %v1214 = vsel %vm1028, %v880, 0
      %v1216 = vsel %vm1028, %v881, 0
      %v1218 = vsel %vm1028, %v882, 0
      %v1220 = vsel %vm1028, %v883, 0
      %v1223 = vsel %vm1083, %v791, 0
      %1225 = vmatpush.bf16.msra.mxu0 0
      %1226 = vmatpush.bf16.msra.mxu0 0
      %1227 = vmatpush.bf16.msra.mxu0 0
      %1228 = vmatpush.bf16.msra.mxu0 0
      %1229 = vmatpush.bf16.msra.mxu0 0
      %1230 = vmatpush.bf16.msra.mxu0 0
      %1231 = vmatpush.bf16.msra.mxu0 0
      %1232 = vmatpush.bf16.msra.mxu0 %v1223
      %1233 = vmatmul.bf16.gmra.mxu0 %v1186
      %v1234 = vpop.f32.mrf.mxu0
      %v1235 = vadd.f32 %v1097, %v1234
      %v1236 = vpop.f32.mrf.mxu0
      %v1237 = vadd.f32 %v1099, %v1236
      %1238 = vmatmul.bf16.gmra.mxu0 %v1188
      %v1239 = vpop.f32.mrf.mxu0
      %v1240 = vadd.f32 %v1102, %v1239
      %v1241 = vpop.f32.mrf.mxu0
      %v1242 = vadd.f32 %v1104, %v1241
      %1243 = vmatmul.bf16.gmra.mxu0 %v1190
      %v1244 = vpop.f32.mrf.mxu0
      %v1245 = vadd.f32 %v1107, %v1244
      %v1246 = vpop.f32.mrf.mxu0
      %v1247 = vadd.f32 %v1109, %v1246
      %1248 = vmatmul.bf16.gmra.mxu0 %v1192
      %v1249 = vpop.f32.mrf.mxu0
      %v1250 = vadd.f32 %v1112, %v1249
      %v1251 = vpop.f32.mrf.mxu0
      %v1252 = vadd.f32 %v1114, %v1251
      %1253 = vmatmul.bf16.gmra.mxu0 %v1194
      %v1254 = vpop.f32.mrf.mxu0
      %v1255 = vadd.f32 %v1117, %v1254
      %v1256 = vpop.f32.mrf.mxu0
      %v1257 = vadd.f32 %v1119, %v1256
      %1258 = vmatmul.bf16.gmra.mxu0 %v1196
      %v1259 = vpop.f32.mrf.mxu0
      %v1260 = vadd.f32 %v1122, %v1259
      %v1261 = vpop.f32.mrf.mxu0
      %v1262 = vadd.f32 %v1124, %v1261
      %1263 = vmatmul.bf16.gmra.mxu0 %v1198
      %v1264 = vpop.f32.mrf.mxu0
      %v1265 = vadd.f32 %v1127, %v1264
      %v1266 = vpop.f32.mrf.mxu0
      %v1267 = vadd.f32 %v1129, %v1266
      %1268 = vmatmul.bf16.gmra.mxu0 %v1200
      %v1269 = vpop.f32.mrf.mxu0
      %v1270 = vadd.f32 %v1132, %v1269
      %v1271 = vpop.f32.mrf.mxu0
      %v1272 = vadd.f32 %v1134, %v1271
      %1273 = vmatmul.bf16.gmra.mxu0 %v1202
      %v1274 = vpop.f32.mrf.mxu0
      %v1275 = vadd.f32 %v1137, %v1274
      %v1276 = vpop.f32.mrf.mxu0
      %v1277 = vadd.f32 %v1139, %v1276
      %1278 = vmatmul.bf16.gmra.mxu0 %v1204
      %v1279 = vpop.f32.mrf.mxu0
      %v1280 = vadd.f32 %v1142, %v1279
      %v1281 = vpop.f32.mrf.mxu0
      %v1282 = vadd.f32 %v1144, %v1281
      %1283 = vmatmul.bf16.gmra.mxu0 %v1206
      %v1284 = vpop.f32.mrf.mxu0
      %v1285 = vadd.f32 %v1147, %v1284
      %v1286 = vpop.f32.mrf.mxu0
      %v1287 = vadd.f32 %v1149, %v1286
      %1288 = vmatmul.bf16.gmra.mxu0 %v1208
      %v1289 = vpop.f32.mrf.mxu0
      %v1290 = vadd.f32 %v1152, %v1289
      %v1291 = vpop.f32.mrf.mxu0
      %v1292 = vadd.f32 %v1154, %v1291
      %1293 = vmatmul.bf16.gmra.mxu0 %v1210
      %v1294 = vpop.f32.mrf.mxu0
      %v1295 = vadd.f32 %v1157, %v1294
      %v1296 = vpop.f32.mrf.mxu0
      %v1297 = vadd.f32 %v1159, %v1296
      %1298 = vmatmul.bf16.gmra.mxu0 %v1212
      %v1299 = vpop.f32.mrf.mxu0
      %v1300 = vadd.f32 %v1162, %v1299
      %v1301 = vpop.f32.mrf.mxu0
      %v1302 = vadd.f32 %v1164, %v1301
      %1303 = vmatmul.bf16.gmra.mxu0 %v1214
      %v1304 = vpop.f32.mrf.mxu0
      %v1305 = vadd.f32 %v1167, %v1304
      %v1306 = vpop.f32.mrf.mxu0
      %v1307 = vadd.f32 %v1169, %v1306
      %1308 = vmatmul.bf16.gmra.mxu0 %v1216
      %v1309 = vpop.f32.mrf.mxu0
      %v1310 = vadd.f32 %v1172, %v1309
      %v1311 = vpop.f32.mrf.mxu0
      %v1312 = vadd.f32 %v1174, %v1311
      %1313 = vmatmul.bf16.gmra.mxu0 %v1218
      %v1314 = vpop.f32.mrf.mxu0
      %v1315 = vadd.f32 %v1177, %v1314
      %v1316 = vpop.f32.mrf.mxu0
      %v1317 = vadd.f32 %v1179, %v1316
      %1318 = vmatmul.bf16.gmra.mxu0 %v1220
      %v1319 = vpop.f32.mrf.mxu0
      %v1320 = vadd.f32 %v1182, %v1319
      %v1321 = vpop.f32.mrf.mxu0
      %v1322 = vadd.f32 %v1184, %v1321
      %1323 = vdwg.mxu0
      %s1324 = scalar_lea.vmem %s5, 8
      %v1325 = vld [vmem:[%s1324] sm:$0xf]
      %vm1326 = vcmask 1046528
      %v1327 = vrot.slane %v866, 1
      %v1328 = vrot.slane %v867, 1
      %v1329 = vsel %vm1326, %v1327, %v1328
      %v1330 = vrot.slane %v868, 1
      %v1331 = vsel %vm1326, %v1328, %v1330
      %v1332 = vrot.slane %v869, 1
      %v1333 = vsel %vm1326, %v1330, %v1332
      %v1334 = vrot.slane %v870, 1
      %v1335 = vsel %vm1326, %v1332, %v1334
      %v1336 = vrot.slane %v871, 1
      %v1337 = vsel %vm1326, %v1334, %v1336
      %v1338 = vrot.slane %v872, 1
      %v1339 = vsel %vm1326, %v1336, %v1338
      %v1340 = vrot.slane %v873, 1
      %v1341 = vsel %vm1326, %v1338, %v1340
      %v1342 = vrot.slane %v874, 1
      %v1343 = vsel %vm1326, %v1340, %v1342
      %v1344 = vrot.slane %v875, 1
      %v1345 = vsel %vm1326, %v1342, %v1344
      %v1346 = vrot.slane %v876, 1
      %v1347 = vsel %vm1326, %v1344, %v1346
      %v1348 = vrot.slane %v877, 1
      %v1349 = vsel %vm1326, %v1346, %v1348
      %v1350 = vrot.slane %v878, 1
      %v1351 = vsel %vm1326, %v1348, %v1350
      %v1352 = vrot.slane %v879, 1
      %v1353 = vsel %vm1326, %v1350, %v1352
      %v1354 = vrot.slane %v880, 1
      %v1355 = vsel %vm1326, %v1352, %v1354
      %v1356 = vrot.slane %v881, 1
      %v1357 = vsel %vm1326, %v1354, %v1356
      %v1358 = vrot.slane %v882, 1
      %v1359 = vsel %vm1326, %v1356, %v1358
      %v1360 = vrot.slane %v883, 1
      %v1361 = vsel %vm1326, %v1358, %v1360
      %v1363 = vsel %vm1028, %v1329, 0
      %v1366 = vsel %vm1028, %v1331, 0
      %v1369 = vsel %vm1028, %v1333, 0
      %v1372 = vsel %vm1028, %v1335, 0
      %v1375 = vsel %vm1028, %v1337, 0
      %v1378 = vsel %vm1028, %v1339, 0
      %v1381 = vsel %vm1028, %v1341, 0
      %v1384 = vsel %vm1028, %v1343, 0
      %v1387 = vsel %vm1028, %v1345, 0
      %v1390 = vsel %vm1028, %v1347, 0
      %v1393 = vsel %vm1028, %v1349, 0
      %v1396 = vsel %vm1028, %v1351, 0
      %v1399 = vsel %vm1028, %v1353, 0
      %v1402 = vsel %vm1028, %v1355, 0
      %v1405 = vsel %vm1028, %v1357, 0
      %v1408 = vsel %vm1028, %v1359, 0
      %v1411 = vsel %vm1028, %v1361, 0
      %v1414 = vsel %vm1028, %v1360, 0
      %v1417 = vsel %vm1083, %v1325, 0
      %1419 = vmatpush.bf16.msra.mxu0 0
      %1420 = vmatpush.bf16.msra.mxu0 0
      %1421 = vmatpush.bf16.msra.mxu0 0
      %1422 = vmatpush.bf16.msra.mxu0 0
      %1423 = vmatpush.bf16.msra.mxu0 0
      %1424 = vmatpush.bf16.msra.mxu0 0
      %1425 = vmatpush.bf16.msra.mxu0 0
      %1426 = vmatpush.bf16.msra.mxu0 %v1417
      %1427 = vmatmul.bf16.gmra.mxu0 %v1363
      %v1428 = vpop.f32.mrf.mxu0
      %v1429 = vadd.f32 0.0, %v1428
      %v1430 = vpop.f32.mrf.mxu0
      %v1431 = vadd.f32 0.0, %v1430
      %1432 = vmatmul.bf16.gmra.mxu0 %v1366
      %v1433 = vpop.f32.mrf.mxu0
      %v1434 = vadd.f32 0.0, %v1433
      %v1435 = vpop.f32.mrf.mxu0
      %v1436 = vadd.f32 0.0, %v1435
      %1437 = vmatmul.bf16.gmra.mxu0 %v1369
      %v1438 = vpop.f32.mrf.mxu0
      %v1439 = vadd.f32 0.0, %v1438
      %v1440 = vpop.f32.mrf.mxu0
      %v1441 = vadd.f32 0.0, %v1440
      %1442 = vmatmul.bf16.gmra.mxu0 %v1372
      %v1443 = vpop.f32.mrf.mxu0
      %v1444 = vadd.f32 0.0, %v1443
      %v1445 = vpop.f32.mrf.mxu0
      %v1446 = vadd.f32 0.0, %v1445
      %1447 = vmatmul.bf16.gmra.mxu0 %v1375
      %v1448 = vpop.f32.mrf.mxu0
      %v1449 = vadd.f32 0.0, %v1448
      %v1450 = vpop.f32.mrf.mxu0
      %v1451 = vadd.f32 0.0, %v1450
      %1452 = vmatmul.bf16.gmra.mxu0 %v1378
      %v1453 = vpop.f32.mrf.mxu0
      %v1454 = vadd.f32 0.0, %v1453
      %v1455 = vpop.f32.mrf.mxu0
      %v1456 = vadd.f32 0.0, %v1455
      %1457 = vmatmul.bf16.gmra.mxu0 %v1381
      %v1458 = vpop.f32.mrf.mxu0
      %v1459 = vadd.f32 0.0, %v1458
      %v1460 = vpop.f32.mrf.mxu0
      %v1461 = vadd.f32 0.0, %v1460
      %1462 = vmatmul.bf16.gmra.mxu0 %v1384
      %v1463 = vpop.f32.mrf.mxu0
      %v1464 = vadd.f32 0.0, %v1463
      %v1465 = vpop.f32.mrf.mxu0
      %v1466 = vadd.f32 0.0, %v1465
      %1467 = vmatmul.bf16.gmra.mxu0 %v1387
      %v1468 = vpop.f32.mrf.mxu0
      %v1469 = vadd.f32 0.0, %v1468
      %v1470 = vpop.f32.mrf.mxu0
      %v1471 = vadd.f32 0.0, %v1470
      %1472 = vmatmul.bf16.gmra.mxu0 %v1390
      %v1473 = vpop.f32.mrf.mxu0
      %v1474 = vadd.f32 0.0, %v1473
      %v1475 = vpop.f32.mrf.mxu0
      %v1476 = vadd.f32 0.0, %v1475
      %1477 = vmatmul.bf16.gmra.mxu0 %v1393
      %v1478 = vpop.f32.mrf.mxu0
      %v1479 = vadd.f32 0.0, %v1478
      %v1480 = vpop.f32.mrf.mxu0
      %v1481 = vadd.f32 0.0, %v1480
      %1482 = vmatmul.bf16.gmra.mxu0 %v1396
      %v1483 = vpop.f32.mrf.mxu0
      %v1484 = vadd.f32 0.0, %v1483
      %v1485 = vpop.f32.mrf.mxu0
      %v1486 = vadd.f32 0.0, %v1485
      %1487 = vmatmul.bf16.gmra.mxu0 %v1399
      %v1488 = vpop.f32.mrf.mxu0
      %v1489 = vadd.f32 0.0, %v1488
      %v1490 = vpop.f32.mrf.mxu0
      %v1491 = vadd.f32 0.0, %v1490
      %1492 = vmatmul.bf16.gmra.mxu0 %v1402
      %v1493 = vpop.f32.mrf.mxu0
      %v1494 = vadd.f32 0.0, %v1493
      %v1495 = vpop.f32.mrf.mxu0
      %v1496 = vadd.f32 0.0, %v1495
      %1497 = vmatmul.bf16.gmra.mxu0 %v1405
      %v1498 = vpop.f32.mrf.mxu0
      %v1499 = vadd.f32 0.0, %v1498
      %v1500 = vpop.f32.mrf.mxu0
      %v1501 = vadd.f32 0.0, %v1500
      %1502 = vmatmul.bf16.gmra.mxu0 %v1408
      %v1503 = vpop.f32.mrf.mxu0
      %v1504 = vadd.f32 0.0, %v1503
      %v1505 = vpop.f32.mrf.mxu0
      %v1506 = vadd.f32 0.0, %v1505
      %1507 = vmatmul.bf16.gmra.mxu0 %v1411
      %v1508 = vpop.f32.mrf.mxu0
      %v1509 = vadd.f32 0.0, %v1508
      %v1510 = vpop.f32.mrf.mxu0
      %v1511 = vadd.f32 0.0, %v1510
      %1512 = vmatmul.bf16.gmra.mxu0 %v1414
      %v1513 = vpop.f32.mrf.mxu0
      %v1514 = vadd.f32 0.0, %v1513
      %v1515 = vpop.f32.mrf.mxu0
      %v1516 = vadd.f32 0.0, %v1515
      %1517 = vdwg.mxu0
      %v1518 = vadd.f32 %v1235, %v1429
      %v1519 = vadd.f32 %v1237, %v1431
      %v1520 = vadd.f32 %v1240, %v1434
      %v1521 = vadd.f32 %v1242, %v1436
      %v1522 = vadd.f32 %v1245, %v1439
      %v1523 = vadd.f32 %v1247, %v1441
      %v1524 = vadd.f32 %v1250, %v1444
      %v1525 = vadd.f32 %v1252, %v1446
      %v1526 = vadd.f32 %v1255, %v1449
      %v1527 = vadd.f32 %v1257, %v1451
      %v1528 = vadd.f32 %v1260, %v1454
      %v1529 = vadd.f32 %v1262, %v1456
      %v1530 = vadd.f32 %v1265, %v1459
      %v1531 = vadd.f32 %v1267, %v1461
      %v1532 = vadd.f32 %v1270, %v1464
      %v1533 = vadd.f32 %v1272, %v1466
      %v1534 = vadd.f32 %v1275, %v1469
      %v1535 = vadd.f32 %v1277, %v1471
      %v1536 = vadd.f32 %v1280, %v1474
      %v1537 = vadd.f32 %v1282, %v1476
      %v1538 = vadd.f32 %v1285, %v1479
      %v1539 = vadd.f32 %v1287, %v1481
      %v1540 = vadd.f32 %v1290, %v1484
      %v1541 = vadd.f32 %v1292, %v1486
      %v1542 = vadd.f32 %v1295, %v1489
      %v1543 = vadd.f32 %v1297, %v1491
      %v1544 = vadd.f32 %v1300, %v1494
      %v1545 = vadd.f32 %v1302, %v1496
      %v1546 = vadd.f32 %v1305, %v1499
      %v1547 = vadd.f32 %v1307, %v1501
      %v1548 = vadd.f32 %v1310, %v1504
      %v1549 = vadd.f32 %v1312, %v1506
      %v1550 = vadd.f32 %v1315, %v1509
      %v1551 = vadd.f32 %v1317, %v1511
      %v1552 = vadd.f32 %v1320, %v1514
      %v1553 = vadd.f32 %v1322, %v1516
      %s1554 = scalar_lea.vmem %s5, 12
      %v1555 = vld [vmem:[%s1554] sm:$0xf]
      %v1558 = vunpack.c.l.b16 %v786
      %v1559 = vunpack.c.l.b16 %v787
      %v1560 = vpack.c.b16 %v1559, %v1558
      %v1561 = vrot.slane %v1560, 1
      %v1562 = vsel %vm1326, %v1360, %v1561
      %v1564 = vsel %vm1028, %v1562, 0
      %v1567 = vsel %vm1028, %v1561, 0
      %v1570 = vsel %vm1083, %v1555, 0
      %1572 = vmatpush.bf16.msra.mxu0 0
      %1573 = vmatpush.bf16.msra.mxu0 0
      %1574 = vmatpush.bf16.msra.mxu0 0
      %1575 = vmatpush.bf16.msra.mxu0 0
      %1576 = vmatpush.bf16.msra.mxu0 0
      %1577 = vmatpush.bf16.msra.mxu0 0
      %1578 = vmatpush.bf16.msra.mxu0 0
      %1579 = vmatpush.bf16.msra.mxu0 %v1570
      %1580 = vmatmul.bf16.gmra.mxu0 %v1366
      %v1581 = vpop.f32.mrf.mxu0
      %v1582 = vadd.f32 0.0, %v1581
      %v1583 = vpop.f32.mrf.mxu0
      %v1584 = vadd.f32 0.0, %v1583
      %1585 = vmatmul.bf16.gmra.mxu0 %v1369
      %v1586 = vpop.f32.mrf.mxu0
      %v1587 = vadd.f32 0.0, %v1586
      %v1588 = vpop.f32.mrf.mxu0
      %v1589 = vadd.f32 0.0, %v1588
      %1590 = vmatmul.bf16.gmra.mxu0 %v1372
      %v1591 = vpop.f32.mrf.mxu0
      %v1592 = vadd.f32 0.0, %v1591
      %v1593 = vpop.f32.mrf.mxu0
      %v1594 = vadd.f32 0.0, %v1593
      %1595 = vmatmul.bf16.gmra.mxu0 %v1375
      %v1596 = vpop.f32.mrf.mxu0
      %v1597 = vadd.f32 0.0, %v1596
      %v1598 = vpop.f32.mrf.mxu0
      %v1599 = vadd.f32 0.0, %v1598
      %1600 = vmatmul.bf16.gmra.mxu0 %v1378
      %v1601 = vpop.f32.mrf.mxu0
      %v1602 = vadd.f32 0.0, %v1601
      %v1603 = vpop.f32.mrf.mxu0
      %v1604 = vadd.f32 0.0, %v1603
      %1605 = vmatmul.bf16.gmra.mxu0 %v1381
      %v1606 = vpop.f32.mrf.mxu0
      %v1607 = vadd.f32 0.0, %v1606
      %v1608 = vpop.f32.mrf.mxu0
      %v1609 = vadd.f32 0.0, %v1608
      %1610 = vmatmul.bf16.gmra.mxu0 %v1384
      %v1611 = vpop.f32.mrf.mxu0
      %v1612 = vadd.f32 0.0, %v1611
      %v1613 = vpop.f32.mrf.mxu0
      %v1614 = vadd.f32 0.0, %v1613
      %1615 = vmatmul.bf16.gmra.mxu0 %v1387
      %v1616 = vpop.f32.mrf.mxu0
      %v1617 = vadd.f32 0.0, %v1616
      %v1618 = vpop.f32.mrf.mxu0
      %v1619 = vadd.f32 0.0, %v1618
      %1620 = vmatmul.bf16.gmra.mxu0 %v1390
      %v1621 = vpop.f32.mrf.mxu0
      %v1622 = vadd.f32 0.0, %v1621
      %v1623 = vpop.f32.mrf.mxu0
      %v1624 = vadd.f32 0.0, %v1623
      %1625 = vmatmul.bf16.gmra.mxu0 %v1393
      %v1626 = vpop.f32.mrf.mxu0
      %v1627 = vadd.f32 0.0, %v1626
      %v1628 = vpop.f32.mrf.mxu0
      %v1629 = vadd.f32 0.0, %v1628
      %1630 = vmatmul.bf16.gmra.mxu0 %v1396
      %v1631 = vpop.f32.mrf.mxu0
      %v1632 = vadd.f32 0.0, %v1631
      %v1633 = vpop.f32.mrf.mxu0
      %v1634 = vadd.f32 0.0, %v1633
      %1635 = vmatmul.bf16.gmra.mxu0 %v1399
      %v1636 = vpop.f32.mrf.mxu0
      %v1637 = vadd.f32 0.0, %v1636
      %v1638 = vpop.f32.mrf.mxu0
      %v1639 = vadd.f32 0.0, %v1638
      %1640 = vmatmul.bf16.gmra.mxu0 %v1402
      %v1641 = vpop.f32.mrf.mxu0
      %v1642 = vadd.f32 0.0, %v1641
      %v1643 = vpop.f32.mrf.mxu0
      %v1644 = vadd.f32 0.0, %v1643
      %1645 = vmatmul.bf16.gmra.mxu0 %v1405
      %v1646 = vpop.f32.mrf.mxu0
      %v1647 = vadd.f32 0.0, %v1646
      %v1648 = vpop.f32.mrf.mxu0
      %v1649 = vadd.f32 0.0, %v1648
      %1650 = vmatmul.bf16.gmra.mxu0 %v1408
      %v1651 = vpop.f32.mrf.mxu0
      %v1652 = vadd.f32 0.0, %v1651
      %v1653 = vpop.f32.mrf.mxu0
      %v1654 = vadd.f32 0.0, %v1653
      %1655 = vmatmul.bf16.gmra.mxu0 %v1411
      %v1656 = vpop.f32.mrf.mxu0
      %v1657 = vadd.f32 0.0, %v1656
      %v1658 = vpop.f32.mrf.mxu0
      %v1659 = vadd.f32 0.0, %v1658
      %1660 = vmatmul.bf16.gmra.mxu0 %v1564
      %v1661 = vpop.f32.mrf.mxu0
      %v1662 = vadd.f32 0.0, %v1661
      %v1663 = vpop.f32.mrf.mxu0
      %v1664 = vadd.f32 0.0, %v1663
      %1665 = vmatmul.bf16.gmra.mxu0 %v1567
      %v1666 = vpop.f32.mrf.mxu0
      %v1667 = vadd.f32 0.0, %v1666
      %v1668 = vpop.f32.mrf.mxu0
      %v1669 = vadd.f32 0.0, %v1668
      %1670 = vdwg.mxu0
      %v1671 = vadd.f32 %v1518, %v1582
      %v1672 = vadd.f32 %v1519, %v1584
      %v1673 = vadd.f32 %v1520, %v1587
      %v1674 = vadd.f32 %v1521, %v1589
      %v1675 = vadd.f32 %v1522, %v1592
      %v1676 = vadd.f32 %v1523, %v1594
      %v1677 = vadd.f32 %v1524, %v1597
      %v1678 = vadd.f32 %v1525, %v1599
      %v1679 = vadd.f32 %v1526, %v1602
      %v1680 = vadd.f32 %v1527, %v1604
      %v1681 = vadd.f32 %v1528, %v1607
      %v1682 = vadd.f32 %v1529, %v1609
      %v1683 = vadd.f32 %v1530, %v1612
      %v1684 = vadd.f32 %v1531, %v1614
      %v1685 = vadd.f32 %v1532, %v1617
      %v1686 = vadd.f32 %v1533, %v1619
      %v1687 = vadd.f32 %v1534, %v1622
      %v1688 = vadd.f32 %v1535, %v1624
      %v1689 = vadd.f32 %v1536, %v1627
      %v1690 = vadd.f32 %v1537, %v1629
      %v1691 = vadd.f32 %v1538, %v1632
      %v1692 = vadd.f32 %v1539, %v1634
      %v1693 = vadd.f32 %v1540, %v1637
      %v1694 = vadd.f32 %v1541, %v1639
      %v1695 = vadd.f32 %v1542, %v1642
      %v1696 = vadd.f32 %v1543, %v1644
      %v1697 = vadd.f32 %v1544, %v1647
      %v1698 = vadd.f32 %v1545, %v1649
      %v1699 = vadd.f32 %v1546, %v1652
      %v1700 = vadd.f32 %v1547, %v1654
      %v1701 = vadd.f32 %v1548, %v1657
      %v1702 = vadd.f32 %v1549, %v1659
      %v1703 = vadd.f32 %v1550, %v1662
      %v1704 = vadd.f32 %v1551, %v1664
      %v1705 = vadd.f32 %v1552, %v1667
      %v1706 = vadd.f32 %v1553, %v1669
      %s1707 = scalar_lea.vmem %s5, 16
      %v1708 = vld [vmem:[%s1707] sm:$0xf]
      %v1710 = vunpack.c.l.b16 %v788
      %v1711 = vpack.c.b16 %v1710, %v1710
      %vm1712 = vsmask.f32 6400
      %v1713 = vrot.slane %v897, 1
      %v1714 = vrot.slane %v893, 2
      %v1715 = vor.u32 %v1713, %v1714
      %v1716 = vrot.slane %v905, 1
      %v1717 = vrot.slane %v901, 2
      %v1718 = vor.u32 %v1716, %v1717
      %v1719 = vsel %vm1712, %v1715, %v1718
      %v1720 = vrot.slane %v913, 1
      %v1721 = vrot.slane %v909, 2
      %v1722 = vor.u32 %v1720, %v1721
      %v1723 = vsel %vm1712, %v1718, %v1722
      %v1724 = vrot.slane %v921, 1
      %v1725 = vrot.slane %v917, 2
      %v1726 = vor.u32 %v1724, %v1725
      %v1727 = vsel %vm1712, %v1722, %v1726
      %v1728 = vrot.slane %v929, 1
      %v1729 = vrot.slane %v925, 2
      %v1730 = vor.u32 %v1728, %v1729
      %v1731 = vsel %vm1712, %v1726, %v1730
      %v1732 = vrot.slane %v937, 1
      %v1733 = vrot.slane %v933, 2
      %v1734 = vor.u32 %v1732, %v1733
      %v1735 = vsel %vm1712, %v1730, %v1734
      %v1736 = vrot.slane %v945, 1
      %v1737 = vrot.slane %v941, 2
      %v1738 = vor.u32 %v1736, %v1737
      %v1739 = vsel %vm1712, %v1734, %v1738
      %v1740 = vrot.slane %v953, 1
      %v1741 = vrot.slane %v949, 2
      %v1742 = vor.u32 %v1740, %v1741
      %v1743 = vsel %vm1712, %v1738, %v1742
      %v1744 = vrot.slane %v961, 1
      %v1745 = vrot.slane %v957, 2
      %v1746 = vor.u32 %v1744, %v1745
      %v1747 = vsel %vm1712, %v1742, %v1746
      %v1748 = vrot.slane %v969, 1
      %v1749 = vrot.slane %v965, 2
      %v1750 = vor.u32 %v1748, %v1749
      %v1751 = vsel %vm1712, %v1746, %v1750
      %v1752 = vrot.slane %v977, 1
      %v1753 = vrot.slane %v973, 2
      %v1754 = vor.u32 %v1752, %v1753
      %v1755 = vsel %vm1712, %v1750, %v1754
      %v1756 = vrot.slane %v985, 1
      %v1757 = vrot.slane %v981, 2
      %v1758 = vor.u32 %v1756, %v1757
      %v1759 = vsel %vm1712, %v1754, %v1758
      %v1760 = vrot.slane %v993, 1
      %v1761 = vrot.slane %v989, 2
      %v1762 = vor.u32 %v1760, %v1761
      %v1763 = vsel %vm1712, %v1758, %v1762
      %v1764 = vrot.slane %v1001, 1
      %v1765 = vrot.slane %v997, 2
      %v1766 = vor.u32 %v1764, %v1765
      %v1767 = vsel %vm1712, %v1762, %v1766
      %v1768 = vrot.slane %v1009, 1
      %v1769 = vrot.slane %v1005, 2
      %v1770 = vor.u32 %v1768, %v1769
      %v1771 = vsel %vm1712, %v1766, %v1770
      %v1772 = vrot.slane %v1017, 1
      %v1773 = vrot.slane %v1013, 2
      %v1774 = vor.u32 %v1772, %v1773
      %v1775 = vsel %vm1712, %v1770, %v1774
      %v1776 = vrot.slane %v1025, 1
      %v1777 = vrot.slane %v1021, 2
      %v1778 = vor.u32 %v1776, %v1777
      %v1779 = vsel %vm1712, %v1774, %v1778
      %v1781 = vshrl.u32 %v1560, 16
      %v1783 = vrot.slane %v1781, 1
      %v1784 = vshll.u32 %v1560, 16
      %v1786 = vrot.slane %v1784, 2
      %v1787 = vor.u32 %v1783, %v1786
      %v1788 = vsel %vm1712, %v1778, %v1787
      %v1790 = vshll.u32 %v1711, 16
      %v1792 = vrot.slane %v1790, 2
      %v1793 = vsel %vm1712, %v1787, %v1792
      %v1795 = vsel %vm1028, %v1719, 0
      %v1798 = vsel %vm1028, %v1723, 0
      %v1801 = vsel %vm1028, %v1727, 0
      %v1804 = vsel %vm1028, %v1731, 0
      %v1807 = vsel %vm1028, %v1735, 0
      %v1810 = vsel %vm1028, %v1739, 0
      %v1813 = vsel %vm1028, %v1743, 0
      %v1816 = vsel %vm1028, %v1747, 0
      %v1819 = vsel %vm1028, %v1751, 0
      %v1822 = vsel %vm1028, %v1755, 0
      %v1825 = vsel %vm1028, %v1759, 0
      %v1828 = vsel %vm1028, %v1763, 0
      %v1831 = vsel %vm1028, %v1767, 0
      %v1834 = vsel %vm1028, %v1771, 0
      %v1837 = vsel %vm1028, %v1775, 0
      %v1840 = vsel %vm1028, %v1779, 0
      %v1843 = vsel %vm1028, %v1788, 0
      %v1846 = vsel %vm1028, %v1793, 0
      %v1849 = vsel %vm1083, %v1708, 0
      %1851 = vmatpush.bf16.msra.mxu0 0
      %1852 = vmatpush.bf16.msra.mxu0 0
      %1853 = vmatpush.bf16.msra.mxu0 0
      %1854 = vmatpush.bf16.msra.mxu0 0
      %1855 = vmatpush.bf16.msra.mxu0 0
      %1856 = vmatpush.bf16.msra.mxu0 0
      %1857 = vmatpush.bf16.msra.mxu0 0
      %1858 = vmatpush.bf16.msra.mxu0 %v1849
      %1859 = vmatmul.bf16.gmra.mxu0 %v1795
      %v1860 = vpop.f32.mrf.mxu0
      %v1861 = vadd.f32 0.0, %v1860
      %v1862 = vpop.f32.mrf.mxu0
      %v1863 = vadd.f32 0.0, %v1862
      %1864 = vmatmul.bf16.gmra.mxu0 %v1798
      %v1865 = vpop.f32.mrf.mxu0
      %v1866 = vadd.f32 0.0, %v1865
      %v1867 = vpop.f32.mrf.mxu0
      %v1868 = vadd.f32 0.0, %v1867
      %1869 = vmatmul.bf16.gmra.mxu0 %v1801
      %v1870 = vpop.f32.mrf.mxu0
      %v1871 = vadd.f32 0.0, %v1870
      %v1872 = vpop.f32.mrf.mxu0
      %v1873 = vadd.f32 0.0, %v1872
      %1874 = vmatmul.bf16.gmra.mxu0 %v1804
      %v1875 = vpop.f32.mrf.mxu0
      %v1876 = vadd.f32 0.0, %v1875
      %v1877 = vpop.f32.mrf.mxu0
      %v1878 = vadd.f32 0.0, %v1877
      %1879 = vmatmul.bf16.gmra.mxu0 %v1807
      %v1880 = vpop.f32.mrf.mxu0
      %v1881 = vadd.f32 0.0, %v1880
      %v1882 = vpop.f32.mrf.mxu0
      %v1883 = vadd.f32 0.0, %v1882
      %1884 = vmatmul.bf16.gmra.mxu0 %v1810
      %v1885 = vpop.f32.mrf.mxu0
      %v1886 = vadd.f32 0.0, %v1885
      %v1887 = vpop.f32.mrf.mxu0
      %v1888 = vadd.f32 0.0, %v1887
      %1889 = vmatmul.bf16.gmra.mxu0 %v1813
      %v1890 = vpop.f32.mrf.mxu0
      %v1891 = vadd.f32 0.0, %v1890
      %v1892 = vpop.f32.mrf.mxu0
      %v1893 = vadd.f32 0.0, %v1892
      %1894 = vmatmul.bf16.gmra.mxu0 %v1816
      %v1895 = vpop.f32.mrf.mxu0
      %v1896 = vadd.f32 0.0, %v1895
      %v1897 = vpop.f32.mrf.mxu0
      %v1898 = vadd.f32 0.0, %v1897
      %1899 = vmatmul.bf16.gmra.mxu0 %v1819
      %v1900 = vpop.f32.mrf.mxu0
      %v1901 = vadd.f32 0.0, %v1900
      %v1902 = vpop.f32.mrf.mxu0
      %v1903 = vadd.f32 0.0, %v1902
      %1904 = vmatmul.bf16.gmra.mxu0 %v1822
      %v1905 = vpop.f32.mrf.mxu0
      %v1906 = vadd.f32 0.0, %v1905
      %v1907 = vpop.f32.mrf.mxu0
      %v1908 = vadd.f32 0.0, %v1907
      %1909 = vmatmul.bf16.gmra.mxu0 %v1825
      %v1910 = vpop.f32.mrf.mxu0
      %v1911 = vadd.f32 0.0, %v1910
      %v1912 = vpop.f32.mrf.mxu0
      %v1913 = vadd.f32 0.0, %v1912
      %1914 = vmatmul.bf16.gmra.mxu0 %v1828
      %v1915 = vpop.f32.mrf.mxu0
      %v1916 = vadd.f32 0.0, %v1915
      %v1917 = vpop.f32.mrf.mxu0
      %v1918 = vadd.f32 0.0, %v1917
      %1919 = vmatmul.bf16.gmra.mxu0 %v1831
      %v1920 = vpop.f32.mrf.mxu0
      %v1921 = vadd.f32 0.0, %v1920
      %v1922 = vpop.f32.mrf.mxu0
      %v1923 = vadd.f32 0.0, %v1922
      %1924 = vmatmul.bf16.gmra.mxu0 %v1834
      %v1925 = vpop.f32.mrf.mxu0
      %v1926 = vadd.f32 0.0, %v1925
      %v1927 = vpop.f32.mrf.mxu0
      %v1928 = vadd.f32 0.0, %v1927
      %1929 = vmatmul.bf16.gmra.mxu0 %v1837
      %v1930 = vpop.f32.mrf.mxu0
      %v1931 = vadd.f32 0.0, %v1930
      %v1932 = vpop.f32.mrf.mxu0
      %v1933 = vadd.f32 0.0, %v1932
      %1934 = vmatmul.bf16.gmra.mxu0 %v1840
      %v1935 = vpop.f32.mrf.mxu0
      %v1936 = vadd.f32 0.0, %v1935
      %v1937 = vpop.f32.mrf.mxu0
      %v1938 = vadd.f32 0.0, %v1937
      %1939 = vmatmul.bf16.gmra.mxu0 %v1843
      %v1940 = vpop.f32.mrf.mxu0
      %v1941 = vadd.f32 0.0, %v1940
      %v1942 = vpop.f32.mrf.mxu0
      %v1943 = vadd.f32 0.0, %v1942
      %1944 = vmatmul.bf16.gmra.mxu0 %v1846
      %v1945 = vpop.f32.mrf.mxu0
      %v1946 = vadd.f32 0.0, %v1945
      %v1947 = vpop.f32.mrf.mxu0
      %v1948 = vadd.f32 0.0, %v1947
      %1949 = vdwg.mxu0
      %v1950 = vadd.f32 %v1671, %v1861
      %v1951 = vadd.f32 %v1672, %v1863
      %v1952 = vadd.f32 %v1673, %v1866
      %v1953 = vadd.f32 %v1674, %v1868
      %v1954 = vadd.f32 %v1675, %v1871
      %v1955 = vadd.f32 %v1676, %v1873
      %v1956 = vadd.f32 %v1677, %v1876
      %v1957 = vadd.f32 %v1678, %v1878
      %v1958 = vadd.f32 %v1679, %v1881
      %v1959 = vadd.f32 %v1680, %v1883
      %v1960 = vadd.f32 %v1681, %v1886
      %v1961 = vadd.f32 %v1682, %v1888
      %v1962 = vadd.f32 %v1683, %v1891
      %v1963 = vadd.f32 %v1684, %v1893
      %v1964 = vadd.f32 %v1685, %v1896
      %v1965 = vadd.f32 %v1686, %v1898
      %v1966 = vadd.f32 %v1687, %v1901
      %v1967 = vadd.f32 %v1688, %v1903
      %v1968 = vadd.f32 %v1689, %v1906
      %v1969 = vadd.f32 %v1690, %v1908
      %v1970 = vadd.f32 %v1691, %v1911
      %v1971 = vadd.f32 %v1692, %v1913
      %v1972 = vadd.f32 %v1693, %v1916
      %v1973 = vadd.f32 %v1694, %v1918
      %v1974 = vadd.f32 %v1695, %v1921
      %v1975 = vadd.f32 %v1696, %v1923
      %v1976 = vadd.f32 %v1697, %v1926
      %v1977 = vadd.f32 %v1698, %v1928
      %v1978 = vadd.f32 %v1699, %v1931
      %v1979 = vadd.f32 %v1700, %v1933
      %v1980 = vadd.f32 %v1701, %v1936
      %v1981 = vadd.f32 %v1702, %v1938
      %v1982 = vadd.f32 %v1703, %v1941
      %v1983 = vadd.f32 %v1704, %v1943
      %v1984 = vadd.f32 %v1705, %v1946
      %v1985 = vadd.f32 %v1706, %v1948
      %s1986 = scalar_lea.vmem %s5, 20
      %v1987 = vld [vmem:[%s1986] sm:$0xf]
      %vm1988 = vcmask 1045504
      %v1989 = vrot.slane %v867, 2
      %v1990 = vrot.slane %v868, 2
      %v1991 = vsel %vm1988, %v1989, %v1990
      %v1992 = vrot.slane %v869, 2
      %v1993 = vsel %vm1988, %v1990, %v1992
      %v1994 = vrot.slane %v870, 2
      %v1995 = vsel %vm1988, %v1992, %v1994
      %v1996 = vrot.slane %v871, 2
      %v1997 = vsel %vm1988, %v1994, %v1996
      %v1998 = vrot.slane %v872, 2
      %v1999 = vsel %vm1988, %v1996, %v1998
      %v2000 = vrot.slane %v873, 2
      %v2001 = vsel %vm1988, %v1998, %v2000
      %v2002 = vrot.slane %v874, 2
      %v2003 = vsel %vm1988, %v2000, %v2002
      %v2004 = vrot.slane %v875, 2
      %v2005 = vsel %vm1988, %v2002, %v2004
      %v2006 = vrot.slane %v876, 2
      %v2007 = vsel %vm1988, %v2004, %v2006
      %v2008 = vrot.slane %v877, 2
      %v2009 = vsel %vm1988, %v2006, %v2008
      %v2010 = vrot.slane %v878, 2
      %v2011 = vsel %vm1988, %v2008, %v2010
      %v2012 = vrot.slane %v879, 2
      %v2013 = vsel %vm1988, %v2010, %v2012
      %v2014 = vrot.slane %v880, 2
      %v2015 = vsel %vm1988, %v2012, %v2014
      %v2016 = vrot.slane %v881, 2
      %v2017 = vsel %vm1988, %v2014, %v2016
      %v2018 = vrot.slane %v882, 2
      %v2019 = vsel %vm1988, %v2016, %v2018
      %v2020 = vrot.slane %v883, 2
      %v2021 = vsel %vm1988, %v2018, %v2020
      %v2022 = vrot.slane %v1560, 2
      %v2023 = vsel %vm1988, %v2020, %v2022
      %v2024 = vrot.slane %v1711, 2
      %v2025 = vsel %vm1988, %v2022, %v2024
      %v2027 = vsel %vm1028, %v1991, 0
      %v2030 = vsel %vm1028, %v1993, 0
      %v2033 = vsel %vm1028, %v1995, 0
      %v2036 = vsel %vm1028, %v1997, 0
      %v2039 = vsel %vm1028, %v1999, 0
      %v2042 = vsel %vm1028, %v2001, 0
      %v2045 = vsel %vm1028, %v2003, 0
      %v2048 = vsel %vm1028, %v2005, 0
      %v2051 = vsel %vm1028, %v2007, 0
      %v2054 = vsel %vm1028, %v2009, 0
      %v2057 = vsel %vm1028, %v2011, 0
      %v2060 = vsel %vm1028, %v2013, 0
      %v2063 = vsel %vm1028, %v2015, 0
      %v2066 = vsel %vm1028, %v2017, 0
      %v2069 = vsel %vm1028, %v2019, 0
      %v2072 = vsel %vm1028, %v2021, 0
      %v2075 = vsel %vm1028, %v2023, 0
      %v2078 = vsel %vm1028, %v2025, 0
      %v2081 = vsel %vm1083, %v1987, 0
      %2083 = vmatpush.bf16.msra.mxu0 0
      %2084 = vmatpush.bf16.msra.mxu0 0
      %2085 = vmatpush.bf16.msra.mxu0 0
      %2086 = vmatpush.bf16.msra.mxu0 0
      %2087 = vmatpush.bf16.msra.mxu0 0
      %2088 = vmatpush.bf16.msra.mxu0 0
      %2089 = vmatpush.bf16.msra.mxu0 0
      %2090 = vmatpush.bf16.msra.mxu0 %v2081
      %2091 = vmatmul.bf16.gmra.mxu0 %v2027
      %v2092 = vpop.f32.mrf.mxu0
      %v2093 = vadd.f32 0.0, %v2092
      %v2094 = vpop.f32.mrf.mxu0
      %v2095 = vadd.f32 0.0, %v2094
      %2096 = vmatmul.bf16.gmra.mxu0 %v2030
      %v2097 = vpop.f32.mrf.mxu0
      %v2098 = vadd.f32 0.0, %v2097
      %v2099 = vpop.f32.mrf.mxu0
      %v2100 = vadd.f32 0.0, %v2099
      %2101 = vmatmul.bf16.gmra.mxu0 %v2033
      %v2102 = vpop.f32.mrf.mxu0
      %v2103 = vadd.f32 0.0, %v2102
      %v2104 = vpop.f32.mrf.mxu0
      %v2105 = vadd.f32 0.0, %v2104
      %2106 = vmatmul.bf16.gmra.mxu0 %v2036
      %v2107 = vpop.f32.mrf.mxu0
      %v2108 = vadd.f32 0.0, %v2107
      %v2109 = vpop.f32.mrf.mxu0
      %v2110 = vadd.f32 0.0, %v2109
      %2111 = vmatmul.bf16.gmra.mxu0 %v2039
      %v2112 = vpop.f32.mrf.mxu0
      %v2113 = vadd.f32 0.0, %v2112
      %v2114 = vpop.f32.mrf.mxu0
      %v2115 = vadd.f32 0.0, %v2114
      %2116 = vmatmul.bf16.gmra.mxu0 %v2042
      %v2117 = vpop.f32.mrf.mxu0
      %v2118 = vadd.f32 0.0, %v2117
      %v2119 = vpop.f32.mrf.mxu0
      %v2120 = vadd.f32 0.0, %v2119
      %2121 = vmatmul.bf16.gmra.mxu0 %v2045
      %v2122 = vpop.f32.mrf.mxu0
      %v2123 = vadd.f32 0.0, %v2122
      %v2124 = vpop.f32.mrf.mxu0
      %v2125 = vadd.f32 0.0, %v2124
      %2126 = vmatmul.bf16.gmra.mxu0 %v2048
      %v2127 = vpop.f32.mrf.mxu0
      %v2128 = vadd.f32 0.0, %v2127
      %v2129 = vpop.f32.mrf.mxu0
      %v2130 = vadd.f32 0.0, %v2129
      %2131 = vmatmul.bf16.gmra.mxu0 %v2051
      %v2132 = vpop.f32.mrf.mxu0
      %v2133 = vadd.f32 0.0, %v2132
      %v2134 = vpop.f32.mrf.mxu0
      %v2135 = vadd.f32 0.0, %v2134
      %2136 = vmatmul.bf16.gmra.mxu0 %v2054
      %v2137 = vpop.f32.mrf.mxu0
      %v2138 = vadd.f32 0.0, %v2137
      %v2139 = vpop.f32.mrf.mxu0
      %v2140 = vadd.f32 0.0, %v2139
      %2141 = vmatmul.bf16.gmra.mxu0 %v2057
      %v2142 = vpop.f32.mrf.mxu0
      %v2143 = vadd.f32 0.0, %v2142
      %v2144 = vpop.f32.mrf.mxu0
      %v2145 = vadd.f32 0.0, %v2144
      %2146 = vmatmul.bf16.gmra.mxu0 %v2060
      %v2147 = vpop.f32.mrf.mxu0
      %v2148 = vadd.f32 0.0, %v2147
      %v2149 = vpop.f32.mrf.mxu0
      %v2150 = vadd.f32 0.0, %v2149
      %2151 = vmatmul.bf16.gmra.mxu0 %v2063
      %v2152 = vpop.f32.mrf.mxu0
      %v2153 = vadd.f32 0.0, %v2152
      %v2154 = vpop.f32.mrf.mxu0
      %v2155 = vadd.f32 0.0, %v2154
      %2156 = vmatmul.bf16.gmra.mxu0 %v2066
      %v2157 = vpop.f32.mrf.mxu0
      %v2158 = vadd.f32 0.0, %v2157
      %v2159 = vpop.f32.mrf.mxu0
      %v2160 = vadd.f32 0.0, %v2159
      %2161 = vmatmul.bf16.gmra.mxu0 %v2069
      %v2162 = vpop.f32.mrf.mxu0
      %v2163 = vadd.f32 0.0, %v2162
      %v2164 = vpop.f32.mrf.mxu0
      %v2165 = vadd.f32 0.0, %v2164
      %2166 = vmatmul.bf16.gmra.mxu0 %v2072
      %v2167 = vpop.f32.mrf.mxu0
      %v2168 = vadd.f32 0.0, %v2167
      %v2169 = vpop.f32.mrf.mxu0
      %v2170 = vadd.f32 0.0, %v2169
      %2171 = vmatmul.bf16.gmra.mxu0 %v2075
      %v2172 = vpop.f32.mrf.mxu0
      %v2173 = vadd.f32 0.0, %v2172
      %v2174 = vpop.f32.mrf.mxu0
      %v2175 = vadd.f32 0.0, %v2174
      %2176 = vmatmul.bf16.gmra.mxu0 %v2078
      %v2177 = vpop.f32.mrf.mxu0
      %v2178 = vadd.f32 0.0, %v2177
      %v2179 = vpop.f32.mrf.mxu0
      %v2180 = vadd.f32 0.0, %v2179
      %2181 = vdwg.mxu0
      %v2182 = vadd.f32 %v1950, %v2093
      %v2183 = vadd.f32 %v1951, %v2095
      %v2184 = vadd.f32 %v1952, %v2098
      %v2185 = vadd.f32 %v1953, %v2100
      %v2186 = vadd.f32 %v1954, %v2103
      %v2187 = vadd.f32 %v1955, %v2105
      %v2188 = vadd.f32 %v1956, %v2108
      %v2189 = vadd.f32 %v1957, %v2110
      %v2190 = vadd.f32 %v1958, %v2113
      %v2191 = vadd.f32 %v1959, %v2115
      %v2192 = vadd.f32 %v1960, %v2118
      %v2193 = vadd.f32 %v1961, %v2120
      %v2194 = vadd.f32 %v1962, %v2123
      %v2195 = vadd.f32 %v1963, %v2125
      %v2196 = vadd.f32 %v1964, %v2128
      %v2197 = vadd.f32 %v1965, %v2130
      %v2198 = vadd.f32 %v1966, %v2133
      %v2199 = vadd.f32 %v1967, %v2135
      %v2200 = vadd.f32 %v1968, %v2138
      %v2201 = vadd.f32 %v1969, %v2140
      %v2202 = vadd.f32 %v1970, %v2143
      %v2203 = vadd.f32 %v1971, %v2145
      %v2204 = vadd.f32 %v1972, %v2148
      %v2205 = vadd.f32 %v1973, %v2150
      %v2206 = vadd.f32 %v1974, %v2153
      %v2207 = vadd.f32 %v1975, %v2155
      %v2208 = vadd.f32 %v1976, %v2158
      %v2209 = vadd.f32 %v1977, %v2160
      %v2210 = vadd.f32 %v1978, %v2163
      %v2211 = vadd.f32 %v1979, %v2165
      %v2212 = vadd.f32 %v1980, %v2168
      %v2213 = vadd.f32 %v1981, %v2170
      %v2214 = vadd.f32 %v1982, %v2173
      %v2215 = vadd.f32 %v1983, %v2175
      %v2216 = vadd.f32 %v1984, %v2178
      %v2217 = vadd.f32 %v1985, %v2180
      %s2218 = scalar_lea.vmem %s5, 24
      %v2219 = vld [vmem:[%s2218] sm:$0xf]
      %v2222 = vunpack.c.l.b16 %v789
      %v2223 = vunpack.c.l.b16 %v790
      %v2224 = vpack.c.b16 %v2222, %v1710
      %v2225 = vpack.c.b16 %v2223, %v2223
      %v2226 = vrot.slane %v2224, 2
      %v2227 = vsel %vm1988, %v2022, %v2226
      %v2228 = vrot.slane %v2225, 2
      %v2229 = vsel %vm1988, %v2226, %v2228
      %v2231 = vsel %vm1028, %v2227, 0
      %v2234 = vsel %vm1028, %v2229, 0
      %v2237 = vsel %vm1083, %v2219, 0
      %2239 = vmatpush.bf16.msra.mxu0 0
      %2240 = vmatpush.bf16.msra.mxu0 0
      %2241 = vmatpush.bf16.msra.mxu0 0
      %2242 = vmatpush.bf16.msra.mxu0 0
      %2243 = vmatpush.bf16.msra.mxu0 0
      %2244 = vmatpush.bf16.msra.mxu0 0
      %2245 = vmatpush.bf16.msra.mxu0 0
      %2246 = vmatpush.bf16.msra.mxu0 %v2237
      %2247 = vmatmul.bf16.gmra.mxu0 %v2030
      %v2248 = vpop.f32.mrf.mxu0
      %v2249 = vadd.f32 0.0, %v2248
      %v2250 = vpop.f32.mrf.mxu0
      %v2251 = vadd.f32 0.0, %v2250
      %2252 = vmatmul.bf16.gmra.mxu0 %v2033
      %v2253 = vpop.f32.mrf.mxu0
      %v2254 = vadd.f32 0.0, %v2253
      %v2255 = vpop.f32.mrf.mxu0
      %v2256 = vadd.f32 0.0, %v2255
      %2257 = vmatmul.bf16.gmra.mxu0 %v2036
      %v2258 = vpop.f32.mrf.mxu0
      %v2259 = vadd.f32 0.0, %v2258
      %v2260 = vpop.f32.mrf.mxu0
      %v2261 = vadd.f32 0.0, %v2260
      %2262 = vmatmul.bf16.gmra.mxu0 %v2039
      %v2263 = vpop.f32.mrf.mxu0
      %v2264 = vadd.f32 0.0, %v2263
      %v2265 = vpop.f32.mrf.mxu0
      %v2266 = vadd.f32 0.0, %v2265
      %2267 = vmatmul.bf16.gmra.mxu0 %v2042
      %v2268 = vpop.f32.mrf.mxu0
      %v2269 = vadd.f32 0.0, %v2268
      %v2270 = vpop.f32.mrf.mxu0
      %v2271 = vadd.f32 0.0, %v2270
      %2272 = vmatmul.bf16.gmra.mxu0 %v2045
      %v2273 = vpop.f32.mrf.mxu0
      %v2274 = vadd.f32 0.0, %v2273
      %v2275 = vpop.f32.mrf.mxu0
      %v2276 = vadd.f32 0.0, %v2275
      %2277 = vmatmul.bf16.gmra.mxu0 %v2048
      %v2278 = vpop.f32.mrf.mxu0
      %v2279 = vadd.f32 0.0, %v2278
      %v2280 = vpop.f32.mrf.mxu0
      %v2281 = vadd.f32 0.0, %v2280
      %2282 = vmatmul.bf16.gmra.mxu0 %v2051
      %v2283 = vpop.f32.mrf.mxu0
      %v2284 = vadd.f32 0.0, %v2283
      %v2285 = vpop.f32.mrf.mxu0
      %v2286 = vadd.f32 0.0, %v2285
      %2287 = vmatmul.bf16.gmra.mxu0 %v2054
      %v2288 = vpop.f32.mrf.mxu0
      %v2289 = vadd.f32 0.0, %v2288
      %v2290 = vpop.f32.mrf.mxu0
      %v2291 = vadd.f32 0.0, %v2290
      %2292 = vmatmul.bf16.gmra.mxu0 %v2057
      %v2293 = vpop.f32.mrf.mxu0
      %v2294 = vadd.f32 0.0, %v2293
      %v2295 = vpop.f32.mrf.mxu0
      %v2296 = vadd.f32 0.0, %v2295
      %2297 = vmatmul.bf16.gmra.mxu0 %v2060
      %v2298 = vpop.f32.mrf.mxu0
      %v2299 = vadd.f32 0.0, %v2298
      %v2300 = vpop.f32.mrf.mxu0
      %v2301 = vadd.f32 0.0, %v2300
      %2302 = vmatmul.bf16.gmra.mxu0 %v2063
      %v2303 = vpop.f32.mrf.mxu0
      %v2304 = vadd.f32 0.0, %v2303
      %v2305 = vpop.f32.mrf.mxu0
      %v2306 = vadd.f32 0.0, %v2305
      %2307 = vmatmul.bf16.gmra.mxu0 %v2066
      %v2308 = vpop.f32.mrf.mxu0
      %v2309 = vadd.f32 0.0, %v2308
      %v2310 = vpop.f32.mrf.mxu0
      %v2311 = vadd.f32 0.0, %v2310
      %2312 = vmatmul.bf16.gmra.mxu0 %v2069
      %v2313 = vpop.f32.mrf.mxu0
      %v2314 = vadd.f32 0.0, %v2313
      %v2315 = vpop.f32.mrf.mxu0
      %v2316 = vadd.f32 0.0, %v2315
      %2317 = vmatmul.bf16.gmra.mxu0 %v2072
      %v2318 = vpop.f32.mrf.mxu0
      %v2319 = vadd.f32 0.0, %v2318
      %v2320 = vpop.f32.mrf.mxu0
      %v2321 = vadd.f32 0.0, %v2320
      %2322 = vmatmul.bf16.gmra.mxu0 %v2075
      %v2323 = vpop.f32.mrf.mxu0
      %v2324 = vadd.f32 0.0, %v2323
      %v2325 = vpop.f32.mrf.mxu0
      %v2326 = vadd.f32 0.0, %v2325
      %2327 = vmatmul.bf16.gmra.mxu0 %v2231
      %v2328 = vpop.f32.mrf.mxu0
      %v2329 = vadd.f32 0.0, %v2328
      %v2330 = vpop.f32.mrf.mxu0
      %v2331 = vadd.f32 0.0, %v2330
      %2332 = vmatmul.bf16.gmra.mxu0 %v2234
      %v2333 = vpop.f32.mrf.mxu0
      %v2334 = vadd.f32 0.0, %v2333
      %v2335 = vpop.f32.mrf.mxu0
      %v2336 = vadd.f32 0.0, %v2335
      %2337 = vdwg.mxu0
      %v2338 = vadd.f32 %v2182, %v2249
      %v2339 = vadd.f32 %v2183, %v2251
      %v2340 = vadd.f32 %v2184, %v2254
      %v2341 = vadd.f32 %v2185, %v2256
      %v2342 = vadd.f32 %v2186, %v2259
      %v2343 = vadd.f32 %v2187, %v2261
      %v2344 = vadd.f32 %v2188, %v2264
      %v2345 = vadd.f32 %v2189, %v2266
      %v2346 = vadd.f32 %v2190, %v2269
      %v2347 = vadd.f32 %v2191, %v2271
      %v2348 = vadd.f32 %v2192, %v2274
      %v2349 = vadd.f32 %v2193, %v2276
      %v2350 = vadd.f32 %v2194, %v2279
      %v2351 = vadd.f32 %v2195, %v2281
      %v2352 = vadd.f32 %v2196, %v2284
      %v2353 = vadd.f32 %v2197, %v2286
      %v2354 = vadd.f32 %v2198, %v2289
      %v2355 = vadd.f32 %v2199, %v2291
      %v2356 = vadd.f32 %v2200, %v2294
      %v2357 = vadd.f32 %v2201, %v2296
      %v2358 = vadd.f32 %v2202, %v2299
      %v2359 = vadd.f32 %v2203, %v2301
      %v2360 = vadd.f32 %v2204, %v2304
      %v2361 = vadd.f32 %v2205, %v2306
      %v2362 = vadd.f32 %v2206, %v2309
      %v2363 = vadd.f32 %v2207, %v2311
      %v2364 = vadd.f32 %v2208, %v2314
      %v2365 = vadd.f32 %v2209, %v2316
      %v2366 = vadd.f32 %v2210, %v2319
      %v2367 = vadd.f32 %v2211, %v2321
      %v2368 = vadd.f32 %v2212, %v2324
      %v2369 = vadd.f32 %v2213, %v2326
      %v2370 = vadd.f32 %v2214, %v2329
      %v2371 = vadd.f32 %v2215, %v2331
      %v2372 = vadd.f32 %v2216, %v2334
      %v2373 = vadd.f32 %v2217, %v2336
      %s2374 = scalar_lea.vmem %s5, 28
      %v2375 = vld [vmem:[%s2374] sm:$0xf]
      %vm2376 = vsmask.f32 5376
      %v2377 = vrot.slane %v905, 2
      %v2378 = vrot.slane %v901, 3
      %v2379 = vor.u32 %v2377, %v2378
      %v2380 = vrot.slane %v913, 2
      %v2381 = vrot.slane %v909, 3
      %v2382 = vor.u32 %v2380, %v2381
      %v2383 = vsel %vm2376, %v2379, %v2382
      %v2384 = vrot.slane %v921, 2
      %v2385 = vrot.slane %v917, 3
      %v2386 = vor.u32 %v2384, %v2385
      %v2387 = vsel %vm2376, %v2382, %v2386
      %v2388 = vrot.slane %v929, 2
      %v2389 = vrot.slane %v925, 3
      %v2390 = vor.u32 %v2388, %v2389
      %v2391 = vsel %vm2376, %v2386, %v2390
      %v2392 = vrot.slane %v937, 2
      %v2393 = vrot.slane %v933, 3
      %v2394 = vor.u32 %v2392, %v2393
      %v2395 = vsel %vm2376, %v2390, %v2394
      %v2396 = vrot.slane %v945, 2
      %v2397 = vrot.slane %v941, 3
      %v2398 = vor.u32 %v2396, %v2397
      %v2399 = vsel %vm2376, %v2394, %v2398
      %v2400 = vrot.slane %v953, 2
      %v2401 = vrot.slane %v949, 3
      %v2402 = vor.u32 %v2400, %v2401
      %v2403 = vsel %vm2376, %v2398, %v2402
      %v2404 = vrot.slane %v961, 2
      %v2405 = vrot.slane %v957, 3
      %v2406 = vor.u32 %v2404, %v2405
      %v2407 = vsel %vm2376, %v2402, %v2406
      %v2408 = vrot.slane %v969, 2
      %v2409 = vrot.slane %v965, 3
      %v2410 = vor.u32 %v2408, %v2409
      %v2411 = vsel %vm2376, %v2406, %v2410
      %v2412 = vrot.slane %v977, 2
      %v2413 = vrot.slane %v973, 3
      %v2414 = vor.u32 %v2412, %v2413
      %v2415 = vsel %vm2376, %v2410, %v2414
      %v2416 = vrot.slane %v985, 2
      %v2417 = vrot.slane %v981, 3
      %v2418 = vor.u32 %v2416, %v2417
      %v2419 = vsel %vm2376, %v2414, %v2418
      %v2420 = vrot.slane %v993, 2
      %v2421 = vrot.slane %v989, 3
      %v2422 = vor.u32 %v2420, %v2421
      %v2423 = vsel %vm2376, %v2418, %v2422
      %v2424 = vrot.slane %v1001, 2
      %v2425 = vrot.slane %v997, 3
      %v2426 = vor.u32 %v2424, %v2425
      %v2427 = vsel %vm2376, %v2422, %v2426
      %v2428 = vrot.slane %v1009, 2
      %v2429 = vrot.slane %v1005, 3
      %v2430 = vor.u32 %v2428, %v2429
      %v2431 = vsel %vm2376, %v2426, %v2430
      %v2432 = vrot.slane %v1017, 2
      %v2433 = vrot.slane %v1013, 3
      %v2434 = vor.u32 %v2432, %v2433
      %v2435 = vsel %vm2376, %v2430, %v2434
      %v2436 = vrot.slane %v1025, 2
      %v2437 = vrot.slane %v1021, 3
      %v2438 = vor.u32 %v2436, %v2437
      %v2439 = vsel %vm2376, %v2434, %v2438
      %v2440 = vrot.slane %v1781, 2
      %v2441 = vrot.slane %v1784, 3
      %v2442 = vor.u32 %v2440, %v2441
      %v2443 = vsel %vm2376, %v2438, %v2442
      %v2445 = vshrl.u32 %v2224, 16
      %v2447 = vrot.slane %v2445, 2
      %v2448 = vshll.u32 %v2224, 16
      %v2450 = vrot.slane %v2448, 3
      %v2451 = vor.u32 %v2447, %v2450
      %v2452 = vsel %vm2376, %v2442, %v2451
      %v2454 = vshrl.u32 %v2225, 16
      %v2456 = vrot.slane %v2454, 2
      %v2457 = vshll.u32 %v2225, 16
      %v2459 = vrot.slane %v2457, 3
      %v2460 = vor.u32 %v2456, %v2459
      %v2461 = vsel %vm2376, %v2451, %v2460
      %v2463 = vsel %vm1028, %v2383, 0
      %v2466 = vsel %vm1028, %v2387, 0
      %v2469 = vsel %vm1028, %v2391, 0
      %v2472 = vsel %vm1028, %v2395, 0
      %v2475 = vsel %vm1028, %v2399, 0
      %v2478 = vsel %vm1028, %v2403, 0
      %v2481 = vsel %vm1028, %v2407, 0
      %v2484 = vsel %vm1028, %v2411, 0
      %v2487 = vsel %vm1028, %v2415, 0
      %v2490 = vsel %vm1028, %v2419, 0
      %v2493 = vsel %vm1028, %v2423, 0
      %v2496 = vsel %vm1028, %v2427, 0
      %v2499 = vsel %vm1028, %v2431, 0
      %v2502 = vsel %vm1028, %v2435, 0
      %v2505 = vsel %vm1028, %v2439, 0
      %v2508 = vsel %vm1028, %v2443, 0
      %v2511 = vsel %vm1028, %v2452, 0
      %v2514 = vsel %vm1028, %v2461, 0
      %v2517 = vsel %vm1083, %v2375, 0
      %2519 = vmatpush.bf16.msra.mxu0 0
      %2520 = vmatpush.bf16.msra.mxu0 0
      %2521 = vmatpush.bf16.msra.mxu0 0
      %2522 = vmatpush.bf16.msra.mxu0 0
      %2523 = vmatpush.bf16.msra.mxu0 0
      %2524 = vmatpush.bf16.msra.mxu0 0
      %2525 = vmatpush.bf16.msra.mxu0 0
      %2526 = vmatpush.bf16.msra.mxu0 %v2517
      %2527 = vmatmul.bf16.gmra.mxu0 %v2463
      %v2528 = vpop.f32.mrf.mxu0
      %v2529 = vadd.f32 0.0, %v2528
      %v2530 = vpop.f32.mrf.mxu0
      %v2531 = vadd.f32 0.0, %v2530
      %2532 = vmatmul.bf16.gmra.mxu0 %v2466
      %v2533 = vpop.f32.mrf.mxu0
      %v2534 = vadd.f32 0.0, %v2533
      %v2535 = vpop.f32.mrf.mxu0
      %v2536 = vadd.f32 0.0, %v2535
      %2537 = vmatmul.bf16.gmra.mxu0 %v2469
      %v2538 = vpop.f32.mrf.mxu0
      %v2539 = vadd.f32 0.0, %v2538
      %v2540 = vpop.f32.mrf.mxu0
      %v2541 = vadd.f32 0.0, %v2540
      %2542 = vmatmul.bf16.gmra.mxu0 %v2472
      %v2543 = vpop.f32.mrf.mxu0
      %v2544 = vadd.f32 0.0, %v2543
      %v2545 = vpop.f32.mrf.mxu0
      %v2546 = vadd.f32 0.0, %v2545
      %2547 = vmatmul.bf16.gmra.mxu0 %v2475
      %v2548 = vpop.f32.mrf.mxu0
      %v2549 = vadd.f32 0.0, %v2548
      %v2550 = vpop.f32.mrf.mxu0
      %v2551 = vadd.f32 0.0, %v2550
      %2552 = vmatmul.bf16.gmra.mxu0 %v2478
      %v2553 = vpop.f32.mrf.mxu0
      %v2554 = vadd.f32 0.0, %v2553
      %v2555 = vpop.f32.mrf.mxu0
      %v2556 = vadd.f32 0.0, %v2555
      %2557 = vmatmul.bf16.gmra.mxu0 %v2481
      %v2558 = vpop.f32.mrf.mxu0
      %v2559 = vadd.f32 0.0, %v2558
      %v2560 = vpop.f32.mrf.mxu0
      %v2561 = vadd.f32 0.0, %v2560
      %2562 = vmatmul.bf16.gmra.mxu0 %v2484
      %v2563 = vpop.f32.mrf.mxu0
      %v2564 = vadd.f32 0.0, %v2563
      %v2565 = vpop.f32.mrf.mxu0
      %v2566 = vadd.f32 0.0, %v2565
      %2567 = vmatmul.bf16.gmra.mxu0 %v2487
      %v2568 = vpop.f32.mrf.mxu0
      %v2569 = vadd.f32 0.0, %v2568
      %v2570 = vpop.f32.mrf.mxu0
      %v2571 = vadd.f32 0.0, %v2570
      %2572 = vmatmul.bf16.gmra.mxu0 %v2490
      %v2573 = vpop.f32.mrf.mxu0
      %v2574 = vadd.f32 0.0, %v2573
      %v2575 = vpop.f32.mrf.mxu0
      %v2576 = vadd.f32 0.0, %v2575
      %2577 = vmatmul.bf16.gmra.mxu0 %v2493
      %v2578 = vpop.f32.mrf.mxu0
      %v2579 = vadd.f32 0.0, %v2578
      %v2580 = vpop.f32.mrf.mxu0
      %v2581 = vadd.f32 0.0, %v2580
      %2582 = vmatmul.bf16.gmra.mxu0 %v2496
      %v2583 = vpop.f32.mrf.mxu0
      %v2584 = vadd.f32 0.0, %v2583
      %v2585 = vpop.f32.mrf.mxu0
      %v2586 = vadd.f32 0.0, %v2585
      %2587 = vmatmul.bf16.gmra.mxu0 %v2499
      %v2588 = vpop.f32.mrf.mxu0
      %v2589 = vadd.f32 0.0, %v2588
      %v2590 = vpop.f32.mrf.mxu0
      %v2591 = vadd.f32 0.0, %v2590
      %2592 = vmatmul.bf16.gmra.mxu0 %v2502
      %v2593 = vpop.f32.mrf.mxu0
      %v2594 = vadd.f32 0.0, %v2593
      %v2595 = vpop.f32.mrf.mxu0
      %v2596 = vadd.f32 0.0, %v2595
      %2597 = vmatmul.bf16.gmra.mxu0 %v2505
      %v2598 = vpop.f32.mrf.mxu0
      %v2599 = vadd.f32 0.0, %v2598
      %v2600 = vpop.f32.mrf.mxu0
      %v2601 = vadd.f32 0.0, %v2600
      %2602 = vmatmul.bf16.gmra.mxu0 %v2508
      %v2603 = vpop.f32.mrf.mxu0
      %v2604 = vadd.f32 0.0, %v2603
      %v2605 = vpop.f32.mrf.mxu0
      %v2606 = vadd.f32 0.0, %v2605
      %2607 = vmatmul.bf16.gmra.mxu0 %v2511
      %v2608 = vpop.f32.mrf.mxu0
      %v2609 = vadd.f32 0.0, %v2608
      %v2610 = vpop.f32.mrf.mxu0
      %v2611 = vadd.f32 0.0, %v2610
      %2612 = vmatmul.bf16.gmra.mxu0 %v2514
      %v2613 = vpop.f32.mrf.mxu0
      %v2614 = vadd.f32 0.0, %v2613
      %v2615 = vpop.f32.mrf.mxu0
      %v2616 = vadd.f32 0.0, %v2615
      %2617 = vdwg.mxu0
      %v2618 = vadd.f32 %v2338, %v2529
      %v2619 = vadd.f32 %v2339, %v2531
      %v2620 = vadd.f32 %v2340, %v2534
      %v2621 = vadd.f32 %v2341, %v2536
      %v2622 = vadd.f32 %v2342, %v2539
      %v2623 = vadd.f32 %v2343, %v2541
      %v2624 = vadd.f32 %v2344, %v2544
      %v2625 = vadd.f32 %v2345, %v2546
      %v2626 = vadd.f32 %v2346, %v2549
      %v2627 = vadd.f32 %v2347, %v2551
      %v2628 = vadd.f32 %v2348, %v2554
      %v2629 = vadd.f32 %v2349, %v2556
      %v2630 = vadd.f32 %v2350, %v2559
      %v2631 = vadd.f32 %v2351, %v2561
      %v2632 = vadd.f32 %v2352, %v2564
      %v2633 = vadd.f32 %v2353, %v2566
      %v2634 = vadd.f32 %v2354, %v2569
      %v2635 = vadd.f32 %v2355, %v2571
      %v2636 = vadd.f32 %v2356, %v2574
      %v2637 = vadd.f32 %v2357, %v2576
      %v2638 = vadd.f32 %v2358, %v2579
      %v2639 = vadd.f32 %v2359, %v2581
      %v2640 = vadd.f32 %v2360, %v2584
      %v2641 = vadd.f32 %v2361, %v2586
      %v2642 = vadd.f32 %v2362, %v2589
      %v2643 = vadd.f32 %v2363, %v2591
      %v2644 = vadd.f32 %v2364, %v2594
      %v2645 = vadd.f32 %v2365, %v2596
      %v2646 = vadd.f32 %v2366, %v2599
      %v2647 = vadd.f32 %v2367, %v2601
      %v2648 = vadd.f32 %v2368, %v2604
      %v2649 = vadd.f32 %v2369, %v2606
      %v2650 = vadd.f32 %v2370, %v2609
      %v2651 = vadd.f32 %v2371, %v2611
      %v2652 = vadd.f32 %v2372, %v2614
      %v2653 = vadd.f32 %v2373, %v2616
      %s2654 = scalar_lea.vmem %s5, 32
      %v2655 = vld [vmem:[%s2654] sm:$0xf]
      %vm2656 = vcmask 1044480
      %v2657 = vrot.slane %v868, 3
      %v2658 = vrot.slane %v869, 3
      %v2659 = vsel %vm2656, %v2657, %v2658
      %v2660 = vrot.slane %v870, 3
      %v2661 = vsel %vm2656, %v2658, %v2660
      %v2662 = vrot.slane %v871, 3
      %v2663 = vsel %vm2656, %v2660, %v2662
      %v2664 = vrot.slane %v872, 3
      %v2665 = vsel %vm2656, %v2662, %v2664
      %v2666 = vrot.slane %v873, 3
      %v2667 = vsel %vm2656, %v2664, %v2666
      %v2668 = vrot.slane %v874, 3
      %v2669 = vsel %vm2656, %v2666, %v2668
      %v2670 = vrot.slane %v875, 3
      %v2671 = vsel %vm2656, %v2668, %v2670
      %v2672 = vrot.slane %v876, 3
      %v2673 = vsel %vm2656, %v2670, %v2672
      %v2674 = vrot.slane %v877, 3
      %v2675 = vsel %vm2656, %v2672, %v2674
      %v2676 = vrot.slane %v878, 3
      %v2677 = vsel %vm2656, %v2674, %v2676
      %v2678 = vrot.slane %v879, 3
      %v2679 = vsel %vm2656, %v2676, %v2678
      %v2680 = vrot.slane %v880, 3
      %v2681 = vsel %vm2656, %v2678, %v2680
      %v2682 = vrot.slane %v881, 3
      %v2683 = vsel %vm2656, %v2680, %v2682
      %v2684 = vrot.slane %v882, 3
      %v2685 = vsel %vm2656, %v2682, %v2684
      %v2686 = vrot.slane %v883, 3
      %v2687 = vsel %vm2656, %v2684, %v2686
      %v2688 = vrot.slane %v1560, 3
      %v2689 = vsel %vm2656, %v2686, %v2688
      %v2690 = vrot.slane %v2224, 3
      %v2691 = vsel %vm2656, %v2688, %v2690
      %v2692 = vrot.slane %v2225, 3
      %v2693 = vsel %vm2656, %v2690, %v2692
      %v2695 = vsel %vm1028, %v2659, 0
      %v2698 = vsel %vm1028, %v2661, 0
      %v2701 = vsel %vm1028, %v2663, 0
      %v2704 = vsel %vm1028, %v2665, 0
      %v2707 = vsel %vm1028, %v2667, 0
      %v2710 = vsel %vm1028, %v2669, 0
      %v2713 = vsel %vm1028, %v2671, 0
      %v2716 = vsel %vm1028, %v2673, 0
      %v2719 = vsel %vm1028, %v2675, 0
      %v2722 = vsel %vm1028, %v2677, 0
      %v2725 = vsel %vm1028, %v2679, 0
      %v2728 = vsel %vm1028, %v2681, 0
      %v2731 = vsel %vm1028, %v2683, 0
      %v2734 = vsel %vm1028, %v2685, 0
      %v2737 = vsel %vm1028, %v2687, 0
      %v2740 = vsel %vm1028, %v2689, 0
      %v2743 = vsel %vm1028, %v2691, 0
      %v2746 = vsel %vm1028, %v2693, 0
      %v2749 = vsel %vm1083, %v2655, 0
      %2751 = vmatpush.bf16.msra.mxu0 0
      %2752 = vmatpush.bf16.msra.mxu0 0
      %2753 = vmatpush.bf16.msra.mxu0 0
      %2754 = vmatpush.bf16.msra.mxu0 0
      %2755 = vmatpush.bf16.msra.mxu0 0
      %2756 = vmatpush.bf16.msra.mxu0 0
      %2757 = vmatpush.bf16.msra.mxu0 0
      %2758 = vmatpush.bf16.msra.mxu0 %v2749
      %2759 = vmatmul.bf16.gmra.mxu0 %v2695
      %v2760 = vpop.f32.mrf.mxu0
      %v2761 = vadd.f32 0.0, %v2760
      %v2762 = vpop.f32.mrf.mxu0
      %v2763 = vadd.f32 0.0, %v2762
      %2764 = vmatmul.bf16.gmra.mxu0 %v2698
      %v2765 = vpop.f32.mrf.mxu0
      %v2766 = vadd.f32 0.0, %v2765
      %v2767 = vpop.f32.mrf.mxu0
      %v2768 = vadd.f32 0.0, %v2767
      %2769 = vmatmul.bf16.gmra.mxu0 %v2701
      %v2770 = vpop.f32.mrf.mxu0
      %v2771 = vadd.f32 0.0, %v2770
      %v2772 = vpop.f32.mrf.mxu0
      %v2773 = vadd.f32 0.0, %v2772
      %2774 = vmatmul.bf16.gmra.mxu0 %v2704
      %v2775 = vpop.f32.mrf.mxu0
      %v2776 = vadd.f32 0.0, %v2775
      %v2777 = vpop.f32.mrf.mxu0
      %v2778 = vadd.f32 0.0, %v2777
      %2779 = vmatmul.bf16.gmra.mxu0 %v2707
      %v2780 = vpop.f32.mrf.mxu0
      %v2781 = vadd.f32 0.0, %v2780
      %v2782 = vpop.f32.mrf.mxu0
      %v2783 = vadd.f32 0.0, %v2782
      %2784 = vmatmul.bf16.gmra.mxu0 %v2710
      %v2785 = vpop.f32.mrf.mxu0
      %v2786 = vadd.f32 0.0, %v2785
      %v2787 = vpop.f32.mrf.mxu0
      %v2788 = vadd.f32 0.0, %v2787
      %2789 = vmatmul.bf16.gmra.mxu0 %v2713
      %v2790 = vpop.f32.mrf.mxu0
      %v2791 = vadd.f32 0.0, %v2790
      %v2792 = vpop.f32.mrf.mxu0
      %v2793 = vadd.f32 0.0, %v2792
      %2794 = vmatmul.bf16.gmra.mxu0 %v2716
      %v2795 = vpop.f32.mrf.mxu0
      %v2796 = vadd.f32 0.0, %v2795
      %v2797 = vpop.f32.mrf.mxu0
      %v2798 = vadd.f32 0.0, %v2797
      %2799 = vmatmul.bf16.gmra.mxu0 %v2719
      %v2800 = vpop.f32.mrf.mxu0
      %v2801 = vadd.f32 0.0, %v2800
      %v2802 = vpop.f32.mrf.mxu0
      %v2803 = vadd.f32 0.0, %v2802
      %2804 = vmatmul.bf16.gmra.mxu0 %v2722
      %v2805 = vpop.f32.mrf.mxu0
      %v2806 = vadd.f32 0.0, %v2805
      %v2807 = vpop.f32.mrf.mxu0
      %v2808 = vadd.f32 0.0, %v2807
      %2809 = vmatmul.bf16.gmra.mxu0 %v2725
      %v2810 = vpop.f32.mrf.mxu0
      %v2811 = vadd.f32 0.0, %v2810
      %v2812 = vpop.f32.mrf.mxu0
      %v2813 = vadd.f32 0.0, %v2812
      %2814 = vmatmul.bf16.gmra.mxu0 %v2728
      %v2815 = vpop.f32.mrf.mxu0
      %v2816 = vadd.f32 0.0, %v2815
      %v2817 = vpop.f32.mrf.mxu0
      %v2818 = vadd.f32 0.0, %v2817
      %2819 = vmatmul.bf16.gmra.mxu0 %v2731
      %v2820 = vpop.f32.mrf.mxu0
      %v2821 = vadd.f32 0.0, %v2820
      %v2822 = vpop.f32.mrf.mxu0
      %v2823 = vadd.f32 0.0, %v2822
      %2824 = vmatmul.bf16.gmra.mxu0 %v2734
      %v2825 = vpop.f32.mrf.mxu0
      %v2826 = vadd.f32 0.0, %v2825
      %v2827 = vpop.f32.mrf.mxu0
      %v2828 = vadd.f32 0.0, %v2827
      %2829 = vmatmul.bf16.gmra.mxu0 %v2737
      %v2830 = vpop.f32.mrf.mxu0
      %v2831 = vadd.f32 0.0, %v2830
      %v2832 = vpop.f32.mrf.mxu0
      %v2833 = vadd.f32 0.0, %v2832
      %2834 = vmatmul.bf16.gmra.mxu0 %v2740
      %v2835 = vpop.f32.mrf.mxu0
      %v2836 = vadd.f32 0.0, %v2835
      %v2837 = vpop.f32.mrf.mxu0
      %v2838 = vadd.f32 0.0, %v2837
      %2839 = vmatmul.bf16.gmra.mxu0 %v2743
      %v2840 = vpop.f32.mrf.mxu0
      %v2841 = vadd.f32 0.0, %v2840
      %v2842 = vpop.f32.mrf.mxu0
      %v2843 = vadd.f32 0.0, %v2842
      %2844 = vmatmul.bf16.gmra.mxu0 %v2746
      %v2845 = vpop.f32.mrf.mxu0
      %v2846 = vadd.f32 0.0, %v2845
      %v2847 = vpop.f32.mrf.mxu0
      %v2848 = vadd.f32 0.0, %v2847
      %2849 = vdwg.mxu0
      %v2850 = vadd.f32 %v2618, %v2761
      %v2851 = vadd.f32 %v2619, %v2763
      %v2852 = vadd.f32 %v2620, %v2766
      %v2853 = vadd.f32 %v2621, %v2768
      %v2854 = vadd.f32 %v2622, %v2771
      %v2855 = vadd.f32 %v2623, %v2773
      %v2856 = vadd.f32 %v2624, %v2776
      %v2857 = vadd.f32 %v2625, %v2778
      %v2858 = vadd.f32 %v2626, %v2781
      %v2859 = vadd.f32 %v2627, %v2783
      %v2860 = vadd.f32 %v2628, %v2786
      %v2861 = vadd.f32 %v2629, %v2788
      %v2862 = vadd.f32 %v2630, %v2791
      %v2863 = vadd.f32 %v2631, %v2793
      %v2864 = vadd.f32 %v2632, %v2796
      %v2865 = vadd.f32 %v2633, %v2798
      %v2866 = vadd.f32 %v2634, %v2801
      %v2867 = vadd.f32 %v2635, %v2803
      %v2868 = vadd.f32 %v2636, %v2806
      %v2869 = vadd.f32 %v2637, %v2808
      %v2870 = vadd.f32 %v2638, %v2811
      %v2871 = vadd.f32 %v2639, %v2813
      %v2872 = vadd.f32 %v2640, %v2816
      %v2873 = vadd.f32 %v2641, %v2818
      %v2874 = vadd.f32 %v2642, %v2821
      %v2875 = vadd.f32 %v2643, %v2823
      %v2876 = vadd.f32 %v2644, %v2826
      %v2877 = vadd.f32 %v2645, %v2828
      %v2878 = vadd.f32 %v2646, %v2831
      %v2879 = vadd.f32 %v2647, %v2833
      %v2880 = vadd.f32 %v2648, %v2836
      %v2881 = vadd.f32 %v2649, %v2838
      %v2882 = vadd.f32 %v2650, %v2841
      %v2883 = vadd.f32 %v2651, %v2843
      %v2884 = vadd.f32 %v2652, %v2846
      %v2885 = vadd.f32 %v2653, %v2848
      %v2886 = vld [vmem:[%s2] sm:$0xff]
      %v2887 = vld [vmem:[%s2 + $0x8] sm:$0xff]
      %v2888 = vld [vmem:[%s2 + $0x10] sm:$0xff]
      %v2889 = vld [vmem:[%s2 + $0x18] sm:$0xff]
      %v2890 = vld [vmem:[%s2 + $0x20] sm:$0xff]
      %v2891 = vld [vmem:[%s2 + $0x28] sm:$0xff]
      %v2892 = vld [vmem:[%s2 + $0x30] sm:$0xff]
      %v2893 = vld [vmem:[%s2 + $0x38] sm:$0xff]
      %v2894 = vld [vmem:[%s2 + $0x40] sm:$0xff]
      %v2895 = vld [vmem:[%s2 + $0x48] sm:$0xff]
      %v2896 = vld [vmem:[%s2 + $0x50] sm:$0xff]
      %v2897 = vld [vmem:[%s2 + $0x58] sm:$0xff]
      %v2898 = vld [vmem:[%s2 + $0x60] sm:$0xff]
      %v2899 = vld [vmem:[%s2 + $0x68] sm:$0xff]
      %v2900 = vld [vmem:[%s2 + $0x70] sm:$0xff]
      %v2901 = vld [vmem:[%s2 + $0x78] sm:$0xff]
      %v2902 = vld [vmem:[%s2 + $0x80] sm:$0xff]
      %v2903 = vld [vmem:[%s2 + $0x88] sm:$0xff]
      %v2904 = vld [vmem:[%s2 + $0x90] sm:$0xff]
      %v2905 = vld [vmem:[%s2 + $0x98] sm:$0xff]
      %v2906 = vld [vmem:[%s2 + $0xa0] sm:$0xff]
      %v2907 = vld [vmem:[%s2 + $0xa8] sm:$0xff]
      %v2908 = vld [vmem:[%s2 + $0xb0] sm:$0xff]
      %v2909 = vld [vmem:[%s2 + $0xb8] sm:$0xff]
      %v2910 = vld [vmem:[%s2 + $0xc0] sm:$0xff]
      %v2911 = vld [vmem:[%s2 + $0xc8] sm:$0xff]
      %v2912 = vld [vmem:[%s2 + $0xd0] sm:$0xff]
      %v2913 = vld [vmem:[%s2 + $0xd8] sm:$0xff]
      %v2914 = vld [vmem:[%s2 + $0xe0] sm:$0xff]
      %v2915 = vld [vmem:[%s2 + $0xe8] sm:$0xff]
      %v2916 = vld [vmem:[%s2 + $0xf0] sm:$0xff]
      %v2917 = vld [vmem:[%s2 + $0xf8] sm:$0xff]
      %v2918 = vld [vmem:[%s2 + $0x100] sm:$0xff]
      %v2919 = vld [vmem:[%s2 + $0x108] sm:$0xff]
      %v2920 = vld [vmem:[%s2 + $0x110] sm:$0xff]
      %v2921 = vld [vmem:[%s2 + $0x118] sm:$0x3f]
      %2923 = vset.pattern.permute.xlu0 0
      %2924 = vperm.xlu0 %2923, %v2886
      %v2925 = vpop.permute.xlu0 %2924
      %2928 = vset.pattern.permute.xlu0 0
      %2929 = vperm.xlu0 %2928, %v2887
      %v2930 = vpop.permute.xlu0 %2929
      %2933 = vset.pattern.permute.xlu0 0
      %2934 = vperm.xlu0 %2933, %v2888
      %v2935 = vpop.permute.xlu0 %2934
      %2938 = vset.pattern.permute.xlu0 0
      %2939 = vperm.xlu0 %2938, %v2889
      %v2940 = vpop.permute.xlu0 %2939
      %2943 = vset.pattern.permute.xlu0 0
      %2944 = vperm.xlu0 %2943, %v2890
      %v2945 = vpop.permute.xlu0 %2944
      %2948 = vset.pattern.permute.xlu0 0
      %2949 = vperm.xlu0 %2948, %v2891
      %v2950 = vpop.permute.xlu0 %2949
      %2953 = vset.pattern.permute.xlu0 0
      %2954 = vperm.xlu0 %2953, %v2892
      %v2955 = vpop.permute.xlu0 %2954
      %2958 = vset.pattern.permute.xlu0 0
      %2959 = vperm.xlu0 %2958, %v2893
      %v2960 = vpop.permute.xlu0 %2959
      %2963 = vset.pattern.permute.xlu0 0
      %2964 = vperm.xlu0 %2963, %v2894
      %v2965 = vpop.permute.xlu0 %2964
      %2968 = vset.pattern.permute.xlu0 0
      %2969 = vperm.xlu0 %2968, %v2895
      %v2970 = vpop.permute.xlu0 %2969
      %2973 = vset.pattern.permute.xlu0 0
      %2974 = vperm.xlu0 %2973, %v2896
      %v2975 = vpop.permute.xlu0 %2974
      %2978 = vset.pattern.permute.xlu0 0
      %2979 = vperm.xlu0 %2978, %v2897
      %v2980 = vpop.permute.xlu0 %2979
      %2983 = vset.pattern.permute.xlu0 0
      %2984 = vperm.xlu0 %2983, %v2898
      %v2985 = vpop.permute.xlu0 %2984
      %2988 = vset.pattern.permute.xlu0 0
      %2989 = vperm.xlu0 %2988, %v2899
      %v2990 = vpop.permute.xlu0 %2989
      %2993 = vset.pattern.permute.xlu0 0
      %2994 = vperm.xlu0 %2993, %v2900
      %v2995 = vpop.permute.xlu0 %2994
      %2998 = vset.pattern.permute.xlu0 0
      %2999 = vperm.xlu0 %2998, %v2901
      %v3000 = vpop.permute.xlu0 %2999
      %3003 = vset.pattern.permute.xlu0 0
      %3004 = vperm.xlu0 %3003, %v2902
      %v3005 = vpop.permute.xlu0 %3004
      %3008 = vset.pattern.permute.xlu0 0
      %3009 = vperm.xlu0 %3008, %v2903
      %v3010 = vpop.permute.xlu0 %3009
      %3013 = vset.pattern.permute.xlu0 0
      %3014 = vperm.xlu0 %3013, %v2904
      %v3015 = vpop.permute.xlu0 %3014
      %3018 = vset.pattern.permute.xlu0 0
      %3019 = vperm.xlu0 %3018, %v2905
      %v3020 = vpop.permute.xlu0 %3019
      %3023 = vset.pattern.permute.xlu0 0
      %3024 = vperm.xlu0 %3023, %v2906
      %v3025 = vpop.permute.xlu0 %3024
      %3028 = vset.pattern.permute.xlu0 0
      %3029 = vperm.xlu0 %3028, %v2907
      %v3030 = vpop.permute.xlu0 %3029
      %3033 = vset.pattern.permute.xlu0 0
      %3034 = vperm.xlu0 %3033, %v2908
      %v3035 = vpop.permute.xlu0 %3034
      %3038 = vset.pattern.permute.xlu0 0
      %3039 = vperm.xlu0 %3038, %v2909
      %v3040 = vpop.permute.xlu0 %3039
      %3043 = vset.pattern.permute.xlu0 0
      %3044 = vperm.xlu0 %3043, %v2910
      %v3045 = vpop.permute.xlu0 %3044
      %3048 = vset.pattern.permute.xlu0 0
      %3049 = vperm.xlu0 %3048, %v2911
      %v3050 = vpop.permute.xlu0 %3049
      %3053 = vset.pattern.permute.xlu0 0
      %3054 = vperm.xlu0 %3053, %v2912
      %v3055 = vpop.permute.xlu0 %3054
      %3058 = vset.pattern.permute.xlu0 0
      %3059 = vperm.xlu0 %3058, %v2913
      %v3060 = vpop.permute.xlu0 %3059
      %3063 = vset.pattern.permute.xlu0 0
      %3064 = vperm.xlu0 %3063, %v2914
      %v3065 = vpop.permute.xlu0 %3064
      %3068 = vset.pattern.permute.xlu0 0
      %3069 = vperm.xlu0 %3068, %v2915
      %v3070 = vpop.permute.xlu0 %3069
      %3073 = vset.pattern.permute.xlu0 0
      %3074 = vperm.xlu0 %3073, %v2916
      %v3075 = vpop.permute.xlu0 %3074
      %3078 = vset.pattern.permute.xlu0 0
      %3079 = vperm.xlu0 %3078, %v2917
      %v3080 = vpop.permute.xlu0 %3079
      %3083 = vset.pattern.permute.xlu0 0
      %3084 = vperm.xlu0 %3083, %v2918
      %v3085 = vpop.permute.xlu0 %3084
      %3088 = vset.pattern.permute.xlu0 0
      %3089 = vperm.xlu0 %3088, %v2919
      %v3090 = vpop.permute.xlu0 %3089
      %3093 = vset.pattern.permute.xlu0 0
      %3094 = vperm.xlu0 %3093, %v2920
      %v3095 = vpop.permute.xlu0 %3094
      %3098 = vset.pattern.permute.xlu0 0
      %3099 = vperm.xlu0 %3098, %v2921
      %v3100 = vpop.permute.xlu0 %3099
      %v3102 = vmul.f32 %v2850, %v2925
      %v3103 = vmul.f32 %v2851, %v2930
      %v3104 = vmul.f32 %v2852, %v2935
      %v3105 = vmul.f32 %v2853, %v2940
      %v3106 = vmul.f32 %v2854, %v2945
      %v3107 = vmul.f32 %v2855, %v2950
      %v3108 = vmul.f32 %v2856, %v2955
      %v3109 = vmul.f32 %v2857, %v2960
      %v3110 = vmul.f32 %v2858, %v2965
      %v3111 = vmul.f32 %v2859, %v2970
      %v3112 = vmul.f32 %v2860, %v2975
      %v3113 = vmul.f32 %v2861, %v2980
      %v3114 = vmul.f32 %v2862, %v2985
      %v3115 = vmul.f32 %v2863, %v2990
      %v3116 = vmul.f32 %v2864, %v2995
      %v3117 = vmul.f32 %v2865, %v3000
      %v3118 = vmul.f32 %v2866, %v3005
      %v3119 = vmul.f32 %v2867, %v3010
      %v3120 = vmul.f32 %v2868, %v3015
      %v3121 = vmul.f32 %v2869, %v3020
      %v3122 = vmul.f32 %v2870, %v3025
      %v3123 = vmul.f32 %v2871, %v3030
      %v3124 = vmul.f32 %v2872, %v3035
      %v3125 = vmul.f32 %v2873, %v3040
      %v3126 = vmul.f32 %v2874, %v3045
      %v3127 = vmul.f32 %v2875, %v3050
      %v3128 = vmul.f32 %v2876, %v3055
      %v3129 = vmul.f32 %v2877, %v3060
      %v3130 = vmul.f32 %v2878, %v3065
      %v3131 = vmul.f32 %v2879, %v3070
      %v3132 = vmul.f32 %v2880, %v3075
      %v3133 = vmul.f32 %v2881, %v3080
      %v3134 = vmul.f32 %v2882, %v3085
      %v3135 = vmul.f32 %v2883, %v3090
      %v3136 = vmul.f32 %v2884, %v3095
      %v3137 = vmul.f32 %v2885, %v3100
      %v3138 = vsel %vm1028, %v3102, 0.0
      %v3139 = vsel %vm1028, %v3103, 0.0
      %v3140 = vadd.f32 %v3138, %v3139
      %v3141 = vsel %vm1028, %v3104, 0.0
      %v3142 = vadd.f32 %v3140, %v3141
      %v3143 = vsel %vm1028, %v3105, 0.0
      %v3144 = vadd.f32 %v3142, %v3143
      %v3145 = vsel %vm1028, %v3106, 0.0
      %v3146 = vadd.f32 %v3144, %v3145
      %v3147 = vsel %vm1028, %v3107, 0.0
      %v3148 = vadd.f32 %v3146, %v3147
      %v3149 = vsel %vm1028, %v3108, 0.0
      %v3150 = vadd.f32 %v3148, %v3149
      %v3151 = vsel %vm1028, %v3109, 0.0
      %v3152 = vadd.f32 %v3150, %v3151
      %v3153 = vsel %vm1028, %v3110, 0.0
      %v3154 = vadd.f32 %v3152, %v3153
      %v3155 = vsel %vm1028, %v3111, 0.0
      %v3156 = vadd.f32 %v3154, %v3155
      %v3157 = vsel %vm1028, %v3112, 0.0
      %v3158 = vadd.f32 %v3156, %v3157
      %v3159 = vsel %vm1028, %v3113, 0.0
      %v3160 = vadd.f32 %v3158, %v3159
      %v3161 = vsel %vm1028, %v3114, 0.0
      %v3162 = vadd.f32 %v3160, %v3161
      %v3163 = vsel %vm1028, %v3115, 0.0
      %v3164 = vadd.f32 %v3162, %v3163
      %v3165 = vsel %vm1028, %v3116, 0.0
      %v3166 = vadd.f32 %v3164, %v3165
      %v3167 = vsel %vm1028, %v3117, 0.0
      %v3168 = vadd.f32 %v3166, %v3167
      %v3169 = vsel %vm1028, %v3118, 0.0
      %v3170 = vadd.f32 %v3168, %v3169
      %v3171 = vsel %vm1028, %v3119, 0.0
      %v3172 = vadd.f32 %v3170, %v3171
      %v3173 = vsel %vm1028, %v3120, 0.0
      %v3174 = vadd.f32 %v3172, %v3173
      %v3175 = vsel %vm1028, %v3121, 0.0
      %v3176 = vadd.f32 %v3174, %v3175
      %v3177 = vsel %vm1028, %v3122, 0.0
      %v3178 = vadd.f32 %v3176, %v3177
      %v3179 = vsel %vm1028, %v3123, 0.0
      %v3180 = vadd.f32 %v3178, %v3179
      %v3181 = vsel %vm1028, %v3124, 0.0
      %v3182 = vadd.f32 %v3180, %v3181
      %v3183 = vsel %vm1028, %v3125, 0.0
      %v3184 = vadd.f32 %v3182, %v3183
      %v3185 = vsel %vm1028, %v3126, 0.0
      %v3186 = vadd.f32 %v3184, %v3185
      %v3187 = vsel %vm1028, %v3127, 0.0
      %v3188 = vadd.f32 %v3186, %v3187
      %v3189 = vsel %vm1028, %v3128, 0.0
      %v3190 = vadd.f32 %v3188, %v3189
      %v3191 = vsel %vm1028, %v3129, 0.0
      %v3192 = vadd.f32 %v3190, %v3191
      %v3193 = vsel %vm1028, %v3130, 0.0
      %v3194 = vadd.f32 %v3192, %v3193
      %v3195 = vsel %vm1028, %v3131, 0.0
      %v3196 = vadd.f32 %v3194, %v3195
      %v3197 = vsel %vm1028, %v3132, 0.0
      %v3198 = vadd.f32 %v3196, %v3197
      %v3199 = vsel %vm1028, %v3133, 0.0
      %v3200 = vadd.f32 %v3198, %v3199
      %v3201 = vsel %vm1028, %v3134, 0.0
      %v3202 = vadd.f32 %v3200, %v3201
      %v3203 = vsel %vm1028, %v3135, 0.0
      %v3204 = vadd.f32 %v3202, %v3203
      %v3205 = vsel %vm1028, %v3136, 0.0
      %v3206 = vadd.f32 %v3204, %v3205
      %vm3207 = vcmask 62464
      %v3208 = vsel %vm3207, %v3137, 0.0
      %v3209 = vadd.f32 %v3206, %v3208
      %v3210 = vrot.slane %v3209, 4
      %v3211 = vadd.f32 %v3209, %v3210
      %v3212 = vrot.slane %v3211, 2
      %v3213 = vadd.f32 %v3211, %v3212
      %v3214 = vrot.slane %v3213, 1
      %v3215 = vadd.f32 %v3213, %v3214
      %v3216 = vmul.f32 %v3102, %v2850
      %v3217 = vmul.f32 %v3103, %v2851
      %v3218 = vmul.f32 %v3104, %v2852
      %v3219 = vmul.f32 %v3105, %v2853
      %v3220 = vmul.f32 %v3106, %v2854
      %v3221 = vmul.f32 %v3107, %v2855
      %v3222 = vmul.f32 %v3108, %v2856
      %v3223 = vmul.f32 %v3109, %v2857
      %v3224 = vmul.f32 %v3110, %v2858
      %v3225 = vmul.f32 %v3111, %v2859
      %v3226 = vmul.f32 %v3112, %v2860
      %v3227 = vmul.f32 %v3113, %v2861
      %v3228 = vmul.f32 %v3114, %v2862
      %v3229 = vmul.f32 %v3115, %v2863
      %v3230 = vmul.f32 %v3116, %v2864
      %v3231 = vmul.f32 %v3117, %v2865
      %v3232 = vmul.f32 %v3118, %v2866
      %v3233 = vmul.f32 %v3119, %v2867
      %v3234 = vmul.f32 %v3120, %v2868
      %v3235 = vmul.f32 %v3121, %v2869
      %v3236 = vmul.f32 %v3122, %v2870
      %v3237 = vmul.f32 %v3123, %v2871
      %v3238 = vmul.f32 %v3124, %v2872
      %v3239 = vmul.f32 %v3125, %v2873
      %v3240 = vmul.f32 %v3126, %v2874
      %v3241 = vmul.f32 %v3127, %v2875
      %v3242 = vmul.f32 %v3128, %v2876
      %v3243 = vmul.f32 %v3129, %v2877
      %v3244 = vmul.f32 %v3130, %v2878
      %v3245 = vmul.f32 %v3131, %v2879
      %v3246 = vmul.f32 %v3132, %v2880
      %v3247 = vmul.f32 %v3133, %v2881
      %v3248 = vmul.f32 %v3134, %v2882
      %v3249 = vmul.f32 %v3135, %v2883
      %v3250 = vmul.f32 %v3136, %v2884
      %v3251 = vmul.f32 %v3137, %v2885
      %v3252 = vsel %vm1028, %v3216, 0.0
      %v3253 = vsel %vm1028, %v3217, 0.0
      %v3254 = vadd.f32 %v3252, %v3253
      %v3255 = vsel %vm1028, %v3218, 0.0
      %v3256 = vadd.f32 %v3254, %v3255
      %v3257 = vsel %vm1028, %v3219, 0.0
      %v3258 = vadd.f32 %v3256, %v3257
      %v3259 = vsel %vm1028, %v3220, 0.0
      %v3260 = vadd.f32 %v3258, %v3259
      %v3261 = vsel %vm1028, %v3221, 0.0
      %v3262 = vadd.f32 %v3260, %v3261
      %v3263 = vsel %vm1028, %v3222, 0.0
      %v3264 = vadd.f32 %v3262, %v3263
      %v3265 = vsel %vm1028, %v3223, 0.0
      %v3266 = vadd.f32 %v3264, %v3265
      %v3267 = vsel %vm1028, %v3224, 0.0
      %v3268 = vadd.f32 %v3266, %v3267
      %v3269 = vsel %vm1028, %v3225, 0.0
      %v3270 = vadd.f32 %v3268, %v3269
      %v3271 = vsel %vm1028, %v3226, 0.0
      %v3272 = vadd.f32 %v3270, %v3271
      %v3273 = vsel %vm1028, %v3227, 0.0
      %v3274 = vadd.f32 %v3272, %v3273
      %v3275 = vsel %vm1028, %v3228, 0.0
      %v3276 = vadd.f32 %v3274, %v3275
      %v3277 = vsel %vm1028, %v3229, 0.0
      %v3278 = vadd.f32 %v3276, %v3277
      %v3279 = vsel %vm1028, %v3230, 0.0
      %v3280 = vadd.f32 %v3278, %v3279
      %v3281 = vsel %vm1028, %v3231, 0.0
      %v3282 = vadd.f32 %v3280, %v3281
      %v3283 = vsel %vm1028, %v3232, 0.0
      %v3284 = vadd.f32 %v3282, %v3283
      %v3285 = vsel %vm1028, %v3233, 0.0
      %v3286 = vadd.f32 %v3284, %v3285
      %v3287 = vsel %vm1028, %v3234, 0.0
      %v3288 = vadd.f32 %v3286, %v3287
      %v3289 = vsel %vm1028, %v3235, 0.0
      %v3290 = vadd.f32 %v3288, %v3289
      %v3291 = vsel %vm1028, %v3236, 0.0
      %v3292 = vadd.f32 %v3290, %v3291
      %v3293 = vsel %vm1028, %v3237, 0.0
      %v3294 = vadd.f32 %v3292, %v3293
      %v3295 = vsel %vm1028, %v3238, 0.0
      %v3296 = vadd.f32 %v3294, %v3295
      %v3297 = vsel %vm1028, %v3239, 0.0
      %v3298 = vadd.f32 %v3296, %v3297
      %v3299 = vsel %vm1028, %v3240, 0.0
      %v3300 = vadd.f32 %v3298, %v3299
      %v3301 = vsel %vm1028, %v3241, 0.0
      %v3302 = vadd.f32 %v3300, %v3301
      %v3303 = vsel %vm1028, %v3242, 0.0
      %v3304 = vadd.f32 %v3302, %v3303
      %v3305 = vsel %vm1028, %v3243, 0.0
      %v3306 = vadd.f32 %v3304, %v3305
      %v3307 = vsel %vm1028, %v3244, 0.0
      %v3308 = vadd.f32 %v3306, %v3307
      %v3309 = vsel %vm1028, %v3245, 0.0
      %v3310 = vadd.f32 %v3308, %v3309
      %v3311 = vsel %vm1028, %v3246, 0.0
      %v3312 = vadd.f32 %v3310, %v3311
      %v3313 = vsel %vm1028, %v3247, 0.0
      %v3314 = vadd.f32 %v3312, %v3313
      %v3315 = vsel %vm1028, %v3248, 0.0
      %v3316 = vadd.f32 %v3314, %v3315
      %v3317 = vsel %vm1028, %v3249, 0.0
      %v3318 = vadd.f32 %v3316, %v3317
      %v3319 = vsel %vm1028, %v3250, 0.0
      %v3320 = vadd.f32 %v3318, %v3319
      %v3321 = vsel %vm3207, %v3251, 0.0
      %v3322 = vadd.f32 %v3320, %v3321
      %v3323 = vrot.slane %v3322, 4
      %v3324 = vadd.f32 %v3322, %v3323
      %v3325 = vrot.slane %v3324, 2
      %v3326 = vadd.f32 %v3324, %v3325
      %v3327 = vrot.slane %v3326, 1
      %v3328 = vadd.f32 %v3326, %v3327
      %vm3329 = vcmask 1040384
      %v3330 = vsel %vm3329, %v3215, %v3328
      %vm3331 = vcmask 58368
      %3332 = vst.msk [vmem:[%s289] sm:$0x3] %vm3331, %v3330
      %3333 = vst.msk [vmem:[%s285] sm:$0xff] %vm1028, %v2850
      %3334 = vst.msk [vmem:[%s285 + $0x8] sm:$0xff] %vm1028, %v2851
      %3335 = vst.msk [vmem:[%s285 + $0x10] sm:$0xff] %vm1028, %v2852
      %3336 = vst.msk [vmem:[%s285 + $0x18] sm:$0xff] %vm1028, %v2853
      %3337 = vst.msk [vmem:[%s285 + $0x20] sm:$0xff] %vm1028, %v2854
      %3338 = vst.msk [vmem:[%s285 + $0x28] sm:$0xff] %vm1028, %v2855
      %3339 = vst.msk [vmem:[%s285 + $0x30] sm:$0xff] %vm1028, %v2856
      %3340 = vst.msk [vmem:[%s285 + $0x38] sm:$0xff] %vm1028, %v2857
      %3341 = vst.msk [vmem:[%s285 + $0x40] sm:$0xff] %vm1028, %v2858
      %3342 = vst.msk [vmem:[%s285 + $0x48] sm:$0xff] %vm1028, %v2859
      %3343 = vst.msk [vmem:[%s285 + $0x50] sm:$0xff] %vm1028, %v2860
      %3344 = vst.msk [vmem:[%s285 + $0x58] sm:$0xff] %vm1028, %v2861
      %3345 = vst.msk [vmem:[%s285 + $0x60] sm:$0xff] %vm1028, %v2862
      %3346 = vst.msk [vmem:[%s285 + $0x68] sm:$0xff] %vm1028, %v2863
      %3347 = vst.msk [vmem:[%s285 + $0x70] sm:$0xff] %vm1028, %v2864
      %3348 = vst.msk [vmem:[%s285 + $0x78] sm:$0xff] %vm1028, %v2865
      %3349 = vst.msk [vmem:[%s285 + $0x80] sm:$0xff] %vm1028, %v2866
      %3350 = vst.msk [vmem:[%s285 + $0x88] sm:$0xff] %vm1028, %v2867
      %3351 = vst.msk [vmem:[%s285 + $0x90] sm:$0xff] %vm1028, %v2868
      %3352 = vst.msk [vmem:[%s285 + $0x98] sm:$0xff] %vm1028, %v2869
      %3353 = vst.msk [vmem:[%s285 + $0xa0] sm:$0xff] %vm1028, %v2870
      %3354 = vst.msk [vmem:[%s285 + $0xa8] sm:$0xff] %vm1028, %v2871
      %3355 = vst.msk [vmem:[%s285 + $0xb0] sm:$0xff] %vm1028, %v2872
      %3356 = vst.msk [vmem:[%s285 + $0xb8] sm:$0xff] %vm1028, %v2873
      %3357 = vst.msk [vmem:[%s285 + $0xc0] sm:$0xff] %vm1028, %v2874
      %3358 = vst.msk [vmem:[%s285 + $0xc8] sm:$0xff] %vm1028, %v2875
      %3359 = vst.msk [vmem:[%s285 + $0xd0] sm:$0xff] %vm1028, %v2876
      %3360 = vst.msk [vmem:[%s285 + $0xd8] sm:$0xff] %vm1028, %v2877
      %3361 = vst.msk [vmem:[%s285 + $0xe0] sm:$0xff] %vm1028, %v2878
      %3362 = vst.msk [vmem:[%s285 + $0xe8] sm:$0xff] %vm1028, %v2879
      %3363 = vst.msk [vmem:[%s285 + $0xf0] sm:$0xff] %vm1028, %v2880
      %3364 = vst.msk [vmem:[%s285 + $0xf8] sm:$0xff] %vm1028, %v2881
      %3365 = vst.msk [vmem:[%s285 + $0x100] sm:$0xff] %vm1028, %v2882
      %3366 = vst.msk [vmem:[%s285 + $0x108] sm:$0xff] %vm1028, %v2883
      %3367 = vst.msk [vmem:[%s285 + $0x110] sm:$0xff] %vm1028, %v2884
      %3368 = vst.msk [vmem:[%s285 + $0x118] sm:$0x3f] %vm3207, %v2885
      %p3369 = scmp.lt.s32.totalorder %s19, 1
      %s3370 = scalar_select %p3369, %s19, 1
      %s3371 = smul.addr %s3370, 36
      %s3372 = smul.addr %s3371, 8
      %s3373 = scalar_lea.vmem %s6, %s3372
      %p3374 = scmp.lt.s32.totalorder %s19, 1
      %s3375 = scalar_select %p3374, %s19, 1
      %s3376 = smul.addr %s3375, 2
      %s3377 = scalar_lea.vmem %s7, %s3376
      // Predicated region
      $region45: #{resblk_forward.4} parent=43 // pred_check
        %p3378 = pneg %p168
      $region46: #{resblk_forward.4} parent=43 // pred_check_branch
        %3380 = sbr.rel (%p3378) target = $region48
      $region47: #{resblk_forward.4} parent=43 // pred_region
        _
      $region48: #{resblk_forward.4} parent=43 // pred_fallthru
        _
      // Predicated region
      $region49: #{resblk_forward.4} parent=43 // pred_check
        %p3381 = pneg %p194
      $region50: #{resblk_forward.4} parent=43 // pred_check_branch
        %3383 = sbr.rel (%p3381) target = $region52
      $region51: #{resblk_forward.4} parent=43 // pred_region
        _
      $region52: #{resblk_forward.4} parent=43 // pred_fallthru
        _
    $region44: #{resblk_forward.4} parent=5 // pred_fallthru
      _
    %p3384 = scmp.le.s32.totalorder 2, %s14
    // Predicated region
    $region53: #{resblk_forward.4} parent=5 // pred_check
      %p3385 = pneg %p3384
    $region54: #{resblk_forward.4} parent=5 // pred_check_branch
      %3387 = sbr.rel (%p3385) target = $region56
    $region55: #{resblk_forward.4} parent=5 // pred_region
      %s3388 = ssub.s32 %s14, 2
      // Predicated region
      $region57: #{resblk_forward.4} parent=55 // pred_check
        %p3389 = pneg %p174
      $region58: #{resblk_forward.4} parent=55 // pred_check_branch
        %3391 = sbr.rel (%p3389) target = $region60
      $region59: #{resblk_forward.4} parent=55 // pred_region
        %p3392 = scmp.lt.s32.totalorder %s20, 1
        %s3393 = scalar_select %p3392, %s20, 1
        %s3394 = smul.addr %s3393, 36
        %s3395 = smul.addr %s3394, 8
        %s3396 = scalar_lea.vmem %s6, %s3395
      $region60: #{resblk_forward.4} parent=55 // pred_fallthru
        _
      // Predicated region
      $region61: #{resblk_forward.4} parent=55 // pred_check
        %p3397 = pneg %p200
      $region62: #{resblk_forward.4} parent=55 // pred_check_branch
        %3399 = sbr.rel (%p3397) target = $region64
      $region63: #{resblk_forward.4} parent=55 // pred_region
        %p3400 = scmp.lt.s32.totalorder %s20, 1
        %s3401 = scalar_select %p3400, %s20, 1
        %s3402 = smul.addr %s3401, 2
        %s3403 = scalar_lea.vmem %s7, %s3402
      $region64: #{resblk_forward.4} parent=55 // pred_fallthru
        _
    $region56: #{resblk_forward.4} parent=5 // pred_fallthru
      _
  $region6: #{resblk_forward.4} parent=0 // loop_footer
    %s18 = sadd.s32 1, %s14
  $region7: #{resblk_forward.4} parent=0 // loop_footer_branch
    %13 = sbr.rel target = $region3
  $region8: #{resblk_forward.4} parent=0 // loop_exit
    _

</llo_original>
